<compile_context>
chip_gen: v7x
topology: tpu7x:2x2x1
jax: 0.10.0
libtpu: 0.0.40
codegen_flags: <defaults>
</compile_context>

<pallas_src>
import functools

import jax
import jax.numpy as jnp
from jax.experimental import pallas as pl
from jax.experimental.pallas import tpu as pltpu


_VPU_ADJ_MAX_N = 32   # below this, the adjacency contraction runs on the VPU


def _sigmoid(z):
    # Single-tanh sigmoid: one EUP transcendental instead of exp + divide.
    return 0.5 * (jnp.tanh(0.5 * z) + 1.0)


def _ggc_kernel(x_ref, adj_ref,
                w_x2_ref, b_x2_ref,      # [W_ux | W_rx]            (D, 2D) / (1, 2D)
                w_iy3_ref, b_iy3_ref,    # W_inp@[W_uy|W_ry|W_ty],  (D, 3D) / (1, 3D)
                b_y3_ref,                # [b_uy | b_ry | b_ty]     (1, 3D)
                w_tx_ref, b_tx_ref,      # W_tx                     (D, D) / (1, D)
                out_ref,
                *, vpu_adj):
    """One batch block: x (Bb, N, D), adj (Bb, N, N), out (Bb, N, D)."""
    bb, n, d = x_ref.shape
    m = bb * n
    cdt = x_ref.dtype                     # compute dtype (e.g. bf16) for MXU operands

    x3 = x_ref[...]                       # (Bb, N, D)
    adj = adj_ref[...]                    # (Bb, N, N)
    x3_f32 = x3.astype(jnp.float32)
    adj_f32 = adj.astype(jnp.float32)
    x2 = x3.reshape(m, d)                 # tall MXU LHS
    x_f32 = x3_f32.reshape(m, d)

    # x-side fused gate linears: columns [fc_u_x | fc_r_x], f32 accumulation.
    xh = (jnp.dot(x2, w_x2_ref[...], preferred_element_type=jnp.float32)
          + b_x2_ref[...])                                   # (M, 2D) f32

    # z = adj @ x. For tiny N the Bb-way batched matmul wastes MXU passes, so
    # run the contraction on the VPU (broadcast over j, reduce over j).
    if vpu_adj:
        z = jnp.sum(adj_f32[:, :, :, None] * x3_f32[:, None, :, :], axis=2)
    else:
        z = jnp.einsum("bij,bjd->bid", adj, x3,
                       preferred_element_type=jnp.float32)   # (Bb, N, D) f32
    z2 = z.reshape(m, d).astype(cdt)

    # fc_inp is folded into the y-side linears (W_iy3 = W_inp @ W_y3); its bias
    # contribution becomes rowsum(adj) * (b_inp @ W_y3).
    adj_rowsum = jnp.sum(adj_f32, axis=2, keepdims=True).reshape(m, 1)   # (M, 1)
    yh = (jnp.dot(z2, w_iy3_ref[...], preferred_element_type=jnp.float32)
          + adj_rowsum * b_iy3_ref[...]
          + b_y3_ref[...])                                   # (M, 3D) f32

    # Gating — elementwise math kept in f32 (v5e VPU/EUP has no bf16).
    u = _sigmoid(yh[:, :d] + xh[:, :d])
    r = _sigmoid(yh[:, d:2 * d] + xh[:, d:])
    rx = (r * x_f32).astype(cdt)
    x_tmp = jnp.tanh(yh[:, 2 * d:]
                     + jnp.dot(rx, w_tx_ref[...], preferred_element_type=jnp.float32)
                     + b_tx_ref[...])
    out = (1.0 - u) * x_f32 + u * x_tmp

    out_ref[...] = out.reshape(bb, n, d).astype(out_ref.dtype)


def _tpu_vmem_and_cores():
    """(per-TensorCore VMEM bytes, assume-2-TC?) with safe fallbacks."""
    vmem = 128 * 1024 * 1024
    try:
        info = pltpu.get_tpu_info()
        vmem = int(getattr(info, "vmem_capacity_bytes", vmem))
    except Exception:
        pass
    # v7x is the only generation with 2 TensorCores per chip; it is also the
    # only one with 64 MiB VMEM per TC, so VMEM size is a safe proxy.
    two_cores = vmem < 100 * 1024 * 1024
    return vmem, two_cores


def _estimate_vmem_bytes(bb, n, d, c_item, out_item, vpu_adj,
                         weights_double_buffered):
    """Rough VMEM need: pipelined blocks + weights + in-kernel f32 temporaries."""
    m = bb * n
    x_blk = m * d * c_item
    adj_blk = bb * n * n * c_item
    out_blk = m * d * out_item
    pipelined = 2 * (x_blk + adj_blk + out_blk)             # double-buffered grid I/O
    w_bytes = (d * 2 * d + d * 3 * d + d * d) * c_item      # W_x2, W_iy3, W_tx
    w_bytes += (2 * d + 3 * d + 3 * d + d) * 4              # f32 biases
    if weights_double_buffered:
        w_bytes *= 2
    # f32 intermediates: xh (M,2D), yh (M,3D), z/x_f32/u/r/x_tmp/out (M,D)-ish.
    temps = 11 * m * d * 4
    if vpu_adj:
        temps += bb * n * n * d * 4                         # adj (x) x broadcast product
    return pipelined + w_bytes + temps


def _choose_batch_block(batch, nodes, dim, c_item, out_item, vpu_adj,
                        vmem_budget, two_cores):
    """Target ~2048 MXU LHS rows (M = Bb*N) per step, bounded by the VMEM budget."""
    bb = max(1, min(batch, pl.cdiv(2048, max(nodes, 1))))
    while bb > 1 and _estimate_vmem_bytes(
            bb, nodes, dim, c_item, out_item, vpu_adj,
            weights_double_buffered=True) > vmem_budget:
        bb = max(1, bb // 2)
    # Split only on multi-TensorCore chips (v7x), and only when each half still
    # feeds the MXU >= 1024 rows.  On 1-TC v5e/v6e keep the full tile.
    if two_cores and pl.cdiv(batch, bb) < 2 and (bb // 2) * nodes >= 1024:
        bb = max(1, bb // 2)
    return bb


def gated_graph_conv_net(inputs, adj_mat, params, *, compute_dtype=None,
                         out_dtype=None, batch_block=None):
    """inputs: (B, N, D), adj_mat: (B, N, N), params: dict of (D,D)/(1,D) arrays."""
    B, N, D = inputs.shape
    assert adj_mat.shape == (B, N, N)
    cdt = jnp.dtype(compute_dtype) if compute_dtype is not None else jnp.dtype(inputs.dtype)
    odt = jnp.dtype(out_dtype) if out_dtype is not None else jnp.dtype(inputs.dtype)

    vmem_cap, two_cores = _tpu_vmem_and_cores()
    vmem_budget = int(vmem_cap * 0.8)          # headroom for Mosaic internals
    vpu_adj = N <= _VPU_ADJ_MAX_N

    # ---- wrapper-side weight fusion (all products in f32, cast last) ----
    w_y3_f32 = jnp.concatenate(
        [params["w_u_y"], params["w_r_y"], params["w_t_y"]], axis=1).astype(jnp.float32)
    w_iy3 = (params["w_inp"].astype(jnp.float32) @ w_y3_f32).astype(cdt)   # (D, 3D)
    b_iy3 = params["b_inp"].astype(jnp.float32) @ w_y3_f32                 # (1, 3D) f32
    b_y3 = jnp.concatenate(
        [params["b_u_y"], params["b_r_y"], params["b_t_y"]], axis=1).astype(jnp.float32)
    w_x2 = jnp.concatenate([params["w_u_x"], params["w_r_x"]], axis=1).astype(cdt)
    b_x2 = jnp.concatenate([params["b_u_x"], params["b_r_x"]], axis=1).astype(jnp.float32)
    w_tx = params["w_t_x"].astype(cdt)
    b_tx = params["b_t_x"].astype(jnp.float32)

    x_c = inputs.astype(cdt)
    adj_c = adj_mat.astype(cdt)

    if batch_block is not None:
        bb = max(1, min(int(batch_block), B))
    else:
        bb = _choose_batch_block(B, N, D, cdt.itemsize, odt.itemsize,
                                 vpu_adj, vmem_budget, two_cores)

    grid_b = pl.cdiv(B, bb)
    b_pad = grid_b * bb
    if b_pad != B:        # pad awkward batch sizes instead of collapsing the tile
        x_c = jnp.pad(x_c, ((0, b_pad - B), (0, 0), (0, 0)))
        adj_c = jnp.pad(adj_c, ((0, b_pad - B), (0, 0), (0, 0)))

    est = _estimate_vmem_bytes(bb, N, D, cdt.itemsize, odt.itemsize, vpu_adj,
                               weights_double_buffered=True)
    vmem_limit = int(min(vmem_budget, max(32 * 1024 * 1024, 2 * est)))

    args = (x_c, adj_c, w_x2, b_x2, w_iy3, b_iy3, b_y3, w_tx, b_tx)

    def build(single_buffer_weights, use_vpu_adj):
        wkw = {"pipeline_mode": pl.Buffered(1)} if single_buffer_weights else {}

        def wspec(shape):
            return pl.BlockSpec(shape, lambda b: (0,) * len(shape), **wkw)

        in_specs = [
            pl.BlockSpec((bb, N, D), lambda b: (b, 0, 0)),      # x block
            pl.BlockSpec((bb, N, N), lambda b: (b, 0, 0)),      # adj block
            wspec((D, 2 * D)), wspec((1, 2 * D)),               # fused x-side gates
            wspec((D, 3 * D)), wspec((1, 3 * D)),               # fused (inp o y)-side
            wspec((1, 3 * D)),                                  # y-side biases
            wspec((D, D)), wspec((1, D)),                       # W_tx / b_tx
        ]
        return pl.pallas_call(
            functools.partial(_ggc_kernel, vpu_adj=use_vpu_adj),
            out_shape=jax.ShapeDtypeStruct((b_pad, N, D), odt),
            grid=(grid_b,),
            in_specs=in_specs,
            out_specs=pl.BlockSpec((bb, N, D), lambda b: (b, 0, 0)),
            compiler_params=pltpu.CompilerParams(
                dimension_semantics=("parallel",),
                vmem_limit_bytes=vmem_limit),
        )

    # Most-optimized config first; fall back to more conservative configs if a
    # feature (single-buffered weights / VPU adjacency) fails to lower locally.
    configs = [(True, vpu_adj), (False, vpu_adj)]
    if vpu_adj:
        configs.append((False, False))
    out = None
    last_err = None
    for sbw, vadj in configs:
        try:
            out = build(sbw, vadj)(*args)
            break
        except Exception as e:          # retry with a more conservative config
            last_err = e
    if out is None:
        raise last_err

    return out if b_pad == B else out[:B]


def init_params(dim, key):
    """Deterministic init mimicking torch.nn.Linear default (uniform +-1/sqrt(dim))."""
    bound = 1.0 / (dim ** 0.5)
    names = ["inp", "u_x", "u_y", "r_y", "r_x", "t_y", "t_x"]
    params = {}
    keys = jax.random.split(key, 2 * len(names))
    for i, name in enumerate(names):
        wk, bk = keys[2 * i], keys[2 * i + 1]
        # Stored transposed relative to torch (so the kernel does x @ W + b).
        params[f"w_{name}"] = jax.random.uniform(
            wk, (dim, dim), jnp.float32, minval=-bound, maxval=bound)
        params[f"b_{name}"] = jax.random.uniform(
            bk, (1, dim), jnp.float32, minval=-bound, maxval=bound)
    return params


def _reference(inputs, adj_mat, params):
    """Pure-JAX reference (mirrors the PyTorch forward, no fusion)."""
    def lin(v, name):
        return v @ params[f"w_{name}"] + params[f"b_{name}"]

    y = jnp.matmul(adj_mat, lin(inputs, "inp"))
    u = jax.nn.sigmoid(lin(y, "u_y") + lin(inputs, "u_x"))
    r = jax.nn.sigmoid(lin(y, "r_y") + lin(inputs, "r_x"))
    x_tmp = jnp.tanh(lin(y, "t_y") + lin(r * inputs, "t_x"))
    return (1.0 - u) * inputs + u * x_tmp


if __name__ == "__main__":
    # batch, graph nodes, feature dim (D=128 keeps output stores lane-dense;
    # on v6e/v7x prefer D a multiple of 256 for full MXU contraction depth).
    B, N, D = 8, 16, 128

    key = jax.random.PRNGKey(0)
    k_x, k_adj, k_params = jax.random.split(key, 3)

    inputs = jax.random.normal(k_x, (B, N, D), jnp.float32)
    adj_mat = jax.random.uniform(k_adj, (B, N, N), jnp.float32)
    params = init_params(D, k_params)

    ref = jax.block_until_ready(_reference(inputs, adj_mat, params))

    # f32 compute / f32 output.
    out = jax.block_until_ready(gated_graph_conv_net(inputs, adj_mat, params))
    assert out.shape == (B, N, D)
    assert jnp.allclose(out, ref, atol=2e-2, rtol=2e-2), "f32 mismatch vs reference"

    # Awkward batch size (exercises batch padding + a multi-step parallel grid).
    out_pad = jax.block_until_ready(
        gated_graph_conv_net(inputs[:5], adj_mat[:5], params, batch_block=4))
    assert out_pad.shape == (5, N, D)
    assert jnp.allclose(out_pad, ref[:5], atol=2e-2, rtol=2e-2), "padded-batch mismatch"

    # bf16 MXU operands + bf16 output (perf path); f32 accumulation / f32 gating.
    out_bf16 = jax.block_until_ready(
        gated_graph_conv_net(inputs, adj_mat, params,
                             compute_dtype=jnp.bfloat16, out_dtype=jnp.bfloat16))
    assert out_bf16.dtype == jnp.bfloat16
    assert jnp.allclose(out_bf16.astype(jnp.float32), ref,
                        atol=3e-1, rtol=1e-1), "bf16 mismatch vs reference"

    print("KERNEL_OK")
</pallas_src>

<mosaic_0001>
module attributes {stable_mosaic.version = 11 : i64} {
  func.func @_ggc_kernel(%arg0: i32, %arg1: memref<8x16x128xf32, #tpu.memory_space<vmem>>, %arg2: memref<8x16x16xf32, #tpu.memory_space<vmem>>, %arg3: memref<128x256xf32, #tpu.memory_space<vmem>>, %arg4: memref<1x256xf32, #tpu.memory_space<vmem>>, %arg5: memref<128x384xf32, #tpu.memory_space<vmem>>, %arg6: memref<1x384xf32, #tpu.memory_space<vmem>>, %arg7: memref<1x384xf32, #tpu.memory_space<vmem>>, %arg8: memref<128x128xf32, #tpu.memory_space<vmem>>, %arg9: memref<1x128xf32, #tpu.memory_space<vmem>>, %arg10: memref<8x16x128xf32, #tpu.memory_space<vmem>>) attributes {dimension_semantics = [#tpu.dimension_semantics<parallel>], iteration_bounds = array<i64: 1>, scalar_prefetch = 0 : i64, scratch_operands = 0 : i64, tpu.core_type = #tpu.core_type<tc>, window_params = [{transform_indices = @transform_0, window_bounds = array<i64: 8, 16, 128>}, {transform_indices = @transform_1, window_bounds = array<i64: 8, 16, 16>}, {pipeline_mode = #tpu.pipeline_mode<synchronous>, transform_indices = @transform_2, window_bounds = array<i64: 128, 256>}, {pipeline_mode = #tpu.pipeline_mode<synchronous>, transform_indices = @transform_3, window_bounds = array<i64: 1, 256>}, {pipeline_mode = #tpu.pipeline_mode<synchronous>, transform_indices = @transform_4, window_bounds = array<i64: 128, 384>}, {pipeline_mode = #tpu.pipeline_mode<synchronous>, transform_indices = @transform_5, window_bounds = array<i64: 1, 384>}, {pipeline_mode = #tpu.pipeline_mode<synchronous>, transform_indices = @transform_6, window_bounds = array<i64: 1, 384>}, {pipeline_mode = #tpu.pipeline_mode<synchronous>, transform_indices = @transform_7, window_bounds = array<i64: 128, 128>}, {pipeline_mode = #tpu.pipeline_mode<synchronous>, transform_indices = @transform_8, window_bounds = array<i64: 1, 128>}, {transform_indices = @transform_9, window_bounds = array<i64: 8, 16, 128>}]} {
    %c0 = arith.constant 0 : index
    %c0_0 = arith.constant 0 : index
    %c0_1 = arith.constant 0 : index
    %0 = vector.load %arg1[%c0, %c0_0, %c0_1] : memref<8x16x128xf32, #tpu.memory_space<vmem>>, vector<8x16x128xf32>
    %c0_2 = arith.constant 0 : index
    %c0_3 = arith.constant 0 : index
    %c0_4 = arith.constant 0 : index
    %1 = vector.load %arg2[%c0_2, %c0_3, %c0_4] : memref<8x16x16xf32, #tpu.memory_space<vmem>>, vector<8x16x16xf32>
    %2 = vector.shape_cast %0 : vector<8x16x128xf32> to vector<128x128xf32>
    %3 = vector.shape_cast %0 : vector<8x16x128xf32> to vector<128x128xf32>
    %c0_5 = arith.constant 0 : index
    %c0_6 = arith.constant 0 : index
    %4 = vector.load %arg3[%c0_5, %c0_6] : memref<128x256xf32, #tpu.memory_space<vmem>>, vector<128x256xf32>
    %cst = arith.constant dense<0.000000e+00> : vector<128x256xf32>
    %5 = tpu.matmul %2, %4, %cst {dimension_numbers = #tpu.dot_dimension_numbers<[1], [0], [0], [1], [0, 0, 1, 1], [], []>} : vector<128x128xf32>, vector<128x256xf32>, vector<128x256xf32> -> vector<128x256xf32>
    %c0_7 = arith.constant 0 : index
    %c0_8 = arith.constant 0 : index
    %6 = vector.load %arg4[%c0_7, %c0_8] : memref<1x256xf32, #tpu.memory_space<vmem>>, vector<1x256xf32>
    %7 = vector.broadcast %6 : vector<1x256xf32> to vector<128x256xf32>
    %8 = arith.addf %5, %7 : vector<128x256xf32>
    %9 = vector.shape_cast %1 : vector<8x16x16xf32> to vector<8x16x16x1xf32>
    %10 = vector.shape_cast %0 : vector<8x16x128xf32> to vector<8x1x16x128xf32>
    %11 = vector.broadcast %9 : vector<8x16x16x1xf32> to vector<8x16x16x128xf32>
    %12 = vector.broadcast %10 : vector<8x1x16x128xf32> to vector<8x16x16x128xf32>
    %13 = arith.mulf %11, %12 : vector<8x16x16x128xf32>
    %cst_9 = arith.constant dense<0.000000e+00> : vector<8x16x128xf32>
    %14 = vector.multi_reduction <add>, %13, %cst_9 [2] : vector<8x16x16x128xf32> to vector<8x16x128xf32>
    %15 = vector.shape_cast %14 : vector<8x16x128xf32> to vector<128x128xf32>
    %cst_10 = arith.constant dense<0.000000e+00> : vector<8x16xf32>
    %16 = vector.multi_reduction <add>, %1, %cst_10 [2] : vector<8x16x16xf32> to vector<8x16xf32>
    %17 = vector.shape_cast %16 : vector<8x16xf32> to vector<8x16x1xf32>
    %18 = vector.shape_cast %17 : vector<8x16x1xf32> to vector<128x1xf32>
    %c0_11 = arith.constant 0 : index
    %c0_12 = arith.constant 0 : index
    %19 = vector.load %arg5[%c0_11, %c0_12] : memref<128x384xf32, #tpu.memory_space<vmem>>, vector<128x384xf32>
    %cst_13 = arith.constant dense<0.000000e+00> : vector<128x384xf32>
    %20 = tpu.matmul %15, %19, %cst_13 {dimension_numbers = #tpu.dot_dimension_numbers<[1], [0], [0], [1], [0, 0, 1, 1], [], []>} : vector<128x128xf32>, vector<128x384xf32>, vector<128x384xf32> -> vector<128x384xf32>
    %c0_14 = arith.constant 0 : index
    %c0_15 = arith.constant 0 : index
    %21 = vector.load %arg6[%c0_14, %c0_15] : memref<1x384xf32, #tpu.memory_space<vmem>>, vector<1x384xf32>
    %22 = vector.broadcast %18 : vector<128x1xf32> to vector<128x384xf32>
    %23 = vector.broadcast %21 : vector<1x384xf32> to vector<128x384xf32>
    %24 = arith.mulf %22, %23 : vector<128x384xf32>
    %25 = arith.addf %20, %24 : vector<128x384xf32>
    %c0_16 = arith.constant 0 : index
    %c0_17 = arith.constant 0 : index
    %26 = vector.load %arg7[%c0_16, %c0_17] : memref<1x384xf32, #tpu.memory_space<vmem>>, vector<1x384xf32>
    %27 = vector.broadcast %26 : vector<1x384xf32> to vector<128x384xf32>
    %28 = arith.addf %25, %27 : vector<128x384xf32>
    %29 = vector.extract_strided_slice %28 {offsets = [0, 0], sizes = [128, 128], strides = [1, 1]} : vector<128x384xf32> to vector<128x128xf32>
    %30 = vector.extract_strided_slice %8 {offsets = [0, 0], sizes = [128, 128], strides = [1, 1]} : vector<128x256xf32> to vector<128x128xf32>
    %31 = arith.addf %29, %30 : vector<128x128xf32>
    %cst_18 = arith.constant 5.000000e-01 : f32
    %32 = vector.broadcast %cst_18 : f32 to vector<128x128xf32>
    %33 = arith.mulf %32, %31 : vector<128x128xf32>
    %34 = math.tanh %33 : vector<128x128xf32>
    %cst_19 = arith.constant 1.000000e+00 : f32
    %35 = vector.broadcast %cst_19 : f32 to vector<128x128xf32>
    %36 = arith.addf %34, %35 : vector<128x128xf32>
    %cst_20 = arith.constant 5.000000e-01 : f32
    %37 = vector.broadcast %cst_20 : f32 to vector<128x128xf32>
    %38 = arith.mulf %37, %36 : vector<128x128xf32>
    %39 = vector.extract_strided_slice %28 {offsets = [0, 128], sizes = [128, 128], strides = [1, 1]} : vector<128x384xf32> to vector<128x128xf32>
    %40 = vector.extract_strided_slice %8 {offsets = [0, 128], sizes = [128, 128], strides = [1, 1]} : vector<128x256xf32> to vector<128x128xf32>
    %41 = arith.addf %39, %40 : vector<128x128xf32>
    %cst_21 = arith.constant 5.000000e-01 : f32
    %42 = vector.broadcast %cst_21 : f32 to vector<128x128xf32>
    %43 = arith.mulf %42, %41 : vector<128x128xf32>
    %44 = math.tanh %43 : vector<128x128xf32>
    %cst_22 = arith.constant 1.000000e+00 : f32
    %45 = vector.broadcast %cst_22 : f32 to vector<128x128xf32>
    %46 = arith.addf %44, %45 : vector<128x128xf32>
    %cst_23 = arith.constant 5.000000e-01 : f32
    %47 = vector.broadcast %cst_23 : f32 to vector<128x128xf32>
    %48 = arith.mulf %47, %46 : vector<128x128xf32>
    %49 = arith.mulf %48, %3 : vector<128x128xf32>
    %50 = vector.extract_strided_slice %28 {offsets = [0, 256], sizes = [128, 128], strides = [1, 1]} : vector<128x384xf32> to vector<128x128xf32>
    %c0_24 = arith.constant 0 : index
    %c0_25 = arith.constant 0 : index
    %51 = vector.load %arg8[%c0_24, %c0_25] : memref<128x128xf32, #tpu.memory_space<vmem>>, vector<128x128xf32>
    %cst_26 = arith.constant dense<0.000000e+00> : vector<128x128xf32>
    %52 = tpu.matmul %49, %51, %cst_26 {dimension_numbers = #tpu.dot_dimension_numbers<[1], [0], [0], [1], [0, 0, 1, 1], [], []>} : vector<128x128xf32>, vector<128x128xf32>, vector<128x128xf32> -> vector<128x128xf32>
    %53 = arith.addf %50, %52 : vector<128x128xf32>
    %c0_27 = arith.constant 0 : index
    %c0_28 = arith.constant 0 : index
    %54 = vector.load %arg9[%c0_27, %c0_28] : memref<1x128xf32, #tpu.memory_space<vmem>>, vector<1x128xf32>
    %55 = vector.broadcast %54 : vector<1x128xf32> to vector<128x128xf32>
    %56 = arith.addf %53, %55 : vector<128x128xf32>
    %57 = math.tanh %56 : vector<128x128xf32>
    %cst_29 = arith.constant 1.000000e+00 : f32
    %58 = vector.broadcast %cst_29 : f32 to vector<128x128xf32>
    %59 = arith.subf %58, %38 : vector<128x128xf32>
    %60 = arith.mulf %59, %3 : vector<128x128xf32>
    %61 = arith.mulf %38, %57 : vector<128x128xf32>
    %62 = arith.addf %60, %61 : vector<128x128xf32>
    %63 = vector.shape_cast %62 : vector<128x128xf32> to vector<8x16x128xf32>
    %c0_30 = arith.constant 0 : index
    %c0_31 = arith.constant 0 : index
    %c0_32 = arith.constant 0 : index
    %64 = vector.load %arg10[%c0_30, %c0_31, %c0_32] : memref<8x16x128xf32, #tpu.memory_space<vmem>>, vector<8x16x128xf32>
    tpu.vector_store %arg10[%c0_30, %c0_31, %c0_32], %63 {strides = array<i32>} : memref<8x16x128xf32, #tpu.memory_space<vmem>>, vector<8x16x128xf32>,
    return
  }
  func.func @transform_0(%arg0: i32) -> (i32, i32, i32) {
    %c0_i32 = arith.constant 0 : i32
    %c0_i32_0 = arith.constant 0 : i32
    %c0_i32_1 = arith.constant 0 : i32
    return %arg0, %c0_i32, %c0_i32_0 : i32, i32, i32
  }
  func.func @transform_1(%arg0: i32) -> (i32, i32, i32) {
    %c0_i32 = arith.constant 0 : i32
    %c0_i32_0 = arith.constant 0 : i32
    %c0_i32_1 = arith.constant 0 : i32
    return %arg0, %c0_i32, %c0_i32_0 : i32, i32, i32
  }
  func.func @transform_2(%arg0: i32) -> (i32, i32) {
    %c0_i32 = arith.constant 0 : i32
    %c0_i32_0 = arith.constant 0 : i32
    %c0_i32_1 = arith.constant 0 : i32
    return %c0_i32, %c0_i32_0 : i32, i32
  }
  func.func @transform_3(%arg0: i32) -> (i32, i32) {
    %c0_i32 = arith.constant 0 : i32
    %c0_i32_0 = arith.constant 0 : i32
    %c0_i32_1 = arith.constant 0 : i32
    return %c0_i32, %c0_i32_0 : i32, i32
  }
  func.func @transform_4(%arg0: i32) -> (i32, i32) {
    %c0_i32 = arith.constant 0 : i32
    %c0_i32_0 = arith.constant 0 : i32
    %c0_i32_1 = arith.constant 0 : i32
    return %c0_i32, %c0_i32_0 : i32, i32
  }
  func.func @transform_5(%arg0: i32) -> (i32, i32) {
    %c0_i32 = arith.constant 0 : i32
    %c0_i32_0 = arith.constant 0 : i32
    %c0_i32_1 = arith.constant 0 : i32
    return %c0_i32, %c0_i32_0 : i32, i32
  }
  func.func @transform_6(%arg0: i32) -> (i32, i32) {
    %c0_i32 = arith.constant 0 : i32
    %c0_i32_0 = arith.constant 0 : i32
    %c0_i32_1 = arith.constant 0 : i32
    return %c0_i32, %c0_i32_0 : i32, i32
  }
  func.func @transform_7(%arg0: i32) -> (i32, i32) {
    %c0_i32 = arith.constant 0 : i32
    %c0_i32_0 = arith.constant 0 : i32
    %c0_i32_1 = arith.constant 0 : i32
    return %c0_i32, %c0_i32_0 : i32, i32
  }
  func.func @transform_8(%arg0: i32) -> (i32, i32) {
    %c0_i32 = arith.constant 0 : i32
    %c0_i32_0 = arith.constant 0 : i32
    %c0_i32_1 = arith.constant 0 : i32
    return %c0_i32, %c0_i32_0 : i32, i32
  }
  func.func @transform_9(%arg0: i32) -> (i32, i32, i32) {
    %c0_i32 = arith.constant 0 : i32
    %c0_i32_0 = arith.constant 0 : i32
    %c0_i32_1 = arith.constant 0 : i32
    return %arg0, %c0_i32, %c0_i32_0 : i32, i32, i32
  }
}

module attributes {stable_mosaic.version = 11 : i64} {
  func.func @_ggc_kernel(%arg0: i32, %arg1: memref<8x16x128xf32, #tpu.memory_space<vmem>>, %arg2: memref<8x16x16xf32, #tpu.memory_space<vmem>>, %arg3: memref<128x256xf32, #tpu.memory_space<vmem>>, %arg4: memref<1x256xf32, #tpu.memory_space<vmem>>, %arg5: memref<128x384xf32, #tpu.memory_space<vmem>>, %arg6: memref<1x384xf32, #tpu.memory_space<vmem>>, %arg7: memref<1x384xf32, #tpu.memory_space<vmem>>, %arg8: memref<128x128xf32, #tpu.memory_space<vmem>>, %arg9: memref<1x128xf32, #tpu.memory_space<vmem>>, %arg10: memref<8x16x128xf32, #tpu.memory_space<vmem>>) attributes {dimension_semantics = [#tpu.dimension_semantics<parallel>], iteration_bounds = array<i64: 1>, scalar_prefetch = 0 : i64, scratch_operands = 0 : i64, tpu.core_type = #tpu.core_type<tc>, window_params = [{transform_indices = @transform_0, window_bounds = array<i64: 8, 16, 128>}, {transform_indices = @transform_1, window_bounds = array<i64: 8, 16, 16>}, {pipeline_mode = #tpu.pipeline_mode<synchronous>, transform_indices = @transform_2, window_bounds = array<i64: 128, 256>}, {pipeline_mode = #tpu.pipeline_mode<synchronous>, transform_indices = @transform_3, window_bounds = array<i64: 1, 256>}, {pipeline_mode = #tpu.pipeline_mode<synchronous>, transform_indices = @transform_4, window_bounds = array<i64: 128, 384>}, {pipeline_mode = #tpu.pipeline_mode<synchronous>, transform_indices = @transform_5, window_bounds = array<i64: 1, 384>}, {pipeline_mode = #tpu.pipeline_mode<synchronous>, transform_indices = @transform_6, window_bounds = array<i64: 1, 384>}, {pipeline_mode = #tpu.pipeline_mode<synchronous>, transform_indices = @transform_7, window_bounds = array<i64: 128, 128>}, {pipeline_mode = #tpu.pipeline_mode<synchronous>, transform_indices = @transform_8, window_bounds = array<i64: 1, 128>}, {transform_indices = @transform_9, window_bounds = array<i64: 8, 16, 128>}]} {
    %c0 = arith.constant 0 : index
    %c0_0 = arith.constant 0 : index
    %c0_1 = arith.constant 0 : index
    %0 = vector.load %arg1[%c0, %c0_0, %c0_1] : memref<8x16x128xf32, #tpu.memory_space<vmem>>, vector<8x16x128xf32>
    %c0_2 = arith.constant 0 : index
    %c0_3 = arith.constant 0 : index
    %c0_4 = arith.constant 0 : index
    %1 = vector.load %arg2[%c0_2, %c0_3, %c0_4] : memref<8x16x16xf32, #tpu.memory_space<vmem>>, vector<8x16x16xf32>
    %2 = vector.shape_cast %0 : vector<8x16x128xf32> to vector<128x128xf32>
    %3 = vector.shape_cast %0 : vector<8x16x128xf32> to vector<128x128xf32>
    %c0_5 = arith.constant 0 : index
    %c0_6 = arith.constant 0 : index
    %4 = vector.load %arg3[%c0_5, %c0_6] : memref<128x256xf32, #tpu.memory_space<vmem>>, vector<128x256xf32>
    %cst = arith.constant dense<0.000000e+00> : vector<128x256xf32>
    %5 = tpu.matmul %2, %4, %cst {dimension_numbers = #tpu.dot_dimension_numbers<[1], [0], [0], [1], [0, 0, 1, 1], [], []>} : vector<128x128xf32>, vector<128x256xf32>, vector<128x256xf32> -> vector<128x256xf32>
    %c0_7 = arith.constant 0 : index
    %c0_8 = arith.constant 0 : index
    %6 = vector.load %arg4[%c0_7, %c0_8] : memref<1x256xf32, #tpu.memory_space<vmem>>, vector<1x256xf32>
    %7 = vector.broadcast %6 : vector<1x256xf32> to vector<128x256xf32>
    %8 = arith.addf %5, %7 : vector<128x256xf32>
    %9 = vector.shape_cast %1 : vector<8x16x16xf32> to vector<8x16x16x1xf32>
    %10 = vector.shape_cast %0 : vector<8x16x128xf32> to vector<8x1x16x128xf32>
    %11 = vector.broadcast %9 : vector<8x16x16x1xf32> to vector<8x16x16x128xf32>
    %12 = vector.broadcast %10 : vector<8x1x16x128xf32> to vector<8x16x16x128xf32>
    %13 = arith.mulf %11, %12 : vector<8x16x16x128xf32>
    %cst_9 = arith.constant dense<0.000000e+00> : vector<8x16x128xf32>
    %14 = vector.multi_reduction <add>, %13, %cst_9 [2] : vector<8x16x16x128xf32> to vector<8x16x128xf32>
    %15 = vector.shape_cast %14 : vector<8x16x128xf32> to vector<128x128xf32>
    %cst_10 = arith.constant dense<0.000000e+00> : vector<8x16xf32>
    %16 = vector.multi_reduction <add>, %1, %cst_10 [2] : vector<8x16x16xf32> to vector<8x16xf32>
    %17 = vector.shape_cast %16 : vector<8x16xf32> to vector<8x16x1xf32>
    %18 = vector.shape_cast %17 : vector<8x16x1xf32> to vector<128x1xf32>
    %c0_11 = arith.constant 0 : index
    %c0_12 = arith.constant 0 : index
    %19 = vector.load %arg5[%c0_11, %c0_12] : memref<128x384xf32, #tpu.memory_space<vmem>>, vector<128x384xf32>
    %cst_13 = arith.constant dense<0.000000e+00> : vector<128x384xf32>
    %20 = tpu.matmul %15, %19, %cst_13 {dimension_numbers = #tpu.dot_dimension_numbers<[1], [0], [0], [1], [0, 0, 1, 1], [], []>} : vector<128x128xf32>, vector<128x384xf32>, vector<128x384xf32> -> vector<128x384xf32>
    %c0_14 = arith.constant 0 : index
    %c0_15 = arith.constant 0 : index
    %21 = vector.load %arg6[%c0_14, %c0_15] : memref<1x384xf32, #tpu.memory_space<vmem>>, vector<1x384xf32>
    %22 = vector.broadcast %18 : vector<128x1xf32> to vector<128x384xf32>
    %23 = vector.broadcast %21 : vector<1x384xf32> to vector<128x384xf32>
    %24 = arith.mulf %22, %23 : vector<128x384xf32>
    %25 = arith.addf %20, %24 : vector<128x384xf32>
    %c0_16 = arith.constant 0 : index
    %c0_17 = arith.constant 0 : index
    %26 = vector.load %arg7[%c0_16, %c0_17] : memref<1x384xf32, #tpu.memory_space<vmem>>, vector<1x384xf32>
    %27 = vector.broadcast %26 : vector<1x384xf32> to vector<128x384xf32>
    %28 = arith.addf %25, %27 : vector<128x384xf32>
    %29 = vector.extract_strided_slice %28 {offsets = [0, 0], sizes = [128, 128], strides = [1, 1]} : vector<128x384xf32> to vector<128x128xf32>
    %30 = vector.extract_strided_slice %8 {offsets = [0, 0], sizes = [128, 128], strides = [1, 1]} : vector<128x256xf32> to vector<128x128xf32>
    %31 = arith.addf %29, %30 : vector<128x128xf32>
    %cst_18 = arith.constant 5.000000e-01 : f32
    %32 = vector.broadcast %cst_18 : f32 to vector<128x128xf32>
    %33 = arith.mulf %32, %31 : vector<128x128xf32>
    %34 = math.tanh %33 : vector<128x128xf32>
    %cst_19 = arith.constant 1.000000e+00 : f32
    %35 = vector.broadcast %cst_19 : f32 to vector<128x128xf32>
    %36 = arith.addf %34, %35 : vector<128x128xf32>
    %cst_20 = arith.constant 5.000000e-01 : f32
    %37 = vector.broadcast %cst_20 : f32 to vector<128x128xf32>
    %38 = arith.mulf %37, %36 : vector<128x128xf32>
    %39 = vector.extract_strided_slice %28 {offsets = [0, 128], sizes = [128, 128], strides = [1, 1]} : vector<128x384xf32> to vector<128x128xf32>
    %40 = vector.extract_strided_slice %8 {offsets = [0, 128], sizes = [128, 128], strides = [1, 1]} : vector<128x256xf32> to vector<128x128xf32>
    %41 = arith.addf %39, %40 : vector<128x128xf32>
    %cst_21 = arith.constant 5.000000e-01 : f32
    %42 = vector.broadcast %cst_21 : f32 to vector<128x128xf32>
    %43 = arith.mulf %42, %41 : vector<128x128xf32>
    %44 = math.tanh %43 : vector<128x128xf32>
    %cst_22 = arith.constant 1.000000e+00 : f32
    %45 = vector.broadcast %cst_22 : f32 to vector<128x128xf32>
    %46 = arith.addf %44, %45 : vector<128x128xf32>
    %cst_23 = arith.constant 5.000000e-01 : f32
    %47 = vector.broadcast %cst_23 : f32 to vector<128x128xf32>
    %48 = arith.mulf %47, %46 : vector<128x128xf32>
    %49 = arith.mulf %48, %3 : vector<128x128xf32>
    %50 = vector.extract_strided_slice %28 {offsets = [0, 256], sizes = [128, 128], strides = [1, 1]} : vector<128x384xf32> to vector<128x128xf32>
    %c0_24 = arith.constant 0 : index
    %c0_25 = arith.constant 0 : index
    %51 = vector.load %arg8[%c0_24, %c0_25] : memref<128x128xf32, #tpu.memory_space<vmem>>, vector<128x128xf32>
    %cst_26 = arith.constant dense<0.000000e+00> : vector<128x128xf32>
    %52 = tpu.matmul %49, %51, %cst_26 {dimension_numbers = #tpu.dot_dimension_numbers<[1], [0], [0], [1], [0, 0, 1, 1], [], []>} : vector<128x128xf32>, vector<128x128xf32>, vector<128x128xf32> -> vector<128x128xf32>
    %53 = arith.addf %50, %52 : vector<128x128xf32>
    %c0_27 = arith.constant 0 : index
    %c0_28 = arith.constant 0 : index
    %54 = vector.load %arg9[%c0_27, %c0_28] : memref<1x128xf32, #tpu.memory_space<vmem>>, vector<1x128xf32>
    %55 = vector.broadcast %54 : vector<1x128xf32> to vector<128x128xf32>
    %56 = arith.addf %53, %55 : vector<128x128xf32>
    %57 = math.tanh %56 : vector<128x128xf32>
    %cst_29 = arith.constant 1.000000e+00 : f32
    %58 = vector.broadcast %cst_29 : f32 to vector<128x128xf32>
    %59 = arith.subf %58, %38 : vector<128x128xf32>
    %60 = arith.mulf %59, %3 : vector<128x128xf32>
    %61 = arith.mulf %38, %57 : vector<128x128xf32>
    %62 = arith.addf %60, %61 : vector<128x128xf32>
    %63 = vector.shape_cast %62 : vector<128x128xf32> to vector<8x16x128xf32>
    %c0_30 = arith.constant 0 : index
    %c0_31 = arith.constant 0 : index
    %c0_32 = arith.constant 0 : index
    %64 = vector.load %arg10[%c0_30, %c0_31, %c0_32] : memref<8x16x128xf32, #tpu.memory_space<vmem>>, vector<8x16x128xf32>
    tpu.vector_store %arg10[%c0_30, %c0_31, %c0_32], %63 {strides = array<i32>} : memref<8x16x128xf32, #tpu.memory_space<vmem>>, vector<8x16x128xf32>,
    return
  }
  func.func @transform_0(%arg0: i32) -> (i32, i32, i32) {
    %c0_i32 = arith.constant 0 : i32
    %c0_i32_0 = arith.constant 0 : i32
    %c0_i32_1 = arith.constant 0 : i32
    return %arg0, %c0_i32, %c0_i32_0 : i32, i32, i32
  }
  func.func @transform_1(%arg0: i32) -> (i32, i32, i32) {
    %c0_i32 = arith.constant 0 : i32
    %c0_i32_0 = arith.constant 0 : i32
    %c0_i32_1 = arith.constant 0 : i32
    return %arg0, %c0_i32, %c0_i32_0 : i32, i32, i32
  }
  func.func @transform_2(%arg0: i32) -> (i32, i32) {
    %c0_i32 = arith.constant 0 : i32
    %c0_i32_0 = arith.constant 0 : i32
    %c0_i32_1 = arith.constant 0 : i32
    return %c0_i32, %c0_i32_0 : i32, i32
  }
  func.func @transform_3(%arg0: i32) -> (i32, i32) {
    %c0_i32 = arith.constant 0 : i32
    %c0_i32_0 = arith.constant 0 : i32
    %c0_i32_1 = arith.constant 0 : i32
    return %c0_i32, %c0_i32_0 : i32, i32
  }
  func.func @transform_4(%arg0: i32) -> (i32, i32) {
    %c0_i32 = arith.constant 0 : i32
    %c0_i32_0 = arith.constant 0 : i32
    %c0_i32_1 = arith.constant 0 : i32
    return %c0_i32, %c0_i32_0 : i32, i32
  }
  func.func @transform_5(%arg0: i32) -> (i32, i32) {
    %c0_i32 = arith.constant 0 : i32
    %c0_i32_0 = arith.constant 0 : i32
    %c0_i32_1 = arith.constant 0 : i32
    return %c0_i32, %c0_i32_0 : i32, i32
  }
  func.func @transform_6(%arg0: i32) -> (i32, i32) {
    %c0_i32 = arith.constant 0 : i32
    %c0_i32_0 = arith.constant 0 : i32
    %c0_i32_1 = arith.constant 0 : i32
    return %c0_i32, %c0_i32_0 : i32, i32
  }
  func.func @transform_7(%arg0: i32) -> (i32, i32) {
    %c0_i32 = arith.constant 0 : i32
    %c0_i32_0 = arith.constant 0 : i32
    %c0_i32_1 = arith.constant 0 : i32
    return %c0_i32, %c0_i32_0 : i32, i32
  }
  func.func @transform_8(%arg0: i32) -> (i32, i32) {
    %c0_i32 = arith.constant 0 : i32
    %c0_i32_0 = arith.constant 0 : i32
    %c0_i32_1 = arith.constant 0 : i32
    return %c0_i32, %c0_i32_0 : i32, i32
  }
  func.func @transform_9(%arg0: i32) -> (i32, i32, i32) {
    %c0_i32 = arith.constant 0 : i32
    %c0_i32_0 = arith.constant 0 : i32
    %c0_i32_1 = arith.constant 0 : i32
    return %arg0, %c0_i32, %c0_i32_0 : i32, i32, i32
  }
}

module attributes {stable_mosaic.version = 11 : i64} {
  func.func @_ggc_kernel(%arg0: i32, %arg1: memref<8x16x128xf32, #tpu.memory_space<vmem>>, %arg2: memref<8x16x16xf32, #tpu.memory_space<vmem>>, %arg3: memref<128x256xf32, #tpu.memory_space<vmem>>, %arg4: memref<1x256xf32, #tpu.memory_space<vmem>>, %arg5: memref<128x384xf32, #tpu.memory_space<vmem>>, %arg6: memref<1x384xf32, #tpu.memory_space<vmem>>, %arg7: memref<1x384xf32, #tpu.memory_space<vmem>>, %arg8: memref<128x128xf32, #tpu.memory_space<vmem>>, %arg9: memref<1x128xf32, #tpu.memory_space<vmem>>, %arg10: memref<8x16x128xf32, #tpu.memory_space<vmem>>) attributes {dimension_semantics = [#tpu.dimension_semantics<parallel>], iteration_bounds = array<i64: 1>, scalar_prefetch = 0 : i64, scratch_operands = 0 : i64, tpu.core_type = #tpu.core_type<tc>, window_params = [{transform_indices = @transform_0, window_bounds = array<i64: 8, 16, 128>}, {transform_indices = @transform_1, window_bounds = array<i64: 8, 16, 16>}, {pipeline_mode = #tpu.pipeline_mode<synchronous>, transform_indices = @transform_2, window_bounds = array<i64: 128, 256>}, {pipeline_mode = #tpu.pipeline_mode<synchronous>, transform_indices = @transform_3, window_bounds = array<i64: 1, 256>}, {pipeline_mode = #tpu.pipeline_mode<synchronous>, transform_indices = @transform_4, window_bounds = array<i64: 128, 384>}, {pipeline_mode = #tpu.pipeline_mode<synchronous>, transform_indices = @transform_5, window_bounds = array<i64: 1, 384>}, {pipeline_mode = #tpu.pipeline_mode<synchronous>, transform_indices = @transform_6, window_bounds = array<i64: 1, 384>}, {pipeline_mode = #tpu.pipeline_mode<synchronous>, transform_indices = @transform_7, window_bounds = array<i64: 128, 128>}, {pipeline_mode = #tpu.pipeline_mode<synchronous>, transform_indices = @transform_8, window_bounds = array<i64: 1, 128>}, {transform_indices = @transform_9, window_bounds = array<i64: 8, 16, 128>}]} {
    %c0 = arith.constant 0 : index
    %c0_0 = arith.constant 0 : index
    %c0_1 = arith.constant 0 : index
    %0 = vector.load %arg1[%c0, %c0_0, %c0_1] : memref<8x16x128xf32, #tpu.memory_space<vmem>>, vector<8x16x128xf32>
    %c0_2 = arith.constant 0 : index
    %c0_3 = arith.constant 0 : index
    %c0_4 = arith.constant 0 : index
    %1 = vector.load %arg2[%c0_2, %c0_3, %c0_4] : memref<8x16x16xf32, #tpu.memory_space<vmem>>, vector<8x16x16xf32>
    %2 = vector.shape_cast %0 : vector<8x16x128xf32> to vector<128x128xf32>
    %3 = vector.shape_cast %0 : vector<8x16x128xf32> to vector<128x128xf32>
    %c0_5 = arith.constant 0 : index
    %c0_6 = arith.constant 0 : index
    %4 = vector.load %arg3[%c0_5, %c0_6] : memref<128x256xf32, #tpu.memory_space<vmem>>, vector<128x256xf32>
    %cst = arith.constant dense<0.000000e+00> : vector<128x256xf32>
    %5 = tpu.matmul %2, %4, %cst {dimension_numbers = #tpu.dot_dimension_numbers<[1], [0], [0], [1], [0, 0, 1, 1], [], []>} : vector<128x128xf32>, vector<128x256xf32>, vector<128x256xf32> -> vector<128x256xf32>
    %c0_7 = arith.constant 0 : index
    %c0_8 = arith.constant 0 : index
    %6 = vector.load %arg4[%c0_7, %c0_8] : memref<1x256xf32, #tpu.memory_space<vmem>>, vector<1x256xf32>
    %7 = vector.broadcast %6 : vector<1x256xf32> to vector<128x256xf32>
    %8 = arith.addf %5, %7 : vector<128x256xf32>
    "tpu.trace_start"() <{level = 10 : i32, message = "bij,bjd->bid"}> : () -> ()
    %cst_9 = arith.constant dense<0.000000e+00> : vector<8x16x128xf32>
    %9 = tpu.matmul %1, %0, %cst_9 {dimension_numbers = #tpu.dot_dimension_numbers<[2], [1], [1], [2], [0, 0, 0, 1, 1, 2], [0], [0]>} : vector<8x16x16xf32>, vector<8x16x128xf32>, vector<8x16x128xf32> -> vector<8x16x128xf32>
    "tpu.trace_stop"() : () -> ()
    %10 = vector.shape_cast %9 : vector<8x16x128xf32> to vector<128x128xf32>
    %cst_10 = arith.constant dense<0.000000e+00> : vector<8x16xf32>
    %11 = vector.multi_reduction <add>, %1, %cst_10 [2] : vector<8x16x16xf32> to vector<8x16xf32>
    %12 = vector.shape_cast %11 : vector<8x16xf32> to vector<8x16x1xf32>
    %13 = vector.shape_cast %12 : vector<8x16x1xf32> to vector<128x1xf32>
    %c0_11 = arith.constant 0 : index
    %c0_12 = arith.constant 0 : index
    %14 = vector.load %arg5[%c0_11, %c0_12] : memref<128x384xf32, #tpu.memory_space<vmem>>, vector<128x384xf32>
    %cst_13 = arith.constant dense<0.000000e+00> : vector<128x384xf32>
    %15 = tpu.matmul %10, %14, %cst_13 {dimension_numbers = #tpu.dot_dimension_numbers<[1], [0], [0], [1], [0, 0, 1, 1], [], []>} : vector<128x128xf32>, vector<128x384xf32>, vector<128x384xf32> -> vector<128x384xf32>
    %c0_14 = arith.constant 0 : index
    %c0_15 = arith.constant 0 : index
    %16 = vector.load %arg6[%c0_14, %c0_15] : memref<1x384xf32, #tpu.memory_space<vmem>>, vector<1x384xf32>
    %17 = vector.broadcast %13 : vector<128x1xf32> to vector<128x384xf32>
    %18 = vector.broadcast %16 : vector<1x384xf32> to vector<128x384xf32>
    %19 = arith.mulf %17, %18 : vector<128x384xf32>
    %20 = arith.addf %15, %19 : vector<128x384xf32>
    %c0_16 = arith.constant 0 : index
    %c0_17 = arith.constant 0 : index
    %21 = vector.load %arg7[%c0_16, %c0_17] : memref<1x384xf32, #tpu.memory_space<vmem>>, vector<1x384xf32>
    %22 = vector.broadcast %21 : vector<1x384xf32> to vector<128x384xf32>
    %23 = arith.addf %20, %22 : vector<128x384xf32>
    %24 = vector.extract_strided_slice %23 {offsets = [0, 0], sizes = [128, 128], strides = [1, 1]} : vector<128x384xf32> to vector<128x128xf32>
    %25 = vector.extract_strided_slice %8 {offsets = [0, 0], sizes = [128, 128], strides = [1, 1]} : vector<128x256xf32> to vector<128x128xf32>
    %26 = arith.addf %24, %25 : vector<128x128xf32>
    %cst_18 = arith.constant 5.000000e-01 : f32
    %27 = vector.broadcast %cst_18 : f32 to vector<128x128xf32>
    %28 = arith.mulf %27, %26 : vector<128x128xf32>
    %29 = math.tanh %28 : vector<128x128xf32>
    %cst_19 = arith.constant 1.000000e+00 : f32
    %30 = vector.broadcast %cst_19 : f32 to vector<128x128xf32>
    %31 = arith.addf %29, %30 : vector<128x128xf32>
    %cst_20 = arith.constant 5.000000e-01 : f32
    %32 = vector.broadcast %cst_20 : f32 to vector<128x128xf32>
    %33 = arith.mulf %32, %31 : vector<128x128xf32>
    %34 = vector.extract_strided_slice %23 {offsets = [0, 128], sizes = [128, 128], strides = [1, 1]} : vector<128x384xf32> to vector<128x128xf32>
    %35 = vector.extract_strided_slice %8 {offsets = [0, 128], sizes = [128, 128], strides = [1, 1]} : vector<128x256xf32> to vector<128x128xf32>
    %36 = arith.addf %34, %35 : vector<128x128xf32>
    %cst_21 = arith.constant 5.000000e-01 : f32
    %37 = vector.broadcast %cst_21 : f32 to vector<128x128xf32>
    %38 = arith.mulf %37, %36 : vector<128x128xf32>
    %39 = math.tanh %38 : vector<128x128xf32>
    %cst_22 = arith.constant 1.000000e+00 : f32
    %40 = vector.broadcast %cst_22 : f32 to vector<128x128xf32>
    %41 = arith.addf %39, %40 : vector<128x128xf32>
    %cst_23 = arith.constant 5.000000e-01 : f32
    %42 = vector.broadcast %cst_23 : f32 to vector<128x128xf32>
    %43 = arith.mulf %42, %41 : vector<128x128xf32>
    %44 = arith.mulf %43, %3 : vector<128x128xf32>
    %45 = vector.extract_strided_slice %23 {offsets = [0, 256], sizes = [128, 128], strides = [1, 1]} : vector<128x384xf32> to vector<128x128xf32>
    %c0_24 = arith.constant 0 : index
    %c0_25 = arith.constant 0 : index
    %46 = vector.load %arg8[%c0_24, %c0_25] : memref<128x128xf32, #tpu.memory_space<vmem>>, vector<128x128xf32>
    %cst_26 = arith.constant dense<0.000000e+00> : vector<128x128xf32>
    %47 = tpu.matmul %44, %46, %cst_26 {dimension_numbers = #tpu.dot_dimension_numbers<[1], [0], [0], [1], [0, 0, 1, 1], [], []>} : vector<128x128xf32>, vector<128x128xf32>, vector<128x128xf32> -> vector<128x128xf32>
    %48 = arith.addf %45, %47 : vector<128x128xf32>
    %c0_27 = arith.constant 0 : index
    %c0_28 = arith.constant 0 : index
    %49 = vector.load %arg9[%c0_27, %c0_28] : memref<1x128xf32, #tpu.memory_space<vmem>>, vector<1x128xf32>
    %50 = vector.broadcast %49 : vector<1x128xf32> to vector<128x128xf32>
    %51 = arith.addf %48, %50 : vector<128x128xf32>
    %52 = math.tanh %51 : vector<128x128xf32>
    %cst_29 = arith.constant 1.000000e+00 : f32
    %53 = vector.broadcast %cst_29 : f32 to vector<128x128xf32>
    %54 = arith.subf %53, %33 : vector<128x128xf32>
    %55 = arith.mulf %54, %3 : vector<128x128xf32>
    %56 = arith.mulf %33, %52 : vector<128x128xf32>
    %57 = arith.addf %55, %56 : vector<128x128xf32>
    %58 = vector.shape_cast %57 : vector<128x128xf32> to vector<8x16x128xf32>
    %c0_30 = arith.constant 0 : index
    %c0_31 = arith.constant 0 : index
    %c0_32 = arith.constant 0 : index
    %59 = vector.load %arg10[%c0_30, %c0_31, %c0_32] : memref<8x16x128xf32, #tpu.memory_space<vmem>>, vector<8x16x128xf32>
    tpu.vector_store %arg10[%c0_30, %c0_31, %c0_32], %58 {strides = array<i32>} : memref<8x16x128xf32, #tpu.memory_space<vmem>>, vector<8x16x128xf32>,
    return
  }
  func.func @transform_0(%arg0: i32) -> (i32, i32, i32) {
    %c0_i32 = arith.constant 0 : i32
    %c0_i32_0 = arith.constant 0 : i32
    %c0_i32_1 = arith.constant 0 : i32
    return %arg0, %c0_i32, %c0_i32_0 : i32, i32, i32
  }
  func.func @transform_1(%arg0: i32) -> (i32, i32, i32) {
    %c0_i32 = arith.constant 0 : i32
    %c0_i32_0 = arith.constant 0 : i32
    %c0_i32_1 = arith.constant 0 : i32
    return %arg0, %c0_i32, %c0_i32_0 : i32, i32, i32
  }
  func.func @transform_2(%arg0: i32) -> (i32, i32) {
    %c0_i32 = arith.constant 0 : i32
    %c0_i32_0 = arith.constant 0 : i32
    %c0_i32_1 = arith.constant 0 : i32
    return %c0_i32, %c0_i32_0 : i32, i32
  }
  func.func @transform_3(%arg0: i32) -> (i32, i32) {
    %c0_i32 = arith.constant 0 : i32
    %c0_i32_0 = arith.constant 0 : i32
    %c0_i32_1 = arith.constant 0 : i32
    return %c0_i32, %c0_i32_0 : i32, i32
  }
  func.func @transform_4(%arg0: i32) -> (i32, i32) {
    %c0_i32 = arith.constant 0 : i32
    %c0_i32_0 = arith.constant 0 : i32
    %c0_i32_1 = arith.constant 0 : i32
    return %c0_i32, %c0_i32_0 : i32, i32
  }
  func.func @transform_5(%arg0: i32) -> (i32, i32) {
    %c0_i32 = arith.constant 0 : i32
    %c0_i32_0 = arith.constant 0 : i32
    %c0_i32_1 = arith.constant 0 : i32
    return %c0_i32, %c0_i32_0 : i32, i32
  }
  func.func @transform_6(%arg0: i32) -> (i32, i32) {
    %c0_i32 = arith.constant 0 : i32
    %c0_i32_0 = arith.constant 0 : i32
    %c0_i32_1 = arith.constant 0 : i32
    return %c0_i32, %c0_i32_0 : i32, i32
  }
  func.func @transform_7(%arg0: i32) -> (i32, i32) {
    %c0_i32 = arith.constant 0 : i32
    %c0_i32_0 = arith.constant 0 : i32
    %c0_i32_1 = arith.constant 0 : i32
    return %c0_i32, %c0_i32_0 : i32, i32
  }
  func.func @transform_8(%arg0: i32) -> (i32, i32) {
    %c0_i32 = arith.constant 0 : i32
    %c0_i32_0 = arith.constant 0 : i32
    %c0_i32_1 = arith.constant 0 : i32
    return %c0_i32, %c0_i32_0 : i32, i32
  }
  func.func @transform_9(%arg0: i32) -> (i32, i32, i32) {
    %c0_i32 = arith.constant 0 : i32
    %c0_i32_0 = arith.constant 0 : i32
    %c0_i32_1 = arith.constant 0 : i32
    return %arg0, %c0_i32, %c0_i32_0 : i32, i32, i32
  }
}

</mosaic_0001>

<llo_original>
// kernel: tpu_custom_call.1
$region0: #{tpu_custom_call.1}
  #allocation0 [shape = 'u32[]', space=smem, size = 0x4, offset = 0x4, fixed_abs, tag = 'smem constant byte address 0x4 - core index']
  #allocation1 [shape = 'u32[144,128]{1,0:T(1,128)}', space=vmem, size = 0x12000, scoped, tag = 'internal scratch']
  %s0 = inlined_call_operand.hbm [shape: f32[8,16,128], index: 0, kind: input, shape index: {}]
  %s1 = inlined_call_operand.hbm [shape: f32[8,16,16], index: 1, kind: input, shape index: {}]
  %s2 = inlined_call_operand.hbm [shape: f32[128,256], index: 2, kind: input, shape index: {}]
  %s3 = inlined_call_operand.vmem [shape: f32[1,256], index: 3, kind: input, shape index: {}]
  %s4 = inlined_call_operand.hbm [shape: f32[128,384], index: 4, kind: input, shape index: {}]
  %s5 = inlined_call_operand.vmem [shape: f32[1,384], index: 5, kind: input, shape index: {}]
  %s6 = inlined_call_operand.vmem [shape: f32[1,384], index: 6, kind: input, shape index: {}]
  %s7 = inlined_call_operand.hbm [shape: f32[128,128], index: 7, kind: input, shape index: {}]
  %s8 = inlined_call_operand.vmem [shape: f32[1,128], index: 8, kind: input, shape index: {}]
  %s9 = inlined_call_operand.hbm [shape: f32[8,16,128], index: 9, kind: output, shape index: {}]
  %s10 = sld [smem:[#allocation0]]
  $region66: #{tpu_custom_call.1} parent=0
    _
  %s12 = ssub.s32 1, %s10
  %s13 = scalar_select 0, %s12, %s10
  $region1: #{tpu_custom_call.1} parent=0
    #allocation2 [shape = 'u8[65536]{0}', space=vmem, size = 0x10000, scoped, tag = 'input window, operand 0, single buffered']
    #allocation3 [shape = 's32[1]{0}', space=sflag, size = 0x4, scoped, tag = 'scoped memory for tpu_custom_call.1']
    #allocation4 [shape = 's32[1]{0}', space=sflag, size = 0x4, scoped, tag = 'scoped memory for tpu_custom_call.1']
    #allocation5 [shape = 'u8[65536]{0}', space=vmem, size = 0x10000, scoped, tag = 'input window, operand 1, single buffered']
    #allocation6 [shape = 's32[1]{0}', space=sflag, size = 0x4, scoped, tag = 'scoped memory for tpu_custom_call.1']
    #allocation7 [shape = 'u8[131072]{0}', space=vmem, size = 0x20000, scoped, tag = 'input window, operand 2, single buffered']
    #allocation8 [shape = 'u8[196608]{0}', space=vmem, size = 0x30000, scoped, tag = 'input window, operand 4, single buffered']
    #allocation9 [shape = 's32[1]{0}', space=sflag, size = 0x4, scoped, tag = 'scoped memory for tpu_custom_call.1']
    #allocation10 [shape = 'u8[65536]{0}', space=vmem, size = 0x10000, scoped, tag = 'input window, operand 7, single buffered']
    #allocation11 [shape = 'u8[65536]{0}', space=vmem, size = 0x10000, scoped, tag = 'output window, operand 0, single buffered']
    %14 = vsyncpa [#allocation3], 0
    %15 = vsyncpa [#allocation6], 0
    %16 = vsyncpa [#allocation9], 0
    %17 = vsyncpa [#allocation4], 0
    // Predicated region
    $region2: #{tpu_custom_call.1} parent=1 // pred_check
      _
    $region3: #{tpu_custom_call.1} parent=1 // pred_check_branch
      %19 = sbr.rel (0) target = $region5
    $region4: #{tpu_custom_call.1} parent=1 // pred_region
      %s21 = ssub.s32 2048, 2048
      %22 = vsyncadd [#allocation3], %s21
      %s23 = sshll.u32 [#allocation2], 4
      %s24 = int_to_ptr.vmem [resolvable:$true] %s23
      %29 = dma.hbm_to_vmem [thread:$0]  %s0, 2048, %s24, [#allocation3], 128, 128, 8
    $region5: #{tpu_custom_call.1} parent=1 // pred_fallthru
      _
    // Predicated region
    $region6: #{tpu_custom_call.1} parent=1 // pred_check
      _
    $region7: #{tpu_custom_call.1} parent=1 // pred_check_branch
      %31 = sbr.rel (0) target = $region9
    $region8: #{tpu_custom_call.1} parent=1 // pred_region
      %s33 = ssub.s32 2048, 2048
      %34 = vsyncadd [#allocation6], %s33
      %s35 = sshll.u32 [#allocation5], 4
      %s36 = int_to_ptr.vmem [resolvable:$true] %s35
      %41 = dma.hbm_to_vmem [thread:$0]  %s1, 2048, %s36, [#allocation6], 128, 128, 8
    $region9: #{tpu_custom_call.1} parent=1 // pred_fallthru
      _
    // Predicated region
    $region10: #{tpu_custom_call.1} parent=1 // pred_check
      _
    $region11: #{tpu_custom_call.1} parent=1 // pred_check_branch
      %43 = sbr.rel (0) target = $region13
    $region12: #{tpu_custom_call.1} parent=1 // pred_region
      %s45 = ssub.s32 4096, 4096
      %46 = vsyncadd [#allocation6], %s45
      %s47 = sshll.u32 [#allocation7], 4
      %s48 = int_to_ptr.vmem [resolvable:$true] %s47
      %53 = dma.hbm_to_vmem [thread:$0]  %s2, 4096, %s48, [#allocation6], 256, 256, 16
    $region13: #{tpu_custom_call.1} parent=1 // pred_fallthru
      _
    // Predicated region
    $region14: #{tpu_custom_call.1} parent=1 // pred_check
      _
    $region15: #{tpu_custom_call.1} parent=1 // pred_check_branch
      %55 = sbr.rel (0) target = $region17
    $region16: #{tpu_custom_call.1} parent=1 // pred_region
      _
    $region17: #{tpu_custom_call.1} parent=1 // pred_fallthru
      _
    // Predicated region
    $region18: #{tpu_custom_call.1} parent=1 // pred_check
      _
    $region19: #{tpu_custom_call.1} parent=1 // pred_check_branch
      %57 = sbr.rel (0) target = $region21
    $region20: #{tpu_custom_call.1} parent=1 // pred_region
      %s59 = ssub.s32 6144, 6144
      %60 = vsyncadd [#allocation9], %s59
      %s61 = sshll.u32 [#allocation8], 4
      %s62 = int_to_ptr.vmem [resolvable:$true] %s61
      %67 = dma.hbm_to_vmem [thread:$0]  %s4, 6144, %s62, [#allocation9], 384, 384, 24
    $region21: #{tpu_custom_call.1} parent=1 // pred_fallthru
      _
    // Predicated region
    $region22: #{tpu_custom_call.1} parent=1 // pred_check
      _
    $region23: #{tpu_custom_call.1} parent=1 // pred_check_branch
      %69 = sbr.rel (0) target = $region25
    $region24: #{tpu_custom_call.1} parent=1 // pred_region
      _
    $region25: #{tpu_custom_call.1} parent=1 // pred_fallthru
      _
    // Predicated region
    $region26: #{tpu_custom_call.1} parent=1 // pred_check
      _
    $region27: #{tpu_custom_call.1} parent=1 // pred_check_branch
      %71 = sbr.rel (0) target = $region29
    $region28: #{tpu_custom_call.1} parent=1 // pred_region
      _
    $region29: #{tpu_custom_call.1} parent=1 // pred_fallthru
      _
    // Predicated region
    $region30: #{tpu_custom_call.1} parent=1 // pred_check
      _
    $region31: #{tpu_custom_call.1} parent=1 // pred_check_branch
      %73 = sbr.rel (0) target = $region33
    $region32: #{tpu_custom_call.1} parent=1 // pred_region
      %s75 = ssub.s32 2048, 2048
      %76 = vsyncadd [#allocation9], %s75
      %s77 = sshll.u32 [#allocation10], 4
      %s78 = int_to_ptr.vmem [resolvable:$true] %s77
      %83 = dma.hbm_to_vmem [thread:$0]  %s7, 2048, %s78, [#allocation9], 128, 128, 8
    $region33: #{tpu_custom_call.1} parent=1 // pred_fallthru
      _
    // Predicated region
    $region34: #{tpu_custom_call.1} parent=1 // pred_check
      _
    $region35: #{tpu_custom_call.1} parent=1 // pred_check_branch
      %85 = sbr.rel (0) target = $region37
    $region36: #{tpu_custom_call.1} parent=1 // pred_region
      _
    $region37: #{tpu_custom_call.1} parent=1 // pred_fallthru
      _
    // Predicated region
    $region38: #{tpu_custom_call.1} parent=1 // pred_check
      _
    $region39: #{tpu_custom_call.1} parent=1 // pred_check_branch
      %87 = sbr.rel (0) target = $region41
    $region40: #{tpu_custom_call.1} parent=1 // pred_region
      %88 = dma.done [#allocation3], 2048
    $region41: #{tpu_custom_call.1} parent=1 // pred_fallthru
      _
    // Predicated region
    $region42: #{tpu_custom_call.1} parent=1 // pred_check
      _
    $region43: #{tpu_custom_call.1} parent=1 // pred_check_branch
      %90 = sbr.rel (0) target = $region45
    $region44: #{tpu_custom_call.1} parent=1 // pred_region
      %91 = dma.done [#allocation6], 2048
    $region45: #{tpu_custom_call.1} parent=1 // pred_fallthru
      _
    // Predicated region
    $region46: #{tpu_custom_call.1} parent=1 // pred_check
      _
    $region47: #{tpu_custom_call.1} parent=1 // pred_check_branch
      %93 = sbr.rel (0) target = $region49
    $region48: #{tpu_custom_call.1} parent=1 // pred_region
      %94 = dma.done [#allocation6], 4096
    $region49: #{tpu_custom_call.1} parent=1 // pred_fallthru
      _
    // Predicated region
    $region50: #{tpu_custom_call.1} parent=1 // pred_check
      _
    $region51: #{tpu_custom_call.1} parent=1 // pred_check_branch
      %96 = sbr.rel (0) target = $region53
    $region52: #{tpu_custom_call.1} parent=1 // pred_region
      %97 = dma.done [#allocation9], 6144
    $region53: #{tpu_custom_call.1} parent=1 // pred_fallthru
      _
    // Predicated region
    $region54: #{tpu_custom_call.1} parent=1 // pred_check
      _
    $region55: #{tpu_custom_call.1} parent=1 // pred_check_branch
      %99 = sbr.rel (0) target = $region57
    $region56: #{tpu_custom_call.1} parent=1 // pred_region
      %100 = dma.done [#allocation9], 2048
    $region57: #{tpu_custom_call.1} parent=1 // pred_fallthru
      _
    %v101 = vld [vmem:[#allocation2] sm:$0xff]
    %v102 = vld [vmem:[#allocation2 + $0x8] sm:$0xff]
    %v103 = vld [vmem:[#allocation2 + $0x10] sm:$0xff]
    %v104 = vld [vmem:[#allocation2 + $0x18] sm:$0xff]
    %v105 = vld [vmem:[#allocation2 + $0x20] sm:$0xff]
    %v106 = vld [vmem:[#allocation2 + $0x28] sm:$0xff]
    %v107 = vld [vmem:[#allocation2 + $0x30] sm:$0xff]
    %v108 = vld [vmem:[#allocation2 + $0x38] sm:$0xff]
    %v109 = vld [vmem:[#allocation2 + $0x40] sm:$0xff]
    %v110 = vld [vmem:[#allocation2 + $0x48] sm:$0xff]
    %v111 = vld [vmem:[#allocation2 + $0x50] sm:$0xff]
    %v112 = vld [vmem:[#allocation2 + $0x58] sm:$0xff]
    %v113 = vld [vmem:[#allocation2 + $0x60] sm:$0xff]
    %v114 = vld [vmem:[#allocation2 + $0x68] sm:$0xff]
    %v115 = vld [vmem:[#allocation2 + $0x70] sm:$0xff]
    %v116 = vld [vmem:[#allocation2 + $0x78] sm:$0xff]
    %v117 = vld [vmem:[#allocation5] sm:$0xff]
    %v118 = vld [vmem:[#allocation5 + $0x8] sm:$0xff]
    %v119 = vld [vmem:[#allocation5 + $0x10] sm:$0xff]
    %v120 = vld [vmem:[#allocation5 + $0x18] sm:$0xff]
    %v121 = vld [vmem:[#allocation5 + $0x20] sm:$0xff]
    %v122 = vld [vmem:[#allocation5 + $0x28] sm:$0xff]
    %v123 = vld [vmem:[#allocation5 + $0x30] sm:$0xff]
    %v124 = vld [vmem:[#allocation5 + $0x38] sm:$0xff]
    %v125 = vld [vmem:[#allocation5 + $0x40] sm:$0xff]
    %v126 = vld [vmem:[#allocation5 + $0x48] sm:$0xff]
    %v127 = vld [vmem:[#allocation5 + $0x50] sm:$0xff]
    %v128 = vld [vmem:[#allocation5 + $0x58] sm:$0xff]
    %v129 = vld [vmem:[#allocation5 + $0x60] sm:$0xff]
    %v130 = vld [vmem:[#allocation5 + $0x68] sm:$0xff]
    %v131 = vld [vmem:[#allocation5 + $0x70] sm:$0xff]
    %v132 = vld [vmem:[#allocation5 + $0x78] sm:$0xff]
    %v133 = vld [vmem:[#allocation7] sm:$0xff]
    %v134 = vld [vmem:[#allocation7 + $0x8] sm:$0xff]
    %v135 = vld [vmem:[#allocation7 + $0x10] sm:$0xff]
    %v136 = vld [vmem:[#allocation7 + $0x18] sm:$0xff]
    %v137 = vld [vmem:[#allocation7 + $0x20] sm:$0xff]
    %v138 = vld [vmem:[#allocation7 + $0x28] sm:$0xff]
    %v139 = vld [vmem:[#allocation7 + $0x30] sm:$0xff]
    %v140 = vld [vmem:[#allocation7 + $0x38] sm:$0xff]
    %v141 = vld [vmem:[#allocation7 + $0x40] sm:$0xff]
    %v142 = vld [vmem:[#allocation7 + $0x48] sm:$0xff]
    %v143 = vld [vmem:[#allocation7 + $0x50] sm:$0xff]
    %v144 = vld [vmem:[#allocation7 + $0x58] sm:$0xff]
    %v145 = vld [vmem:[#allocation7 + $0x60] sm:$0xff]
    %v146 = vld [vmem:[#allocation7 + $0x68] sm:$0xff]
    %v147 = vld [vmem:[#allocation7 + $0x70] sm:$0xff]
    %v148 = vld [vmem:[#allocation7 + $0x78] sm:$0xff]
    %v149 = vld [vmem:[#allocation7 + $0x80] sm:$0xff]
    %v150 = vld [vmem:[#allocation7 + $0x88] sm:$0xff]
    %v151 = vld [vmem:[#allocation7 + $0x90] sm:$0xff]
    %v152 = vld [vmem:[#allocation7 + $0x98] sm:$0xff]
    %v153 = vld [vmem:[#allocation7 + $0xa0] sm:$0xff]
    %v154 = vld [vmem:[#allocation7 + $0xa8] sm:$0xff]
    %v155 = vld [vmem:[#allocation7 + $0xb0] sm:$0xff]
    %v156 = vld [vmem:[#allocation7 + $0xb8] sm:$0xff]
    %v157 = vld [vmem:[#allocation7 + $0xc0] sm:$0xff]
    %v158 = vld [vmem:[#allocation7 + $0xc8] sm:$0xff]
    %v159 = vld [vmem:[#allocation7 + $0xd0] sm:$0xff]
    %v160 = vld [vmem:[#allocation7 + $0xd8] sm:$0xff]
    %v161 = vld [vmem:[#allocation7 + $0xe0] sm:$0xff]
    %v162 = vld [vmem:[#allocation7 + $0xe8] sm:$0xff]
    %v163 = vld [vmem:[#allocation7 + $0xf0] sm:$0xff]
    %v164 = vld [vmem:[#allocation7 + $0xf8] sm:$0xff]
    %v165 = vld [vmem:[%s3] sm:$0x3]
    %v167 = vlaneseq
    %v168 = vshrl.u32 %v167, 7
    %v169 = vsub.s32 0, %v168
    %v170 = vrot.slane %v165, %v169
    %v171 = vlaneseq
    %v172 = vshrl.u32 %v171, 7
    %v173 = vsub.s32 1, %v172
    %v174 = vrot.slane %v165, %v173
    %177 = vmatprep.subr.mxu0 %v134
    %178 = vmatpush1.msra.mxu0 %v133
    %179 = vmatprep.subr.mxu0 %v136
    %180 = vmatpush1.msra.mxu0 %v135
    %181 = vmatprep.subr.mxu0 %v138
    %182 = vmatpush1.msra.mxu0 %v137
    %183 = vmatprep.subr.mxu0 %v140
    %184 = vmatpush1.msra.mxu0 %v139
    %185 = vmatprep.subr.mxu0 %v142
    %186 = vmatpush1.msra.mxu0 %v141
    %187 = vmatprep.subr.mxu0 %v144
    %188 = vmatpush1.msra.mxu0 %v143
    %189 = vmatprep.subr.mxu0 %v146
    %190 = vmatpush1.msra.mxu0 %v145
    %191 = vmatprep.subr.mxu0 %v148
    %192 = vmatpush1.msra.mxu0 %v147
    %193 = vmatprep.subr.mxu0 %v150
    %194 = vmatpush1.msra.mxu0 %v149
    %195 = vmatprep.subr.mxu0 %v152
    %196 = vmatpush1.msra.mxu0 %v151
    %197 = vmatprep.subr.mxu0 %v154
    %198 = vmatpush1.msra.mxu0 %v153
    %199 = vmatprep.subr.mxu0 %v156
    %200 = vmatpush1.msra.mxu0 %v155
    %201 = vmatprep.subr.mxu0 %v158
    %202 = vmatpush1.msra.mxu0 %v157
    %203 = vmatprep.subr.mxu0 %v160
    %204 = vmatpush1.msra.mxu0 %v159
    %205 = vmatprep.subr.mxu0 %v162
    %206 = vmatpush1.msra.mxu0 %v161
    %207 = vmatprep.subr.mxu0 %v164
    %208 = vmatpush1.msra.mxu0 %v163
    %209 = vmatprep.subr.mxu0 0.0
    %210 = vmatpush1.msra.mxu0 0.0
    %211 = vmatprep.subr.mxu0 0.0
    %212 = vmatpush1.msra.mxu0 0.0
    %213 = vmatprep.subr.mxu0 0.0
    %214 = vmatpush1.msra.mxu0 0.0
    %215 = vmatprep.subr.mxu0 0.0
    %216 = vmatpush1.msra.mxu0 0.0
    %217 = vmatprep.subr.mxu0 0.0
    %218 = vmatpush1.msra.mxu0 0.0
    %219 = vmatprep.subr.mxu0 0.0
    %220 = vmatpush1.msra.mxu0 0.0
    %221 = vmatprep.subr.mxu0 0.0
    %222 = vmatpush1.msra.mxu0 0.0
    %223 = vmatprep.subr.mxu0 0.0
    %224 = vmatpush1.msra.mxu0 0.0
    %225 = vmatprep.subr.mxu0 0.0
    %226 = vmatpush1.msra.mxu0 0.0
    %227 = vmatprep.subr.mxu0 0.0
    %228 = vmatpush1.msra.mxu0 0.0
    %229 = vmatprep.subr.mxu0 0.0
    %230 = vmatpush1.msra.mxu0 0.0
    %231 = vmatprep.subr.mxu0 0.0
    %232 = vmatpush1.msra.mxu0 0.0
    %233 = vmatprep.subr.mxu0 0.0
    %234 = vmatpush1.msra.mxu0 0.0
    %235 = vmatprep.subr.mxu0 0.0
    %236 = vmatpush1.msra.mxu0 0.0
    %237 = vmatprep.subr.mxu0 0.0
    %238 = vmatpush1.msra.mxu0 0.0
    %239 = vmatprep.subr.mxu0 0.0
    %240 = vmatpush1.msra.mxu0 0.0
    %241 = vmatprep.mubr.f32.mxu0 0.0
    %242 = vmatmul.mubr.f32.gmra.mrb[0].mxu0 %v101
    %v243 = vpop.f32.mrb[0].mxu0
    %v244 = vadd.f32 %v170, %v243
    %v245 = vpop.f32.mrb[0].mxu0
    %v246 = vadd.f32 %v174, %v245
    %247 = vmatprep.mubr.f32.mxu0 0.0
    %248 = vmatmul.mubr.f32.gmra.mrb[0].mxu0 %v102
    %v249 = vpop.f32.mrb[0].mxu0
    %v250 = vadd.f32 %v170, %v249
    %v251 = vpop.f32.mrb[0].mxu0
    %v252 = vadd.f32 %v174, %v251
    %253 = vmatprep.mubr.f32.mxu0 0.0
    %254 = vmatmul.mubr.f32.gmra.mrb[0].mxu0 %v103
    %v255 = vpop.f32.mrb[0].mxu0
    %v256 = vadd.f32 %v170, %v255
    %v257 = vpop.f32.mrb[0].mxu0
    %v258 = vadd.f32 %v174, %v257
    %259 = vmatprep.mubr.f32.mxu0 0.0
    %260 = vmatmul.mubr.f32.gmra.mrb[0].mxu0 %v104
    %v261 = vpop.f32.mrb[0].mxu0
    %v262 = vadd.f32 %v170, %v261
    %v263 = vpop.f32.mrb[0].mxu0
    %v264 = vadd.f32 %v174, %v263
    %265 = vmatprep.mubr.f32.mxu0 0.0
    %266 = vmatmul.mubr.f32.gmra.mrb[0].mxu0 %v105
    %v267 = vpop.f32.mrb[0].mxu0
    %v268 = vadd.f32 %v170, %v267
    %v269 = vpop.f32.mrb[0].mxu0
    %v270 = vadd.f32 %v174, %v269
    %271 = vmatprep.mubr.f32.mxu0 0.0
    %272 = vmatmul.mubr.f32.gmra.mrb[0].mxu0 %v106
    %v273 = vpop.f32.mrb[0].mxu0
    %v274 = vadd.f32 %v170, %v273
    %v275 = vpop.f32.mrb[0].mxu0
    %v276 = vadd.f32 %v174, %v275
    %277 = vmatprep.mubr.f32.mxu0 0.0
    %278 = vmatmul.mubr.f32.gmra.mrb[0].mxu0 %v107
    %v279 = vpop.f32.mrb[0].mxu0
    %v280 = vadd.f32 %v170, %v279
    %v281 = vpop.f32.mrb[0].mxu0
    %v282 = vadd.f32 %v174, %v281
    %283 = vmatprep.mubr.f32.mxu0 0.0
    %284 = vmatmul.mubr.f32.gmra.mrb[0].mxu0 %v108
    %v285 = vpop.f32.mrb[0].mxu0
    %v286 = vadd.f32 %v170, %v285
    %v287 = vpop.f32.mrb[0].mxu0
    %v288 = vadd.f32 %v174, %v287
    %289 = vmatprep.mubr.f32.mxu0 0.0
    %290 = vmatmul.mubr.f32.gmra.mrb[0].mxu0 %v109
    %v291 = vpop.f32.mrb[0].mxu0
    %v292 = vadd.f32 %v170, %v291
    %v293 = vpop.f32.mrb[0].mxu0
    %v294 = vadd.f32 %v174, %v293
    %295 = vmatprep.mubr.f32.mxu0 0.0
    %296 = vmatmul.mubr.f32.gmra.mrb[0].mxu0 %v110
    %v297 = vpop.f32.mrb[0].mxu0
    %v298 = vadd.f32 %v170, %v297
    %v299 = vpop.f32.mrb[0].mxu0
    %v300 = vadd.f32 %v174, %v299
    %301 = vmatprep.mubr.f32.mxu0 0.0
    %302 = vmatmul.mubr.f32.gmra.mrb[0].mxu0 %v111
    %v303 = vpop.f32.mrb[0].mxu0
    %v304 = vadd.f32 %v170, %v303
    %v305 = vpop.f32.mrb[0].mxu0
    %v306 = vadd.f32 %v174, %v305
    %307 = vmatprep.mubr.f32.mxu0 0.0
    %308 = vmatmul.mubr.f32.gmra.mrb[0].mxu0 %v112
    %v309 = vpop.f32.mrb[0].mxu0
    %v310 = vadd.f32 %v170, %v309
    %v311 = vpop.f32.mrb[0].mxu0
    %v312 = vadd.f32 %v174, %v311
    %313 = vmatprep.mubr.f32.mxu0 0.0
    %314 = vmatmul.mubr.f32.gmra.mrb[0].mxu0 %v113
    %v315 = vpop.f32.mrb[0].mxu0
    %v316 = vadd.f32 %v170, %v315
    %v317 = vpop.f32.mrb[0].mxu0
    %v318 = vadd.f32 %v174, %v317
    %319 = vmatprep.mubr.f32.mxu0 0.0
    %320 = vmatmul.mubr.f32.gmra.mrb[0].mxu0 %v114
    %v321 = vpop.f32.mrb[0].mxu0
    %v322 = vadd.f32 %v170, %v321
    %v323 = vpop.f32.mrb[0].mxu0
    %v324 = vadd.f32 %v174, %v323
    %325 = vmatprep.mubr.f32.mxu0 0.0
    %326 = vmatmul.mubr.f32.gmra.mrb[0].mxu0 %v115
    %v327 = vpop.f32.mrb[0].mxu0
    %v328 = vadd.f32 %v170, %v327
    %v329 = vpop.f32.mrb[0].mxu0
    %v330 = vadd.f32 %v174, %v329
    %331 = vmatprep.mubr.f32.mxu0 0.0
    %332 = vmatmul.mubr.f32.gmra.mrb[0].mxu0 %v116
    %v333 = vpop.f32.mrb[0].mxu0
    %v334 = vadd.f32 %v170, %v333
    %v335 = vpop.f32.mrb[0].mxu0
    %v336 = vadd.f32 %v174, %v335
    %337 = vdwg.mxu0
    %v338 = vlaneseq
    %v339 = vshrl.u32 %v338, 7
    %v340 = vsub.s32 0, %v339
    %v341 = vrot.slane %v117, %v340
    %343 = vbcast.lane.b32.xlu0 %v341, 256
    %v344 = vpop.permute.xlu0 %343
    %s346 = sor.u32 256, 8
    %347 = vbcast.lane.b32.xlu0 %v341, %s346
    %v348 = vpop.permute.xlu0 %347
    %v349 = vlaneseq
    %v350 = vshrl.u32 %v349, 7
    %v351 = vsub.s32 1, %v350
    %v352 = vrot.slane %v117, %v351
    %354 = vbcast.lane.b32.xlu0 %v352, 256
    %v355 = vpop.permute.xlu0 %354
    %s357 = sor.u32 256, 8
    %358 = vbcast.lane.b32.xlu0 %v352, %s357
    %v359 = vpop.permute.xlu0 %358
    %v360 = vlaneseq
    %v361 = vshrl.u32 %v360, 7
    %v362 = vsub.s32 2, %v361
    %v363 = vrot.slane %v117, %v362
    %365 = vbcast.lane.b32.xlu0 %v363, 256
    %v366 = vpop.permute.xlu0 %365
    %s368 = sor.u32 256, 8
    %369 = vbcast.lane.b32.xlu0 %v363, %s368
    %v370 = vpop.permute.xlu0 %369
    %v371 = vlaneseq
    %v372 = vshrl.u32 %v371, 7
    %v373 = vsub.s32 3, %v372
    %v374 = vrot.slane %v117, %v373
    %376 = vbcast.lane.b32.xlu0 %v374, 256
    %v377 = vpop.permute.xlu0 %376
    %s379 = sor.u32 256, 8
    %380 = vbcast.lane.b32.xlu0 %v374, %s379
    %v381 = vpop.permute.xlu0 %380
    %v382 = vlaneseq
    %v383 = vshrl.u32 %v382, 7
    %v384 = vsub.s32 4, %v383
    %v385 = vrot.slane %v117, %v384
    %387 = vbcast.lane.b32.xlu0 %v385, 256
    %v388 = vpop.permute.xlu0 %387
    %s390 = sor.u32 256, 8
    %391 = vbcast.lane.b32.xlu0 %v385, %s390
    %v392 = vpop.permute.xlu0 %391
    %v393 = vlaneseq
    %v394 = vshrl.u32 %v393, 7
    %v395 = vsub.s32 5, %v394
    %v396 = vrot.slane %v117, %v395
    %398 = vbcast.lane.b32.xlu0 %v396, 256
    %v399 = vpop.permute.xlu0 %398
    %s401 = sor.u32 256, 8
    %402 = vbcast.lane.b32.xlu0 %v396, %s401
    %v403 = vpop.permute.xlu0 %402
    %v404 = vlaneseq
    %v405 = vshrl.u32 %v404, 7
    %v406 = vsub.s32 6, %v405
    %v407 = vrot.slane %v117, %v406
    %409 = vbcast.lane.b32.xlu0 %v407, 256
    %v410 = vpop.permute.xlu0 %409
    %s412 = sor.u32 256, 8
    %413 = vbcast.lane.b32.xlu0 %v407, %s412
    %v414 = vpop.permute.xlu0 %413
    %v415 = vlaneseq
    %v416 = vshrl.u32 %v415, 7
    %v417 = vsub.s32 7, %v416
    %v418 = vrot.slane %v117, %v417
    %420 = vbcast.lane.b32.xlu0 %v418, 256
    %v421 = vpop.permute.xlu0 %420
    %s423 = sor.u32 256, 8
    %424 = vbcast.lane.b32.xlu0 %v418, %s423
    %v425 = vpop.permute.xlu0 %424
    %v426 = vlaneseq
    %v427 = vshrl.u32 %v426, 7
    %v428 = vsub.s32 0, %v427
    %v429 = vrot.slane %v118, %v428
    %431 = vbcast.lane.b32.xlu0 %v429, 256
    %v432 = vpop.permute.xlu0 %431
    %s434 = sor.u32 256, 8
    %435 = vbcast.lane.b32.xlu0 %v429, %s434
    %v436 = vpop.permute.xlu0 %435
    %v437 = vlaneseq
    %v438 = vshrl.u32 %v437, 7
    %v439 = vsub.s32 1, %v438
    %v440 = vrot.slane %v118, %v439
    %442 = vbcast.lane.b32.xlu0 %v440, 256
    %v443 = vpop.permute.xlu0 %442
    %s445 = sor.u32 256, 8
    %446 = vbcast.lane.b32.xlu0 %v440, %s445
    %v447 = vpop.permute.xlu0 %446
    %v448 = vlaneseq
    %v449 = vshrl.u32 %v448, 7
    %v450 = vsub.s32 2, %v449
    %v451 = vrot.slane %v118, %v450
    %453 = vbcast.lane.b32.xlu0 %v451, 256
    %v454 = vpop.permute.xlu0 %453
    %s456 = sor.u32 256, 8
    %457 = vbcast.lane.b32.xlu0 %v451, %s456
    %v458 = vpop.permute.xlu0 %457
    %v459 = vlaneseq
    %v460 = vshrl.u32 %v459, 7
    %v461 = vsub.s32 3, %v460
    %v462 = vrot.slane %v118, %v461
    %464 = vbcast.lane.b32.xlu0 %v462, 256
    %v465 = vpop.permute.xlu0 %464
    %s467 = sor.u32 256, 8
    %468 = vbcast.lane.b32.xlu0 %v462, %s467
    %v469 = vpop.permute.xlu0 %468
    %v470 = vlaneseq
    %v471 = vshrl.u32 %v470, 7
    %v472 = vsub.s32 4, %v471
    %v473 = vrot.slane %v118, %v472
    %475 = vbcast.lane.b32.xlu0 %v473, 256
    %v476 = vpop.permute.xlu0 %475
    %s478 = sor.u32 256, 8
    %479 = vbcast.lane.b32.xlu0 %v473, %s478
    %v480 = vpop.permute.xlu0 %479
    %v481 = vlaneseq
    %v482 = vshrl.u32 %v481, 7
    %v483 = vsub.s32 5, %v482
    %v484 = vrot.slane %v118, %v483
    %486 = vbcast.lane.b32.xlu0 %v484, 256
    %v487 = vpop.permute.xlu0 %486
    %s489 = sor.u32 256, 8
    %490 = vbcast.lane.b32.xlu0 %v484, %s489
    %v491 = vpop.permute.xlu0 %490
    %v492 = vlaneseq
    %v493 = vshrl.u32 %v492, 7
    %v494 = vsub.s32 6, %v493
    %v495 = vrot.slane %v118, %v494
    %497 = vbcast.lane.b32.xlu0 %v495, 256
    %v498 = vpop.permute.xlu0 %497
    %s500 = sor.u32 256, 8
    %501 = vbcast.lane.b32.xlu0 %v495, %s500
    %v502 = vpop.permute.xlu0 %501
    %v503 = vlaneseq
    %v504 = vshrl.u32 %v503, 7
    %v505 = vsub.s32 7, %v504
    %v506 = vrot.slane %v118, %v505
    %508 = vbcast.lane.b32.xlu0 %v506, 256
    %v509 = vpop.permute.xlu0 %508
    %s511 = sor.u32 256, 8
    %512 = vbcast.lane.b32.xlu0 %v506, %s511
    %v513 = vpop.permute.xlu0 %512
    %v514 = vlaneseq
    %v515 = vshrl.u32 %v514, 7
    %v516 = vsub.s32 0, %v515
    %v517 = vrot.slane %v119, %v516
    %519 = vbcast.lane.b32.xlu0 %v517, 256
    %v520 = vpop.permute.xlu0 %519
    %s522 = sor.u32 256, 8
    %523 = vbcast.lane.b32.xlu0 %v517, %s522
    %v524 = vpop.permute.xlu0 %523
    %v525 = vlaneseq
    %v526 = vshrl.u32 %v525, 7
    %v527 = vsub.s32 1, %v526
    %v528 = vrot.slane %v119, %v527
    %530 = vbcast.lane.b32.xlu0 %v528, 256
    %v531 = vpop.permute.xlu0 %530
    %s533 = sor.u32 256, 8
    %534 = vbcast.lane.b32.xlu0 %v528, %s533
    %v535 = vpop.permute.xlu0 %534
    %v536 = vlaneseq
    %v537 = vshrl.u32 %v536, 7
    %v538 = vsub.s32 2, %v537
    %v539 = vrot.slane %v119, %v538
    %541 = vbcast.lane.b32.xlu0 %v539, 256
    %v542 = vpop.permute.xlu0 %541
    %s544 = sor.u32 256, 8
    %545 = vbcast.lane.b32.xlu0 %v539, %s544
    %v546 = vpop.permute.xlu0 %545
    %v547 = vlaneseq
    %v548 = vshrl.u32 %v547, 7
    %v549 = vsub.s32 3, %v548
    %v550 = vrot.slane %v119, %v549
    %552 = vbcast.lane.b32.xlu0 %v550, 256
    %v553 = vpop.permute.xlu0 %552
    %s555 = sor.u32 256, 8
    %556 = vbcast.lane.b32.xlu0 %v550, %s555
    %v557 = vpop.permute.xlu0 %556
    %v558 = vlaneseq
    %v559 = vshrl.u32 %v558, 7
    %v560 = vsub.s32 4, %v559
    %v561 = vrot.slane %v119, %v560
    %563 = vbcast.lane.b32.xlu0 %v561, 256
    %v564 = vpop.permute.xlu0 %563
    %s566 = sor.u32 256, 8
    %567 = vbcast.lane.b32.xlu0 %v561, %s566
    %v568 = vpop.permute.xlu0 %567
    %v569 = vlaneseq
    %v570 = vshrl.u32 %v569, 7
    %v571 = vsub.s32 5, %v570
    %v572 = vrot.slane %v119, %v571
    %574 = vbcast.lane.b32.xlu0 %v572, 256
    %v575 = vpop.permute.xlu0 %574
    %s577 = sor.u32 256, 8
    %578 = vbcast.lane.b32.xlu0 %v572, %s577
    %v579 = vpop.permute.xlu0 %578
    %v580 = vlaneseq
    %v581 = vshrl.u32 %v580, 7
    %v582 = vsub.s32 6, %v581
    %v583 = vrot.slane %v119, %v582
    %585 = vbcast.lane.b32.xlu0 %v583, 256
    %v586 = vpop.permute.xlu0 %585
    %s588 = sor.u32 256, 8
    %589 = vbcast.lane.b32.xlu0 %v583, %s588
    %v590 = vpop.permute.xlu0 %589
    %v591 = vlaneseq
    %v592 = vshrl.u32 %v591, 7
    %v593 = vsub.s32 7, %v592
    %v594 = vrot.slane %v119, %v593
    %596 = vbcast.lane.b32.xlu0 %v594, 256
    %v597 = vpop.permute.xlu0 %596
    %s599 = sor.u32 256, 8
    %600 = vbcast.lane.b32.xlu0 %v594, %s599
    %v601 = vpop.permute.xlu0 %600
    %v602 = vlaneseq
    %v603 = vshrl.u32 %v602, 7
    %v604 = vsub.s32 0, %v603
    %v605 = vrot.slane %v120, %v604
    %607 = vbcast.lane.b32.xlu0 %v605, 256
    %v608 = vpop.permute.xlu0 %607
    %s610 = sor.u32 256, 8
    %611 = vbcast.lane.b32.xlu0 %v605, %s610
    %v612 = vpop.permute.xlu0 %611
    %v613 = vlaneseq
    %v614 = vshrl.u32 %v613, 7
    %v615 = vsub.s32 1, %v614
    %v616 = vrot.slane %v120, %v615
    %618 = vbcast.lane.b32.xlu0 %v616, 256
    %v619 = vpop.permute.xlu0 %618
    %s621 = sor.u32 256, 8
    %622 = vbcast.lane.b32.xlu0 %v616, %s621
    %v623 = vpop.permute.xlu0 %622
    %v624 = vlaneseq
    %v625 = vshrl.u32 %v624, 7
    %v626 = vsub.s32 2, %v625
    %v627 = vrot.slane %v120, %v626
    %629 = vbcast.lane.b32.xlu0 %v627, 256
    %v630 = vpop.permute.xlu0 %629
    %s632 = sor.u32 256, 8
    %633 = vbcast.lane.b32.xlu0 %v627, %s632
    %v634 = vpop.permute.xlu0 %633
    %v635 = vlaneseq
    %v636 = vshrl.u32 %v635, 7
    %v637 = vsub.s32 3, %v636
    %v638 = vrot.slane %v120, %v637
    %640 = vbcast.lane.b32.xlu0 %v638, 256
    %v641 = vpop.permute.xlu0 %640
    %s643 = sor.u32 256, 8
    %644 = vbcast.lane.b32.xlu0 %v638, %s643
    %v645 = vpop.permute.xlu0 %644
    %v646 = vlaneseq
    %v647 = vshrl.u32 %v646, 7
    %v648 = vsub.s32 4, %v647
    %v649 = vrot.slane %v120, %v648
    %651 = vbcast.lane.b32.xlu0 %v649, 256
    %v652 = vpop.permute.xlu0 %651
    %s654 = sor.u32 256, 8
    %655 = vbcast.lane.b32.xlu0 %v649, %s654
    %v656 = vpop.permute.xlu0 %655
    %v657 = vlaneseq
    %v658 = vshrl.u32 %v657, 7
    %v659 = vsub.s32 5, %v658
    %v660 = vrot.slane %v120, %v659
    %662 = vbcast.lane.b32.xlu0 %v660, 256
    %v663 = vpop.permute.xlu0 %662
    %s665 = sor.u32 256, 8
    %666 = vbcast.lane.b32.xlu0 %v660, %s665
    %v667 = vpop.permute.xlu0 %666
    %v668 = vlaneseq
    %v669 = vshrl.u32 %v668, 7
    %v670 = vsub.s32 6, %v669
    %v671 = vrot.slane %v120, %v670
    %673 = vbcast.lane.b32.xlu0 %v671, 256
    %v674 = vpop.permute.xlu0 %673
    %s676 = sor.u32 256, 8
    %677 = vbcast.lane.b32.xlu0 %v671, %s676
    %v678 = vpop.permute.xlu0 %677
    %v679 = vlaneseq
    %v680 = vshrl.u32 %v679, 7
    %v681 = vsub.s32 7, %v680
    %v682 = vrot.slane %v120, %v681
    %684 = vbcast.lane.b32.xlu0 %v682, 256
    %v685 = vpop.permute.xlu0 %684
    %s687 = sor.u32 256, 8
    %688 = vbcast.lane.b32.xlu0 %v682, %s687
    %v689 = vpop.permute.xlu0 %688
    %v690 = vlaneseq
    %v691 = vshrl.u32 %v690, 7
    %v692 = vsub.s32 0, %v691
    %v693 = vrot.slane %v121, %v692
    %695 = vbcast.lane.b32.xlu0 %v693, 256
    %v696 = vpop.permute.xlu0 %695
    %s698 = sor.u32 256, 8
    %699 = vbcast.lane.b32.xlu0 %v693, %s698
    %v700 = vpop.permute.xlu0 %699
    %v701 = vlaneseq
    %v702 = vshrl.u32 %v701, 7
    %v703 = vsub.s32 1, %v702
    %v704 = vrot.slane %v121, %v703
    %706 = vbcast.lane.b32.xlu0 %v704, 256
    %v707 = vpop.permute.xlu0 %706
    %s709 = sor.u32 256, 8
    %710 = vbcast.lane.b32.xlu0 %v704, %s709
    %v711 = vpop.permute.xlu0 %710
    %v712 = vlaneseq
    %v713 = vshrl.u32 %v712, 7
    %v714 = vsub.s32 2, %v713
    %v715 = vrot.slane %v121, %v714
    %717 = vbcast.lane.b32.xlu0 %v715, 256
    %v718 = vpop.permute.xlu0 %717
    %s720 = sor.u32 256, 8
    %721 = vbcast.lane.b32.xlu0 %v715, %s720
    %v722 = vpop.permute.xlu0 %721
    %v723 = vlaneseq
    %v724 = vshrl.u32 %v723, 7
    %v725 = vsub.s32 3, %v724
    %v726 = vrot.slane %v121, %v725
    %728 = vbcast.lane.b32.xlu0 %v726, 256
    %v729 = vpop.permute.xlu0 %728
    %s731 = sor.u32 256, 8
    %732 = vbcast.lane.b32.xlu0 %v726, %s731
    %v733 = vpop.permute.xlu0 %732
    %v734 = vlaneseq
    %v735 = vshrl.u32 %v734, 7
    %v736 = vsub.s32 4, %v735
    %v737 = vrot.slane %v121, %v736
    %739 = vbcast.lane.b32.xlu0 %v737, 256
    %v740 = vpop.permute.xlu0 %739
    %s742 = sor.u32 256, 8
    %743 = vbcast.lane.b32.xlu0 %v737, %s742
    %v744 = vpop.permute.xlu0 %743
    %v745 = vlaneseq
    %v746 = vshrl.u32 %v745, 7
    %v747 = vsub.s32 5, %v746
    %v748 = vrot.slane %v121, %v747
    %750 = vbcast.lane.b32.xlu0 %v748, 256
    %v751 = vpop.permute.xlu0 %750
    %s753 = sor.u32 256, 8
    %754 = vbcast.lane.b32.xlu0 %v748, %s753
    %v755 = vpop.permute.xlu0 %754
    %v756 = vlaneseq
    %v757 = vshrl.u32 %v756, 7
    %v758 = vsub.s32 6, %v757
    %v759 = vrot.slane %v121, %v758
    %761 = vbcast.lane.b32.xlu0 %v759, 256
    %v762 = vpop.permute.xlu0 %761
    %s764 = sor.u32 256, 8
    %765 = vbcast.lane.b32.xlu0 %v759, %s764
    %v766 = vpop.permute.xlu0 %765
    %v767 = vlaneseq
    %v768 = vshrl.u32 %v767, 7
    %v769 = vsub.s32 7, %v768
    %v770 = vrot.slane %v121, %v769
    %772 = vbcast.lane.b32.xlu0 %v770, 256
    %v773 = vpop.permute.xlu0 %772
    %s775 = sor.u32 256, 8
    %776 = vbcast.lane.b32.xlu0 %v770, %s775
    %v777 = vpop.permute.xlu0 %776
    %v778 = vlaneseq
    %v779 = vshrl.u32 %v778, 7
    %v780 = vsub.s32 0, %v779
    %v781 = vrot.slane %v122, %v780
    %783 = vbcast.lane.b32.xlu0 %v781, 256
    %v784 = vpop.permute.xlu0 %783
    %s786 = sor.u32 256, 8
    %787 = vbcast.lane.b32.xlu0 %v781, %s786
    %v788 = vpop.permute.xlu0 %787
    %v789 = vlaneseq
    %v790 = vshrl.u32 %v789, 7
    %v791 = vsub.s32 1, %v790
    %v792 = vrot.slane %v122, %v791
    %794 = vbcast.lane.b32.xlu0 %v792, 256
    %v795 = vpop.permute.xlu0 %794
    %s797 = sor.u32 256, 8
    %798 = vbcast.lane.b32.xlu0 %v792, %s797
    %v799 = vpop.permute.xlu0 %798
    %v800 = vlaneseq
    %v801 = vshrl.u32 %v800, 7
    %v802 = vsub.s32 2, %v801
    %v803 = vrot.slane %v122, %v802
    %805 = vbcast.lane.b32.xlu0 %v803, 256
    %v806 = vpop.permute.xlu0 %805
    %s808 = sor.u32 256, 8
    %809 = vbcast.lane.b32.xlu0 %v803, %s808
    %v810 = vpop.permute.xlu0 %809
    %v811 = vlaneseq
    %v812 = vshrl.u32 %v811, 7
    %v813 = vsub.s32 3, %v812
    %v814 = vrot.slane %v122, %v813
    %816 = vbcast.lane.b32.xlu0 %v814, 256
    %v817 = vpop.permute.xlu0 %816
    %s819 = sor.u32 256, 8
    %820 = vbcast.lane.b32.xlu0 %v814, %s819
    %v821 = vpop.permute.xlu0 %820
    %v822 = vlaneseq
    %v823 = vshrl.u32 %v822, 7
    %v824 = vsub.s32 4, %v823
    %v825 = vrot.slane %v122, %v824
    %827 = vbcast.lane.b32.xlu0 %v825, 256
    %v828 = vpop.permute.xlu0 %827
    %s830 = sor.u32 256, 8
    %831 = vbcast.lane.b32.xlu0 %v825, %s830
    %v832 = vpop.permute.xlu0 %831
    %v833 = vlaneseq
    %v834 = vshrl.u32 %v833, 7
    %v835 = vsub.s32 5, %v834
    %v836 = vrot.slane %v122, %v835
    %838 = vbcast.lane.b32.xlu0 %v836, 256
    %v839 = vpop.permute.xlu0 %838
    %s841 = sor.u32 256, 8
    %842 = vbcast.lane.b32.xlu0 %v836, %s841
    %v843 = vpop.permute.xlu0 %842
    %v844 = vlaneseq
    %v845 = vshrl.u32 %v844, 7
    %v846 = vsub.s32 6, %v845
    %v847 = vrot.slane %v122, %v846
    %849 = vbcast.lane.b32.xlu0 %v847, 256
    %v850 = vpop.permute.xlu0 %849
    %s852 = sor.u32 256, 8
    %853 = vbcast.lane.b32.xlu0 %v847, %s852
    %v854 = vpop.permute.xlu0 %853
    %v855 = vlaneseq
    %v856 = vshrl.u32 %v855, 7
    %v857 = vsub.s32 7, %v856
    %v858 = vrot.slane %v122, %v857
    %860 = vbcast.lane.b32.xlu0 %v858, 256
    %v861 = vpop.permute.xlu0 %860
    %s863 = sor.u32 256, 8
    %864 = vbcast.lane.b32.xlu0 %v858, %s863
    %v865 = vpop.permute.xlu0 %864
    %v866 = vlaneseq
    %v867 = vshrl.u32 %v866, 7
    %v868 = vsub.s32 0, %v867
    %v869 = vrot.slane %v123, %v868
    %871 = vbcast.lane.b32.xlu0 %v869, 256
    %v872 = vpop.permute.xlu0 %871
    %s874 = sor.u32 256, 8
    %875 = vbcast.lane.b32.xlu0 %v869, %s874
    %v876 = vpop.permute.xlu0 %875
    %v877 = vlaneseq
    %v878 = vshrl.u32 %v877, 7
    %v879 = vsub.s32 1, %v878
    %v880 = vrot.slane %v123, %v879
    %882 = vbcast.lane.b32.xlu0 %v880, 256
    %v883 = vpop.permute.xlu0 %882
    %s885 = sor.u32 256, 8
    %886 = vbcast.lane.b32.xlu0 %v880, %s885
    %v887 = vpop.permute.xlu0 %886
    %v888 = vlaneseq
    %v889 = vshrl.u32 %v888, 7
    %v890 = vsub.s32 2, %v889
    %v891 = vrot.slane %v123, %v890
    %893 = vbcast.lane.b32.xlu0 %v891, 256
    %v894 = vpop.permute.xlu0 %893
    %s896 = sor.u32 256, 8
    %897 = vbcast.lane.b32.xlu0 %v891, %s896
    %v898 = vpop.permute.xlu0 %897
    %v899 = vlaneseq
    %v900 = vshrl.u32 %v899, 7
    %v901 = vsub.s32 3, %v900
    %v902 = vrot.slane %v123, %v901
    %904 = vbcast.lane.b32.xlu0 %v902, 256
    %v905 = vpop.permute.xlu0 %904
    %s907 = sor.u32 256, 8
    %908 = vbcast.lane.b32.xlu0 %v902, %s907
    %v909 = vpop.permute.xlu0 %908
    %v910 = vlaneseq
    %v911 = vshrl.u32 %v910, 7
    %v912 = vsub.s32 4, %v911
    %v913 = vrot.slane %v123, %v912
    %915 = vbcast.lane.b32.xlu0 %v913, 256
    %v916 = vpop.permute.xlu0 %915
    %s918 = sor.u32 256, 8
    %919 = vbcast.lane.b32.xlu0 %v913, %s918
    %v920 = vpop.permute.xlu0 %919
    %v921 = vlaneseq
    %v922 = vshrl.u32 %v921, 7
    %v923 = vsub.s32 5, %v922
    %v924 = vrot.slane %v123, %v923
    %926 = vbcast.lane.b32.xlu0 %v924, 256
    %v927 = vpop.permute.xlu0 %926
    %s929 = sor.u32 256, 8
    %930 = vbcast.lane.b32.xlu0 %v924, %s929
    %v931 = vpop.permute.xlu0 %930
    %v932 = vlaneseq
    %v933 = vshrl.u32 %v932, 7
    %v934 = vsub.s32 6, %v933
    %v935 = vrot.slane %v123, %v934
    %937 = vbcast.lane.b32.xlu0 %v935, 256
    %v938 = vpop.permute.xlu0 %937
    %s940 = sor.u32 256, 8
    %941 = vbcast.lane.b32.xlu0 %v935, %s940
    %v942 = vpop.permute.xlu0 %941
    %v943 = vlaneseq
    %v944 = vshrl.u32 %v943, 7
    %v945 = vsub.s32 7, %v944
    %v946 = vrot.slane %v123, %v945
    %948 = vbcast.lane.b32.xlu0 %v946, 256
    %v949 = vpop.permute.xlu0 %948
    %s951 = sor.u32 256, 8
    %952 = vbcast.lane.b32.xlu0 %v946, %s951
    %v953 = vpop.permute.xlu0 %952
    %v954 = vlaneseq
    %v955 = vshrl.u32 %v954, 7
    %v956 = vsub.s32 0, %v955
    %v957 = vrot.slane %v124, %v956
    %959 = vbcast.lane.b32.xlu0 %v957, 256
    %v960 = vpop.permute.xlu0 %959
    %s962 = sor.u32 256, 8
    %963 = vbcast.lane.b32.xlu0 %v957, %s962
    %v964 = vpop.permute.xlu0 %963
    %v965 = vlaneseq
    %v966 = vshrl.u32 %v965, 7
    %v967 = vsub.s32 1, %v966
    %v968 = vrot.slane %v124, %v967
    %970 = vbcast.lane.b32.xlu0 %v968, 256
    %v971 = vpop.permute.xlu0 %970
    %s973 = sor.u32 256, 8
    %974 = vbcast.lane.b32.xlu0 %v968, %s973
    %v975 = vpop.permute.xlu0 %974
    %v976 = vlaneseq
    %v977 = vshrl.u32 %v976, 7
    %v978 = vsub.s32 2, %v977
    %v979 = vrot.slane %v124, %v978
    %981 = vbcast.lane.b32.xlu0 %v979, 256
    %v982 = vpop.permute.xlu0 %981
    %s984 = sor.u32 256, 8
    %985 = vbcast.lane.b32.xlu0 %v979, %s984
    %v986 = vpop.permute.xlu0 %985
    %v987 = vlaneseq
    %v988 = vshrl.u32 %v987, 7
    %v989 = vsub.s32 3, %v988
    %v990 = vrot.slane %v124, %v989
    %992 = vbcast.lane.b32.xlu0 %v990, 256
    %v993 = vpop.permute.xlu0 %992
    %s995 = sor.u32 256, 8
    %996 = vbcast.lane.b32.xlu0 %v990, %s995
    %v997 = vpop.permute.xlu0 %996
    %v998 = vlaneseq
    %v999 = vshrl.u32 %v998, 7
    %v1000 = vsub.s32 4, %v999
    %v1001 = vrot.slane %v124, %v1000
    %1003 = vbcast.lane.b32.xlu0 %v1001, 256
    %v1004 = vpop.permute.xlu0 %1003
    %s1006 = sor.u32 256, 8
    %1007 = vbcast.lane.b32.xlu0 %v1001, %s1006
    %v1008 = vpop.permute.xlu0 %1007
    %v1009 = vlaneseq
    %v1010 = vshrl.u32 %v1009, 7
    %v1011 = vsub.s32 5, %v1010
    %v1012 = vrot.slane %v124, %v1011
    %1014 = vbcast.lane.b32.xlu0 %v1012, 256
    %v1015 = vpop.permute.xlu0 %1014
    %s1017 = sor.u32 256, 8
    %1018 = vbcast.lane.b32.xlu0 %v1012, %s1017
    %v1019 = vpop.permute.xlu0 %1018
    %v1020 = vlaneseq
    %v1021 = vshrl.u32 %v1020, 7
    %v1022 = vsub.s32 6, %v1021
    %v1023 = vrot.slane %v124, %v1022
    %1025 = vbcast.lane.b32.xlu0 %v1023, 256
    %v1026 = vpop.permute.xlu0 %1025
    %s1028 = sor.u32 256, 8
    %1029 = vbcast.lane.b32.xlu0 %v1023, %s1028
    %v1030 = vpop.permute.xlu0 %1029
    %v1031 = vlaneseq
    %v1032 = vshrl.u32 %v1031, 7
    %v1033 = vsub.s32 7, %v1032
    %v1034 = vrot.slane %v124, %v1033
    %1036 = vbcast.lane.b32.xlu0 %v1034, 256
    %v1037 = vpop.permute.xlu0 %1036
    %s1039 = sor.u32 256, 8
    %1040 = vbcast.lane.b32.xlu0 %v1034, %s1039
    %v1041 = vpop.permute.xlu0 %1040
    %v1042 = vlaneseq
    %v1043 = vshrl.u32 %v1042, 7
    %v1044 = vsub.s32 0, %v1043
    %v1045 = vrot.slane %v125, %v1044
    %1047 = vbcast.lane.b32.xlu0 %v1045, 256
    %v1048 = vpop.permute.xlu0 %1047
    %s1050 = sor.u32 256, 8
    %1051 = vbcast.lane.b32.xlu0 %v1045, %s1050
    %v1052 = vpop.permute.xlu0 %1051
    %v1053 = vlaneseq
    %v1054 = vshrl.u32 %v1053, 7
    %v1055 = vsub.s32 1, %v1054
    %v1056 = vrot.slane %v125, %v1055
    %1058 = vbcast.lane.b32.xlu0 %v1056, 256
    %v1059 = vpop.permute.xlu0 %1058
    %s1061 = sor.u32 256, 8
    %1062 = vbcast.lane.b32.xlu0 %v1056, %s1061
    %v1063 = vpop.permute.xlu0 %1062
    %v1064 = vlaneseq
    %v1065 = vshrl.u32 %v1064, 7
    %v1066 = vsub.s32 2, %v1065
    %v1067 = vrot.slane %v125, %v1066
    %1069 = vbcast.lane.b32.xlu0 %v1067, 256
    %v1070 = vpop.permute.xlu0 %1069
    %s1072 = sor.u32 256, 8
    %1073 = vbcast.lane.b32.xlu0 %v1067, %s1072
    %v1074 = vpop.permute.xlu0 %1073
    %v1075 = vlaneseq
    %v1076 = vshrl.u32 %v1075, 7
    %v1077 = vsub.s32 3, %v1076
    %v1078 = vrot.slane %v125, %v1077
    %1080 = vbcast.lane.b32.xlu0 %v1078, 256
    %v1081 = vpop.permute.xlu0 %1080
    %s1083 = sor.u32 256, 8
    %1084 = vbcast.lane.b32.xlu0 %v1078, %s1083
    %v1085 = vpop.permute.xlu0 %1084
    %v1086 = vlaneseq
    %v1087 = vshrl.u32 %v1086, 7
    %v1088 = vsub.s32 4, %v1087
    %v1089 = vrot.slane %v125, %v1088
    %1091 = vbcast.lane.b32.xlu0 %v1089, 256
    %v1092 = vpop.permute.xlu0 %1091
    %s1094 = sor.u32 256, 8
    %1095 = vbcast.lane.b32.xlu0 %v1089, %s1094
    %v1096 = vpop.permute.xlu0 %1095
    %v1097 = vlaneseq
    %v1098 = vshrl.u32 %v1097, 7
    %v1099 = vsub.s32 5, %v1098
    %v1100 = vrot.slane %v125, %v1099
    %1102 = vbcast.lane.b32.xlu0 %v1100, 256
    %v1103 = vpop.permute.xlu0 %1102
    %s1105 = sor.u32 256, 8
    %1106 = vbcast.lane.b32.xlu0 %v1100, %s1105
    %v1107 = vpop.permute.xlu0 %1106
    %v1108 = vlaneseq
    %v1109 = vshrl.u32 %v1108, 7
    %v1110 = vsub.s32 6, %v1109
    %v1111 = vrot.slane %v125, %v1110
    %1113 = vbcast.lane.b32.xlu0 %v1111, 256
    %v1114 = vpop.permute.xlu0 %1113
    %s1116 = sor.u32 256, 8
    %1117 = vbcast.lane.b32.xlu0 %v1111, %s1116
    %v1118 = vpop.permute.xlu0 %1117
    %v1119 = vlaneseq
    %v1120 = vshrl.u32 %v1119, 7
    %v1121 = vsub.s32 7, %v1120
    %v1122 = vrot.slane %v125, %v1121
    %1124 = vbcast.lane.b32.xlu0 %v1122, 256
    %v1125 = vpop.permute.xlu0 %1124
    %s1127 = sor.u32 256, 8
    %1128 = vbcast.lane.b32.xlu0 %v1122, %s1127
    %v1129 = vpop.permute.xlu0 %1128
    %v1130 = vlaneseq
    %v1131 = vshrl.u32 %v1130, 7
    %v1132 = vsub.s32 0, %v1131
    %v1133 = vrot.slane %v126, %v1132
    %1135 = vbcast.lane.b32.xlu0 %v1133, 256
    %v1136 = vpop.permute.xlu0 %1135
    %s1138 = sor.u32 256, 8
    %1139 = vbcast.lane.b32.xlu0 %v1133, %s1138
    %v1140 = vpop.permute.xlu0 %1139
    %v1141 = vlaneseq
    %v1142 = vshrl.u32 %v1141, 7
    %v1143 = vsub.s32 1, %v1142
    %v1144 = vrot.slane %v126, %v1143
    %1146 = vbcast.lane.b32.xlu0 %v1144, 256
    %v1147 = vpop.permute.xlu0 %1146
    %s1149 = sor.u32 256, 8
    %1150 = vbcast.lane.b32.xlu0 %v1144, %s1149
    %v1151 = vpop.permute.xlu0 %1150
    %v1152 = vlaneseq
    %v1153 = vshrl.u32 %v1152, 7
    %v1154 = vsub.s32 2, %v1153
    %v1155 = vrot.slane %v126, %v1154
    %1157 = vbcast.lane.b32.xlu0 %v1155, 256
    %v1158 = vpop.permute.xlu0 %1157
    %s1160 = sor.u32 256, 8
    %1161 = vbcast.lane.b32.xlu0 %v1155, %s1160
    %v1162 = vpop.permute.xlu0 %1161
    %v1163 = vlaneseq
    %v1164 = vshrl.u32 %v1163, 7
    %v1165 = vsub.s32 3, %v1164
    %v1166 = vrot.slane %v126, %v1165
    %1168 = vbcast.lane.b32.xlu0 %v1166, 256
    %v1169 = vpop.permute.xlu0 %1168
    %s1171 = sor.u32 256, 8
    %1172 = vbcast.lane.b32.xlu0 %v1166, %s1171
    %v1173 = vpop.permute.xlu0 %1172
    %v1174 = vlaneseq
    %v1175 = vshrl.u32 %v1174, 7
    %v1176 = vsub.s32 4, %v1175
    %v1177 = vrot.slane %v126, %v1176
    %1179 = vbcast.lane.b32.xlu0 %v1177, 256
    %v1180 = vpop.permute.xlu0 %1179
    %s1182 = sor.u32 256, 8
    %1183 = vbcast.lane.b32.xlu0 %v1177, %s1182
    %v1184 = vpop.permute.xlu0 %1183
    %v1185 = vlaneseq
    %v1186 = vshrl.u32 %v1185, 7
    %v1187 = vsub.s32 5, %v1186
    %v1188 = vrot.slane %v126, %v1187
    %1190 = vbcast.lane.b32.xlu0 %v1188, 256
    %v1191 = vpop.permute.xlu0 %1190
    %s1193 = sor.u32 256, 8
    %1194 = vbcast.lane.b32.xlu0 %v1188, %s1193
    %v1195 = vpop.permute.xlu0 %1194
    %v1196 = vlaneseq
    %v1197 = vshrl.u32 %v1196, 7
    %v1198 = vsub.s32 6, %v1197
    %v1199 = vrot.slane %v126, %v1198
    %1201 = vbcast.lane.b32.xlu0 %v1199, 256
    %v1202 = vpop.permute.xlu0 %1201
    %s1204 = sor.u32 256, 8
    %1205 = vbcast.lane.b32.xlu0 %v1199, %s1204
    %v1206 = vpop.permute.xlu0 %1205
    %v1207 = vlaneseq
    %v1208 = vshrl.u32 %v1207, 7
    %v1209 = vsub.s32 7, %v1208
    %v1210 = vrot.slane %v126, %v1209
    %1212 = vbcast.lane.b32.xlu0 %v1210, 256
    %v1213 = vpop.permute.xlu0 %1212
    %s1215 = sor.u32 256, 8
    %1216 = vbcast.lane.b32.xlu0 %v1210, %s1215
    %v1217 = vpop.permute.xlu0 %1216
    %v1218 = vlaneseq
    %v1219 = vshrl.u32 %v1218, 7
    %v1220 = vsub.s32 0, %v1219
    %v1221 = vrot.slane %v127, %v1220
    %1223 = vbcast.lane.b32.xlu0 %v1221, 256
    %v1224 = vpop.permute.xlu0 %1223
    %s1226 = sor.u32 256, 8
    %1227 = vbcast.lane.b32.xlu0 %v1221, %s1226
    %v1228 = vpop.permute.xlu0 %1227
    %v1229 = vlaneseq
    %v1230 = vshrl.u32 %v1229, 7
    %v1231 = vsub.s32 1, %v1230
    %v1232 = vrot.slane %v127, %v1231
    %1234 = vbcast.lane.b32.xlu0 %v1232, 256
    %v1235 = vpop.permute.xlu0 %1234
    %s1237 = sor.u32 256, 8
    %1238 = vbcast.lane.b32.xlu0 %v1232, %s1237
    %v1239 = vpop.permute.xlu0 %1238
    %v1240 = vlaneseq
    %v1241 = vshrl.u32 %v1240, 7
    %v1242 = vsub.s32 2, %v1241
    %v1243 = vrot.slane %v127, %v1242
    %1245 = vbcast.lane.b32.xlu0 %v1243, 256
    %v1246 = vpop.permute.xlu0 %1245
    %s1248 = sor.u32 256, 8
    %1249 = vbcast.lane.b32.xlu0 %v1243, %s1248
    %v1250 = vpop.permute.xlu0 %1249
    %v1251 = vlaneseq
    %v1252 = vshrl.u32 %v1251, 7
    %v1253 = vsub.s32 3, %v1252
    %v1254 = vrot.slane %v127, %v1253
    %1256 = vbcast.lane.b32.xlu0 %v1254, 256
    %v1257 = vpop.permute.xlu0 %1256
    %s1259 = sor.u32 256, 8
    %1260 = vbcast.lane.b32.xlu0 %v1254, %s1259
    %v1261 = vpop.permute.xlu0 %1260
    %v1262 = vlaneseq
    %v1263 = vshrl.u32 %v1262, 7
    %v1264 = vsub.s32 4, %v1263
    %v1265 = vrot.slane %v127, %v1264
    %1267 = vbcast.lane.b32.xlu0 %v1265, 256
    %v1268 = vpop.permute.xlu0 %1267
    %s1270 = sor.u32 256, 8
    %1271 = vbcast.lane.b32.xlu0 %v1265, %s1270
    %v1272 = vpop.permute.xlu0 %1271
    %v1273 = vlaneseq
    %v1274 = vshrl.u32 %v1273, 7
    %v1275 = vsub.s32 5, %v1274
    %v1276 = vrot.slane %v127, %v1275
    %1278 = vbcast.lane.b32.xlu0 %v1276, 256
    %v1279 = vpop.permute.xlu0 %1278
    %s1281 = sor.u32 256, 8
    %1282 = vbcast.lane.b32.xlu0 %v1276, %s1281
    %v1283 = vpop.permute.xlu0 %1282
    %v1284 = vlaneseq
    %v1285 = vshrl.u32 %v1284, 7
    %v1286 = vsub.s32 6, %v1285
    %v1287 = vrot.slane %v127, %v1286
    %1289 = vbcast.lane.b32.xlu0 %v1287, 256
    %v1290 = vpop.permute.xlu0 %1289
    %s1292 = sor.u32 256, 8
    %1293 = vbcast.lane.b32.xlu0 %v1287, %s1292
    %v1294 = vpop.permute.xlu0 %1293
    %v1295 = vlaneseq
    %v1296 = vshrl.u32 %v1295, 7
    %v1297 = vsub.s32 7, %v1296
    %v1298 = vrot.slane %v127, %v1297
    %1300 = vbcast.lane.b32.xlu0 %v1298, 256
    %v1301 = vpop.permute.xlu0 %1300
    %s1303 = sor.u32 256, 8
    %1304 = vbcast.lane.b32.xlu0 %v1298, %s1303
    %v1305 = vpop.permute.xlu0 %1304
    %v1306 = vlaneseq
    %v1307 = vshrl.u32 %v1306, 7
    %v1308 = vsub.s32 0, %v1307
    %v1309 = vrot.slane %v128, %v1308
    %1311 = vbcast.lane.b32.xlu0 %v1309, 256
    %v1312 = vpop.permute.xlu0 %1311
    %s1314 = sor.u32 256, 8
    %1315 = vbcast.lane.b32.xlu0 %v1309, %s1314
    %v1316 = vpop.permute.xlu0 %1315
    %v1317 = vlaneseq
    %v1318 = vshrl.u32 %v1317, 7
    %v1319 = vsub.s32 1, %v1318
    %v1320 = vrot.slane %v128, %v1319
    %1322 = vbcast.lane.b32.xlu0 %v1320, 256
    %v1323 = vpop.permute.xlu0 %1322
    %s1325 = sor.u32 256, 8
    %1326 = vbcast.lane.b32.xlu0 %v1320, %s1325
    %v1327 = vpop.permute.xlu0 %1326
    %v1328 = vlaneseq
    %v1329 = vshrl.u32 %v1328, 7
    %v1330 = vsub.s32 2, %v1329
    %v1331 = vrot.slane %v128, %v1330
    %1333 = vbcast.lane.b32.xlu0 %v1331, 256
    %v1334 = vpop.permute.xlu0 %1333
    %s1336 = sor.u32 256, 8
    %1337 = vbcast.lane.b32.xlu0 %v1331, %s1336
    %v1338 = vpop.permute.xlu0 %1337
    %v1339 = vlaneseq
    %v1340 = vshrl.u32 %v1339, 7
    %v1341 = vsub.s32 3, %v1340
    %v1342 = vrot.slane %v128, %v1341
    %1344 = vbcast.lane.b32.xlu0 %v1342, 256
    %v1345 = vpop.permute.xlu0 %1344
    %s1347 = sor.u32 256, 8
    %1348 = vbcast.lane.b32.xlu0 %v1342, %s1347
    %v1349 = vpop.permute.xlu0 %1348
    %v1350 = vlaneseq
    %v1351 = vshrl.u32 %v1350, 7
    %v1352 = vsub.s32 4, %v1351
    %v1353 = vrot.slane %v128, %v1352
    %1355 = vbcast.lane.b32.xlu0 %v1353, 256
    %v1356 = vpop.permute.xlu0 %1355
    %s1358 = sor.u32 256, 8
    %1359 = vbcast.lane.b32.xlu0 %v1353, %s1358
    %v1360 = vpop.permute.xlu0 %1359
    %v1361 = vlaneseq
    %v1362 = vshrl.u32 %v1361, 7
    %v1363 = vsub.s32 5, %v1362
    %v1364 = vrot.slane %v128, %v1363
    %1366 = vbcast.lane.b32.xlu0 %v1364, 256
    %v1367 = vpop.permute.xlu0 %1366
    %s1369 = sor.u32 256, 8
    %1370 = vbcast.lane.b32.xlu0 %v1364, %s1369
    %v1371 = vpop.permute.xlu0 %1370
    %v1372 = vlaneseq
    %v1373 = vshrl.u32 %v1372, 7
    %v1374 = vsub.s32 6, %v1373
    %v1375 = vrot.slane %v128, %v1374
    %1377 = vbcast.lane.b32.xlu0 %v1375, 256
    %v1378 = vpop.permute.xlu0 %1377
    %s1380 = sor.u32 256, 8
    %1381 = vbcast.lane.b32.xlu0 %v1375, %s1380
    %v1382 = vpop.permute.xlu0 %1381
    %v1383 = vlaneseq
    %v1384 = vshrl.u32 %v1383, 7
    %v1385 = vsub.s32 7, %v1384
    %v1386 = vrot.slane %v128, %v1385
    %1388 = vbcast.lane.b32.xlu0 %v1386, 256
    %v1389 = vpop.permute.xlu0 %1388
    %s1391 = sor.u32 256, 8
    %1392 = vbcast.lane.b32.xlu0 %v1386, %s1391
    %v1393 = vpop.permute.xlu0 %1392
    %v1394 = vlaneseq
    %v1395 = vshrl.u32 %v1394, 7
    %v1396 = vsub.s32 0, %v1395
    %v1397 = vrot.slane %v129, %v1396
    %1399 = vbcast.lane.b32.xlu0 %v1397, 256
    %v1400 = vpop.permute.xlu0 %1399
    %s1402 = sor.u32 256, 8
    %1403 = vbcast.lane.b32.xlu0 %v1397, %s1402
    %v1404 = vpop.permute.xlu0 %1403
    %v1405 = vlaneseq
    %v1406 = vshrl.u32 %v1405, 7
    %v1407 = vsub.s32 1, %v1406
    %v1408 = vrot.slane %v129, %v1407
    %1410 = vbcast.lane.b32.xlu0 %v1408, 256
    %v1411 = vpop.permute.xlu0 %1410
    %s1413 = sor.u32 256, 8
    %1414 = vbcast.lane.b32.xlu0 %v1408, %s1413
    %v1415 = vpop.permute.xlu0 %1414
    %v1416 = vlaneseq
    %v1417 = vshrl.u32 %v1416, 7
    %v1418 = vsub.s32 2, %v1417
    %v1419 = vrot.slane %v129, %v1418
    %1421 = vbcast.lane.b32.xlu0 %v1419, 256
    %v1422 = vpop.permute.xlu0 %1421
    %s1424 = sor.u32 256, 8
    %1425 = vbcast.lane.b32.xlu0 %v1419, %s1424
    %v1426 = vpop.permute.xlu0 %1425
    %v1427 = vlaneseq
    %v1428 = vshrl.u32 %v1427, 7
    %v1429 = vsub.s32 3, %v1428
    %v1430 = vrot.slane %v129, %v1429
    %1432 = vbcast.lane.b32.xlu0 %v1430, 256
    %v1433 = vpop.permute.xlu0 %1432
    %s1435 = sor.u32 256, 8
    %1436 = vbcast.lane.b32.xlu0 %v1430, %s1435
    %v1437 = vpop.permute.xlu0 %1436
    %v1438 = vlaneseq
    %v1439 = vshrl.u32 %v1438, 7
    %v1440 = vsub.s32 4, %v1439
    %v1441 = vrot.slane %v129, %v1440
    %1443 = vbcast.lane.b32.xlu0 %v1441, 256
    %v1444 = vpop.permute.xlu0 %1443
    %s1446 = sor.u32 256, 8
    %1447 = vbcast.lane.b32.xlu0 %v1441, %s1446
    %v1448 = vpop.permute.xlu0 %1447
    %v1449 = vlaneseq
    %v1450 = vshrl.u32 %v1449, 7
    %v1451 = vsub.s32 5, %v1450
    %v1452 = vrot.slane %v129, %v1451
    %1454 = vbcast.lane.b32.xlu0 %v1452, 256
    %v1455 = vpop.permute.xlu0 %1454
    %s1457 = sor.u32 256, 8
    %1458 = vbcast.lane.b32.xlu0 %v1452, %s1457
    %v1459 = vpop.permute.xlu0 %1458
    %v1460 = vlaneseq
    %v1461 = vshrl.u32 %v1460, 7
    %v1462 = vsub.s32 6, %v1461
    %v1463 = vrot.slane %v129, %v1462
    %1465 = vbcast.lane.b32.xlu0 %v1463, 256
    %v1466 = vpop.permute.xlu0 %1465
    %s1468 = sor.u32 256, 8
    %1469 = vbcast.lane.b32.xlu0 %v1463, %s1468
    %v1470 = vpop.permute.xlu0 %1469
    %v1471 = vlaneseq
    %v1472 = vshrl.u32 %v1471, 7
    %v1473 = vsub.s32 7, %v1472
    %v1474 = vrot.slane %v129, %v1473
    %1476 = vbcast.lane.b32.xlu0 %v1474, 256
    %v1477 = vpop.permute.xlu0 %1476
    %s1479 = sor.u32 256, 8
    %1480 = vbcast.lane.b32.xlu0 %v1474, %s1479
    %v1481 = vpop.permute.xlu0 %1480
    %v1482 = vlaneseq
    %v1483 = vshrl.u32 %v1482, 7
    %v1484 = vsub.s32 0, %v1483
    %v1485 = vrot.slane %v130, %v1484
    %1487 = vbcast.lane.b32.xlu0 %v1485, 256
    %v1488 = vpop.permute.xlu0 %1487
    %s1490 = sor.u32 256, 8
    %1491 = vbcast.lane.b32.xlu0 %v1485, %s1490
    %v1492 = vpop.permute.xlu0 %1491
    %v1493 = vlaneseq
    %v1494 = vshrl.u32 %v1493, 7
    %v1495 = vsub.s32 1, %v1494
    %v1496 = vrot.slane %v130, %v1495
    %1498 = vbcast.lane.b32.xlu0 %v1496, 256
    %v1499 = vpop.permute.xlu0 %1498
    %s1501 = sor.u32 256, 8
    %1502 = vbcast.lane.b32.xlu0 %v1496, %s1501
    %v1503 = vpop.permute.xlu0 %1502
    %v1504 = vlaneseq
    %v1505 = vshrl.u32 %v1504, 7
    %v1506 = vsub.s32 2, %v1505
    %v1507 = vrot.slane %v130, %v1506
    %1509 = vbcast.lane.b32.xlu0 %v1507, 256
    %v1510 = vpop.permute.xlu0 %1509
    %s1512 = sor.u32 256, 8
    %1513 = vbcast.lane.b32.xlu0 %v1507, %s1512
    %v1514 = vpop.permute.xlu0 %1513
    %v1515 = vlaneseq
    %v1516 = vshrl.u32 %v1515, 7
    %v1517 = vsub.s32 3, %v1516
    %v1518 = vrot.slane %v130, %v1517
    %1520 = vbcast.lane.b32.xlu0 %v1518, 256
    %v1521 = vpop.permute.xlu0 %1520
    %s1523 = sor.u32 256, 8
    %1524 = vbcast.lane.b32.xlu0 %v1518, %s1523
    %v1525 = vpop.permute.xlu0 %1524
    %v1526 = vlaneseq
    %v1527 = vshrl.u32 %v1526, 7
    %v1528 = vsub.s32 4, %v1527
    %v1529 = vrot.slane %v130, %v1528
    %1531 = vbcast.lane.b32.xlu0 %v1529, 256
    %v1532 = vpop.permute.xlu0 %1531
    %s1534 = sor.u32 256, 8
    %1535 = vbcast.lane.b32.xlu0 %v1529, %s1534
    %v1536 = vpop.permute.xlu0 %1535
    %v1537 = vlaneseq
    %v1538 = vshrl.u32 %v1537, 7
    %v1539 = vsub.s32 5, %v1538
    %v1540 = vrot.slane %v130, %v1539
    %1542 = vbcast.lane.b32.xlu0 %v1540, 256
    %v1543 = vpop.permute.xlu0 %1542
    %s1545 = sor.u32 256, 8
    %1546 = vbcast.lane.b32.xlu0 %v1540, %s1545
    %v1547 = vpop.permute.xlu0 %1546
    %v1548 = vlaneseq
    %v1549 = vshrl.u32 %v1548, 7
    %v1550 = vsub.s32 6, %v1549
    %v1551 = vrot.slane %v130, %v1550
    %1553 = vbcast.lane.b32.xlu0 %v1551, 256
    %v1554 = vpop.permute.xlu0 %1553
    %s1556 = sor.u32 256, 8
    %1557 = vbcast.lane.b32.xlu0 %v1551, %s1556
    %v1558 = vpop.permute.xlu0 %1557
    %v1559 = vlaneseq
    %v1560 = vshrl.u32 %v1559, 7
    %v1561 = vsub.s32 7, %v1560
    %v1562 = vrot.slane %v130, %v1561
    %1564 = vbcast.lane.b32.xlu0 %v1562, 256
    %v1565 = vpop.permute.xlu0 %1564
    %s1567 = sor.u32 256, 8
    %1568 = vbcast.lane.b32.xlu0 %v1562, %s1567
    %v1569 = vpop.permute.xlu0 %1568
    %v1570 = vlaneseq
    %v1571 = vshrl.u32 %v1570, 7
    %v1572 = vsub.s32 0, %v1571
    %v1573 = vrot.slane %v131, %v1572
    %1575 = vbcast.lane.b32.xlu0 %v1573, 256
    %v1576 = vpop.permute.xlu0 %1575
    %s1578 = sor.u32 256, 8
    %1579 = vbcast.lane.b32.xlu0 %v1573, %s1578
    %v1580 = vpop.permute.xlu0 %1579
    %v1581 = vlaneseq
    %v1582 = vshrl.u32 %v1581, 7
    %v1583 = vsub.s32 1, %v1582
    %v1584 = vrot.slane %v131, %v1583
    %1586 = vbcast.lane.b32.xlu0 %v1584, 256
    %v1587 = vpop.permute.xlu0 %1586
    %s1589 = sor.u32 256, 8
    %1590 = vbcast.lane.b32.xlu0 %v1584, %s1589
    %v1591 = vpop.permute.xlu0 %1590
    %v1592 = vlaneseq
    %v1593 = vshrl.u32 %v1592, 7
    %v1594 = vsub.s32 2, %v1593
    %v1595 = vrot.slane %v131, %v1594
    %1597 = vbcast.lane.b32.xlu0 %v1595, 256
    %v1598 = vpop.permute.xlu0 %1597
    %s1600 = sor.u32 256, 8
    %1601 = vbcast.lane.b32.xlu0 %v1595, %s1600
    %v1602 = vpop.permute.xlu0 %1601
    %v1603 = vlaneseq
    %v1604 = vshrl.u32 %v1603, 7
    %v1605 = vsub.s32 3, %v1604
    %v1606 = vrot.slane %v131, %v1605
    %1608 = vbcast.lane.b32.xlu0 %v1606, 256
    %v1609 = vpop.permute.xlu0 %1608
    %s1611 = sor.u32 256, 8
    %1612 = vbcast.lane.b32.xlu0 %v1606, %s1611
    %v1613 = vpop.permute.xlu0 %1612
    %v1614 = vlaneseq
    %v1615 = vshrl.u32 %v1614, 7
    %v1616 = vsub.s32 4, %v1615
    %v1617 = vrot.slane %v131, %v1616
    %1619 = vbcast.lane.b32.xlu0 %v1617, 256
    %v1620 = vpop.permute.xlu0 %1619
    %s1622 = sor.u32 256, 8
    %1623 = vbcast.lane.b32.xlu0 %v1617, %s1622
    %v1624 = vpop.permute.xlu0 %1623
    %v1625 = vlaneseq
    %v1626 = vshrl.u32 %v1625, 7
    %v1627 = vsub.s32 5, %v1626
    %v1628 = vrot.slane %v131, %v1627
    %1630 = vbcast.lane.b32.xlu0 %v1628, 256
    %v1631 = vpop.permute.xlu0 %1630
    %s1633 = sor.u32 256, 8
    %1634 = vbcast.lane.b32.xlu0 %v1628, %s1633
    %v1635 = vpop.permute.xlu0 %1634
    %v1636 = vlaneseq
    %v1637 = vshrl.u32 %v1636, 7
    %v1638 = vsub.s32 6, %v1637
    %v1639 = vrot.slane %v131, %v1638
    %1641 = vbcast.lane.b32.xlu0 %v1639, 256
    %v1642 = vpop.permute.xlu0 %1641
    %s1644 = sor.u32 256, 8
    %1645 = vbcast.lane.b32.xlu0 %v1639, %s1644
    %v1646 = vpop.permute.xlu0 %1645
    %v1647 = vlaneseq
    %v1648 = vshrl.u32 %v1647, 7
    %v1649 = vsub.s32 7, %v1648
    %v1650 = vrot.slane %v131, %v1649
    %1652 = vbcast.lane.b32.xlu0 %v1650, 256
    %v1653 = vpop.permute.xlu0 %1652
    %s1655 = sor.u32 256, 8
    %1656 = vbcast.lane.b32.xlu0 %v1650, %s1655
    %v1657 = vpop.permute.xlu0 %1656
    %v1658 = vlaneseq
    %v1659 = vshrl.u32 %v1658, 7
    %v1660 = vsub.s32 0, %v1659
    %v1661 = vrot.slane %v132, %v1660
    %1663 = vbcast.lane.b32.xlu0 %v1661, 256
    %v1664 = vpop.permute.xlu0 %1663
    %s1666 = sor.u32 256, 8
    %1667 = vbcast.lane.b32.xlu0 %v1661, %s1666
    %v1668 = vpop.permute.xlu0 %1667
    %v1669 = vlaneseq
    %v1670 = vshrl.u32 %v1669, 7
    %v1671 = vsub.s32 1, %v1670
    %v1672 = vrot.slane %v132, %v1671
    %1674 = vbcast.lane.b32.xlu0 %v1672, 256
    %v1675 = vpop.permute.xlu0 %1674
    %s1677 = sor.u32 256, 8
    %1678 = vbcast.lane.b32.xlu0 %v1672, %s1677
    %v1679 = vpop.permute.xlu0 %1678
    %v1680 = vlaneseq
    %v1681 = vshrl.u32 %v1680, 7
    %v1682 = vsub.s32 2, %v1681
    %v1683 = vrot.slane %v132, %v1682
    %1685 = vbcast.lane.b32.xlu0 %v1683, 256
    %v1686 = vpop.permute.xlu0 %1685
    %s1688 = sor.u32 256, 8
    %1689 = vbcast.lane.b32.xlu0 %v1683, %s1688
    %v1690 = vpop.permute.xlu0 %1689
    %v1691 = vlaneseq
    %v1692 = vshrl.u32 %v1691, 7
    %v1693 = vsub.s32 3, %v1692
    %v1694 = vrot.slane %v132, %v1693
    %1696 = vbcast.lane.b32.xlu0 %v1694, 256
    %v1697 = vpop.permute.xlu0 %1696
    %s1699 = sor.u32 256, 8
    %1700 = vbcast.lane.b32.xlu0 %v1694, %s1699
    %v1701 = vpop.permute.xlu0 %1700
    %v1702 = vlaneseq
    %v1703 = vshrl.u32 %v1702, 7
    %v1704 = vsub.s32 4, %v1703
    %v1705 = vrot.slane %v132, %v1704
    %1707 = vbcast.lane.b32.xlu0 %v1705, 256
    %v1708 = vpop.permute.xlu0 %1707
    %s1710 = sor.u32 256, 8
    %1711 = vbcast.lane.b32.xlu0 %v1705, %s1710
    %v1712 = vpop.permute.xlu0 %1711
    %v1713 = vlaneseq
    %v1714 = vshrl.u32 %v1713, 7
    %v1715 = vsub.s32 5, %v1714
    %v1716 = vrot.slane %v132, %v1715
    %1718 = vbcast.lane.b32.xlu0 %v1716, 256
    %v1719 = vpop.permute.xlu0 %1718
    %s1721 = sor.u32 256, 8
    %1722 = vbcast.lane.b32.xlu0 %v1716, %s1721
    %v1723 = vpop.permute.xlu0 %1722
    %v1724 = vlaneseq
    %v1725 = vshrl.u32 %v1724, 7
    %v1726 = vsub.s32 6, %v1725
    %v1727 = vrot.slane %v132, %v1726
    %1729 = vbcast.lane.b32.xlu0 %v1727, 256
    %v1730 = vpop.permute.xlu0 %1729
    %s1732 = sor.u32 256, 8
    %1733 = vbcast.lane.b32.xlu0 %v1727, %s1732
    %v1734 = vpop.permute.xlu0 %1733
    %v1735 = vlaneseq
    %v1736 = vshrl.u32 %v1735, 7
    %v1737 = vsub.s32 7, %v1736
    %v1738 = vrot.slane %v132, %v1737
    %1740 = vbcast.lane.b32.xlu0 %v1738, 256
    %v1741 = vpop.permute.xlu0 %1740
    %s1743 = sor.u32 256, 8
    %1744 = vbcast.lane.b32.xlu0 %v1738, %s1743
    %v1745 = vpop.permute.xlu0 %1744
    %v1746 = vmul.f32 %v344, %v101
    %v1747 = vmul.f32 %v348, %v102
    %v1748 = vmul.f32 %v355, %v101
    %v1749 = vmul.f32 %v359, %v102
    %v1750 = vmul.f32 %v366, %v101
    %v1751 = vmul.f32 %v370, %v102
    %v1752 = vmul.f32 %v377, %v101
    %v1753 = vmul.f32 %v381, %v102
    %v1754 = vmul.f32 %v388, %v101
    %v1755 = vmul.f32 %v392, %v102
    %v1756 = vmul.f32 %v399, %v101
    %v1757 = vmul.f32 %v403, %v102
    %v1758 = vmul.f32 %v410, %v101
    %v1759 = vmul.f32 %v414, %v102
    %v1760 = vmul.f32 %v421, %v101
    %v1761 = vmul.f32 %v425, %v102
    %v1762 = vmul.f32 %v432, %v101
    %v1763 = vmul.f32 %v436, %v102
    %v1764 = vmul.f32 %v443, %v101
    %v1765 = vmul.f32 %v447, %v102
    %v1766 = vmul.f32 %v454, %v101
    %v1767 = vmul.f32 %v458, %v102
    %v1768 = vmul.f32 %v465, %v101
    %v1769 = vmul.f32 %v469, %v102
    %v1770 = vmul.f32 %v476, %v101
    %v1771 = vmul.f32 %v480, %v102
    %v1772 = vmul.f32 %v487, %v101
    %v1773 = vmul.f32 %v491, %v102
    %v1774 = vmul.f32 %v498, %v101
    %v1775 = vmul.f32 %v502, %v102
    %v1776 = vmul.f32 %v509, %v101
    %v1777 = vmul.f32 %v513, %v102
    %v1778 = vmul.f32 %v520, %v103
    %v1779 = vmul.f32 %v524, %v104
    %v1780 = vmul.f32 %v531, %v103
    %v1781 = vmul.f32 %v535, %v104
    %v1782 = vmul.f32 %v542, %v103
    %v1783 = vmul.f32 %v546, %v104
    %v1784 = vmul.f32 %v553, %v103
    %v1785 = vmul.f32 %v557, %v104
    %v1786 = vmul.f32 %v564, %v103
    %v1787 = vmul.f32 %v568, %v104
    %v1788 = vmul.f32 %v575, %v103
    %v1789 = vmul.f32 %v579, %v104
    %v1790 = vmul.f32 %v586, %v103
    %v1791 = vmul.f32 %v590, %v104
    %v1792 = vmul.f32 %v597, %v103
    %v1793 = vmul.f32 %v601, %v104
    %v1794 = vmul.f32 %v608, %v103
    %v1795 = vmul.f32 %v612, %v104
    %v1796 = vmul.f32 %v619, %v103
    %v1797 = vmul.f32 %v623, %v104
    %v1798 = vmul.f32 %v630, %v103
    %v1799 = vmul.f32 %v634, %v104
    %v1800 = vmul.f32 %v641, %v103
    %v1801 = vmul.f32 %v645, %v104
    %v1802 = vmul.f32 %v652, %v103
    %v1803 = vmul.f32 %v656, %v104
    %v1804 = vmul.f32 %v663, %v103
    %v1805 = vmul.f32 %v667, %v104
    %v1806 = vmul.f32 %v674, %v103
    %v1807 = vmul.f32 %v678, %v104
    %v1808 = vmul.f32 %v685, %v103
    %v1809 = vmul.f32 %v689, %v104
    %v1810 = vmul.f32 %v696, %v105
    %v1811 = vmul.f32 %v700, %v106
    %v1812 = vmul.f32 %v707, %v105
    %v1813 = vmul.f32 %v711, %v106
    %v1814 = vmul.f32 %v718, %v105
    %v1815 = vmul.f32 %v722, %v106
    %v1816 = vmul.f32 %v729, %v105
    %v1817 = vmul.f32 %v733, %v106
    %v1818 = vmul.f32 %v740, %v105
    %v1819 = vmul.f32 %v744, %v106
    %v1820 = vmul.f32 %v751, %v105
    %v1821 = vmul.f32 %v755, %v106
    %v1822 = vmul.f32 %v762, %v105
    %v1823 = vmul.f32 %v766, %v106
    %v1824 = vmul.f32 %v773, %v105
    %v1825 = vmul.f32 %v777, %v106
    %v1826 = vmul.f32 %v784, %v105
    %v1827 = vmul.f32 %v788, %v106
    %v1828 = vmul.f32 %v795, %v105
    %v1829 = vmul.f32 %v799, %v106
    %v1830 = vmul.f32 %v806, %v105
    %v1831 = vmul.f32 %v810, %v106
    %v1832 = vmul.f32 %v817, %v105
    %v1833 = vmul.f32 %v821, %v106
    %v1834 = vmul.f32 %v828, %v105
    %v1835 = vmul.f32 %v832, %v106
    %v1836 = vmul.f32 %v839, %v105
    %v1837 = vmul.f32 %v843, %v106
    %v1838 = vmul.f32 %v850, %v105
    %v1839 = vmul.f32 %v854, %v106
    %v1840 = vmul.f32 %v861, %v105
    %v1841 = vmul.f32 %v865, %v106
    %v1842 = vmul.f32 %v872, %v107
    %v1843 = vmul.f32 %v876, %v108
    %v1844 = vmul.f32 %v883, %v107
    %v1845 = vmul.f32 %v887, %v108
    %v1846 = vmul.f32 %v894, %v107
    %v1847 = vmul.f32 %v898, %v108
    %v1848 = vmul.f32 %v905, %v107
    %v1849 = vmul.f32 %v909, %v108
    %v1850 = vmul.f32 %v916, %v107
    %v1851 = vmul.f32 %v920, %v108
    %v1852 = vmul.f32 %v927, %v107
    %v1853 = vmul.f32 %v931, %v108
    %v1854 = vmul.f32 %v938, %v107
    %v1855 = vmul.f32 %v942, %v108
    %v1856 = vmul.f32 %v949, %v107
    %v1857 = vmul.f32 %v953, %v108
    %v1858 = vmul.f32 %v960, %v107
    %v1859 = vmul.f32 %v964, %v108
    %v1860 = vmul.f32 %v971, %v107
    %v1861 = vmul.f32 %v975, %v108
    %v1862 = vmul.f32 %v982, %v107
    %v1863 = vmul.f32 %v986, %v108
    %v1864 = vmul.f32 %v993, %v107
    %v1865 = vmul.f32 %v997, %v108
    %v1866 = vmul.f32 %v1004, %v107
    %v1867 = vmul.f32 %v1008, %v108
    %v1868 = vmul.f32 %v1015, %v107
    %v1869 = vmul.f32 %v1019, %v108
    %v1870 = vmul.f32 %v1026, %v107
    %v1871 = vmul.f32 %v1030, %v108
    %v1872 = vmul.f32 %v1037, %v107
    %v1873 = vmul.f32 %v1041, %v108
    %v1874 = vmul.f32 %v1048, %v109
    %v1875 = vmul.f32 %v1052, %v110
    %v1876 = vmul.f32 %v1059, %v109
    %v1877 = vmul.f32 %v1063, %v110
    %v1878 = vmul.f32 %v1070, %v109
    %v1879 = vmul.f32 %v1074, %v110
    %v1880 = vmul.f32 %v1081, %v109
    %v1881 = vmul.f32 %v1085, %v110
    %v1882 = vmul.f32 %v1092, %v109
    %v1883 = vmul.f32 %v1096, %v110
    %v1884 = vmul.f32 %v1103, %v109
    %v1885 = vmul.f32 %v1107, %v110
    %v1886 = vmul.f32 %v1114, %v109
    %v1887 = vmul.f32 %v1118, %v110
    %v1888 = vmul.f32 %v1125, %v109
    %v1889 = vmul.f32 %v1129, %v110
    %v1890 = vmul.f32 %v1136, %v109
    %v1891 = vmul.f32 %v1140, %v110
    %v1892 = vmul.f32 %v1147, %v109
    %v1893 = vmul.f32 %v1151, %v110
    %v1894 = vmul.f32 %v1158, %v109
    %v1895 = vmul.f32 %v1162, %v110
    %v1896 = vmul.f32 %v1169, %v109
    %v1897 = vmul.f32 %v1173, %v110
    %v1898 = vmul.f32 %v1180, %v109
    %v1899 = vmul.f32 %v1184, %v110
    %v1900 = vmul.f32 %v1191, %v109
    %v1901 = vmul.f32 %v1195, %v110
    %v1902 = vmul.f32 %v1202, %v109
    %v1903 = vmul.f32 %v1206, %v110
    %v1904 = vmul.f32 %v1213, %v109
    %v1905 = vmul.f32 %v1217, %v110
    %v1906 = vmul.f32 %v1224, %v111
    %v1907 = vmul.f32 %v1228, %v112
    %v1908 = vmul.f32 %v1235, %v111
    %v1909 = vmul.f32 %v1239, %v112
    %v1910 = vmul.f32 %v1246, %v111
    %v1911 = vmul.f32 %v1250, %v112
    %v1912 = vmul.f32 %v1257, %v111
    %v1913 = vmul.f32 %v1261, %v112
    %v1914 = vmul.f32 %v1268, %v111
    %v1915 = vmul.f32 %v1272, %v112
    %v1916 = vmul.f32 %v1279, %v111
    %v1917 = vmul.f32 %v1283, %v112
    %v1918 = vmul.f32 %v1290, %v111
    %v1919 = vmul.f32 %v1294, %v112
    %v1920 = vmul.f32 %v1301, %v111
    %v1921 = vmul.f32 %v1305, %v112
    %v1922 = vmul.f32 %v1312, %v111
    %v1923 = vmul.f32 %v1316, %v112
    %v1924 = vmul.f32 %v1323, %v111
    %v1925 = vmul.f32 %v1327, %v112
    %v1926 = vmul.f32 %v1334, %v111
    %v1927 = vmul.f32 %v1338, %v112
    %v1928 = vmul.f32 %v1345, %v111
    %v1929 = vmul.f32 %v1349, %v112
    %v1930 = vmul.f32 %v1356, %v111
    %v1931 = vmul.f32 %v1360, %v112
    %v1932 = vmul.f32 %v1367, %v111
    %v1933 = vmul.f32 %v1371, %v112
    %v1934 = vmul.f32 %v1378, %v111
    %v1935 = vmul.f32 %v1382, %v112
    %v1936 = vmul.f32 %v1389, %v111
    %v1937 = vmul.f32 %v1393, %v112
    %v1938 = vmul.f32 %v1400, %v113
    %v1939 = vmul.f32 %v1404, %v114
    %v1940 = vmul.f32 %v1411, %v113
    %v1941 = vmul.f32 %v1415, %v114
    %v1942 = vmul.f32 %v1422, %v113
    %v1943 = vmul.f32 %v1426, %v114
    %v1944 = vmul.f32 %v1433, %v113
    %v1945 = vmul.f32 %v1437, %v114
    %v1946 = vmul.f32 %v1444, %v113
    %v1947 = vmul.f32 %v1448, %v114
    %v1948 = vmul.f32 %v1455, %v113
    %v1949 = vmul.f32 %v1459, %v114
    %v1950 = vmul.f32 %v1466, %v113
    %v1951 = vmul.f32 %v1470, %v114
    %v1952 = vmul.f32 %v1477, %v113
    %v1953 = vmul.f32 %v1481, %v114
    %v1954 = vmul.f32 %v1488, %v113
    %v1955 = vmul.f32 %v1492, %v114
    %v1956 = vmul.f32 %v1499, %v113
    %v1957 = vmul.f32 %v1503, %v114
    %v1958 = vmul.f32 %v1510, %v113
    %v1959 = vmul.f32 %v1514, %v114
    %v1960 = vmul.f32 %v1521, %v113
    %v1961 = vmul.f32 %v1525, %v114
    %v1962 = vmul.f32 %v1532, %v113
    %v1963 = vmul.f32 %v1536, %v114
    %v1964 = vmul.f32 %v1543, %v113
    %v1965 = vmul.f32 %v1547, %v114
    %v1966 = vmul.f32 %v1554, %v113
    %v1967 = vmul.f32 %v1558, %v114
    %v1968 = vmul.f32 %v1565, %v113
    %v1969 = vmul.f32 %v1569, %v114
    %v1970 = vmul.f32 %v1576, %v115
    %v1971 = vmul.f32 %v1580, %v116
    %v1972 = vmul.f32 %v1587, %v115
    %v1973 = vmul.f32 %v1591, %v116
    %v1974 = vmul.f32 %v1598, %v115
    %v1975 = vmul.f32 %v1602, %v116
    %v1976 = vmul.f32 %v1609, %v115
    %v1977 = vmul.f32 %v1613, %v116
    %v1978 = vmul.f32 %v1620, %v115
    %v1979 = vmul.f32 %v1624, %v116
    %v1980 = vmul.f32 %v1631, %v115
    %v1981 = vmul.f32 %v1635, %v116
    %v1982 = vmul.f32 %v1642, %v115
    %v1983 = vmul.f32 %v1646, %v116
    %v1984 = vmul.f32 %v1653, %v115
    %v1985 = vmul.f32 %v1657, %v116
    %v1986 = vmul.f32 %v1664, %v115
    %v1987 = vmul.f32 %v1668, %v116
    %v1988 = vmul.f32 %v1675, %v115
    %v1989 = vmul.f32 %v1679, %v116
    %v1990 = vmul.f32 %v1686, %v115
    %v1991 = vmul.f32 %v1690, %v116
    %v1992 = vmul.f32 %v1697, %v115
    %v1993 = vmul.f32 %v1701, %v116
    %v1994 = vmul.f32 %v1708, %v115
    %v1995 = vmul.f32 %v1712, %v116
    %v1996 = vmul.f32 %v1719, %v115
    %v1997 = vmul.f32 %v1723, %v116
    %v1998 = vmul.f32 %v1730, %v115
    %v1999 = vmul.f32 %v1734, %v116
    %v2000 = vmul.f32 %v1741, %v115
    %v2001 = vmul.f32 %v1745, %v116
    %v2002 = vadd.f32 %v1746, %v1747
    %v2003 = vrot.slane %v2002, 4
    %v2004 = vadd.f32 %v2002, %v2003
    %v2005 = vrot.slane %v2004, 2
    %v2006 = vadd.f32 %v2004, %v2005
    %v2007 = vrot.slane %v2006, 1
    %v2008 = vadd.f32 %v2006, %v2007
    %v2009 = vadd.f32 %v1748, %v1749
    %v2010 = vrot.slane %v2009, 4
    %v2011 = vadd.f32 %v2009, %v2010
    %v2012 = vrot.slane %v2011, 2
    %v2013 = vadd.f32 %v2011, %v2012
    %v2014 = vrot.slane %v2013, 1
    %v2015 = vadd.f32 %v2013, %v2014
    %v2016 = vadd.f32 %v1750, %v1751
    %v2017 = vrot.slane %v2016, 4
    %v2018 = vadd.f32 %v2016, %v2017
    %v2019 = vrot.slane %v2018, 2
    %v2020 = vadd.f32 %v2018, %v2019
    %v2021 = vrot.slane %v2020, 1
    %v2022 = vadd.f32 %v2020, %v2021
    %v2023 = vadd.f32 %v1752, %v1753
    %v2024 = vrot.slane %v2023, 4
    %v2025 = vadd.f32 %v2023, %v2024
    %v2026 = vrot.slane %v2025, 2
    %v2027 = vadd.f32 %v2025, %v2026
    %v2028 = vrot.slane %v2027, 1
    %v2029 = vadd.f32 %v2027, %v2028
    %v2030 = vadd.f32 %v1754, %v1755
    %v2031 = vrot.slane %v2030, 4
    %v2032 = vadd.f32 %v2030, %v2031
    %v2033 = vrot.slane %v2032, 2
    %v2034 = vadd.f32 %v2032, %v2033
    %v2035 = vrot.slane %v2034, 1
    %v2036 = vadd.f32 %v2034, %v2035
    %v2037 = vadd.f32 %v1756, %v1757
    %v2038 = vrot.slane %v2037, 4
    %v2039 = vadd.f32 %v2037, %v2038
    %v2040 = vrot.slane %v2039, 2
    %v2041 = vadd.f32 %v2039, %v2040
    %v2042 = vrot.slane %v2041, 1
    %v2043 = vadd.f32 %v2041, %v2042
    %v2044 = vadd.f32 %v1758, %v1759
    %v2045 = vrot.slane %v2044, 4
    %v2046 = vadd.f32 %v2044, %v2045
    %v2047 = vrot.slane %v2046, 2
    %v2048 = vadd.f32 %v2046, %v2047
    %v2049 = vrot.slane %v2048, 1
    %v2050 = vadd.f32 %v2048, %v2049
    %v2051 = vadd.f32 %v1760, %v1761
    %v2052 = vrot.slane %v2051, 4
    %v2053 = vadd.f32 %v2051, %v2052
    %v2054 = vrot.slane %v2053, 2
    %v2055 = vadd.f32 %v2053, %v2054
    %v2056 = vrot.slane %v2055, 1
    %v2057 = vadd.f32 %v2055, %v2056
    %v2058 = vadd.f32 %v1762, %v1763
    %v2059 = vrot.slane %v2058, 4
    %v2060 = vadd.f32 %v2058, %v2059
    %v2061 = vrot.slane %v2060, 2
    %v2062 = vadd.f32 %v2060, %v2061
    %v2063 = vrot.slane %v2062, 1
    %v2064 = vadd.f32 %v2062, %v2063
    %v2065 = vadd.f32 %v1764, %v1765
    %v2066 = vrot.slane %v2065, 4
    %v2067 = vadd.f32 %v2065, %v2066
    %v2068 = vrot.slane %v2067, 2
    %v2069 = vadd.f32 %v2067, %v2068
    %v2070 = vrot.slane %v2069, 1
    %v2071 = vadd.f32 %v2069, %v2070
    %v2072 = vadd.f32 %v1766, %v1767
    %v2073 = vrot.slane %v2072, 4
    %v2074 = vadd.f32 %v2072, %v2073
    %v2075 = vrot.slane %v2074, 2
    %v2076 = vadd.f32 %v2074, %v2075
    %v2077 = vrot.slane %v2076, 1
    %v2078 = vadd.f32 %v2076, %v2077
    %v2079 = vadd.f32 %v1768, %v1769
    %v2080 = vrot.slane %v2079, 4
    %v2081 = vadd.f32 %v2079, %v2080
    %v2082 = vrot.slane %v2081, 2
    %v2083 = vadd.f32 %v2081, %v2082
    %v2084 = vrot.slane %v2083, 1
    %v2085 = vadd.f32 %v2083, %v2084
    %v2086 = vadd.f32 %v1770, %v1771
    %v2087 = vrot.slane %v2086, 4
    %v2088 = vadd.f32 %v2086, %v2087
    %v2089 = vrot.slane %v2088, 2
    %v2090 = vadd.f32 %v2088, %v2089
    %v2091 = vrot.slane %v2090, 1
    %v2092 = vadd.f32 %v2090, %v2091
    %v2093 = vadd.f32 %v1772, %v1773
    %v2094 = vrot.slane %v2093, 4
    %v2095 = vadd.f32 %v2093, %v2094
    %v2096 = vrot.slane %v2095, 2
    %v2097 = vadd.f32 %v2095, %v2096
    %v2098 = vrot.slane %v2097, 1
    %v2099 = vadd.f32 %v2097, %v2098
    %v2100 = vadd.f32 %v1774, %v1775
    %v2101 = vrot.slane %v2100, 4
    %v2102 = vadd.f32 %v2100, %v2101
    %v2103 = vrot.slane %v2102, 2
    %v2104 = vadd.f32 %v2102, %v2103
    %v2105 = vrot.slane %v2104, 1
    %v2106 = vadd.f32 %v2104, %v2105
    %v2107 = vadd.f32 %v1776, %v1777
    %v2108 = vrot.slane %v2107, 4
    %v2109 = vadd.f32 %v2107, %v2108
    %v2110 = vrot.slane %v2109, 2
    %v2111 = vadd.f32 %v2109, %v2110
    %v2112 = vrot.slane %v2111, 1
    %v2113 = vadd.f32 %v2111, %v2112
    %v2114 = vadd.f32 %v1778, %v1779
    %v2115 = vrot.slane %v2114, 4
    %v2116 = vadd.f32 %v2114, %v2115
    %v2117 = vrot.slane %v2116, 2
    %v2118 = vadd.f32 %v2116, %v2117
    %v2119 = vrot.slane %v2118, 1
    %v2120 = vadd.f32 %v2118, %v2119
    %v2121 = vadd.f32 %v1780, %v1781
    %v2122 = vrot.slane %v2121, 4
    %v2123 = vadd.f32 %v2121, %v2122
    %v2124 = vrot.slane %v2123, 2
    %v2125 = vadd.f32 %v2123, %v2124
    %v2126 = vrot.slane %v2125, 1
    %v2127 = vadd.f32 %v2125, %v2126
    %v2128 = vadd.f32 %v1782, %v1783
    %v2129 = vrot.slane %v2128, 4
    %v2130 = vadd.f32 %v2128, %v2129
    %v2131 = vrot.slane %v2130, 2
    %v2132 = vadd.f32 %v2130, %v2131
    %v2133 = vrot.slane %v2132, 1
    %v2134 = vadd.f32 %v2132, %v2133
    %v2135 = vadd.f32 %v1784, %v1785
    %v2136 = vrot.slane %v2135, 4
    %v2137 = vadd.f32 %v2135, %v2136
    %v2138 = vrot.slane %v2137, 2
    %v2139 = vadd.f32 %v2137, %v2138
    %v2140 = vrot.slane %v2139, 1
    %v2141 = vadd.f32 %v2139, %v2140
    %v2142 = vadd.f32 %v1786, %v1787
    %v2143 = vrot.slane %v2142, 4
    %v2144 = vadd.f32 %v2142, %v2143
    %v2145 = vrot.slane %v2144, 2
    %v2146 = vadd.f32 %v2144, %v2145
    %v2147 = vrot.slane %v2146, 1
    %v2148 = vadd.f32 %v2146, %v2147
    %v2149 = vadd.f32 %v1788, %v1789
    %v2150 = vrot.slane %v2149, 4
    %v2151 = vadd.f32 %v2149, %v2150
    %v2152 = vrot.slane %v2151, 2
    %v2153 = vadd.f32 %v2151, %v2152
    %v2154 = vrot.slane %v2153, 1
    %v2155 = vadd.f32 %v2153, %v2154
    %v2156 = vadd.f32 %v1790, %v1791
    %v2157 = vrot.slane %v2156, 4
    %v2158 = vadd.f32 %v2156, %v2157
    %v2159 = vrot.slane %v2158, 2
    %v2160 = vadd.f32 %v2158, %v2159
    %v2161 = vrot.slane %v2160, 1
    %v2162 = vadd.f32 %v2160, %v2161
    %v2163 = vadd.f32 %v1792, %v1793
    %v2164 = vrot.slane %v2163, 4
    %v2165 = vadd.f32 %v2163, %v2164
    %v2166 = vrot.slane %v2165, 2
    %v2167 = vadd.f32 %v2165, %v2166
    %v2168 = vrot.slane %v2167, 1
    %v2169 = vadd.f32 %v2167, %v2168
    %v2170 = vadd.f32 %v1794, %v1795
    %v2171 = vrot.slane %v2170, 4
    %v2172 = vadd.f32 %v2170, %v2171
    %v2173 = vrot.slane %v2172, 2
    %v2174 = vadd.f32 %v2172, %v2173
    %v2175 = vrot.slane %v2174, 1
    %v2176 = vadd.f32 %v2174, %v2175
    %v2177 = vadd.f32 %v1796, %v1797
    %v2178 = vrot.slane %v2177, 4
    %v2179 = vadd.f32 %v2177, %v2178
    %v2180 = vrot.slane %v2179, 2
    %v2181 = vadd.f32 %v2179, %v2180
    %v2182 = vrot.slane %v2181, 1
    %v2183 = vadd.f32 %v2181, %v2182
    %v2184 = vadd.f32 %v1798, %v1799
    %v2185 = vrot.slane %v2184, 4
    %v2186 = vadd.f32 %v2184, %v2185
    %v2187 = vrot.slane %v2186, 2
    %v2188 = vadd.f32 %v2186, %v2187
    %v2189 = vrot.slane %v2188, 1
    %v2190 = vadd.f32 %v2188, %v2189
    %v2191 = vadd.f32 %v1800, %v1801
    %v2192 = vrot.slane %v2191, 4
    %v2193 = vadd.f32 %v2191, %v2192
    %v2194 = vrot.slane %v2193, 2
    %v2195 = vadd.f32 %v2193, %v2194
    %v2196 = vrot.slane %v2195, 1
    %v2197 = vadd.f32 %v2195, %v2196
    %v2198 = vadd.f32 %v1802, %v1803
    %v2199 = vrot.slane %v2198, 4
    %v2200 = vadd.f32 %v2198, %v2199
    %v2201 = vrot.slane %v2200, 2
    %v2202 = vadd.f32 %v2200, %v2201
    %v2203 = vrot.slane %v2202, 1
    %v2204 = vadd.f32 %v2202, %v2203
    %v2205 = vadd.f32 %v1804, %v1805
    %v2206 = vrot.slane %v2205, 4
    %v2207 = vadd.f32 %v2205, %v2206
    %v2208 = vrot.slane %v2207, 2
    %v2209 = vadd.f32 %v2207, %v2208
    %v2210 = vrot.slane %v2209, 1
    %v2211 = vadd.f32 %v2209, %v2210
    %v2212 = vadd.f32 %v1806, %v1807
    %v2213 = vrot.slane %v2212, 4
    %v2214 = vadd.f32 %v2212, %v2213
    %v2215 = vrot.slane %v2214, 2
    %v2216 = vadd.f32 %v2214, %v2215
    %v2217 = vrot.slane %v2216, 1
    %v2218 = vadd.f32 %v2216, %v2217
    %v2219 = vadd.f32 %v1808, %v1809
    %v2220 = vrot.slane %v2219, 4
    %v2221 = vadd.f32 %v2219, %v2220
    %v2222 = vrot.slane %v2221, 2
    %v2223 = vadd.f32 %v2221, %v2222
    %v2224 = vrot.slane %v2223, 1
    %v2225 = vadd.f32 %v2223, %v2224
    %v2226 = vadd.f32 %v1810, %v1811
    %v2227 = vrot.slane %v2226, 4
    %v2228 = vadd.f32 %v2226, %v2227
    %v2229 = vrot.slane %v2228, 2
    %v2230 = vadd.f32 %v2228, %v2229
    %v2231 = vrot.slane %v2230, 1
    %v2232 = vadd.f32 %v2230, %v2231
    %v2233 = vadd.f32 %v1812, %v1813
    %v2234 = vrot.slane %v2233, 4
    %v2235 = vadd.f32 %v2233, %v2234
    %v2236 = vrot.slane %v2235, 2
    %v2237 = vadd.f32 %v2235, %v2236
    %v2238 = vrot.slane %v2237, 1
    %v2239 = vadd.f32 %v2237, %v2238
    %v2240 = vadd.f32 %v1814, %v1815
    %v2241 = vrot.slane %v2240, 4
    %v2242 = vadd.f32 %v2240, %v2241
    %v2243 = vrot.slane %v2242, 2
    %v2244 = vadd.f32 %v2242, %v2243
    %v2245 = vrot.slane %v2244, 1
    %v2246 = vadd.f32 %v2244, %v2245
    %v2247 = vadd.f32 %v1816, %v1817
    %v2248 = vrot.slane %v2247, 4
    %v2249 = vadd.f32 %v2247, %v2248
    %v2250 = vrot.slane %v2249, 2
    %v2251 = vadd.f32 %v2249, %v2250
    %v2252 = vrot.slane %v2251, 1
    %v2253 = vadd.f32 %v2251, %v2252
    %v2254 = vadd.f32 %v1818, %v1819
    %v2255 = vrot.slane %v2254, 4
    %v2256 = vadd.f32 %v2254, %v2255
    %v2257 = vrot.slane %v2256, 2
    %v2258 = vadd.f32 %v2256, %v2257
    %v2259 = vrot.slane %v2258, 1
    %v2260 = vadd.f32 %v2258, %v2259
    %v2261 = vadd.f32 %v1820, %v1821
    %v2262 = vrot.slane %v2261, 4
    %v2263 = vadd.f32 %v2261, %v2262
    %v2264 = vrot.slane %v2263, 2
    %v2265 = vadd.f32 %v2263, %v2264
    %v2266 = vrot.slane %v2265, 1
    %v2267 = vadd.f32 %v2265, %v2266
    %v2268 = vadd.f32 %v1822, %v1823
    %v2269 = vrot.slane %v2268, 4
    %v2270 = vadd.f32 %v2268, %v2269
    %v2271 = vrot.slane %v2270, 2
    %v2272 = vadd.f32 %v2270, %v2271
    %v2273 = vrot.slane %v2272, 1
    %v2274 = vadd.f32 %v2272, %v2273
    %v2275 = vadd.f32 %v1824, %v1825
    %v2276 = vrot.slane %v2275, 4
    %v2277 = vadd.f32 %v2275, %v2276
    %v2278 = vrot.slane %v2277, 2
    %v2279 = vadd.f32 %v2277, %v2278
    %v2280 = vrot.slane %v2279, 1
    %v2281 = vadd.f32 %v2279, %v2280
    %v2282 = vadd.f32 %v1826, %v1827
    %v2283 = vrot.slane %v2282, 4
    %v2284 = vadd.f32 %v2282, %v2283
    %v2285 = vrot.slane %v2284, 2
    %v2286 = vadd.f32 %v2284, %v2285
    %v2287 = vrot.slane %v2286, 1
    %v2288 = vadd.f32 %v2286, %v2287
    %v2289 = vadd.f32 %v1828, %v1829
    %v2290 = vrot.slane %v2289, 4
    %v2291 = vadd.f32 %v2289, %v2290
    %v2292 = vrot.slane %v2291, 2
    %v2293 = vadd.f32 %v2291, %v2292
    %v2294 = vrot.slane %v2293, 1
    %v2295 = vadd.f32 %v2293, %v2294
    %v2296 = vadd.f32 %v1830, %v1831
    %v2297 = vrot.slane %v2296, 4
    %v2298 = vadd.f32 %v2296, %v2297
    %v2299 = vrot.slane %v2298, 2
    %v2300 = vadd.f32 %v2298, %v2299
    %v2301 = vrot.slane %v2300, 1
    %v2302 = vadd.f32 %v2300, %v2301
    %v2303 = vadd.f32 %v1832, %v1833
    %v2304 = vrot.slane %v2303, 4
    %v2305 = vadd.f32 %v2303, %v2304
    %v2306 = vrot.slane %v2305, 2
    %v2307 = vadd.f32 %v2305, %v2306
    %v2308 = vrot.slane %v2307, 1
    %v2309 = vadd.f32 %v2307, %v2308
    %v2310 = vadd.f32 %v1834, %v1835
    %v2311 = vrot.slane %v2310, 4
    %v2312 = vadd.f32 %v2310, %v2311
    %v2313 = vrot.slane %v2312, 2
    %v2314 = vadd.f32 %v2312, %v2313
    %v2315 = vrot.slane %v2314, 1
    %v2316 = vadd.f32 %v2314, %v2315
    %v2317 = vadd.f32 %v1836, %v1837
    %v2318 = vrot.slane %v2317, 4
    %v2319 = vadd.f32 %v2317, %v2318
    %v2320 = vrot.slane %v2319, 2
    %v2321 = vadd.f32 %v2319, %v2320
    %v2322 = vrot.slane %v2321, 1
    %v2323 = vadd.f32 %v2321, %v2322
    %v2324 = vadd.f32 %v1838, %v1839
    %v2325 = vrot.slane %v2324, 4
    %v2326 = vadd.f32 %v2324, %v2325
    %v2327 = vrot.slane %v2326, 2
    %v2328 = vadd.f32 %v2326, %v2327
    %v2329 = vrot.slane %v2328, 1
    %v2330 = vadd.f32 %v2328, %v2329
    %v2331 = vadd.f32 %v1840, %v1841
    %v2332 = vrot.slane %v2331, 4
    %v2333 = vadd.f32 %v2331, %v2332
    %v2334 = vrot.slane %v2333, 2
    %v2335 = vadd.f32 %v2333, %v2334
    %v2336 = vrot.slane %v2335, 1
    %v2337 = vadd.f32 %v2335, %v2336
    %v2338 = vadd.f32 %v1842, %v1843
    %v2339 = vrot.slane %v2338, 4
    %v2340 = vadd.f32 %v2338, %v2339
    %v2341 = vrot.slane %v2340, 2
    %v2342 = vadd.f32 %v2340, %v2341
    %v2343 = vrot.slane %v2342, 1
    %v2344 = vadd.f32 %v2342, %v2343
    %v2345 = vadd.f32 %v1844, %v1845
    %v2346 = vrot.slane %v2345, 4
    %v2347 = vadd.f32 %v2345, %v2346
    %v2348 = vrot.slane %v2347, 2
    %v2349 = vadd.f32 %v2347, %v2348
    %v2350 = vrot.slane %v2349, 1
    %v2351 = vadd.f32 %v2349, %v2350
    %v2352 = vadd.f32 %v1846, %v1847
    %v2353 = vrot.slane %v2352, 4
    %v2354 = vadd.f32 %v2352, %v2353
    %v2355 = vrot.slane %v2354, 2
    %v2356 = vadd.f32 %v2354, %v2355
    %v2357 = vrot.slane %v2356, 1
    %v2358 = vadd.f32 %v2356, %v2357
    %v2359 = vadd.f32 %v1848, %v1849
    %v2360 = vrot.slane %v2359, 4
    %v2361 = vadd.f32 %v2359, %v2360
    %v2362 = vrot.slane %v2361, 2
    %v2363 = vadd.f32 %v2361, %v2362
    %v2364 = vrot.slane %v2363, 1
    %v2365 = vadd.f32 %v2363, %v2364
    %v2366 = vadd.f32 %v1850, %v1851
    %v2367 = vrot.slane %v2366, 4
    %v2368 = vadd.f32 %v2366, %v2367
    %v2369 = vrot.slane %v2368, 2
    %v2370 = vadd.f32 %v2368, %v2369
    %v2371 = vrot.slane %v2370, 1
    %v2372 = vadd.f32 %v2370, %v2371
    %v2373 = vadd.f32 %v1852, %v1853
    %v2374 = vrot.slane %v2373, 4
    %v2375 = vadd.f32 %v2373, %v2374
    %v2376 = vrot.slane %v2375, 2
    %v2377 = vadd.f32 %v2375, %v2376
    %v2378 = vrot.slane %v2377, 1
    %v2379 = vadd.f32 %v2377, %v2378
    %v2380 = vadd.f32 %v1854, %v1855
    %v2381 = vrot.slane %v2380, 4
    %v2382 = vadd.f32 %v2380, %v2381
    %v2383 = vrot.slane %v2382, 2
    %v2384 = vadd.f32 %v2382, %v2383
    %v2385 = vrot.slane %v2384, 1
    %v2386 = vadd.f32 %v2384, %v2385
    %v2387 = vadd.f32 %v1856, %v1857
    %v2388 = vrot.slane %v2387, 4
    %v2389 = vadd.f32 %v2387, %v2388
    %v2390 = vrot.slane %v2389, 2
    %v2391 = vadd.f32 %v2389, %v2390
    %v2392 = vrot.slane %v2391, 1
    %v2393 = vadd.f32 %v2391, %v2392
    %v2394 = vadd.f32 %v1858, %v1859
    %v2395 = vrot.slane %v2394, 4
    %v2396 = vadd.f32 %v2394, %v2395
    %v2397 = vrot.slane %v2396, 2
    %v2398 = vadd.f32 %v2396, %v2397
    %v2399 = vrot.slane %v2398, 1
    %v2400 = vadd.f32 %v2398, %v2399
    %v2401 = vadd.f32 %v1860, %v1861
    %v2402 = vrot.slane %v2401, 4
    %v2403 = vadd.f32 %v2401, %v2402
    %v2404 = vrot.slane %v2403, 2
    %v2405 = vadd.f32 %v2403, %v2404
    %v2406 = vrot.slane %v2405, 1
    %v2407 = vadd.f32 %v2405, %v2406
    %v2408 = vadd.f32 %v1862, %v1863
    %v2409 = vrot.slane %v2408, 4
    %v2410 = vadd.f32 %v2408, %v2409
    %v2411 = vrot.slane %v2410, 2
    %v2412 = vadd.f32 %v2410, %v2411
    %v2413 = vrot.slane %v2412, 1
    %v2414 = vadd.f32 %v2412, %v2413
    %v2415 = vadd.f32 %v1864, %v1865
    %v2416 = vrot.slane %v2415, 4
    %v2417 = vadd.f32 %v2415, %v2416
    %v2418 = vrot.slane %v2417, 2
    %v2419 = vadd.f32 %v2417, %v2418
    %v2420 = vrot.slane %v2419, 1
    %v2421 = vadd.f32 %v2419, %v2420
    %v2422 = vadd.f32 %v1866, %v1867
    %v2423 = vrot.slane %v2422, 4
    %v2424 = vadd.f32 %v2422, %v2423
    %v2425 = vrot.slane %v2424, 2
    %v2426 = vadd.f32 %v2424, %v2425
    %v2427 = vrot.slane %v2426, 1
    %v2428 = vadd.f32 %v2426, %v2427
    %v2429 = vadd.f32 %v1868, %v1869
    %v2430 = vrot.slane %v2429, 4
    %v2431 = vadd.f32 %v2429, %v2430
    %v2432 = vrot.slane %v2431, 2
    %v2433 = vadd.f32 %v2431, %v2432
    %v2434 = vrot.slane %v2433, 1
    %v2435 = vadd.f32 %v2433, %v2434
    %v2436 = vadd.f32 %v1870, %v1871
    %v2437 = vrot.slane %v2436, 4
    %v2438 = vadd.f32 %v2436, %v2437
    %v2439 = vrot.slane %v2438, 2
    %v2440 = vadd.f32 %v2438, %v2439
    %v2441 = vrot.slane %v2440, 1
    %v2442 = vadd.f32 %v2440, %v2441
    %v2443 = vadd.f32 %v1872, %v1873
    %v2444 = vrot.slane %v2443, 4
    %v2445 = vadd.f32 %v2443, %v2444
    %v2446 = vrot.slane %v2445, 2
    %v2447 = vadd.f32 %v2445, %v2446
    %v2448 = vrot.slane %v2447, 1
    %v2449 = vadd.f32 %v2447, %v2448
    %v2450 = vadd.f32 %v1874, %v1875
    %v2451 = vrot.slane %v2450, 4
    %v2452 = vadd.f32 %v2450, %v2451
    %v2453 = vrot.slane %v2452, 2
    %v2454 = vadd.f32 %v2452, %v2453
    %v2455 = vrot.slane %v2454, 1
    %v2456 = vadd.f32 %v2454, %v2455
    %v2457 = vadd.f32 %v1876, %v1877
    %v2458 = vrot.slane %v2457, 4
    %v2459 = vadd.f32 %v2457, %v2458
    %v2460 = vrot.slane %v2459, 2
    %v2461 = vadd.f32 %v2459, %v2460
    %v2462 = vrot.slane %v2461, 1
    %v2463 = vadd.f32 %v2461, %v2462
    %v2464 = vadd.f32 %v1878, %v1879
    %v2465 = vrot.slane %v2464, 4
    %v2466 = vadd.f32 %v2464, %v2465
    %v2467 = vrot.slane %v2466, 2
    %v2468 = vadd.f32 %v2466, %v2467
    %v2469 = vrot.slane %v2468, 1
    %v2470 = vadd.f32 %v2468, %v2469
    %v2471 = vadd.f32 %v1880, %v1881
    %v2472 = vrot.slane %v2471, 4
    %v2473 = vadd.f32 %v2471, %v2472
    %v2474 = vrot.slane %v2473, 2
    %v2475 = vadd.f32 %v2473, %v2474
    %v2476 = vrot.slane %v2475, 1
    %v2477 = vadd.f32 %v2475, %v2476
    %v2478 = vadd.f32 %v1882, %v1883
    %v2479 = vrot.slane %v2478, 4
    %v2480 = vadd.f32 %v2478, %v2479
    %v2481 = vrot.slane %v2480, 2
    %v2482 = vadd.f32 %v2480, %v2481
    %v2483 = vrot.slane %v2482, 1
    %v2484 = vadd.f32 %v2482, %v2483
    %v2485 = vadd.f32 %v1884, %v1885
    %v2486 = vrot.slane %v2485, 4
    %v2487 = vadd.f32 %v2485, %v2486
    %v2488 = vrot.slane %v2487, 2
    %v2489 = vadd.f32 %v2487, %v2488
    %v2490 = vrot.slane %v2489, 1
    %v2491 = vadd.f32 %v2489, %v2490
    %v2492 = vadd.f32 %v1886, %v1887
    %v2493 = vrot.slane %v2492, 4
    %v2494 = vadd.f32 %v2492, %v2493
    %v2495 = vrot.slane %v2494, 2
    %v2496 = vadd.f32 %v2494, %v2495
    %v2497 = vrot.slane %v2496, 1
    %v2498 = vadd.f32 %v2496, %v2497
    %v2499 = vadd.f32 %v1888, %v1889
    %v2500 = vrot.slane %v2499, 4
    %v2501 = vadd.f32 %v2499, %v2500
    %v2502 = vrot.slane %v2501, 2
    %v2503 = vadd.f32 %v2501, %v2502
    %v2504 = vrot.slane %v2503, 1
    %v2505 = vadd.f32 %v2503, %v2504
    %v2506 = vadd.f32 %v1890, %v1891
    %v2507 = vrot.slane %v2506, 4
    %v2508 = vadd.f32 %v2506, %v2507
    %v2509 = vrot.slane %v2508, 2
    %v2510 = vadd.f32 %v2508, %v2509
    %v2511 = vrot.slane %v2510, 1
    %v2512 = vadd.f32 %v2510, %v2511
    %v2513 = vadd.f32 %v1892, %v1893
    %v2514 = vrot.slane %v2513, 4
    %v2515 = vadd.f32 %v2513, %v2514
    %v2516 = vrot.slane %v2515, 2
    %v2517 = vadd.f32 %v2515, %v2516
    %v2518 = vrot.slane %v2517, 1
    %v2519 = vadd.f32 %v2517, %v2518
    %v2520 = vadd.f32 %v1894, %v1895
    %v2521 = vrot.slane %v2520, 4
    %v2522 = vadd.f32 %v2520, %v2521
    %v2523 = vrot.slane %v2522, 2
    %v2524 = vadd.f32 %v2522, %v2523
    %v2525 = vrot.slane %v2524, 1
    %v2526 = vadd.f32 %v2524, %v2525
    %v2527 = vadd.f32 %v1896, %v1897
    %v2528 = vrot.slane %v2527, 4
    %v2529 = vadd.f32 %v2527, %v2528
    %v2530 = vrot.slane %v2529, 2
    %v2531 = vadd.f32 %v2529, %v2530
    %v2532 = vrot.slane %v2531, 1
    %v2533 = vadd.f32 %v2531, %v2532
    %v2534 = vadd.f32 %v1898, %v1899
    %v2535 = vrot.slane %v2534, 4
    %v2536 = vadd.f32 %v2534, %v2535
    %v2537 = vrot.slane %v2536, 2
    %v2538 = vadd.f32 %v2536, %v2537
    %v2539 = vrot.slane %v2538, 1
    %v2540 = vadd.f32 %v2538, %v2539
    %v2541 = vadd.f32 %v1900, %v1901
    %v2542 = vrot.slane %v2541, 4
    %v2543 = vadd.f32 %v2541, %v2542
    %v2544 = vrot.slane %v2543, 2
    %v2545 = vadd.f32 %v2543, %v2544
    %v2546 = vrot.slane %v2545, 1
    %v2547 = vadd.f32 %v2545, %v2546
    %v2548 = vadd.f32 %v1902, %v1903
    %v2549 = vrot.slane %v2548, 4
    %v2550 = vadd.f32 %v2548, %v2549
    %v2551 = vrot.slane %v2550, 2
    %v2552 = vadd.f32 %v2550, %v2551
    %v2553 = vrot.slane %v2552, 1
    %v2554 = vadd.f32 %v2552, %v2553
    %v2555 = vadd.f32 %v1904, %v1905
    %v2556 = vrot.slane %v2555, 4
    %v2557 = vadd.f32 %v2555, %v2556
    %v2558 = vrot.slane %v2557, 2
    %v2559 = vadd.f32 %v2557, %v2558
    %v2560 = vrot.slane %v2559, 1
    %v2561 = vadd.f32 %v2559, %v2560
    %v2562 = vadd.f32 %v1906, %v1907
    %v2563 = vrot.slane %v2562, 4
    %v2564 = vadd.f32 %v2562, %v2563
    %v2565 = vrot.slane %v2564, 2
    %v2566 = vadd.f32 %v2564, %v2565
    %v2567 = vrot.slane %v2566, 1
    %v2568 = vadd.f32 %v2566, %v2567
    %v2569 = vadd.f32 %v1908, %v1909
    %v2570 = vrot.slane %v2569, 4
    %v2571 = vadd.f32 %v2569, %v2570
    %v2572 = vrot.slane %v2571, 2
    %v2573 = vadd.f32 %v2571, %v2572
    %v2574 = vrot.slane %v2573, 1
    %v2575 = vadd.f32 %v2573, %v2574
    %v2576 = vadd.f32 %v1910, %v1911
    %v2577 = vrot.slane %v2576, 4
    %v2578 = vadd.f32 %v2576, %v2577
    %v2579 = vrot.slane %v2578, 2
    %v2580 = vadd.f32 %v2578, %v2579
    %v2581 = vrot.slane %v2580, 1
    %v2582 = vadd.f32 %v2580, %v2581
    %v2583 = vadd.f32 %v1912, %v1913
    %v2584 = vrot.slane %v2583, 4
    %v2585 = vadd.f32 %v2583, %v2584
    %v2586 = vrot.slane %v2585, 2
    %v2587 = vadd.f32 %v2585, %v2586
    %v2588 = vrot.slane %v2587, 1
    %v2589 = vadd.f32 %v2587, %v2588
    %v2590 = vadd.f32 %v1914, %v1915
    %v2591 = vrot.slane %v2590, 4
    %v2592 = vadd.f32 %v2590, %v2591
    %v2593 = vrot.slane %v2592, 2
    %v2594 = vadd.f32 %v2592, %v2593
    %v2595 = vrot.slane %v2594, 1
    %v2596 = vadd.f32 %v2594, %v2595
    %v2597 = vadd.f32 %v1916, %v1917
    %v2598 = vrot.slane %v2597, 4
    %v2599 = vadd.f32 %v2597, %v2598
    %v2600 = vrot.slane %v2599, 2
    %v2601 = vadd.f32 %v2599, %v2600
    %v2602 = vrot.slane %v2601, 1
    %v2603 = vadd.f32 %v2601, %v2602
    %v2604 = vadd.f32 %v1918, %v1919
    %v2605 = vrot.slane %v2604, 4
    %v2606 = vadd.f32 %v2604, %v2605
    %v2607 = vrot.slane %v2606, 2
    %v2608 = vadd.f32 %v2606, %v2607
    %v2609 = vrot.slane %v2608, 1
    %v2610 = vadd.f32 %v2608, %v2609
    %v2611 = vadd.f32 %v1920, %v1921
    %v2612 = vrot.slane %v2611, 4
    %v2613 = vadd.f32 %v2611, %v2612
    %v2614 = vrot.slane %v2613, 2
    %v2615 = vadd.f32 %v2613, %v2614
    %v2616 = vrot.slane %v2615, 1
    %v2617 = vadd.f32 %v2615, %v2616
    %v2618 = vadd.f32 %v1922, %v1923
    %v2619 = vrot.slane %v2618, 4
    %v2620 = vadd.f32 %v2618, %v2619
    %v2621 = vrot.slane %v2620, 2
    %v2622 = vadd.f32 %v2620, %v2621
    %v2623 = vrot.slane %v2622, 1
    %v2624 = vadd.f32 %v2622, %v2623
    %v2625 = vadd.f32 %v1924, %v1925
    %v2626 = vrot.slane %v2625, 4
    %v2627 = vadd.f32 %v2625, %v2626
    %v2628 = vrot.slane %v2627, 2
    %v2629 = vadd.f32 %v2627, %v2628
    %v2630 = vrot.slane %v2629, 1
    %v2631 = vadd.f32 %v2629, %v2630
    %v2632 = vadd.f32 %v1926, %v1927
    %v2633 = vrot.slane %v2632, 4
    %v2634 = vadd.f32 %v2632, %v2633
    %v2635 = vrot.slane %v2634, 2
    %v2636 = vadd.f32 %v2634, %v2635
    %v2637 = vrot.slane %v2636, 1
    %v2638 = vadd.f32 %v2636, %v2637
    %v2639 = vadd.f32 %v1928, %v1929
    %v2640 = vrot.slane %v2639, 4
    %v2641 = vadd.f32 %v2639, %v2640
    %v2642 = vrot.slane %v2641, 2
    %v2643 = vadd.f32 %v2641, %v2642
    %v2644 = vrot.slane %v2643, 1
    %v2645 = vadd.f32 %v2643, %v2644
    %v2646 = vadd.f32 %v1930, %v1931
    %v2647 = vrot.slane %v2646, 4
    %v2648 = vadd.f32 %v2646, %v2647
    %v2649 = vrot.slane %v2648, 2
    %v2650 = vadd.f32 %v2648, %v2649
    %v2651 = vrot.slane %v2650, 1
    %v2652 = vadd.f32 %v2650, %v2651
    %v2653 = vadd.f32 %v1932, %v1933
    %v2654 = vrot.slane %v2653, 4
    %v2655 = vadd.f32 %v2653, %v2654
    %v2656 = vrot.slane %v2655, 2
    %v2657 = vadd.f32 %v2655, %v2656
    %v2658 = vrot.slane %v2657, 1
    %v2659 = vadd.f32 %v2657, %v2658
    %v2660 = vadd.f32 %v1934, %v1935
    %v2661 = vrot.slane %v2660, 4
    %v2662 = vadd.f32 %v2660, %v2661
    %v2663 = vrot.slane %v2662, 2
    %v2664 = vadd.f32 %v2662, %v2663
    %v2665 = vrot.slane %v2664, 1
    %v2666 = vadd.f32 %v2664, %v2665
    %v2667 = vadd.f32 %v1936, %v1937
    %v2668 = vrot.slane %v2667, 4
    %v2669 = vadd.f32 %v2667, %v2668
    %v2670 = vrot.slane %v2669, 2
    %v2671 = vadd.f32 %v2669, %v2670
    %v2672 = vrot.slane %v2671, 1
    %v2673 = vadd.f32 %v2671, %v2672
    %v2674 = vadd.f32 %v1938, %v1939
    %v2675 = vrot.slane %v2674, 4
    %v2676 = vadd.f32 %v2674, %v2675
    %v2677 = vrot.slane %v2676, 2
    %v2678 = vadd.f32 %v2676, %v2677
    %v2679 = vrot.slane %v2678, 1
    %v2680 = vadd.f32 %v2678, %v2679
    %v2681 = vadd.f32 %v1940, %v1941
    %v2682 = vrot.slane %v2681, 4
    %v2683 = vadd.f32 %v2681, %v2682
    %v2684 = vrot.slane %v2683, 2
    %v2685 = vadd.f32 %v2683, %v2684
    %v2686 = vrot.slane %v2685, 1
    %v2687 = vadd.f32 %v2685, %v2686
    %v2688 = vadd.f32 %v1942, %v1943
    %v2689 = vrot.slane %v2688, 4
    %v2690 = vadd.f32 %v2688, %v2689
    %v2691 = vrot.slane %v2690, 2
    %v2692 = vadd.f32 %v2690, %v2691
    %v2693 = vrot.slane %v2692, 1
    %v2694 = vadd.f32 %v2692, %v2693
    %v2695 = vadd.f32 %v1944, %v1945
    %v2696 = vrot.slane %v2695, 4
    %v2697 = vadd.f32 %v2695, %v2696
    %v2698 = vrot.slane %v2697, 2
    %v2699 = vadd.f32 %v2697, %v2698
    %v2700 = vrot.slane %v2699, 1
    %v2701 = vadd.f32 %v2699, %v2700
    %v2702 = vadd.f32 %v1946, %v1947
    %v2703 = vrot.slane %v2702, 4
    %v2704 = vadd.f32 %v2702, %v2703
    %v2705 = vrot.slane %v2704, 2
    %v2706 = vadd.f32 %v2704, %v2705
    %v2707 = vrot.slane %v2706, 1
    %v2708 = vadd.f32 %v2706, %v2707
    %v2709 = vadd.f32 %v1948, %v1949
    %v2710 = vrot.slane %v2709, 4
    %v2711 = vadd.f32 %v2709, %v2710
    %v2712 = vrot.slane %v2711, 2
    %v2713 = vadd.f32 %v2711, %v2712
    %v2714 = vrot.slane %v2713, 1
    %v2715 = vadd.f32 %v2713, %v2714
    %v2716 = vadd.f32 %v1950, %v1951
    %v2717 = vrot.slane %v2716, 4
    %v2718 = vadd.f32 %v2716, %v2717
    %v2719 = vrot.slane %v2718, 2
    %v2720 = vadd.f32 %v2718, %v2719
    %v2721 = vrot.slane %v2720, 1
    %v2722 = vadd.f32 %v2720, %v2721
    %v2723 = vadd.f32 %v1952, %v1953
    %v2724 = vrot.slane %v2723, 4
    %v2725 = vadd.f32 %v2723, %v2724
    %v2726 = vrot.slane %v2725, 2
    %v2727 = vadd.f32 %v2725, %v2726
    %v2728 = vrot.slane %v2727, 1
    %v2729 = vadd.f32 %v2727, %v2728
    %v2730 = vadd.f32 %v1954, %v1955
    %v2731 = vrot.slane %v2730, 4
    %v2732 = vadd.f32 %v2730, %v2731
    %v2733 = vrot.slane %v2732, 2
    %v2734 = vadd.f32 %v2732, %v2733
    %v2735 = vrot.slane %v2734, 1
    %v2736 = vadd.f32 %v2734, %v2735
    %v2737 = vadd.f32 %v1956, %v1957
    %v2738 = vrot.slane %v2737, 4
    %v2739 = vadd.f32 %v2737, %v2738
    %v2740 = vrot.slane %v2739, 2
    %v2741 = vadd.f32 %v2739, %v2740
    %v2742 = vrot.slane %v2741, 1
    %v2743 = vadd.f32 %v2741, %v2742
    %v2744 = vadd.f32 %v1958, %v1959
    %v2745 = vrot.slane %v2744, 4
    %v2746 = vadd.f32 %v2744, %v2745
    %v2747 = vrot.slane %v2746, 2
    %v2748 = vadd.f32 %v2746, %v2747
    %v2749 = vrot.slane %v2748, 1
    %v2750 = vadd.f32 %v2748, %v2749
    %v2751 = vadd.f32 %v1960, %v1961
    %v2752 = vrot.slane %v2751, 4
    %v2753 = vadd.f32 %v2751, %v2752
    %v2754 = vrot.slane %v2753, 2
    %v2755 = vadd.f32 %v2753, %v2754
    %v2756 = vrot.slane %v2755, 1
    %v2757 = vadd.f32 %v2755, %v2756
    %v2758 = vadd.f32 %v1962, %v1963
    %v2759 = vrot.slane %v2758, 4
    %v2760 = vadd.f32 %v2758, %v2759
    %v2761 = vrot.slane %v2760, 2
    %v2762 = vadd.f32 %v2760, %v2761
    %v2763 = vrot.slane %v2762, 1
    %v2764 = vadd.f32 %v2762, %v2763
    %v2765 = vadd.f32 %v1964, %v1965
    %v2766 = vrot.slane %v2765, 4
    %v2767 = vadd.f32 %v2765, %v2766
    %v2768 = vrot.slane %v2767, 2
    %v2769 = vadd.f32 %v2767, %v2768
    %v2770 = vrot.slane %v2769, 1
    %v2771 = vadd.f32 %v2769, %v2770
    %v2772 = vadd.f32 %v1966, %v1967
    %v2773 = vrot.slane %v2772, 4
    %v2774 = vadd.f32 %v2772, %v2773
    %v2775 = vrot.slane %v2774, 2
    %v2776 = vadd.f32 %v2774, %v2775
    %v2777 = vrot.slane %v2776, 1
    %v2778 = vadd.f32 %v2776, %v2777
    %v2779 = vadd.f32 %v1968, %v1969
    %v2780 = vrot.slane %v2779, 4
    %v2781 = vadd.f32 %v2779, %v2780
    %v2782 = vrot.slane %v2781, 2
    %v2783 = vadd.f32 %v2781, %v2782
    %v2784 = vrot.slane %v2783, 1
    %v2785 = vadd.f32 %v2783, %v2784
    %v2786 = vadd.f32 %v1970, %v1971
    %v2787 = vrot.slane %v2786, 4
    %v2788 = vadd.f32 %v2786, %v2787
    %v2789 = vrot.slane %v2788, 2
    %v2790 = vadd.f32 %v2788, %v2789
    %v2791 = vrot.slane %v2790, 1
    %v2792 = vadd.f32 %v2790, %v2791
    %v2793 = vadd.f32 %v1972, %v1973
    %v2794 = vrot.slane %v2793, 4
    %v2795 = vadd.f32 %v2793, %v2794
    %v2796 = vrot.slane %v2795, 2
    %v2797 = vadd.f32 %v2795, %v2796
    %v2798 = vrot.slane %v2797, 1
    %v2799 = vadd.f32 %v2797, %v2798
    %v2800 = vadd.f32 %v1974, %v1975
    %v2801 = vrot.slane %v2800, 4
    %v2802 = vadd.f32 %v2800, %v2801
    %v2803 = vrot.slane %v2802, 2
    %v2804 = vadd.f32 %v2802, %v2803
    %v2805 = vrot.slane %v2804, 1
    %v2806 = vadd.f32 %v2804, %v2805
    %v2807 = vadd.f32 %v1976, %v1977
    %v2808 = vrot.slane %v2807, 4
    %v2809 = vadd.f32 %v2807, %v2808
    %v2810 = vrot.slane %v2809, 2
    %v2811 = vadd.f32 %v2809, %v2810
    %v2812 = vrot.slane %v2811, 1
    %v2813 = vadd.f32 %v2811, %v2812
    %v2814 = vadd.f32 %v1978, %v1979
    %v2815 = vrot.slane %v2814, 4
    %v2816 = vadd.f32 %v2814, %v2815
    %v2817 = vrot.slane %v2816, 2
    %v2818 = vadd.f32 %v2816, %v2817
    %v2819 = vrot.slane %v2818, 1
    %v2820 = vadd.f32 %v2818, %v2819
    %v2821 = vadd.f32 %v1980, %v1981
    %v2822 = vrot.slane %v2821, 4
    %v2823 = vadd.f32 %v2821, %v2822
    %v2824 = vrot.slane %v2823, 2
    %v2825 = vadd.f32 %v2823, %v2824
    %v2826 = vrot.slane %v2825, 1
    %v2827 = vadd.f32 %v2825, %v2826
    %v2828 = vadd.f32 %v1982, %v1983
    %v2829 = vrot.slane %v2828, 4
    %v2830 = vadd.f32 %v2828, %v2829
    %v2831 = vrot.slane %v2830, 2
    %v2832 = vadd.f32 %v2830, %v2831
    %v2833 = vrot.slane %v2832, 1
    %v2834 = vadd.f32 %v2832, %v2833
    %v2835 = vadd.f32 %v1984, %v1985
    %v2836 = vrot.slane %v2835, 4
    %v2837 = vadd.f32 %v2835, %v2836
    %v2838 = vrot.slane %v2837, 2
    %v2839 = vadd.f32 %v2837, %v2838
    %v2840 = vrot.slane %v2839, 1
    %v2841 = vadd.f32 %v2839, %v2840
    %v2842 = vadd.f32 %v1986, %v1987
    %v2843 = vrot.slane %v2842, 4
    %v2844 = vadd.f32 %v2842, %v2843
    %v2845 = vrot.slane %v2844, 2
    %v2846 = vadd.f32 %v2844, %v2845
    %v2847 = vrot.slane %v2846, 1
    %v2848 = vadd.f32 %v2846, %v2847
    %v2849 = vadd.f32 %v1988, %v1989
    %v2850 = vrot.slane %v2849, 4
    %v2851 = vadd.f32 %v2849, %v2850
    %v2852 = vrot.slane %v2851, 2
    %v2853 = vadd.f32 %v2851, %v2852
    %v2854 = vrot.slane %v2853, 1
    %v2855 = vadd.f32 %v2853, %v2854
    %v2856 = vadd.f32 %v1990, %v1991
    %v2857 = vrot.slane %v2856, 4
    %v2858 = vadd.f32 %v2856, %v2857
    %v2859 = vrot.slane %v2858, 2
    %v2860 = vadd.f32 %v2858, %v2859
    %v2861 = vrot.slane %v2860, 1
    %v2862 = vadd.f32 %v2860, %v2861
    %v2863 = vadd.f32 %v1992, %v1993
    %v2864 = vrot.slane %v2863, 4
    %v2865 = vadd.f32 %v2863, %v2864
    %v2866 = vrot.slane %v2865, 2
    %v2867 = vadd.f32 %v2865, %v2866
    %v2868 = vrot.slane %v2867, 1
    %v2869 = vadd.f32 %v2867, %v2868
    %v2870 = vadd.f32 %v1994, %v1995
    %v2871 = vrot.slane %v2870, 4
    %v2872 = vadd.f32 %v2870, %v2871
    %v2873 = vrot.slane %v2872, 2
    %v2874 = vadd.f32 %v2872, %v2873
    %v2875 = vrot.slane %v2874, 1
    %v2876 = vadd.f32 %v2874, %v2875
    %v2877 = vadd.f32 %v1996, %v1997
    %v2878 = vrot.slane %v2877, 4
    %v2879 = vadd.f32 %v2877, %v2878
    %v2880 = vrot.slane %v2879, 2
    %v2881 = vadd.f32 %v2879, %v2880
    %v2882 = vrot.slane %v2881, 1
    %v2883 = vadd.f32 %v2881, %v2882
    %v2884 = vadd.f32 %v1998, %v1999
    %v2885 = vrot.slane %v2884, 4
    %v2886 = vadd.f32 %v2884, %v2885
    %v2887 = vrot.slane %v2886, 2
    %v2888 = vadd.f32 %v2886, %v2887
    %v2889 = vrot.slane %v2888, 1
    %v2890 = vadd.f32 %v2888, %v2889
    %v2891 = vadd.f32 %v2000, %v2001
    %v2892 = vrot.slane %v2891, 4
    %v2893 = vadd.f32 %v2891, %v2892
    %v2894 = vrot.slane %v2893, 2
    %v2895 = vadd.f32 %v2893, %v2894
    %v2896 = vrot.slane %v2895, 1
    %v2897 = vadd.f32 %v2895, %v2896
    %vm2898 = vcmask 130048
    %v2899 = vsel %vm2898, %v117, 0.0
    %2900 = vadd.xlane.f32.xlu0 %v2899
    %v2901 = vpop.xlane.xlu0 %2900
    %v2902 = vsel %vm2898, %v118, 0.0
    %2903 = vadd.xlane.f32.xlu0 %v2902
    %v2904 = vpop.xlane.xlu0 %2903
    %v2905 = vsel %vm2898, %v119, 0.0
    %2906 = vadd.xlane.f32.xlu0 %v2905
    %v2907 = vpop.xlane.xlu0 %2906
    %v2908 = vsel %vm2898, %v120, 0.0
    %2909 = vadd.xlane.f32.xlu0 %v2908
    %v2910 = vpop.xlane.xlu0 %2909
    %v2911 = vsel %vm2898, %v121, 0.0
    %2912 = vadd.xlane.f32.xlu0 %v2911
    %v2913 = vpop.xlane.xlu0 %2912
    %v2914 = vsel %vm2898, %v122, 0.0
    %2915 = vadd.xlane.f32.xlu0 %v2914
    %v2916 = vpop.xlane.xlu0 %2915
    %v2917 = vsel %vm2898, %v123, 0.0
    %2918 = vadd.xlane.f32.xlu0 %v2917
    %v2919 = vpop.xlane.xlu0 %2918
    %v2920 = vsel %vm2898, %v124, 0.0
    %2921 = vadd.xlane.f32.xlu0 %v2920
    %v2922 = vpop.xlane.xlu0 %2921
    %v2923 = vsel %vm2898, %v125, 0.0
    %2924 = vadd.xlane.f32.xlu0 %v2923
    %v2925 = vpop.xlane.xlu0 %2924
    %v2926 = vsel %vm2898, %v126, 0.0
    %2927 = vadd.xlane.f32.xlu0 %v2926
    %v2928 = vpop.xlane.xlu0 %2927
    %v2929 = vsel %vm2898, %v127, 0.0
    %2930 = vadd.xlane.f32.xlu0 %v2929
    %v2931 = vpop.xlane.xlu0 %2930
    %v2932 = vsel %vm2898, %v128, 0.0
    %2933 = vadd.xlane.f32.xlu0 %v2932
    %v2934 = vpop.xlane.xlu0 %2933
    %v2935 = vsel %vm2898, %v129, 0.0
    %2936 = vadd.xlane.f32.xlu0 %v2935
    %v2937 = vpop.xlane.xlu0 %2936
    %v2938 = vsel %vm2898, %v130, 0.0
    %2939 = vadd.xlane.f32.xlu0 %v2938
    %v2940 = vpop.xlane.xlu0 %2939
    %v2941 = vsel %vm2898, %v131, 0.0
    %2942 = vadd.xlane.f32.xlu0 %v2941
    %v2943 = vpop.xlane.xlu0 %2942
    %v2944 = vsel %vm2898, %v132, 0.0
    %2945 = vadd.xlane.f32.xlu0 %v2944
    %v2946 = vpop.xlane.xlu0 %2945
    %v2947 = vld [vmem:[#allocation8] sm:$0xff]
    %v2948 = vld [vmem:[#allocation8 + $0x8] sm:$0xff]
    %v2949 = vld [vmem:[#allocation8 + $0x10] sm:$0xff]
    %v2950 = vld [vmem:[#allocation8 + $0x18] sm:$0xff]
    %v2951 = vld [vmem:[#allocation8 + $0x20] sm:$0xff]
    %v2952 = vld [vmem:[#allocation8 + $0x28] sm:$0xff]
    %v2953 = vld [vmem:[#allocation8 + $0x30] sm:$0xff]
    %v2954 = vld [vmem:[#allocation8 + $0x38] sm:$0xff]
    %v2955 = vld [vmem:[#allocation8 + $0x40] sm:$0xff]
    %v2956 = vld [vmem:[#allocation8 + $0x48] sm:$0xff]
    %v2957 = vld [vmem:[#allocation8 + $0x50] sm:$0xff]
    %v2958 = vld [vmem:[#allocation8 + $0x58] sm:$0xff]
    %v2959 = vld [vmem:[#allocation8 + $0x60] sm:$0xff]
    %v2960 = vld [vmem:[#allocation8 + $0x68] sm:$0xff]
    %v2961 = vld [vmem:[#allocation8 + $0x70] sm:$0xff]
    %v2962 = vld [vmem:[#allocation8 + $0x78] sm:$0xff]
    %v2963 = vld [vmem:[#allocation8 + $0x80] sm:$0xff]
    %v2964 = vld [vmem:[#allocation8 + $0x88] sm:$0xff]
    %v2965 = vld [vmem:[#allocation8 + $0x90] sm:$0xff]
    %v2966 = vld [vmem:[#allocation8 + $0x98] sm:$0xff]
    %v2967 = vld [vmem:[#allocation8 + $0xa0] sm:$0xff]
    %v2968 = vld [vmem:[#allocation8 + $0xa8] sm:$0xff]
    %v2969 = vld [vmem:[#allocation8 + $0xb0] sm:$0xff]
    %v2970 = vld [vmem:[#allocation8 + $0xb8] sm:$0xff]
    %v2971 = vld [vmem:[#allocation8 + $0xc0] sm:$0xff]
    %v2972 = vld [vmem:[#allocation8 + $0xc8] sm:$0xff]
    %v2973 = vld [vmem:[#allocation8 + $0xd0] sm:$0xff]
    %v2974 = vld [vmem:[#allocation8 + $0xd8] sm:$0xff]
    %v2975 = vld [vmem:[#allocation8 + $0xe0] sm:$0xff]
    %v2976 = vld [vmem:[#allocation8 + $0xe8] sm:$0xff]
    %v2977 = vld [vmem:[#allocation8 + $0xf0] sm:$0xff]
    %v2978 = vld [vmem:[#allocation8 + $0xf8] sm:$0xff]
    %v2979 = vld [vmem:[#allocation8 + $0x100] sm:$0xff]
    %v2980 = vld [vmem:[#allocation8 + $0x108] sm:$0xff]
    %v2981 = vld [vmem:[#allocation8 + $0x110] sm:$0xff]
    %v2982 = vld [vmem:[#allocation8 + $0x118] sm:$0xff]
    %v2983 = vld [vmem:[#allocation8 + $0x120] sm:$0xff]
    %v2984 = vld [vmem:[#allocation8 + $0x128] sm:$0xff]
    %v2985 = vld [vmem:[#allocation8 + $0x130] sm:$0xff]
    %v2986 = vld [vmem:[#allocation8 + $0x138] sm:$0xff]
    %v2987 = vld [vmem:[#allocation8 + $0x140] sm:$0xff]
    %v2988 = vld [vmem:[#allocation8 + $0x148] sm:$0xff]
    %v2989 = vld [vmem:[#allocation8 + $0x150] sm:$0xff]
    %v2990 = vld [vmem:[#allocation8 + $0x158] sm:$0xff]
    %v2991 = vld [vmem:[#allocation8 + $0x160] sm:$0xff]
    %v2992 = vld [vmem:[#allocation8 + $0x168] sm:$0xff]
    %v2993 = vld [vmem:[#allocation8 + $0x170] sm:$0xff]
    %v2994 = vld [vmem:[#allocation8 + $0x178] sm:$0xff]
    %v2995 = vld [vmem:[%s5] sm:$0x7]
    %v2997 = vlaneseq
    %v2998 = vshrl.u32 %v2997, 7
    %v2999 = vsub.s32 0, %v2998
    %v3000 = vrot.slane %v2995, %v2999
    %v3001 = vlaneseq
    %v3002 = vshrl.u32 %v3001, 7
    %v3003 = vsub.s32 1, %v3002
    %v3004 = vrot.slane %v2995, %v3003
    %v3005 = vlaneseq
    %v3006 = vshrl.u32 %v3005, 7
    %v3007 = vsub.s32 2, %v3006
    %v3008 = vrot.slane %v2995, %v3007
    %v3012 = vmul.f32 %v2901, %v3000
    %v3013 = vmul.f32 %v2901, %v3004
    %v3014 = vmul.f32 %v2901, %v3008
    %v3015 = vmul.f32 %v2904, %v3000
    %v3016 = vmul.f32 %v2904, %v3004
    %v3017 = vmul.f32 %v2904, %v3008
    %v3018 = vmul.f32 %v2907, %v3000
    %v3019 = vmul.f32 %v2907, %v3004
    %v3020 = vmul.f32 %v2907, %v3008
    %v3021 = vmul.f32 %v2910, %v3000
    %v3022 = vmul.f32 %v2910, %v3004
    %v3023 = vmul.f32 %v2910, %v3008
    %v3024 = vmul.f32 %v2913, %v3000
    %v3025 = vmul.f32 %v2913, %v3004
    %v3026 = vmul.f32 %v2913, %v3008
    %v3027 = vmul.f32 %v2916, %v3000
    %v3028 = vmul.f32 %v2916, %v3004
    %v3029 = vmul.f32 %v2916, %v3008
    %v3030 = vmul.f32 %v2919, %v3000
    %v3031 = vmul.f32 %v2919, %v3004
    %v3032 = vmul.f32 %v2919, %v3008
    %v3033 = vmul.f32 %v2922, %v3000
    %v3034 = vmul.f32 %v2922, %v3004
    %v3035 = vmul.f32 %v2922, %v3008
    %v3036 = vmul.f32 %v2925, %v3000
    %v3037 = vmul.f32 %v2925, %v3004
    %v3038 = vmul.f32 %v2925, %v3008
    %v3039 = vmul.f32 %v2928, %v3000
    %v3040 = vmul.f32 %v2928, %v3004
    %v3041 = vmul.f32 %v2928, %v3008
    %v3042 = vmul.f32 %v2931, %v3000
    %v3043 = vmul.f32 %v2931, %v3004
    %v3044 = vmul.f32 %v2931, %v3008
    %v3045 = vmul.f32 %v2934, %v3000
    %v3046 = vmul.f32 %v2934, %v3004
    %v3047 = vmul.f32 %v2934, %v3008
    %v3048 = vmul.f32 %v2937, %v3000
    %v3049 = vmul.f32 %v2937, %v3004
    %v3050 = vmul.f32 %v2937, %v3008
    %v3051 = vmul.f32 %v2940, %v3000
    %v3052 = vmul.f32 %v2940, %v3004
    %v3053 = vmul.f32 %v2940, %v3008
    %v3054 = vmul.f32 %v2943, %v3000
    %v3055 = vmul.f32 %v2943, %v3004
    %v3056 = vmul.f32 %v2943, %v3008
    %v3057 = vmul.f32 %v2946, %v3000
    %v3058 = vmul.f32 %v2946, %v3004
    %v3059 = vmul.f32 %v2946, %v3008
    %vm3188 = vcmask 1041409
    %v3189 = vsel %vm3188, %v2015, %v2008
    %vm3190 = vcmask 1042434
    %v3191 = vsel %vm3190, %v2022, %v3189
    %vm3192 = vcmask 1043459
    %v3193 = vsel %vm3192, %v2029, %v3191
    %vm3194 = vcmask 1044484
    %v3195 = vsel %vm3194, %v2036, %v3193
    %vm3196 = vcmask 1045509
    %v3197 = vsel %vm3196, %v2043, %v3195
    %vm3198 = vcmask 1046534
    %v3199 = vsel %vm3198, %v2050, %v3197
    %vm3200 = vcmask 1047559
    %v3201 = vsel %vm3200, %v2057, %v3199
    %v3202 = vsel %vm3188, %v2071, %v2064
    %v3203 = vsel %vm3190, %v2078, %v3202
    %v3204 = vsel %vm3192, %v2085, %v3203
    %v3205 = vsel %vm3194, %v2092, %v3204
    %v3206 = vsel %vm3196, %v2099, %v3205
    %v3207 = vsel %vm3198, %v2106, %v3206
    %v3208 = vsel %vm3200, %v2113, %v3207
    %v3209 = vsel %vm3188, %v2127, %v2120
    %v3210 = vsel %vm3190, %v2134, %v3209
    %v3211 = vsel %vm3192, %v2141, %v3210
    %v3212 = vsel %vm3194, %v2148, %v3211
    %v3213 = vsel %vm3196, %v2155, %v3212
    %v3214 = vsel %vm3198, %v2162, %v3213
    %v3215 = vsel %vm3200, %v2169, %v3214
    %v3216 = vsel %vm3188, %v2183, %v2176
    %v3217 = vsel %vm3190, %v2190, %v3216
    %v3218 = vsel %vm3192, %v2197, %v3217
    %v3219 = vsel %vm3194, %v2204, %v3218
    %v3220 = vsel %vm3196, %v2211, %v3219
    %v3221 = vsel %vm3198, %v2218, %v3220
    %v3222 = vsel %vm3200, %v2225, %v3221
    %v3223 = vsel %vm3188, %v2239, %v2232
    %v3224 = vsel %vm3190, %v2246, %v3223
    %v3225 = vsel %vm3192, %v2253, %v3224
    %v3226 = vsel %vm3194, %v2260, %v3225
    %v3227 = vsel %vm3196, %v2267, %v3226
    %v3228 = vsel %vm3198, %v2274, %v3227
    %v3229 = vsel %vm3200, %v2281, %v3228
    %v3230 = vsel %vm3188, %v2295, %v2288
    %v3231 = vsel %vm3190, %v2302, %v3230
    %v3232 = vsel %vm3192, %v2309, %v3231
    %v3233 = vsel %vm3194, %v2316, %v3232
    %v3234 = vsel %vm3196, %v2323, %v3233
    %v3235 = vsel %vm3198, %v2330, %v3234
    %v3236 = vsel %vm3200, %v2337, %v3235
    %v3237 = vsel %vm3188, %v2351, %v2344
    %v3238 = vsel %vm3190, %v2358, %v3237
    %v3239 = vsel %vm3192, %v2365, %v3238
    %v3240 = vsel %vm3194, %v2372, %v3239
    %v3241 = vsel %vm3196, %v2379, %v3240
    %v3242 = vsel %vm3198, %v2386, %v3241
    %v3243 = vsel %vm3200, %v2393, %v3242
    %v3244 = vsel %vm3188, %v2407, %v2400
    %v3245 = vsel %vm3190, %v2414, %v3244
    %v3246 = vsel %vm3192, %v2421, %v3245
    %v3247 = vsel %vm3194, %v2428, %v3246
    %v3248 = vsel %vm3196, %v2435, %v3247
    %v3249 = vsel %vm3198, %v2442, %v3248
    %v3250 = vsel %vm3200, %v2449, %v3249
    %v3251 = vsel %vm3188, %v2463, %v2456
    %v3252 = vsel %vm3190, %v2470, %v3251
    %v3253 = vsel %vm3192, %v2477, %v3252
    %v3254 = vsel %vm3194, %v2484, %v3253
    %v3255 = vsel %vm3196, %v2491, %v3254
    %v3256 = vsel %vm3198, %v2498, %v3255
    %v3257 = vsel %vm3200, %v2505, %v3256
    %v3258 = vsel %vm3188, %v2519, %v2512
    %v3259 = vsel %vm3190, %v2526, %v3258
    %v3260 = vsel %vm3192, %v2533, %v3259
    %v3261 = vsel %vm3194, %v2540, %v3260
    %v3262 = vsel %vm3196, %v2547, %v3261
    %v3263 = vsel %vm3198, %v2554, %v3262
    %v3264 = vsel %vm3200, %v2561, %v3263
    %v3265 = vsel %vm3188, %v2575, %v2568
    %v3266 = vsel %vm3190, %v2582, %v3265
    %v3267 = vsel %vm3192, %v2589, %v3266
    %v3268 = vsel %vm3194, %v2596, %v3267
    %v3269 = vsel %vm3196, %v2603, %v3268
    %v3270 = vsel %vm3198, %v2610, %v3269
    %v3271 = vsel %vm3200, %v2617, %v3270
    %v3272 = vsel %vm3188, %v2631, %v2624
    %v3273 = vsel %vm3190, %v2638, %v3272
    %v3274 = vsel %vm3192, %v2645, %v3273
    %v3275 = vsel %vm3194, %v2652, %v3274
    %v3276 = vsel %vm3196, %v2659, %v3275
    %v3277 = vsel %vm3198, %v2666, %v3276
    %v3278 = vsel %vm3200, %v2673, %v3277
    %v3279 = vsel %vm3188, %v2687, %v2680
    %v3280 = vsel %vm3190, %v2694, %v3279
    %v3281 = vsel %vm3192, %v2701, %v3280
    %v3282 = vsel %vm3194, %v2708, %v3281
    %v3283 = vsel %vm3196, %v2715, %v3282
    %v3284 = vsel %vm3198, %v2722, %v3283
    %v3285 = vsel %vm3200, %v2729, %v3284
    %v3286 = vsel %vm3188, %v2743, %v2736
    %v3287 = vsel %vm3190, %v2750, %v3286
    %v3288 = vsel %vm3192, %v2757, %v3287
    %v3289 = vsel %vm3194, %v2764, %v3288
    %v3290 = vsel %vm3196, %v2771, %v3289
    %v3291 = vsel %vm3198, %v2778, %v3290
    %v3292 = vsel %vm3200, %v2785, %v3291
    %v3293 = vsel %vm3188, %v2799, %v2792
    %v3294 = vsel %vm3190, %v2806, %v3293
    %v3295 = vsel %vm3192, %v2813, %v3294
    %v3296 = vsel %vm3194, %v2820, %v3295
    %v3297 = vsel %vm3196, %v2827, %v3296
    %v3298 = vsel %vm3198, %v2834, %v3297
    %v3299 = vsel %vm3200, %v2841, %v3298
    %v3300 = vsel %vm3188, %v2855, %v2848
    %v3301 = vsel %vm3190, %v2862, %v3300
    %v3302 = vsel %vm3192, %v2869, %v3301
    %v3303 = vsel %vm3194, %v2876, %v3302
    %v3304 = vsel %vm3196, %v2883, %v3303
    %v3305 = vsel %vm3198, %v2890, %v3304
    %v3306 = vsel %vm3200, %v2897, %v3305
    %3323 = vmatprep.subr.mxu0 %v2948
    %3324 = vmatpush1.msra.mxu0 %v2947
    %3325 = vmatprep.subr.mxu0 %v2951
    %3326 = vmatpush1.msra.mxu0 %v2950
    %3327 = vmatprep.subr.mxu0 %v2954
    %3328 = vmatpush1.msra.mxu0 %v2953
    %3329 = vmatprep.subr.mxu0 %v2957
    %3330 = vmatpush1.msra.mxu0 %v2956
    %3331 = vmatprep.subr.mxu0 %v2960
    %3332 = vmatpush1.msra.mxu0 %v2959
    %3333 = vmatprep.subr.mxu0 %v2963
    %3334 = vmatpush1.msra.mxu0 %v2962
    %3335 = vmatprep.subr.mxu0 %v2966
    %3336 = vmatpush1.msra.mxu0 %v2965
    %3337 = vmatprep.subr.mxu0 %v2969
    %3338 = vmatpush1.msra.mxu0 %v2968
    %3339 = vmatprep.subr.mxu0 %v2972
    %3340 = vmatpush1.msra.mxu0 %v2971
    %3341 = vmatprep.subr.mxu0 %v2975
    %3342 = vmatpush1.msra.mxu0 %v2974
    %3343 = vmatprep.subr.mxu0 %v2978
    %3344 = vmatpush1.msra.mxu0 %v2977
    %3345 = vmatprep.subr.mxu0 %v2981
    %3346 = vmatpush1.msra.mxu0 %v2980
    %3347 = vmatprep.subr.mxu0 %v2984
    %3348 = vmatpush1.msra.mxu0 %v2983
    %3349 = vmatprep.subr.mxu0 %v2987
    %3350 = vmatpush1.msra.mxu0 %v2986
    %3351 = vmatprep.subr.mxu0 %v2990
    %3352 = vmatpush1.msra.mxu0 %v2989
    %3353 = vmatprep.subr.mxu0 %v2993
    %3354 = vmatpush1.msra.mxu0 %v2992
    %3355 = vmatprep.subr.mxu0 0.0
    %3356 = vmatpush1.msra.mxu0 0.0
    %3357 = vmatprep.subr.mxu0 0.0
    %3358 = vmatpush1.msra.mxu0 0.0
    %3359 = vmatprep.subr.mxu0 0.0
    %3360 = vmatpush1.msra.mxu0 0.0
    %3361 = vmatprep.subr.mxu0 0.0
    %3362 = vmatpush1.msra.mxu0 0.0
    %3363 = vmatprep.subr.mxu0 0.0
    %3364 = vmatpush1.msra.mxu0 0.0
    %3365 = vmatprep.subr.mxu0 0.0
    %3366 = vmatpush1.msra.mxu0 0.0
    %3367 = vmatprep.subr.mxu0 0.0
    %3368 = vmatpush1.msra.mxu0 0.0
    %3369 = vmatprep.subr.mxu0 0.0
    %3370 = vmatpush1.msra.mxu0 0.0
    %3371 = vmatprep.subr.mxu0 0.0
    %3372 = vmatpush1.msra.mxu0 0.0
    %3373 = vmatprep.subr.mxu0 0.0
    %3374 = vmatpush1.msra.mxu0 0.0
    %3375 = vmatprep.subr.mxu0 0.0
    %3376 = vmatpush1.msra.mxu0 0.0
    %3377 = vmatprep.subr.mxu0 0.0
    %3378 = vmatpush1.msra.mxu0 0.0
    %3379 = vmatprep.subr.mxu0 0.0
    %3380 = vmatpush1.msra.mxu0 0.0
    %3381 = vmatprep.subr.mxu0 0.0
    %3382 = vmatpush1.msra.mxu0 0.0
    %3383 = vmatprep.subr.mxu0 0.0
    %3384 = vmatpush1.msra.mxu0 0.0
    %3385 = vmatprep.subr.mxu0 0.0
    %3386 = vmatpush1.msra.mxu0 0.0
    %3387 = vmatprep.mubr.f32.mxu0 0.0
    %3388 = vmatmul.mubr.f32.gmra.mrb[0].mxu0 %v3201
    %v3389 = vpop.f32.mrb[0].mxu0
    %v3390 = vadd.f32 %v3012, %v3389
    %v3391 = vpop.f32.mrb[0].mxu0
    %v3392 = vadd.f32 %v3013, %v3391
    %3393 = vmatprep.mubr.f32.mxu0 0.0
    %3394 = vmatmul.mubr.f32.gmra.mrb[0].mxu0 %v3208
    %v3395 = vpop.f32.mrb[0].mxu0
    %v3396 = vadd.f32 %v3015, %v3395
    %v3397 = vpop.f32.mrb[0].mxu0
    %v3398 = vadd.f32 %v3016, %v3397
    %3399 = vmatprep.mubr.f32.mxu0 0.0
    %3400 = vmatmul.mubr.f32.gmra.mrb[0].mxu0 %v3215
    %v3401 = vpop.f32.mrb[0].mxu0
    %v3402 = vadd.f32 %v3018, %v3401
    %v3403 = vpop.f32.mrb[0].mxu0
    %v3404 = vadd.f32 %v3019, %v3403
    %3405 = vmatprep.mubr.f32.mxu0 0.0
    %3406 = vmatmul.mubr.f32.gmra.mrb[0].mxu0 %v3222
    %v3407 = vpop.f32.mrb[0].mxu0
    %v3408 = vadd.f32 %v3021, %v3407
    %v3409 = vpop.f32.mrb[0].mxu0
    %v3410 = vadd.f32 %v3022, %v3409
    %3411 = vmatprep.mubr.f32.mxu0 0.0
    %3412 = vmatmul.mubr.f32.gmra.mrb[0].mxu0 %v3229
    %v3413 = vpop.f32.mrb[0].mxu0
    %v3414 = vadd.f32 %v3024, %v3413
    %v3415 = vpop.f32.mrb[0].mxu0
    %v3416 = vadd.f32 %v3025, %v3415
    %3417 = vmatprep.mubr.f32.mxu0 0.0
    %3418 = vmatmul.mubr.f32.gmra.mrb[0].mxu0 %v3236
    %v3419 = vpop.f32.mrb[0].mxu0
    %v3420 = vadd.f32 %v3027, %v3419
    %v3421 = vpop.f32.mrb[0].mxu0
    %v3422 = vadd.f32 %v3028, %v3421
    %3423 = vmatprep.mubr.f32.mxu0 0.0
    %3424 = vmatmul.mubr.f32.gmra.mrb[0].mxu0 %v3243
    %v3425 = vpop.f32.mrb[0].mxu0
    %v3426 = vadd.f32 %v3030, %v3425
    %v3427 = vpop.f32.mrb[0].mxu0
    %v3428 = vadd.f32 %v3031, %v3427
    %3429 = vmatprep.mubr.f32.mxu0 0.0
    %3430 = vmatmul.mubr.f32.gmra.mrb[0].mxu0 %v3250
    %v3431 = vpop.f32.mrb[0].mxu0
    %v3432 = vadd.f32 %v3033, %v3431
    %v3433 = vpop.f32.mrb[0].mxu0
    %v3434 = vadd.f32 %v3034, %v3433
    %3435 = vmatprep.mubr.f32.mxu0 0.0
    %3436 = vmatmul.mubr.f32.gmra.mrb[0].mxu0 %v3257
    %v3437 = vpop.f32.mrb[0].mxu0
    %v3438 = vadd.f32 %v3036, %v3437
    %v3439 = vpop.f32.mrb[0].mxu0
    %v3440 = vadd.f32 %v3037, %v3439
    %3441 = vmatprep.mubr.f32.mxu0 0.0
    %3442 = vmatmul.mubr.f32.gmra.mrb[0].mxu0 %v3264
    %v3443 = vpop.f32.mrb[0].mxu0
    %v3444 = vadd.f32 %v3039, %v3443
    %v3445 = vpop.f32.mrb[0].mxu0
    %v3446 = vadd.f32 %v3040, %v3445
    %3447 = vmatprep.mubr.f32.mxu0 0.0
    %3448 = vmatmul.mubr.f32.gmra.mrb[0].mxu0 %v3271
    %v3449 = vpop.f32.mrb[0].mxu0
    %v3450 = vadd.f32 %v3042, %v3449
    %v3451 = vpop.f32.mrb[0].mxu0
    %v3452 = vadd.f32 %v3043, %v3451
    %3453 = vmatprep.mubr.f32.mxu0 0.0
    %3454 = vmatmul.mubr.f32.gmra.mrb[0].mxu0 %v3278
    %v3455 = vpop.f32.mrb[0].mxu0
    %v3456 = vadd.f32 %v3045, %v3455
    %v3457 = vpop.f32.mrb[0].mxu0
    %v3458 = vadd.f32 %v3046, %v3457
    %3459 = vmatprep.mubr.f32.mxu0 0.0
    %3460 = vmatmul.mubr.f32.gmra.mrb[0].mxu0 %v3285
    %v3461 = vpop.f32.mrb[0].mxu0
    %v3462 = vadd.f32 %v3048, %v3461
    %v3463 = vpop.f32.mrb[0].mxu0
    %v3464 = vadd.f32 %v3049, %v3463
    %3465 = vmatprep.mubr.f32.mxu0 0.0
    %3466 = vmatmul.mubr.f32.gmra.mrb[0].mxu0 %v3292
    %v3467 = vpop.f32.mrb[0].mxu0
    %v3468 = vadd.f32 %v3051, %v3467
    %v3469 = vpop.f32.mrb[0].mxu0
    %v3470 = vadd.f32 %v3052, %v3469
    %3471 = vmatprep.mubr.f32.mxu0 0.0
    %3472 = vmatmul.mubr.f32.gmra.mrb[0].mxu0 %v3299
    %v3473 = vpop.f32.mrb[0].mxu0
    %v3474 = vadd.f32 %v3054, %v3473
    %v3475 = vpop.f32.mrb[0].mxu0
    %v3476 = vadd.f32 %v3055, %v3475
    %3477 = vmatprep.mubr.f32.mxu0 0.0
    %3478 = vmatmul.mubr.f32.gmra.mrb[0].mxu0 %v3306
    %v3479 = vpop.f32.mrb[0].mxu0
    %v3480 = vadd.f32 %v3057, %v3479
    %v3481 = vpop.f32.mrb[0].mxu0
    %v3482 = vadd.f32 %v3058, %v3481
    %3483 = vdwg.mxu0
    %3484 = vmatprep.subr.mxu0 0.0
    %3485 = vmatpush1.msra.mxu0 %v2949
    %3486 = vmatprep.subr.mxu0 0.0
    %3487 = vmatpush1.msra.mxu0 %v2952
    %3488 = vmatprep.subr.mxu0 0.0
    %3489 = vmatpush1.msra.mxu0 %v2955
    %3490 = vmatprep.subr.mxu0 0.0
    %3491 = vmatpush1.msra.mxu0 %v2958
    %3492 = vmatprep.subr.mxu0 0.0
    %3493 = vmatpush1.msra.mxu0 %v2961
    %3494 = vmatprep.subr.mxu0 0.0
    %3495 = vmatpush1.msra.mxu0 %v2964
    %3496 = vmatprep.subr.mxu0 0.0
    %3497 = vmatpush1.msra.mxu0 %v2967
    %3498 = vmatprep.subr.mxu0 0.0
    %3499 = vmatpush1.msra.mxu0 %v2970
    %3500 = vmatprep.subr.mxu0 0.0
    %3501 = vmatpush1.msra.mxu0 %v2973
    %3502 = vmatprep.subr.mxu0 0.0
    %3503 = vmatpush1.msra.mxu0 %v2976
    %3504 = vmatprep.subr.mxu0 0.0
    %3505 = vmatpush1.msra.mxu0 %v2979
    %3506 = vmatprep.subr.mxu0 0.0
    %3507 = vmatpush1.msra.mxu0 %v2982
    %3508 = vmatprep.subr.mxu0 0.0
    %3509 = vmatpush1.msra.mxu0 %v2985
    %3510 = vmatprep.subr.mxu0 0.0
    %3511 = vmatpush1.msra.mxu0 %v2988
    %3512 = vmatprep.subr.mxu0 0.0
    %3513 = vmatpush1.msra.mxu0 %v2991
    %3514 = vmatprep.subr.mxu0 0.0
    %3515 = vmatpush1.msra.mxu0 %v2994
    %3516 = vmatprep.subr.mxu0 0.0
    %3517 = vmatpush1.msra.mxu0 0.0
    %3518 = vmatprep.subr.mxu0 0.0
    %3519 = vmatpush1.msra.mxu0 0.0
    %3520 = vmatprep.subr.mxu0 0.0
    %3521 = vmatpush1.msra.mxu0 0.0
    %3522 = vmatprep.subr.mxu0 0.0
    %3523 = vmatpush1.msra.mxu0 0.0
    %3524 = vmatprep.subr.mxu0 0.0
    %3525 = vmatpush1.msra.mxu0 0.0
    %3526 = vmatprep.subr.mxu0 0.0
    %3527 = vmatpush1.msra.mxu0 0.0
    %3528 = vmatprep.subr.mxu0 0.0
    %3529 = vmatpush1.msra.mxu0 0.0
    %3530 = vmatprep.subr.mxu0 0.0
    %3531 = vmatpush1.msra.mxu0 0.0
    %3532 = vmatprep.subr.mxu0 0.0
    %3533 = vmatpush1.msra.mxu0 0.0
    %3534 = vmatprep.subr.mxu0 0.0
    %3535 = vmatpush1.msra.mxu0 0.0
    %3536 = vmatprep.subr.mxu0 0.0
    %3537 = vmatpush1.msra.mxu0 0.0
    %3538 = vmatprep.subr.mxu0 0.0
    %3539 = vmatpush1.msra.mxu0 0.0
    %3540 = vmatprep.subr.mxu0 0.0
    %3541 = vmatpush1.msra.mxu0 0.0
    %3542 = vmatprep.subr.mxu0 0.0
    %3543 = vmatpush1.msra.mxu0 0.0
    %3544 = vmatprep.subr.mxu0 0.0
    %3545 = vmatpush1.msra.mxu0 0.0
    %3546 = vmatprep.subr.mxu0 0.0
    %3547 = vmatpush1.msra.mxu0 0.0
    %3548 = vmatprep.mubr.f32.mxu0 0.0
    %3549 = vmatmul.mubr.f32.gmra.mrb[0].mxu0 %v3201
    %v3550 = vpop.f32.mrb[0].mxu0
    %v3551 = vadd.f32 %v3014, %v3550
    %v3552 = vpop.f32.mrb[0].mxu0
    %3553 = vmatprep.mubr.f32.mxu0 0.0
    %3554 = vmatmul.mubr.f32.gmra.mrb[0].mxu0 %v3208
    %v3555 = vpop.f32.mrb[0].mxu0
    %v3556 = vadd.f32 %v3017, %v3555
    %v3557 = vpop.f32.mrb[0].mxu0
    %3558 = vmatprep.mubr.f32.mxu0 0.0
    %3559 = vmatmul.mubr.f32.gmra.mrb[0].mxu0 %v3215
    %v3560 = vpop.f32.mrb[0].mxu0
    %v3561 = vadd.f32 %v3020, %v3560
    %v3562 = vpop.f32.mrb[0].mxu0
    %3563 = vmatprep.mubr.f32.mxu0 0.0
    %3564 = vmatmul.mubr.f32.gmra.mrb[0].mxu0 %v3222
    %v3565 = vpop.f32.mrb[0].mxu0
    %v3566 = vadd.f32 %v3023, %v3565
    %v3567 = vpop.f32.mrb[0].mxu0
    %3568 = vmatprep.mubr.f32.mxu0 0.0
    %3569 = vmatmul.mubr.f32.gmra.mrb[0].mxu0 %v3229
    %v3570 = vpop.f32.mrb[0].mxu0
    %v3571 = vadd.f32 %v3026, %v3570
    %v3572 = vpop.f32.mrb[0].mxu0
    %3573 = vmatprep.mubr.f32.mxu0 0.0
    %3574 = vmatmul.mubr.f32.gmra.mrb[0].mxu0 %v3236
    %v3575 = vpop.f32.mrb[0].mxu0
    %v3576 = vadd.f32 %v3029, %v3575
    %v3577 = vpop.f32.mrb[0].mxu0
    %3578 = vmatprep.mubr.f32.mxu0 0.0
    %3579 = vmatmul.mubr.f32.gmra.mrb[0].mxu0 %v3243
    %v3580 = vpop.f32.mrb[0].mxu0
    %v3581 = vadd.f32 %v3032, %v3580
    %v3582 = vpop.f32.mrb[0].mxu0
    %3583 = vmatprep.mubr.f32.mxu0 0.0
    %3584 = vmatmul.mubr.f32.gmra.mrb[0].mxu0 %v3250
    %v3585 = vpop.f32.mrb[0].mxu0
    %v3586 = vadd.f32 %v3035, %v3585
    %v3587 = vpop.f32.mrb[0].mxu0
    %3588 = vmatprep.mubr.f32.mxu0 0.0
    %3589 = vmatmul.mubr.f32.gmra.mrb[0].mxu0 %v3257
    %v3590 = vpop.f32.mrb[0].mxu0
    %v3591 = vadd.f32 %v3038, %v3590
    %v3592 = vpop.f32.mrb[0].mxu0
    %3593 = vmatprep.mubr.f32.mxu0 0.0
    %3594 = vmatmul.mubr.f32.gmra.mrb[0].mxu0 %v3264
    %v3595 = vpop.f32.mrb[0].mxu0
    %v3596 = vadd.f32 %v3041, %v3595
    %v3597 = vpop.f32.mrb[0].mxu0
    %3598 = vmatprep.mubr.f32.mxu0 0.0
    %3599 = vmatmul.mubr.f32.gmra.mrb[0].mxu0 %v3271
    %v3600 = vpop.f32.mrb[0].mxu0
    %v3601 = vadd.f32 %v3044, %v3600
    %v3602 = vpop.f32.mrb[0].mxu0
    %3603 = vmatprep.mubr.f32.mxu0 0.0
    %3604 = vmatmul.mubr.f32.gmra.mrb[0].mxu0 %v3278
    %v3605 = vpop.f32.mrb[0].mxu0
    %v3606 = vadd.f32 %v3047, %v3605
    %v3607 = vpop.f32.mrb[0].mxu0
    %3608 = vmatprep.mubr.f32.mxu0 0.0
    %3609 = vmatmul.mubr.f32.gmra.mrb[0].mxu0 %v3285
    %v3610 = vpop.f32.mrb[0].mxu0
    %v3611 = vadd.f32 %v3050, %v3610
    %v3612 = vpop.f32.mrb[0].mxu0
    %3613 = vmatprep.mubr.f32.mxu0 0.0
    %3614 = vmatmul.mubr.f32.gmra.mrb[0].mxu0 %v3292
    %v3615 = vpop.f32.mrb[0].mxu0
    %v3616 = vadd.f32 %v3053, %v3615
    %v3617 = vpop.f32.mrb[0].mxu0
    %3618 = vmatprep.mubr.f32.mxu0 0.0
    %3619 = vmatmul.mubr.f32.gmra.mrb[0].mxu0 %v3299
    %v3620 = vpop.f32.mrb[0].mxu0
    %v3621 = vadd.f32 %v3056, %v3620
    %v3622 = vpop.f32.mrb[0].mxu0
    %3623 = vmatprep.mubr.f32.mxu0 0.0
    %3624 = vmatmul.mubr.f32.gmra.mrb[0].mxu0 %v3306
    %v3625 = vpop.f32.mrb[0].mxu0
    %v3626 = vadd.f32 %v3059, %v3625
    %v3627 = vpop.f32.mrb[0].mxu0
    %3628 = vdwg.mxu0
    %v3629 = vld [vmem:[%s6] sm:$0x7]
    %v3631 = vlaneseq
    %v3632 = vshrl.u32 %v3631, 7
    %v3633 = vsub.s32 0, %v3632
    %v3634 = vrot.slane %v3629, %v3633
    %v3635 = vlaneseq
    %v3636 = vshrl.u32 %v3635, 7
    %v3637 = vsub.s32 1, %v3636
    %v3638 = vrot.slane %v3629, %v3637
    %v3639 = vlaneseq
    %v3640 = vshrl.u32 %v3639, 7
    %v3641 = vsub.s32 2, %v3640
    %v3642 = vrot.slane %v3629, %v3641
    %v3646 = vadd.f32 %v3390, %v3634
    %v3647 = vadd.f32 %v3392, %v3638
    %v3648 = vadd.f32 %v3551, %v3642
    %v3649 = vadd.f32 %v3396, %v3634
    %v3650 = vadd.f32 %v3398, %v3638
    %v3651 = vadd.f32 %v3556, %v3642
    %v3652 = vadd.f32 %v3402, %v3634
    %v3653 = vadd.f32 %v3404, %v3638
    %v3654 = vadd.f32 %v3561, %v3642
    %v3655 = vadd.f32 %v3408, %v3634
    %v3656 = vadd.f32 %v3410, %v3638
    %v3657 = vadd.f32 %v3566, %v3642
    %v3658 = vadd.f32 %v3414, %v3634
    %v3659 = vadd.f32 %v3416, %v3638
    %v3660 = vadd.f32 %v3571, %v3642
    %v3661 = vadd.f32 %v3420, %v3634
    %v3662 = vadd.f32 %v3422, %v3638
    %v3663 = vadd.f32 %v3576, %v3642
    %v3664 = vadd.f32 %v3426, %v3634
    %v3665 = vadd.f32 %v3428, %v3638
    %v3666 = vadd.f32 %v3581, %v3642
    %v3667 = vadd.f32 %v3432, %v3634
    %v3668 = vadd.f32 %v3434, %v3638
    %v3669 = vadd.f32 %v3586, %v3642
    %v3670 = vadd.f32 %v3438, %v3634
    %v3671 = vadd.f32 %v3440, %v3638
    %v3672 = vadd.f32 %v3591, %v3642
    %v3673 = vadd.f32 %v3444, %v3634
    %v3674 = vadd.f32 %v3446, %v3638
    %v3675 = vadd.f32 %v3596, %v3642
    %v3676 = vadd.f32 %v3450, %v3634
    %v3677 = vadd.f32 %v3452, %v3638
    %v3678 = vadd.f32 %v3601, %v3642
    %v3679 = vadd.f32 %v3456, %v3634
    %v3680 = vadd.f32 %v3458, %v3638
    %v3681 = vadd.f32 %v3606, %v3642
    %v3682 = vadd.f32 %v3462, %v3634
    %v3683 = vadd.f32 %v3464, %v3638
    %v3684 = vadd.f32 %v3611, %v3642
    %v3685 = vadd.f32 %v3468, %v3634
    %v3686 = vadd.f32 %v3470, %v3638
    %v3687 = vadd.f32 %v3616, %v3642
    %v3688 = vadd.f32 %v3474, %v3634
    %v3689 = vadd.f32 %v3476, %v3638
    %v3690 = vadd.f32 %v3621, %v3642
    %v3691 = vadd.f32 %v3480, %v3634
    %v3692 = vadd.f32 %v3482, %v3638
    %v3693 = vadd.f32 %v3626, %v3642
    %v3694 = vadd.f32 %v3646, %v244
    %v3695 = vadd.f32 %v3649, %v250
    %v3696 = vadd.f32 %v3652, %v256
    %v3697 = vadd.f32 %v3655, %v262
    %v3698 = vadd.f32 %v3658, %v268
    %v3699 = vadd.f32 %v3661, %v274
    %v3700 = vadd.f32 %v3664, %v280
    %v3701 = vadd.f32 %v3667, %v286
    %v3702 = vadd.f32 %v3670, %v292
    %v3703 = vadd.f32 %v3673, %v298
    %v3704 = vadd.f32 %v3676, %v304
    %v3705 = vadd.f32 %v3679, %v310
    %v3706 = vadd.f32 %v3682, %v316
    %v3707 = vadd.f32 %v3685, %v322
    %v3708 = vadd.f32 %v3688, %v328
    %v3709 = vadd.f32 %v3691, %v334
    %v3710 = vmul.f32 %v3694, 0.5
    %v3711 = vmul.f32 %v3695, 0.5
    %v3712 = vmul.f32 %v3696, 0.5
    %v3713 = vmul.f32 %v3697, 0.5
    %v3714 = vmul.f32 %v3698, 0.5
    %v3715 = vmul.f32 %v3699, 0.5
    %v3716 = vmul.f32 %v3700, 0.5
    %v3717 = vmul.f32 %v3701, 0.5
    %v3718 = vmul.f32 %v3702, 0.5
    %v3719 = vmul.f32 %v3703, 0.5
    %v3720 = vmul.f32 %v3704, 0.5
    %v3721 = vmul.f32 %v3705, 0.5
    %v3722 = vmul.f32 %v3706, 0.5
    %v3723 = vmul.f32 %v3707, 0.5
    %v3724 = vmul.f32 %v3708, 0.5
    %v3725 = vmul.f32 %v3709, 0.5
    %v3726 = vtanh.pop %v3710
    %v3727 = vtanh.pop %v3711
    %v3728 = vtanh.pop %v3712
    %v3729 = vtanh.pop %v3713
    %v3730 = vtanh.pop %v3714
    %v3731 = vtanh.pop %v3715
    %v3732 = vtanh.pop %v3716
    %v3733 = vtanh.pop %v3717
    %v3734 = vtanh.pop %v3718
    %v3735 = vtanh.pop %v3719
    %v3736 = vtanh.pop %v3720
    %v3737 = vtanh.pop %v3721
    %v3738 = vtanh.pop %v3722
    %v3739 = vtanh.pop %v3723
    %v3740 = vtanh.pop %v3724
    %v3741 = vtanh.pop %v3725
    %v3742 = vadd.f32 %v3726, 1.0
    %v3743 = vadd.f32 %v3727, 1.0
    %v3744 = vadd.f32 %v3728, 1.0
    %v3745 = vadd.f32 %v3729, 1.0
    %v3746 = vadd.f32 %v3730, 1.0
    %v3747 = vadd.f32 %v3731, 1.0
    %v3748 = vadd.f32 %v3732, 1.0
    %v3749 = vadd.f32 %v3733, 1.0
    %v3750 = vadd.f32 %v3734, 1.0
    %v3751 = vadd.f32 %v3735, 1.0
    %v3752 = vadd.f32 %v3736, 1.0
    %v3753 = vadd.f32 %v3737, 1.0
    %v3754 = vadd.f32 %v3738, 1.0
    %v3755 = vadd.f32 %v3739, 1.0
    %v3756 = vadd.f32 %v3740, 1.0
    %v3757 = vadd.f32 %v3741, 1.0
    %v3758 = vmul.f32 %v3742, 0.5
    %v3759 = vmul.f32 %v3743, 0.5
    %v3760 = vmul.f32 %v3744, 0.5
    %v3761 = vmul.f32 %v3745, 0.5
    %v3762 = vmul.f32 %v3746, 0.5
    %v3763 = vmul.f32 %v3747, 0.5
    %v3764 = vmul.f32 %v3748, 0.5
    %v3765 = vmul.f32 %v3749, 0.5
    %v3766 = vmul.f32 %v3750, 0.5
    %v3767 = vmul.f32 %v3751, 0.5
    %v3768 = vmul.f32 %v3752, 0.5
    %v3769 = vmul.f32 %v3753, 0.5
    %v3770 = vmul.f32 %v3754, 0.5
    %v3771 = vmul.f32 %v3755, 0.5
    %v3772 = vmul.f32 %v3756, 0.5
    %v3773 = vmul.f32 %v3757, 0.5
    %v3774 = vadd.f32 %v3647, %v246
    %v3775 = vadd.f32 %v3650, %v252
    %v3776 = vadd.f32 %v3653, %v258
    %v3777 = vadd.f32 %v3656, %v264
    %v3778 = vadd.f32 %v3659, %v270
    %v3779 = vadd.f32 %v3662, %v276
    %v3780 = vadd.f32 %v3665, %v282
    %v3781 = vadd.f32 %v3668, %v288
    %v3782 = vadd.f32 %v3671, %v294
    %v3783 = vadd.f32 %v3674, %v300
    %v3784 = vadd.f32 %v3677, %v306
    %v3785 = vadd.f32 %v3680, %v312
    %v3786 = vadd.f32 %v3683, %v318
    %v3787 = vadd.f32 %v3686, %v324
    %v3788 = vadd.f32 %v3689, %v330
    %v3789 = vadd.f32 %v3692, %v336
    %v3790 = vmul.f32 %v3774, 0.5
    %v3791 = vmul.f32 %v3775, 0.5
    %v3792 = vmul.f32 %v3776, 0.5
    %v3793 = vmul.f32 %v3777, 0.5
    %v3794 = vmul.f32 %v3778, 0.5
    %v3795 = vmul.f32 %v3779, 0.5
    %v3796 = vmul.f32 %v3780, 0.5
    %v3797 = vmul.f32 %v3781, 0.5
    %v3798 = vmul.f32 %v3782, 0.5
    %v3799 = vmul.f32 %v3783, 0.5
    %v3800 = vmul.f32 %v3784, 0.5
    %v3801 = vmul.f32 %v3785, 0.5
    %v3802 = vmul.f32 %v3786, 0.5
    %v3803 = vmul.f32 %v3787, 0.5
    %v3804 = vmul.f32 %v3788, 0.5
    %v3805 = vmul.f32 %v3789, 0.5
    %v3806 = vtanh.pop %v3790
    %v3807 = vtanh.pop %v3791
    %v3808 = vtanh.pop %v3792
    %v3809 = vtanh.pop %v3793
    %v3810 = vtanh.pop %v3794
    %v3811 = vtanh.pop %v3795
    %v3812 = vtanh.pop %v3796
    %v3813 = vtanh.pop %v3797
    %v3814 = vtanh.pop %v3798
    %v3815 = vtanh.pop %v3799
    %v3816 = vtanh.pop %v3800
    %v3817 = vtanh.pop %v3801
    %v3818 = vtanh.pop %v3802
    %v3819 = vtanh.pop %v3803
    %v3820 = vtanh.pop %v3804
    %v3821 = vtanh.pop %v3805
    %v3822 = vadd.f32 %v3806, 1.0
    %v3823 = vadd.f32 %v3807, 1.0
    %v3824 = vadd.f32 %v3808, 1.0
    %v3825 = vadd.f32 %v3809, 1.0
    %v3826 = vadd.f32 %v3810, 1.0
    %v3827 = vadd.f32 %v3811, 1.0
    %v3828 = vadd.f32 %v3812, 1.0
    %v3829 = vadd.f32 %v3813, 1.0
    %v3830 = vadd.f32 %v3814, 1.0
    %v3831 = vadd.f32 %v3815, 1.0
    %v3832 = vadd.f32 %v3816, 1.0
    %v3833 = vadd.f32 %v3817, 1.0
    %v3834 = vadd.f32 %v3818, 1.0
    %v3835 = vadd.f32 %v3819, 1.0
    %v3836 = vadd.f32 %v3820, 1.0
    %v3837 = vadd.f32 %v3821, 1.0
    %v3838 = vmul.f32 %v3822, 0.5
    %v3839 = vmul.f32 %v3823, 0.5
    %v3840 = vmul.f32 %v3824, 0.5
    %v3841 = vmul.f32 %v3825, 0.5
    %v3842 = vmul.f32 %v3826, 0.5
    %v3843 = vmul.f32 %v3827, 0.5
    %v3844 = vmul.f32 %v3828, 0.5
    %v3845 = vmul.f32 %v3829, 0.5
    %v3846 = vmul.f32 %v3830, 0.5
    %v3847 = vmul.f32 %v3831, 0.5
    %v3848 = vmul.f32 %v3832, 0.5
    %v3849 = vmul.f32 %v3833, 0.5
    %v3850 = vmul.f32 %v3834, 0.5
    %v3851 = vmul.f32 %v3835, 0.5
    %v3852 = vmul.f32 %v3836, 0.5
    %v3853 = vmul.f32 %v3837, 0.5
    %v3854 = vmul.f32 %v3838, %v101
    %v3855 = vmul.f32 %v3839, %v102
    %v3856 = vmul.f32 %v3840, %v103
    %v3857 = vmul.f32 %v3841, %v104
    %v3858 = vmul.f32 %v3842, %v105
    %v3859 = vmul.f32 %v3843, %v106
    %v3860 = vmul.f32 %v3844, %v107
    %v3861 = vmul.f32 %v3845, %v108
    %v3862 = vmul.f32 %v3846, %v109
    %v3863 = vmul.f32 %v3847, %v110
    %v3864 = vmul.f32 %v3848, %v111
    %v3865 = vmul.f32 %v3849, %v112
    %v3866 = vmul.f32 %v3850, %v113
    %v3867 = vmul.f32 %v3851, %v114
    %v3868 = vmul.f32 %v3852, %v115
    %v3869 = vmul.f32 %v3853, %v116
    %v3870 = vld [vmem:[#allocation10] sm:$0xff]
    %v3871 = vld [vmem:[#allocation10 + $0x8] sm:$0xff]
    %v3872 = vld [vmem:[#allocation10 + $0x10] sm:$0xff]
    %v3873 = vld [vmem:[#allocation10 + $0x18] sm:$0xff]
    %v3874 = vld [vmem:[#allocation10 + $0x20] sm:$0xff]
    %v3875 = vld [vmem:[#allocation10 + $0x28] sm:$0xff]
    %v3876 = vld [vmem:[#allocation10 + $0x30] sm:$0xff]
    %v3877 = vld [vmem:[#allocation10 + $0x38] sm:$0xff]
    %v3878 = vld [vmem:[#allocation10 + $0x40] sm:$0xff]
    %v3879 = vld [vmem:[#allocation10 + $0x48] sm:$0xff]
    %v3880 = vld [vmem:[#allocation10 + $0x50] sm:$0xff]
    %v3881 = vld [vmem:[#allocation10 + $0x58] sm:$0xff]
    %v3882 = vld [vmem:[#allocation10 + $0x60] sm:$0xff]
    %v3883 = vld [vmem:[#allocation10 + $0x68] sm:$0xff]
    %v3884 = vld [vmem:[#allocation10 + $0x70] sm:$0xff]
    %v3885 = vld [vmem:[#allocation10 + $0x78] sm:$0xff]
    %3886 = vmatprep.subr.mxu0 0.0
    %3887 = vmatpush1.msra.mxu0 %v3870
    %3888 = vmatprep.subr.mxu0 0.0
    %3889 = vmatpush1.msra.mxu0 %v3871
    %3890 = vmatprep.subr.mxu0 0.0
    %3891 = vmatpush1.msra.mxu0 %v3872
    %3892 = vmatprep.subr.mxu0 0.0
    %3893 = vmatpush1.msra.mxu0 %v3873
    %3894 = vmatprep.subr.mxu0 0.0
    %3895 = vmatpush1.msra.mxu0 %v3874
    %3896 = vmatprep.subr.mxu0 0.0
    %3897 = vmatpush1.msra.mxu0 %v3875
    %3898 = vmatprep.subr.mxu0 0.0
    %3899 = vmatpush1.msra.mxu0 %v3876
    %3900 = vmatprep.subr.mxu0 0.0
    %3901 = vmatpush1.msra.mxu0 %v3877
    %3902 = vmatprep.subr.mxu0 0.0
    %3903 = vmatpush1.msra.mxu0 %v3878
    %3904 = vmatprep.subr.mxu0 0.0
    %3905 = vmatpush1.msra.mxu0 %v3879
    %3906 = vmatprep.subr.mxu0 0.0
    %3907 = vmatpush1.msra.mxu0 %v3880
    %3908 = vmatprep.subr.mxu0 0.0
    %3909 = vmatpush1.msra.mxu0 %v3881
    %3910 = vmatprep.subr.mxu0 0.0
    %3911 = vmatpush1.msra.mxu0 %v3882
    %3912 = vmatprep.subr.mxu0 0.0
    %3913 = vmatpush1.msra.mxu0 %v3883
    %3914 = vmatprep.subr.mxu0 0.0
    %3915 = vmatpush1.msra.mxu0 %v3884
    %3916 = vmatprep.subr.mxu0 0.0
    %3917 = vmatpush1.msra.mxu0 %v3885
    %3918 = vmatprep.subr.mxu0 0.0
    %3919 = vmatpush1.msra.mxu0 0.0
    %3920 = vmatprep.subr.mxu0 0.0
    %3921 = vmatpush1.msra.mxu0 0.0
    %3922 = vmatprep.subr.mxu0 0.0
    %3923 = vmatpush1.msra.mxu0 0.0
    %3924 = vmatprep.subr.mxu0 0.0
    %3925 = vmatpush1.msra.mxu0 0.0
    %3926 = vmatprep.subr.mxu0 0.0
    %3927 = vmatpush1.msra.mxu0 0.0
    %3928 = vmatprep.subr.mxu0 0.0
    %3929 = vmatpush1.msra.mxu0 0.0
    %3930 = vmatprep.subr.mxu0 0.0
    %3931 = vmatpush1.msra.mxu0 0.0
    %3932 = vmatprep.subr.mxu0 0.0
    %3933 = vmatpush1.msra.mxu0 0.0
    %3934 = vmatprep.subr.mxu0 0.0
    %3935 = vmatpush1.msra.mxu0 0.0
    %3936 = vmatprep.subr.mxu0 0.0
    %3937 = vmatpush1.msra.mxu0 0.0
    %3938 = vmatprep.subr.mxu0 0.0
    %3939 = vmatpush1.msra.mxu0 0.0
    %3940 = vmatprep.subr.mxu0 0.0
    %3941 = vmatpush1.msra.mxu0 0.0
    %3942 = vmatprep.subr.mxu0 0.0
    %3943 = vmatpush1.msra.mxu0 0.0
    %3944 = vmatprep.subr.mxu0 0.0
    %3945 = vmatpush1.msra.mxu0 0.0
    %3946 = vmatprep.subr.mxu0 0.0
    %3947 = vmatpush1.msra.mxu0 0.0
    %3948 = vmatprep.subr.mxu0 0.0
    %3949 = vmatpush1.msra.mxu0 0.0
    %3950 = vmatprep.mubr.f32.mxu0 0.0
    %3951 = vmatmul.mubr.f32.gmra.mrb[0].mxu0 %v3854
    %v3952 = vpop.f32.mrb[0].mxu0
    %v3953 = vadd.f32 0.0, %v3952
    %v3954 = vpop.f32.mrb[0].mxu0
    %3955 = vmatprep.mubr.f32.mxu0 0.0
    %3956 = vmatmul.mubr.f32.gmra.mrb[0].mxu0 %v3855
    %v3957 = vpop.f32.mrb[0].mxu0
    %v3958 = vadd.f32 0.0, %v3957
    %v3959 = vpop.f32.mrb[0].mxu0
    %3960 = vmatprep.mubr.f32.mxu0 0.0
    %3961 = vmatmul.mubr.f32.gmra.mrb[0].mxu0 %v3856
    %v3962 = vpop.f32.mrb[0].mxu0
    %v3963 = vadd.f32 0.0, %v3962
    %v3964 = vpop.f32.mrb[0].mxu0
    %3965 = vmatprep.mubr.f32.mxu0 0.0
    %3966 = vmatmul.mubr.f32.gmra.mrb[0].mxu0 %v3857
    %v3967 = vpop.f32.mrb[0].mxu0
    %v3968 = vadd.f32 0.0, %v3967
    %v3969 = vpop.f32.mrb[0].mxu0
    %3970 = vmatprep.mubr.f32.mxu0 0.0
    %3971 = vmatmul.mubr.f32.gmra.mrb[0].mxu0 %v3858
    %v3972 = vpop.f32.mrb[0].mxu0
    %v3973 = vadd.f32 0.0, %v3972
    %v3974 = vpop.f32.mrb[0].mxu0
    %3975 = vmatprep.mubr.f32.mxu0 0.0
    %3976 = vmatmul.mubr.f32.gmra.mrb[0].mxu0 %v3859
    %v3977 = vpop.f32.mrb[0].mxu0
    %v3978 = vadd.f32 0.0, %v3977
    %v3979 = vpop.f32.mrb[0].mxu0
    %3980 = vmatprep.mubr.f32.mxu0 0.0
    %3981 = vmatmul.mubr.f32.gmra.mrb[0].mxu0 %v3860
    %v3982 = vpop.f32.mrb[0].mxu0
    %v3983 = vadd.f32 0.0, %v3982
    %v3984 = vpop.f32.mrb[0].mxu0
    %3985 = vmatprep.mubr.f32.mxu0 0.0
    %3986 = vmatmul.mubr.f32.gmra.mrb[0].mxu0 %v3861
    %v3987 = vpop.f32.mrb[0].mxu0
    %v3988 = vadd.f32 0.0, %v3987
    %v3989 = vpop.f32.mrb[0].mxu0
    %3990 = vmatprep.mubr.f32.mxu0 0.0
    %3991 = vmatmul.mubr.f32.gmra.mrb[0].mxu0 %v3862
    %v3992 = vpop.f32.mrb[0].mxu0
    %v3993 = vadd.f32 0.0, %v3992
    %v3994 = vpop.f32.mrb[0].mxu0
    %3995 = vmatprep.mubr.f32.mxu0 0.0
    %3996 = vmatmul.mubr.f32.gmra.mrb[0].mxu0 %v3863
    %v3997 = vpop.f32.mrb[0].mxu0
    %v3998 = vadd.f32 0.0, %v3997
    %v3999 = vpop.f32.mrb[0].mxu0
    %4000 = vmatprep.mubr.f32.mxu0 0.0
    %4001 = vmatmul.mubr.f32.gmra.mrb[0].mxu0 %v3864
    %v4002 = vpop.f32.mrb[0].mxu0
    %v4003 = vadd.f32 0.0, %v4002
    %v4004 = vpop.f32.mrb[0].mxu0
    %4005 = vmatprep.mubr.f32.mxu0 0.0
    %4006 = vmatmul.mubr.f32.gmra.mrb[0].mxu0 %v3865
    %v4007 = vpop.f32.mrb[0].mxu0
    %v4008 = vadd.f32 0.0, %v4007
    %v4009 = vpop.f32.mrb[0].mxu0
    %4010 = vmatprep.mubr.f32.mxu0 0.0
    %4011 = vmatmul.mubr.f32.gmra.mrb[0].mxu0 %v3866
    %v4012 = vpop.f32.mrb[0].mxu0
    %v4013 = vadd.f32 0.0, %v4012
    %v4014 = vpop.f32.mrb[0].mxu0
    %4015 = vmatprep.mubr.f32.mxu0 0.0
    %4016 = vmatmul.mubr.f32.gmra.mrb[0].mxu0 %v3867
    %v4017 = vpop.f32.mrb[0].mxu0
    %v4018 = vadd.f32 0.0, %v4017
    %v4019 = vpop.f32.mrb[0].mxu0
    %4020 = vmatprep.mubr.f32.mxu0 0.0
    %4021 = vmatmul.mubr.f32.gmra.mrb[0].mxu0 %v3868
    %v4022 = vpop.f32.mrb[0].mxu0
    %v4023 = vadd.f32 0.0, %v4022
    %v4024 = vpop.f32.mrb[0].mxu0
    %4025 = vmatprep.mubr.f32.mxu0 0.0
    %4026 = vmatmul.mubr.f32.gmra.mrb[0].mxu0 %v3869
    %v4027 = vpop.f32.mrb[0].mxu0
    %v4028 = vadd.f32 0.0, %v4027
    %v4029 = vpop.f32.mrb[0].mxu0
    %4030 = vdwg.mxu0
    %v4031 = vadd.f32 %v3648, %v3953
    %v4032 = vadd.f32 %v3651, %v3958
    %v4033 = vadd.f32 %v3654, %v3963
    %v4034 = vadd.f32 %v3657, %v3968
    %v4035 = vadd.f32 %v3660, %v3973
    %v4036 = vadd.f32 %v3663, %v3978
    %v4037 = vadd.f32 %v3666, %v3983
    %v4038 = vadd.f32 %v3669, %v3988
    %v4039 = vadd.f32 %v3672, %v3993
    %v4040 = vadd.f32 %v3675, %v3998
    %v4041 = vadd.f32 %v3678, %v4003
    %v4042 = vadd.f32 %v3681, %v4008
    %v4043 = vadd.f32 %v3684, %v4013
    %v4044 = vadd.f32 %v3687, %v4018
    %v4045 = vadd.f32 %v3690, %v4023
    %v4046 = vadd.f32 %v3693, %v4028
    %v4047 = vld [vmem:[%s8] sm:$0x1]
    %v4049 = vlaneseq
    %v4050 = vshrl.u32 %v4049, 7
    %v4051 = vsub.s32 0, %v4050
    %v4052 = vrot.slane %v4047, %v4051
    %v4054 = vadd.f32 %v4031, %v4052
    %v4055 = vadd.f32 %v4032, %v4052
    %v4056 = vadd.f32 %v4033, %v4052
    %v4057 = vadd.f32 %v4034, %v4052
    %v4058 = vadd.f32 %v4035, %v4052
    %v4059 = vadd.f32 %v4036, %v4052
    %v4060 = vadd.f32 %v4037, %v4052
    %v4061 = vadd.f32 %v4038, %v4052
    %v4062 = vadd.f32 %v4039, %v4052
    %v4063 = vadd.f32 %v4040, %v4052
    %v4064 = vadd.f32 %v4041, %v4052
    %v4065 = vadd.f32 %v4042, %v4052
    %v4066 = vadd.f32 %v4043, %v4052
    %v4067 = vadd.f32 %v4044, %v4052
    %v4068 = vadd.f32 %v4045, %v4052
    %v4069 = vadd.f32 %v4046, %v4052
    %v4070 = vtanh.pop %v4054
    %v4071 = vtanh.pop %v4055
    %v4072 = vtanh.pop %v4056
    %v4073 = vtanh.pop %v4057
    %v4074 = vtanh.pop %v4058
    %v4075 = vtanh.pop %v4059
    %v4076 = vtanh.pop %v4060
    %v4077 = vtanh.pop %v4061
    %v4078 = vtanh.pop %v4062
    %v4079 = vtanh.pop %v4063
    %v4080 = vtanh.pop %v4064
    %v4081 = vtanh.pop %v4065
    %v4082 = vtanh.pop %v4066
    %v4083 = vtanh.pop %v4067
    %v4084 = vtanh.pop %v4068
    %v4085 = vtanh.pop %v4069
    %v4086 = vsub.f32 1.0, %v3758
    %v4087 = vsub.f32 1.0, %v3759
    %v4088 = vsub.f32 1.0, %v3760
    %v4089 = vsub.f32 1.0, %v3761
    %v4090 = vsub.f32 1.0, %v3762
    %v4091 = vsub.f32 1.0, %v3763
    %v4092 = vsub.f32 1.0, %v3764
    %v4093 = vsub.f32 1.0, %v3765
    %v4094 = vsub.f32 1.0, %v3766
    %v4095 = vsub.f32 1.0, %v3767
    %v4096 = vsub.f32 1.0, %v3768
    %v4097 = vsub.f32 1.0, %v3769
    %v4098 = vsub.f32 1.0, %v3770
    %v4099 = vsub.f32 1.0, %v3771
    %v4100 = vsub.f32 1.0, %v3772
    %v4101 = vsub.f32 1.0, %v3773
    %v4102 = vmul.f32 %v4086, %v101
    %v4103 = vmul.f32 %v4087, %v102
    %v4104 = vmul.f32 %v4088, %v103
    %v4105 = vmul.f32 %v4089, %v104
    %v4106 = vmul.f32 %v4090, %v105
    %v4107 = vmul.f32 %v4091, %v106
    %v4108 = vmul.f32 %v4092, %v107
    %v4109 = vmul.f32 %v4093, %v108
    %v4110 = vmul.f32 %v4094, %v109
    %v4111 = vmul.f32 %v4095, %v110
    %v4112 = vmul.f32 %v4096, %v111
    %v4113 = vmul.f32 %v4097, %v112
    %v4114 = vmul.f32 %v4098, %v113
    %v4115 = vmul.f32 %v4099, %v114
    %v4116 = vmul.f32 %v4100, %v115
    %v4117 = vmul.f32 %v4101, %v116
    %v4118 = vmul.f32 %v3758, %v4070
    %v4119 = vmul.f32 %v3759, %v4071
    %v4120 = vmul.f32 %v3760, %v4072
    %v4121 = vmul.f32 %v3761, %v4073
    %v4122 = vmul.f32 %v3762, %v4074
    %v4123 = vmul.f32 %v3763, %v4075
    %v4124 = vmul.f32 %v3764, %v4076
    %v4125 = vmul.f32 %v3765, %v4077
    %v4126 = vmul.f32 %v3766, %v4078
    %v4127 = vmul.f32 %v3767, %v4079
    %v4128 = vmul.f32 %v3768, %v4080
    %v4129 = vmul.f32 %v3769, %v4081
    %v4130 = vmul.f32 %v3770, %v4082
    %v4131 = vmul.f32 %v3771, %v4083
    %v4132 = vmul.f32 %v3772, %v4084
    %v4133 = vmul.f32 %v3773, %v4085
    %v4134 = vadd.f32 %v4102, %v4118
    %v4135 = vadd.f32 %v4103, %v4119
    %v4136 = vadd.f32 %v4104, %v4120
    %v4137 = vadd.f32 %v4105, %v4121
    %v4138 = vadd.f32 %v4106, %v4122
    %v4139 = vadd.f32 %v4107, %v4123
    %v4140 = vadd.f32 %v4108, %v4124
    %v4141 = vadd.f32 %v4109, %v4125
    %v4142 = vadd.f32 %v4110, %v4126
    %v4143 = vadd.f32 %v4111, %v4127
    %v4144 = vadd.f32 %v4112, %v4128
    %v4145 = vadd.f32 %v4113, %v4129
    %v4146 = vadd.f32 %v4114, %v4130
    %v4147 = vadd.f32 %v4115, %v4131
    %v4148 = vadd.f32 %v4116, %v4132
    %v4149 = vadd.f32 %v4117, %v4133
    %4150 = vst [vmem:[#allocation11] sm:$0xff] %v4134
    %4151 = vst [vmem:[#allocation11 + $0x8] sm:$0xff] %v4135
    %4152 = vst [vmem:[#allocation11 + $0x10] sm:$0xff] %v4136
    %4153 = vst [vmem:[#allocation11 + $0x18] sm:$0xff] %v4137
    %4154 = vst [vmem:[#allocation11 + $0x20] sm:$0xff] %v4138
    %4155 = vst [vmem:[#allocation11 + $0x28] sm:$0xff] %v4139
    %4156 = vst [vmem:[#allocation11 + $0x30] sm:$0xff] %v4140
    %4157 = vst [vmem:[#allocation11 + $0x38] sm:$0xff] %v4141
    %4158 = vst [vmem:[#allocation11 + $0x40] sm:$0xff] %v4142
    %4159 = vst [vmem:[#allocation11 + $0x48] sm:$0xff] %v4143
    %4160 = vst [vmem:[#allocation11 + $0x50] sm:$0xff] %v4144
    %4161 = vst [vmem:[#allocation11 + $0x58] sm:$0xff] %v4145
    %4162 = vst [vmem:[#allocation11 + $0x60] sm:$0xff] %v4146
    %4163 = vst [vmem:[#allocation11 + $0x68] sm:$0xff] %v4147
    %4164 = vst [vmem:[#allocation11 + $0x70] sm:$0xff] %v4148
    %4165 = vst [vmem:[#allocation11 + $0x78] sm:$0xff] %v4149
    // Predicated region
    $region58: #{tpu_custom_call.1} parent=1 // pred_check
      _
    $region59: #{tpu_custom_call.1} parent=1 // pred_check_branch
      %4167 = sbr.rel (0) target = $region61
    $region60: #{tpu_custom_call.1} parent=1 // pred_region
      %s4169 = ssub.s32 2048, 2048
      %4170 = vsyncadd [#allocation4], %s4169
      %s4171 = sshll.u32 [#allocation11], 4
      %s4172 = int_to_ptr.vmem [resolvable:$true] %s4171
      %4177 = dma.vmem_to_hbm [thread:$0]  %s4172, 2048, %s9, [#allocation4], 128, 128, 8
    $region61: #{tpu_custom_call.1} parent=1 // pred_fallthru
      _
    // Predicated region
    $region62: #{tpu_custom_call.1} parent=1 // pred_check
      _
    $region63: #{tpu_custom_call.1} parent=1 // pred_check_branch
      %4179 = sbr.rel (0) target = $region65
    $region64: #{tpu_custom_call.1} parent=1 // pred_region
      %4180 = dma.done [#allocation4], 2048
    $region65: #{tpu_custom_call.1} parent=1 // pred_fallthru
      _
    %4181 = vsyncpa [#allocation3], 1
    %4182 = vsyncpa [#allocation6], 1
    %4183 = vsyncpa [#allocation9], 1
    %4184 = vsyncpa [#allocation4], 1

// kernel: tpu_custom_call.1
$region0: #{tpu_custom_call.1}
  #allocation0 [shape = 'u32[]', space=smem, size = 0x4, offset = 0x4, fixed_abs, tag = 'smem constant byte address 0x4 - core index']
  #allocation1 [shape = 'u32[144,128]{1,0:T(1,128)}', space=vmem, size = 0x12000, scoped, tag = 'internal scratch']
  %s0 = inlined_call_operand.hbm [shape: f32[8,16,128], index: 0, kind: input, shape index: {}]
  %s1 = inlined_call_operand.hbm [shape: f32[8,16,16], index: 1, kind: input, shape index: {}]
  %s2 = inlined_call_operand.hbm [shape: f32[128,256], index: 2, kind: input, shape index: {}]
  %s3 = inlined_call_operand.vmem [shape: f32[1,256], index: 3, kind: input, shape index: {}]
  %s4 = inlined_call_operand.hbm [shape: f32[128,384], index: 4, kind: input, shape index: {}]
  %s5 = inlined_call_operand.vmem [shape: f32[1,384], index: 5, kind: input, shape index: {}]
  %s6 = inlined_call_operand.vmem [shape: f32[1,384], index: 6, kind: input, shape index: {}]
  %s7 = inlined_call_operand.hbm [shape: f32[128,128], index: 7, kind: input, shape index: {}]
  %s8 = inlined_call_operand.vmem [shape: f32[1,128], index: 8, kind: input, shape index: {}]
  %s9 = inlined_call_operand.hbm [shape: f32[8,16,128], index: 9, kind: output, shape index: {}]
  %s10 = sld [smem:[#allocation0]]
  $region66: #{tpu_custom_call.1} parent=0
    _
  %s12 = ssub.s32 1, %s10
  %s13 = scalar_select 0, %s12, %s10
  $region1: #{tpu_custom_call.1} parent=0
    #allocation2 [shape = 'u8[65536]{0}', space=vmem, size = 0x10000, scoped, tag = 'input window, operand 0, single buffered']
    #allocation3 [shape = 's32[1]{0}', space=sflag, size = 0x4, scoped, tag = 'scoped memory for tpu_custom_call.1']
    #allocation4 [shape = 's32[1]{0}', space=sflag, size = 0x4, scoped, tag = 'scoped memory for tpu_custom_call.1']
    #allocation5 [shape = 'u8[65536]{0}', space=vmem, size = 0x10000, scoped, tag = 'input window, operand 1, single buffered']
    #allocation6 [shape = 's32[1]{0}', space=sflag, size = 0x4, scoped, tag = 'scoped memory for tpu_custom_call.1']
    #allocation7 [shape = 'u8[131072]{0}', space=vmem, size = 0x20000, scoped, tag = 'input window, operand 2, single buffered']
    #allocation8 [shape = 'u8[196608]{0}', space=vmem, size = 0x30000, scoped, tag = 'input window, operand 4, single buffered']
    #allocation9 [shape = 's32[1]{0}', space=sflag, size = 0x4, scoped, tag = 'scoped memory for tpu_custom_call.1']
    #allocation10 [shape = 'u8[65536]{0}', space=vmem, size = 0x10000, scoped, tag = 'input window, operand 7, single buffered']
    #allocation11 [shape = 'u8[65536]{0}', space=vmem, size = 0x10000, scoped, tag = 'output window, operand 0, single buffered']
    %14 = vsyncpa [#allocation3], 0
    %15 = vsyncpa [#allocation6], 0
    %16 = vsyncpa [#allocation9], 0
    %17 = vsyncpa [#allocation4], 0
    // Predicated region
    $region2: #{tpu_custom_call.1} parent=1 // pred_check
      _
    $region3: #{tpu_custom_call.1} parent=1 // pred_check_branch
      %19 = sbr.rel (0) target = $region5
    $region4: #{tpu_custom_call.1} parent=1 // pred_region
      %s21 = ssub.s32 2048, 2048
      %22 = vsyncadd [#allocation3], %s21
      %s23 = sshll.u32 [#allocation2], 4
      %s24 = int_to_ptr.vmem [resolvable:$true] %s23
      %29 = dma.hbm_to_vmem [thread:$0]  %s0, 2048, %s24, [#allocation3], 128, 128, 8
    $region5: #{tpu_custom_call.1} parent=1 // pred_fallthru
      _
    // Predicated region
    $region6: #{tpu_custom_call.1} parent=1 // pred_check
      _
    $region7: #{tpu_custom_call.1} parent=1 // pred_check_branch
      %31 = sbr.rel (0) target = $region9
    $region8: #{tpu_custom_call.1} parent=1 // pred_region
      %s33 = ssub.s32 2048, 2048
      %34 = vsyncadd [#allocation6], %s33
      %s35 = sshll.u32 [#allocation5], 4
      %s36 = int_to_ptr.vmem [resolvable:$true] %s35
      %41 = dma.hbm_to_vmem [thread:$0]  %s1, 2048, %s36, [#allocation6], 128, 128, 8
    $region9: #{tpu_custom_call.1} parent=1 // pred_fallthru
      _
    // Predicated region
    $region10: #{tpu_custom_call.1} parent=1 // pred_check
      _
    $region11: #{tpu_custom_call.1} parent=1 // pred_check_branch
      %43 = sbr.rel (0) target = $region13
    $region12: #{tpu_custom_call.1} parent=1 // pred_region
      %s45 = ssub.s32 4096, 4096
      %46 = vsyncadd [#allocation6], %s45
      %s47 = sshll.u32 [#allocation7], 4
      %s48 = int_to_ptr.vmem [resolvable:$true] %s47
      %53 = dma.hbm_to_vmem [thread:$0]  %s2, 4096, %s48, [#allocation6], 256, 256, 16
    $region13: #{tpu_custom_call.1} parent=1 // pred_fallthru
      _
    // Predicated region
    $region14: #{tpu_custom_call.1} parent=1 // pred_check
      _
    $region15: #{tpu_custom_call.1} parent=1 // pred_check_branch
      %55 = sbr.rel (0) target = $region17
    $region16: #{tpu_custom_call.1} parent=1 // pred_region
      _
    $region17: #{tpu_custom_call.1} parent=1 // pred_fallthru
      _
    // Predicated region
    $region18: #{tpu_custom_call.1} parent=1 // pred_check
      _
    $region19: #{tpu_custom_call.1} parent=1 // pred_check_branch
      %57 = sbr.rel (0) target = $region21
    $region20: #{tpu_custom_call.1} parent=1 // pred_region
      %s59 = ssub.s32 6144, 6144
      %60 = vsyncadd [#allocation9], %s59
      %s61 = sshll.u32 [#allocation8], 4
      %s62 = int_to_ptr.vmem [resolvable:$true] %s61
      %67 = dma.hbm_to_vmem [thread:$0]  %s4, 6144, %s62, [#allocation9], 384, 384, 24
    $region21: #{tpu_custom_call.1} parent=1 // pred_fallthru
      _
    // Predicated region
    $region22: #{tpu_custom_call.1} parent=1 // pred_check
      _
    $region23: #{tpu_custom_call.1} parent=1 // pred_check_branch
      %69 = sbr.rel (0) target = $region25
    $region24: #{tpu_custom_call.1} parent=1 // pred_region
      _
    $region25: #{tpu_custom_call.1} parent=1 // pred_fallthru
      _
    // Predicated region
    $region26: #{tpu_custom_call.1} parent=1 // pred_check
      _
    $region27: #{tpu_custom_call.1} parent=1 // pred_check_branch
      %71 = sbr.rel (0) target = $region29
    $region28: #{tpu_custom_call.1} parent=1 // pred_region
      _
    $region29: #{tpu_custom_call.1} parent=1 // pred_fallthru
      _
    // Predicated region
    $region30: #{tpu_custom_call.1} parent=1 // pred_check
      _
    $region31: #{tpu_custom_call.1} parent=1 // pred_check_branch
      %73 = sbr.rel (0) target = $region33
    $region32: #{tpu_custom_call.1} parent=1 // pred_region
      %s75 = ssub.s32 2048, 2048
      %76 = vsyncadd [#allocation9], %s75
      %s77 = sshll.u32 [#allocation10], 4
      %s78 = int_to_ptr.vmem [resolvable:$true] %s77
      %83 = dma.hbm_to_vmem [thread:$0]  %s7, 2048, %s78, [#allocation9], 128, 128, 8
    $region33: #{tpu_custom_call.1} parent=1 // pred_fallthru
      _
    // Predicated region
    $region34: #{tpu_custom_call.1} parent=1 // pred_check
      _
    $region35: #{tpu_custom_call.1} parent=1 // pred_check_branch
      %85 = sbr.rel (0) target = $region37
    $region36: #{tpu_custom_call.1} parent=1 // pred_region
      _
    $region37: #{tpu_custom_call.1} parent=1 // pred_fallthru
      _
    // Predicated region
    $region38: #{tpu_custom_call.1} parent=1 // pred_check
      _
    $region39: #{tpu_custom_call.1} parent=1 // pred_check_branch
      %87 = sbr.rel (0) target = $region41
    $region40: #{tpu_custom_call.1} parent=1 // pred_region
      %88 = dma.done [#allocation3], 2048
    $region41: #{tpu_custom_call.1} parent=1 // pred_fallthru
      _
    // Predicated region
    $region42: #{tpu_custom_call.1} parent=1 // pred_check
      _
    $region43: #{tpu_custom_call.1} parent=1 // pred_check_branch
      %90 = sbr.rel (0) target = $region45
    $region44: #{tpu_custom_call.1} parent=1 // pred_region
      %91 = dma.done [#allocation6], 2048
    $region45: #{tpu_custom_call.1} parent=1 // pred_fallthru
      _
    // Predicated region
    $region46: #{tpu_custom_call.1} parent=1 // pred_check
      _
    $region47: #{tpu_custom_call.1} parent=1 // pred_check_branch
      %93 = sbr.rel (0) target = $region49
    $region48: #{tpu_custom_call.1} parent=1 // pred_region
      %94 = dma.done [#allocation6], 4096
    $region49: #{tpu_custom_call.1} parent=1 // pred_fallthru
      _
    // Predicated region
    $region50: #{tpu_custom_call.1} parent=1 // pred_check
      _
    $region51: #{tpu_custom_call.1} parent=1 // pred_check_branch
      %96 = sbr.rel (0) target = $region53
    $region52: #{tpu_custom_call.1} parent=1 // pred_region
      %97 = dma.done [#allocation9], 6144
    $region53: #{tpu_custom_call.1} parent=1 // pred_fallthru
      _
    // Predicated region
    $region54: #{tpu_custom_call.1} parent=1 // pred_check
      _
    $region55: #{tpu_custom_call.1} parent=1 // pred_check_branch
      %99 = sbr.rel (0) target = $region57
    $region56: #{tpu_custom_call.1} parent=1 // pred_region
      %100 = dma.done [#allocation9], 2048
    $region57: #{tpu_custom_call.1} parent=1 // pred_fallthru
      _
    %v101 = vld [vmem:[#allocation2] sm:$0xff]
    %v102 = vld [vmem:[#allocation2 + $0x8] sm:$0xff]
    %v103 = vld [vmem:[#allocation2 + $0x10] sm:$0xff]
    %v104 = vld [vmem:[#allocation2 + $0x18] sm:$0xff]
    %v105 = vld [vmem:[#allocation2 + $0x20] sm:$0xff]
    %v106 = vld [vmem:[#allocation2 + $0x28] sm:$0xff]
    %v107 = vld [vmem:[#allocation2 + $0x30] sm:$0xff]
    %v108 = vld [vmem:[#allocation2 + $0x38] sm:$0xff]
    %v109 = vld [vmem:[#allocation2 + $0x40] sm:$0xff]
    %v110 = vld [vmem:[#allocation2 + $0x48] sm:$0xff]
    %v111 = vld [vmem:[#allocation2 + $0x50] sm:$0xff]
    %v112 = vld [vmem:[#allocation2 + $0x58] sm:$0xff]
    %v113 = vld [vmem:[#allocation2 + $0x60] sm:$0xff]
    %v114 = vld [vmem:[#allocation2 + $0x68] sm:$0xff]
    %v115 = vld [vmem:[#allocation2 + $0x70] sm:$0xff]
    %v116 = vld [vmem:[#allocation2 + $0x78] sm:$0xff]
    %v117 = vld [vmem:[#allocation5] sm:$0xff]
    %v118 = vld [vmem:[#allocation5 + $0x8] sm:$0xff]
    %v119 = vld [vmem:[#allocation5 + $0x10] sm:$0xff]
    %v120 = vld [vmem:[#allocation5 + $0x18] sm:$0xff]
    %v121 = vld [vmem:[#allocation5 + $0x20] sm:$0xff]
    %v122 = vld [vmem:[#allocation5 + $0x28] sm:$0xff]
    %v123 = vld [vmem:[#allocation5 + $0x30] sm:$0xff]
    %v124 = vld [vmem:[#allocation5 + $0x38] sm:$0xff]
    %v125 = vld [vmem:[#allocation5 + $0x40] sm:$0xff]
    %v126 = vld [vmem:[#allocation5 + $0x48] sm:$0xff]
    %v127 = vld [vmem:[#allocation5 + $0x50] sm:$0xff]
    %v128 = vld [vmem:[#allocation5 + $0x58] sm:$0xff]
    %v129 = vld [vmem:[#allocation5 + $0x60] sm:$0xff]
    %v130 = vld [vmem:[#allocation5 + $0x68] sm:$0xff]
    %v131 = vld [vmem:[#allocation5 + $0x70] sm:$0xff]
    %v132 = vld [vmem:[#allocation5 + $0x78] sm:$0xff]
    %v133 = vld [vmem:[#allocation7] sm:$0xff]
    %v134 = vld [vmem:[#allocation7 + $0x8] sm:$0xff]
    %v135 = vld [vmem:[#allocation7 + $0x10] sm:$0xff]
    %v136 = vld [vmem:[#allocation7 + $0x18] sm:$0xff]
    %v137 = vld [vmem:[#allocation7 + $0x20] sm:$0xff]
    %v138 = vld [vmem:[#allocation7 + $0x28] sm:$0xff]
    %v139 = vld [vmem:[#allocation7 + $0x30] sm:$0xff]
    %v140 = vld [vmem:[#allocation7 + $0x38] sm:$0xff]
    %v141 = vld [vmem:[#allocation7 + $0x40] sm:$0xff]
    %v142 = vld [vmem:[#allocation7 + $0x48] sm:$0xff]
    %v143 = vld [vmem:[#allocation7 + $0x50] sm:$0xff]
    %v144 = vld [vmem:[#allocation7 + $0x58] sm:$0xff]
    %v145 = vld [vmem:[#allocation7 + $0x60] sm:$0xff]
    %v146 = vld [vmem:[#allocation7 + $0x68] sm:$0xff]
    %v147 = vld [vmem:[#allocation7 + $0x70] sm:$0xff]
    %v148 = vld [vmem:[#allocation7 + $0x78] sm:$0xff]
    %v149 = vld [vmem:[#allocation7 + $0x80] sm:$0xff]
    %v150 = vld [vmem:[#allocation7 + $0x88] sm:$0xff]
    %v151 = vld [vmem:[#allocation7 + $0x90] sm:$0xff]
    %v152 = vld [vmem:[#allocation7 + $0x98] sm:$0xff]
    %v153 = vld [vmem:[#allocation7 + $0xa0] sm:$0xff]
    %v154 = vld [vmem:[#allocation7 + $0xa8] sm:$0xff]
    %v155 = vld [vmem:[#allocation7 + $0xb0] sm:$0xff]
    %v156 = vld [vmem:[#allocation7 + $0xb8] sm:$0xff]
    %v157 = vld [vmem:[#allocation7 + $0xc0] sm:$0xff]
    %v158 = vld [vmem:[#allocation7 + $0xc8] sm:$0xff]
    %v159 = vld [vmem:[#allocation7 + $0xd0] sm:$0xff]
    %v160 = vld [vmem:[#allocation7 + $0xd8] sm:$0xff]
    %v161 = vld [vmem:[#allocation7 + $0xe0] sm:$0xff]
    %v162 = vld [vmem:[#allocation7 + $0xe8] sm:$0xff]
    %v163 = vld [vmem:[#allocation7 + $0xf0] sm:$0xff]
    %v164 = vld [vmem:[#allocation7 + $0xf8] sm:$0xff]
    %v165 = vld [vmem:[%s3] sm:$0x3]
    %v167 = vlaneseq
    %v168 = vshrl.u32 %v167, 7
    %v169 = vsub.s32 0, %v168
    %v170 = vrot.slane %v165, %v169
    %v171 = vlaneseq
    %v172 = vshrl.u32 %v171, 7
    %v173 = vsub.s32 1, %v172
    %v174 = vrot.slane %v165, %v173
    %177 = vmatprep.subr.mxu0 %v134
    %178 = vmatpush1.msra.mxu0 %v133
    %179 = vmatprep.subr.mxu0 %v136
    %180 = vmatpush1.msra.mxu0 %v135
    %181 = vmatprep.subr.mxu0 %v138
    %182 = vmatpush1.msra.mxu0 %v137
    %183 = vmatprep.subr.mxu0 %v140
    %184 = vmatpush1.msra.mxu0 %v139
    %185 = vmatprep.subr.mxu0 %v142
    %186 = vmatpush1.msra.mxu0 %v141
    %187 = vmatprep.subr.mxu0 %v144
    %188 = vmatpush1.msra.mxu0 %v143
    %189 = vmatprep.subr.mxu0 %v146
    %190 = vmatpush1.msra.mxu0 %v145
    %191 = vmatprep.subr.mxu0 %v148
    %192 = vmatpush1.msra.mxu0 %v147
    %193 = vmatprep.subr.mxu0 %v150
    %194 = vmatpush1.msra.mxu0 %v149
    %195 = vmatprep.subr.mxu0 %v152
    %196 = vmatpush1.msra.mxu0 %v151
    %197 = vmatprep.subr.mxu0 %v154
    %198 = vmatpush1.msra.mxu0 %v153
    %199 = vmatprep.subr.mxu0 %v156
    %200 = vmatpush1.msra.mxu0 %v155
    %201 = vmatprep.subr.mxu0 %v158
    %202 = vmatpush1.msra.mxu0 %v157
    %203 = vmatprep.subr.mxu0 %v160
    %204 = vmatpush1.msra.mxu0 %v159
    %205 = vmatprep.subr.mxu0 %v162
    %206 = vmatpush1.msra.mxu0 %v161
    %207 = vmatprep.subr.mxu0 %v164
    %208 = vmatpush1.msra.mxu0 %v163
    %209 = vmatprep.subr.mxu0 0.0
    %210 = vmatpush1.msra.mxu0 0.0
    %211 = vmatprep.subr.mxu0 0.0
    %212 = vmatpush1.msra.mxu0 0.0
    %213 = vmatprep.subr.mxu0 0.0
    %214 = vmatpush1.msra.mxu0 0.0
    %215 = vmatprep.subr.mxu0 0.0
    %216 = vmatpush1.msra.mxu0 0.0
    %217 = vmatprep.subr.mxu0 0.0
    %218 = vmatpush1.msra.mxu0 0.0
    %219 = vmatprep.subr.mxu0 0.0
    %220 = vmatpush1.msra.mxu0 0.0
    %221 = vmatprep.subr.mxu0 0.0
    %222 = vmatpush1.msra.mxu0 0.0
    %223 = vmatprep.subr.mxu0 0.0
    %224 = vmatpush1.msra.mxu0 0.0
    %225 = vmatprep.subr.mxu0 0.0
    %226 = vmatpush1.msra.mxu0 0.0
    %227 = vmatprep.subr.mxu0 0.0
    %228 = vmatpush1.msra.mxu0 0.0
    %229 = vmatprep.subr.mxu0 0.0
    %230 = vmatpush1.msra.mxu0 0.0
    %231 = vmatprep.subr.mxu0 0.0
    %232 = vmatpush1.msra.mxu0 0.0
    %233 = vmatprep.subr.mxu0 0.0
    %234 = vmatpush1.msra.mxu0 0.0
    %235 = vmatprep.subr.mxu0 0.0
    %236 = vmatpush1.msra.mxu0 0.0
    %237 = vmatprep.subr.mxu0 0.0
    %238 = vmatpush1.msra.mxu0 0.0
    %239 = vmatprep.subr.mxu0 0.0
    %240 = vmatpush1.msra.mxu0 0.0
    %241 = vmatprep.mubr.f32.mxu0 0.0
    %242 = vmatmul.mubr.f32.gmra.mrb[0].mxu0 %v101
    %v243 = vpop.f32.mrb[0].mxu0
    %v244 = vadd.f32 %v170, %v243
    %v245 = vpop.f32.mrb[0].mxu0
    %v246 = vadd.f32 %v174, %v245
    %247 = vmatprep.mubr.f32.mxu0 0.0
    %248 = vmatmul.mubr.f32.gmra.mrb[0].mxu0 %v102
    %v249 = vpop.f32.mrb[0].mxu0
    %v250 = vadd.f32 %v170, %v249
    %v251 = vpop.f32.mrb[0].mxu0
    %v252 = vadd.f32 %v174, %v251
    %253 = vmatprep.mubr.f32.mxu0 0.0
    %254 = vmatmul.mubr.f32.gmra.mrb[0].mxu0 %v103
    %v255 = vpop.f32.mrb[0].mxu0
    %v256 = vadd.f32 %v170, %v255
    %v257 = vpop.f32.mrb[0].mxu0
    %v258 = vadd.f32 %v174, %v257
    %259 = vmatprep.mubr.f32.mxu0 0.0
    %260 = vmatmul.mubr.f32.gmra.mrb[0].mxu0 %v104
    %v261 = vpop.f32.mrb[0].mxu0
    %v262 = vadd.f32 %v170, %v261
    %v263 = vpop.f32.mrb[0].mxu0
    %v264 = vadd.f32 %v174, %v263
    %265 = vmatprep.mubr.f32.mxu0 0.0
    %266 = vmatmul.mubr.f32.gmra.mrb[0].mxu0 %v105
    %v267 = vpop.f32.mrb[0].mxu0
    %v268 = vadd.f32 %v170, %v267
    %v269 = vpop.f32.mrb[0].mxu0
    %v270 = vadd.f32 %v174, %v269
    %271 = vmatprep.mubr.f32.mxu0 0.0
    %272 = vmatmul.mubr.f32.gmra.mrb[0].mxu0 %v106
    %v273 = vpop.f32.mrb[0].mxu0
    %v274 = vadd.f32 %v170, %v273
    %v275 = vpop.f32.mrb[0].mxu0
    %v276 = vadd.f32 %v174, %v275
    %277 = vmatprep.mubr.f32.mxu0 0.0
    %278 = vmatmul.mubr.f32.gmra.mrb[0].mxu0 %v107
    %v279 = vpop.f32.mrb[0].mxu0
    %v280 = vadd.f32 %v170, %v279
    %v281 = vpop.f32.mrb[0].mxu0
    %v282 = vadd.f32 %v174, %v281
    %283 = vmatprep.mubr.f32.mxu0 0.0
    %284 = vmatmul.mubr.f32.gmra.mrb[0].mxu0 %v108
    %v285 = vpop.f32.mrb[0].mxu0
    %v286 = vadd.f32 %v170, %v285
    %v287 = vpop.f32.mrb[0].mxu0
    %v288 = vadd.f32 %v174, %v287
    %289 = vmatprep.mubr.f32.mxu0 0.0
    %290 = vmatmul.mubr.f32.gmra.mrb[0].mxu0 %v109
    %v291 = vpop.f32.mrb[0].mxu0
    %v292 = vadd.f32 %v170, %v291
    %v293 = vpop.f32.mrb[0].mxu0
    %v294 = vadd.f32 %v174, %v293
    %295 = vmatprep.mubr.f32.mxu0 0.0
    %296 = vmatmul.mubr.f32.gmra.mrb[0].mxu0 %v110
    %v297 = vpop.f32.mrb[0].mxu0
    %v298 = vadd.f32 %v170, %v297
    %v299 = vpop.f32.mrb[0].mxu0
    %v300 = vadd.f32 %v174, %v299
    %301 = vmatprep.mubr.f32.mxu0 0.0
    %302 = vmatmul.mubr.f32.gmra.mrb[0].mxu0 %v111
    %v303 = vpop.f32.mrb[0].mxu0
    %v304 = vadd.f32 %v170, %v303
    %v305 = vpop.f32.mrb[0].mxu0
    %v306 = vadd.f32 %v174, %v305
    %307 = vmatprep.mubr.f32.mxu0 0.0
    %308 = vmatmul.mubr.f32.gmra.mrb[0].mxu0 %v112
    %v309 = vpop.f32.mrb[0].mxu0
    %v310 = vadd.f32 %v170, %v309
    %v311 = vpop.f32.mrb[0].mxu0
    %v312 = vadd.f32 %v174, %v311
    %313 = vmatprep.mubr.f32.mxu0 0.0
    %314 = vmatmul.mubr.f32.gmra.mrb[0].mxu0 %v113
    %v315 = vpop.f32.mrb[0].mxu0
    %v316 = vadd.f32 %v170, %v315
    %v317 = vpop.f32.mrb[0].mxu0
    %v318 = vadd.f32 %v174, %v317
    %319 = vmatprep.mubr.f32.mxu0 0.0
    %320 = vmatmul.mubr.f32.gmra.mrb[0].mxu0 %v114
    %v321 = vpop.f32.mrb[0].mxu0
    %v322 = vadd.f32 %v170, %v321
    %v323 = vpop.f32.mrb[0].mxu0
    %v324 = vadd.f32 %v174, %v323
    %325 = vmatprep.mubr.f32.mxu0 0.0
    %326 = vmatmul.mubr.f32.gmra.mrb[0].mxu0 %v115
    %v327 = vpop.f32.mrb[0].mxu0
    %v328 = vadd.f32 %v170, %v327
    %v329 = vpop.f32.mrb[0].mxu0
    %v330 = vadd.f32 %v174, %v329
    %331 = vmatprep.mubr.f32.mxu0 0.0
    %332 = vmatmul.mubr.f32.gmra.mrb[0].mxu0 %v116
    %v333 = vpop.f32.mrb[0].mxu0
    %v334 = vadd.f32 %v170, %v333
    %v335 = vpop.f32.mrb[0].mxu0
    %v336 = vadd.f32 %v174, %v335
    %337 = vdwg.mxu0
    %v338 = vlaneseq
    %v339 = vshrl.u32 %v338, 7
    %v340 = vsub.s32 0, %v339
    %v341 = vrot.slane %v117, %v340
    %343 = vbcast.lane.b32.xlu0 %v341, 256
    %v344 = vpop.permute.xlu0 %343
    %s346 = sor.u32 256, 8
    %347 = vbcast.lane.b32.xlu0 %v341, %s346
    %v348 = vpop.permute.xlu0 %347
    %v349 = vlaneseq
    %v350 = vshrl.u32 %v349, 7
    %v351 = vsub.s32 1, %v350
    %v352 = vrot.slane %v117, %v351
    %354 = vbcast.lane.b32.xlu0 %v352, 256
    %v355 = vpop.permute.xlu0 %354
    %s357 = sor.u32 256, 8
    %358 = vbcast.lane.b32.xlu0 %v352, %s357
    %v359 = vpop.permute.xlu0 %358
    %v360 = vlaneseq
    %v361 = vshrl.u32 %v360, 7
    %v362 = vsub.s32 2, %v361
    %v363 = vrot.slane %v117, %v362
    %365 = vbcast.lane.b32.xlu0 %v363, 256
    %v366 = vpop.permute.xlu0 %365
    %s368 = sor.u32 256, 8
    %369 = vbcast.lane.b32.xlu0 %v363, %s368
    %v370 = vpop.permute.xlu0 %369
    %v371 = vlaneseq
    %v372 = vshrl.u32 %v371, 7
    %v373 = vsub.s32 3, %v372
    %v374 = vrot.slane %v117, %v373
    %376 = vbcast.lane.b32.xlu0 %v374, 256
    %v377 = vpop.permute.xlu0 %376
    %s379 = sor.u32 256, 8
    %380 = vbcast.lane.b32.xlu0 %v374, %s379
    %v381 = vpop.permute.xlu0 %380
    %v382 = vlaneseq
    %v383 = vshrl.u32 %v382, 7
    %v384 = vsub.s32 4, %v383
    %v385 = vrot.slane %v117, %v384
    %387 = vbcast.lane.b32.xlu0 %v385, 256
    %v388 = vpop.permute.xlu0 %387
    %s390 = sor.u32 256, 8
    %391 = vbcast.lane.b32.xlu0 %v385, %s390
    %v392 = vpop.permute.xlu0 %391
    %v393 = vlaneseq
    %v394 = vshrl.u32 %v393, 7
    %v395 = vsub.s32 5, %v394
    %v396 = vrot.slane %v117, %v395
    %398 = vbcast.lane.b32.xlu0 %v396, 256
    %v399 = vpop.permute.xlu0 %398
    %s401 = sor.u32 256, 8
    %402 = vbcast.lane.b32.xlu0 %v396, %s401
    %v403 = vpop.permute.xlu0 %402
    %v404 = vlaneseq
    %v405 = vshrl.u32 %v404, 7
    %v406 = vsub.s32 6, %v405
    %v407 = vrot.slane %v117, %v406
    %409 = vbcast.lane.b32.xlu0 %v407, 256
    %v410 = vpop.permute.xlu0 %409
    %s412 = sor.u32 256, 8
    %413 = vbcast.lane.b32.xlu0 %v407, %s412
    %v414 = vpop.permute.xlu0 %413
    %v415 = vlaneseq
    %v416 = vshrl.u32 %v415, 7
    %v417 = vsub.s32 7, %v416
    %v418 = vrot.slane %v117, %v417
    %420 = vbcast.lane.b32.xlu0 %v418, 256
    %v421 = vpop.permute.xlu0 %420
    %s423 = sor.u32 256, 8
    %424 = vbcast.lane.b32.xlu0 %v418, %s423
    %v425 = vpop.permute.xlu0 %424
    %v426 = vlaneseq
    %v427 = vshrl.u32 %v426, 7
    %v428 = vsub.s32 0, %v427
    %v429 = vrot.slane %v118, %v428
    %431 = vbcast.lane.b32.xlu0 %v429, 256
    %v432 = vpop.permute.xlu0 %431
    %s434 = sor.u32 256, 8
    %435 = vbcast.lane.b32.xlu0 %v429, %s434
    %v436 = vpop.permute.xlu0 %435
    %v437 = vlaneseq
    %v438 = vshrl.u32 %v437, 7
    %v439 = vsub.s32 1, %v438
    %v440 = vrot.slane %v118, %v439
    %442 = vbcast.lane.b32.xlu0 %v440, 256
    %v443 = vpop.permute.xlu0 %442
    %s445 = sor.u32 256, 8
    %446 = vbcast.lane.b32.xlu0 %v440, %s445
    %v447 = vpop.permute.xlu0 %446
    %v448 = vlaneseq
    %v449 = vshrl.u32 %v448, 7
    %v450 = vsub.s32 2, %v449
    %v451 = vrot.slane %v118, %v450
    %453 = vbcast.lane.b32.xlu0 %v451, 256
    %v454 = vpop.permute.xlu0 %453
    %s456 = sor.u32 256, 8
    %457 = vbcast.lane.b32.xlu0 %v451, %s456
    %v458 = vpop.permute.xlu0 %457
    %v459 = vlaneseq
    %v460 = vshrl.u32 %v459, 7
    %v461 = vsub.s32 3, %v460
    %v462 = vrot.slane %v118, %v461
    %464 = vbcast.lane.b32.xlu0 %v462, 256
    %v465 = vpop.permute.xlu0 %464
    %s467 = sor.u32 256, 8
    %468 = vbcast.lane.b32.xlu0 %v462, %s467
    %v469 = vpop.permute.xlu0 %468
    %v470 = vlaneseq
    %v471 = vshrl.u32 %v470, 7
    %v472 = vsub.s32 4, %v471
    %v473 = vrot.slane %v118, %v472
    %475 = vbcast.lane.b32.xlu0 %v473, 256
    %v476 = vpop.permute.xlu0 %475
    %s478 = sor.u32 256, 8
    %479 = vbcast.lane.b32.xlu0 %v473, %s478
    %v480 = vpop.permute.xlu0 %479
    %v481 = vlaneseq
    %v482 = vshrl.u32 %v481, 7
    %v483 = vsub.s32 5, %v482
    %v484 = vrot.slane %v118, %v483
    %486 = vbcast.lane.b32.xlu0 %v484, 256
    %v487 = vpop.permute.xlu0 %486
    %s489 = sor.u32 256, 8
    %490 = vbcast.lane.b32.xlu0 %v484, %s489
    %v491 = vpop.permute.xlu0 %490
    %v492 = vlaneseq
    %v493 = vshrl.u32 %v492, 7
    %v494 = vsub.s32 6, %v493
    %v495 = vrot.slane %v118, %v494
    %497 = vbcast.lane.b32.xlu0 %v495, 256
    %v498 = vpop.permute.xlu0 %497
    %s500 = sor.u32 256, 8
    %501 = vbcast.lane.b32.xlu0 %v495, %s500
    %v502 = vpop.permute.xlu0 %501
    %v503 = vlaneseq
    %v504 = vshrl.u32 %v503, 7
    %v505 = vsub.s32 7, %v504
    %v506 = vrot.slane %v118, %v505
    %508 = vbcast.lane.b32.xlu0 %v506, 256
    %v509 = vpop.permute.xlu0 %508
    %s511 = sor.u32 256, 8
    %512 = vbcast.lane.b32.xlu0 %v506, %s511
    %v513 = vpop.permute.xlu0 %512
    %v514 = vlaneseq
    %v515 = vshrl.u32 %v514, 7
    %v516 = vsub.s32 0, %v515
    %v517 = vrot.slane %v119, %v516
    %519 = vbcast.lane.b32.xlu0 %v517, 256
    %v520 = vpop.permute.xlu0 %519
    %s522 = sor.u32 256, 8
    %523 = vbcast.lane.b32.xlu0 %v517, %s522
    %v524 = vpop.permute.xlu0 %523
    %v525 = vlaneseq
    %v526 = vshrl.u32 %v525, 7
    %v527 = vsub.s32 1, %v526
    %v528 = vrot.slane %v119, %v527
    %530 = vbcast.lane.b32.xlu0 %v528, 256
    %v531 = vpop.permute.xlu0 %530
    %s533 = sor.u32 256, 8
    %534 = vbcast.lane.b32.xlu0 %v528, %s533
    %v535 = vpop.permute.xlu0 %534
    %v536 = vlaneseq
    %v537 = vshrl.u32 %v536, 7
    %v538 = vsub.s32 2, %v537
    %v539 = vrot.slane %v119, %v538
    %541 = vbcast.lane.b32.xlu0 %v539, 256
    %v542 = vpop.permute.xlu0 %541
    %s544 = sor.u32 256, 8
    %545 = vbcast.lane.b32.xlu0 %v539, %s544
    %v546 = vpop.permute.xlu0 %545
    %v547 = vlaneseq
    %v548 = vshrl.u32 %v547, 7
    %v549 = vsub.s32 3, %v548
    %v550 = vrot.slane %v119, %v549
    %552 = vbcast.lane.b32.xlu0 %v550, 256
    %v553 = vpop.permute.xlu0 %552
    %s555 = sor.u32 256, 8
    %556 = vbcast.lane.b32.xlu0 %v550, %s555
    %v557 = vpop.permute.xlu0 %556
    %v558 = vlaneseq
    %v559 = vshrl.u32 %v558, 7
    %v560 = vsub.s32 4, %v559
    %v561 = vrot.slane %v119, %v560
    %563 = vbcast.lane.b32.xlu0 %v561, 256
    %v564 = vpop.permute.xlu0 %563
    %s566 = sor.u32 256, 8
    %567 = vbcast.lane.b32.xlu0 %v561, %s566
    %v568 = vpop.permute.xlu0 %567
    %v569 = vlaneseq
    %v570 = vshrl.u32 %v569, 7
    %v571 = vsub.s32 5, %v570
    %v572 = vrot.slane %v119, %v571
    %574 = vbcast.lane.b32.xlu0 %v572, 256
    %v575 = vpop.permute.xlu0 %574
    %s577 = sor.u32 256, 8
    %578 = vbcast.lane.b32.xlu0 %v572, %s577
    %v579 = vpop.permute.xlu0 %578
    %v580 = vlaneseq
    %v581 = vshrl.u32 %v580, 7
    %v582 = vsub.s32 6, %v581
    %v583 = vrot.slane %v119, %v582
    %585 = vbcast.lane.b32.xlu0 %v583, 256
    %v586 = vpop.permute.xlu0 %585
    %s588 = sor.u32 256, 8
    %589 = vbcast.lane.b32.xlu0 %v583, %s588
    %v590 = vpop.permute.xlu0 %589
    %v591 = vlaneseq
    %v592 = vshrl.u32 %v591, 7
    %v593 = vsub.s32 7, %v592
    %v594 = vrot.slane %v119, %v593
    %596 = vbcast.lane.b32.xlu0 %v594, 256
    %v597 = vpop.permute.xlu0 %596
    %s599 = sor.u32 256, 8
    %600 = vbcast.lane.b32.xlu0 %v594, %s599
    %v601 = vpop.permute.xlu0 %600
    %v602 = vlaneseq
    %v603 = vshrl.u32 %v602, 7
    %v604 = vsub.s32 0, %v603
    %v605 = vrot.slane %v120, %v604
    %607 = vbcast.lane.b32.xlu0 %v605, 256
    %v608 = vpop.permute.xlu0 %607
    %s610 = sor.u32 256, 8
    %611 = vbcast.lane.b32.xlu0 %v605, %s610
    %v612 = vpop.permute.xlu0 %611
    %v613 = vlaneseq
    %v614 = vshrl.u32 %v613, 7
    %v615 = vsub.s32 1, %v614
    %v616 = vrot.slane %v120, %v615
    %618 = vbcast.lane.b32.xlu0 %v616, 256
    %v619 = vpop.permute.xlu0 %618
    %s621 = sor.u32 256, 8
    %622 = vbcast.lane.b32.xlu0 %v616, %s621
    %v623 = vpop.permute.xlu0 %622
    %v624 = vlaneseq
    %v625 = vshrl.u32 %v624, 7
    %v626 = vsub.s32 2, %v625
    %v627 = vrot.slane %v120, %v626
    %629 = vbcast.lane.b32.xlu0 %v627, 256
    %v630 = vpop.permute.xlu0 %629
    %s632 = sor.u32 256, 8
    %633 = vbcast.lane.b32.xlu0 %v627, %s632
    %v634 = vpop.permute.xlu0 %633
    %v635 = vlaneseq
    %v636 = vshrl.u32 %v635, 7
    %v637 = vsub.s32 3, %v636
    %v638 = vrot.slane %v120, %v637
    %640 = vbcast.lane.b32.xlu0 %v638, 256
    %v641 = vpop.permute.xlu0 %640
    %s643 = sor.u32 256, 8
    %644 = vbcast.lane.b32.xlu0 %v638, %s643
    %v645 = vpop.permute.xlu0 %644
    %v646 = vlaneseq
    %v647 = vshrl.u32 %v646, 7
    %v648 = vsub.s32 4, %v647
    %v649 = vrot.slane %v120, %v648
    %651 = vbcast.lane.b32.xlu0 %v649, 256
    %v652 = vpop.permute.xlu0 %651
    %s654 = sor.u32 256, 8
    %655 = vbcast.lane.b32.xlu0 %v649, %s654
    %v656 = vpop.permute.xlu0 %655
    %v657 = vlaneseq
    %v658 = vshrl.u32 %v657, 7
    %v659 = vsub.s32 5, %v658
    %v660 = vrot.slane %v120, %v659
    %662 = vbcast.lane.b32.xlu0 %v660, 256
    %v663 = vpop.permute.xlu0 %662
    %s665 = sor.u32 256, 8
    %666 = vbcast.lane.b32.xlu0 %v660, %s665
    %v667 = vpop.permute.xlu0 %666
    %v668 = vlaneseq
    %v669 = vshrl.u32 %v668, 7
    %v670 = vsub.s32 6, %v669
    %v671 = vrot.slane %v120, %v670
    %673 = vbcast.lane.b32.xlu0 %v671, 256
    %v674 = vpop.permute.xlu0 %673
    %s676 = sor.u32 256, 8
    %677 = vbcast.lane.b32.xlu0 %v671, %s676
    %v678 = vpop.permute.xlu0 %677
    %v679 = vlaneseq
    %v680 = vshrl.u32 %v679, 7
    %v681 = vsub.s32 7, %v680
    %v682 = vrot.slane %v120, %v681
    %684 = vbcast.lane.b32.xlu0 %v682, 256
    %v685 = vpop.permute.xlu0 %684
    %s687 = sor.u32 256, 8
    %688 = vbcast.lane.b32.xlu0 %v682, %s687
    %v689 = vpop.permute.xlu0 %688
    %v690 = vlaneseq
    %v691 = vshrl.u32 %v690, 7
    %v692 = vsub.s32 0, %v691
    %v693 = vrot.slane %v121, %v692
    %695 = vbcast.lane.b32.xlu0 %v693, 256
    %v696 = vpop.permute.xlu0 %695
    %s698 = sor.u32 256, 8
    %699 = vbcast.lane.b32.xlu0 %v693, %s698
    %v700 = vpop.permute.xlu0 %699
    %v701 = vlaneseq
    %v702 = vshrl.u32 %v701, 7
    %v703 = vsub.s32 1, %v702
    %v704 = vrot.slane %v121, %v703
    %706 = vbcast.lane.b32.xlu0 %v704, 256
    %v707 = vpop.permute.xlu0 %706
    %s709 = sor.u32 256, 8
    %710 = vbcast.lane.b32.xlu0 %v704, %s709
    %v711 = vpop.permute.xlu0 %710
    %v712 = vlaneseq
    %v713 = vshrl.u32 %v712, 7
    %v714 = vsub.s32 2, %v713
    %v715 = vrot.slane %v121, %v714
    %717 = vbcast.lane.b32.xlu0 %v715, 256
    %v718 = vpop.permute.xlu0 %717
    %s720 = sor.u32 256, 8
    %721 = vbcast.lane.b32.xlu0 %v715, %s720
    %v722 = vpop.permute.xlu0 %721
    %v723 = vlaneseq
    %v724 = vshrl.u32 %v723, 7
    %v725 = vsub.s32 3, %v724
    %v726 = vrot.slane %v121, %v725
    %728 = vbcast.lane.b32.xlu0 %v726, 256
    %v729 = vpop.permute.xlu0 %728
    %s731 = sor.u32 256, 8
    %732 = vbcast.lane.b32.xlu0 %v726, %s731
    %v733 = vpop.permute.xlu0 %732
    %v734 = vlaneseq
    %v735 = vshrl.u32 %v734, 7
    %v736 = vsub.s32 4, %v735
    %v737 = vrot.slane %v121, %v736
    %739 = vbcast.lane.b32.xlu0 %v737, 256
    %v740 = vpop.permute.xlu0 %739
    %s742 = sor.u32 256, 8
    %743 = vbcast.lane.b32.xlu0 %v737, %s742
    %v744 = vpop.permute.xlu0 %743
    %v745 = vlaneseq
    %v746 = vshrl.u32 %v745, 7
    %v747 = vsub.s32 5, %v746
    %v748 = vrot.slane %v121, %v747
    %750 = vbcast.lane.b32.xlu0 %v748, 256
    %v751 = vpop.permute.xlu0 %750
    %s753 = sor.u32 256, 8
    %754 = vbcast.lane.b32.xlu0 %v748, %s753
    %v755 = vpop.permute.xlu0 %754
    %v756 = vlaneseq
    %v757 = vshrl.u32 %v756, 7
    %v758 = vsub.s32 6, %v757
    %v759 = vrot.slane %v121, %v758
    %761 = vbcast.lane.b32.xlu0 %v759, 256
    %v762 = vpop.permute.xlu0 %761
    %s764 = sor.u32 256, 8
    %765 = vbcast.lane.b32.xlu0 %v759, %s764
    %v766 = vpop.permute.xlu0 %765
    %v767 = vlaneseq
    %v768 = vshrl.u32 %v767, 7
    %v769 = vsub.s32 7, %v768
    %v770 = vrot.slane %v121, %v769
    %772 = vbcast.lane.b32.xlu0 %v770, 256
    %v773 = vpop.permute.xlu0 %772
    %s775 = sor.u32 256, 8
    %776 = vbcast.lane.b32.xlu0 %v770, %s775
    %v777 = vpop.permute.xlu0 %776
    %v778 = vlaneseq
    %v779 = vshrl.u32 %v778, 7
    %v780 = vsub.s32 0, %v779
    %v781 = vrot.slane %v122, %v780
    %783 = vbcast.lane.b32.xlu0 %v781, 256
    %v784 = vpop.permute.xlu0 %783
    %s786 = sor.u32 256, 8
    %787 = vbcast.lane.b32.xlu0 %v781, %s786
    %v788 = vpop.permute.xlu0 %787
    %v789 = vlaneseq
    %v790 = vshrl.u32 %v789, 7
    %v791 = vsub.s32 1, %v790
    %v792 = vrot.slane %v122, %v791
    %794 = vbcast.lane.b32.xlu0 %v792, 256
    %v795 = vpop.permute.xlu0 %794
    %s797 = sor.u32 256, 8
    %798 = vbcast.lane.b32.xlu0 %v792, %s797
    %v799 = vpop.permute.xlu0 %798
    %v800 = vlaneseq
    %v801 = vshrl.u32 %v800, 7
    %v802 = vsub.s32 2, %v801
    %v803 = vrot.slane %v122, %v802
    %805 = vbcast.lane.b32.xlu0 %v803, 256
    %v806 = vpop.permute.xlu0 %805
    %s808 = sor.u32 256, 8
    %809 = vbcast.lane.b32.xlu0 %v803, %s808
    %v810 = vpop.permute.xlu0 %809
    %v811 = vlaneseq
    %v812 = vshrl.u32 %v811, 7
    %v813 = vsub.s32 3, %v812
    %v814 = vrot.slane %v122, %v813
    %816 = vbcast.lane.b32.xlu0 %v814, 256
    %v817 = vpop.permute.xlu0 %816
    %s819 = sor.u32 256, 8
    %820 = vbcast.lane.b32.xlu0 %v814, %s819
    %v821 = vpop.permute.xlu0 %820
    %v822 = vlaneseq
    %v823 = vshrl.u32 %v822, 7
    %v824 = vsub.s32 4, %v823
    %v825 = vrot.slane %v122, %v824
    %827 = vbcast.lane.b32.xlu0 %v825, 256
    %v828 = vpop.permute.xlu0 %827
    %s830 = sor.u32 256, 8
    %831 = vbcast.lane.b32.xlu0 %v825, %s830
    %v832 = vpop.permute.xlu0 %831
    %v833 = vlaneseq
    %v834 = vshrl.u32 %v833, 7
    %v835 = vsub.s32 5, %v834
    %v836 = vrot.slane %v122, %v835
    %838 = vbcast.lane.b32.xlu0 %v836, 256
    %v839 = vpop.permute.xlu0 %838
    %s841 = sor.u32 256, 8
    %842 = vbcast.lane.b32.xlu0 %v836, %s841
    %v843 = vpop.permute.xlu0 %842
    %v844 = vlaneseq
    %v845 = vshrl.u32 %v844, 7
    %v846 = vsub.s32 6, %v845
    %v847 = vrot.slane %v122, %v846
    %849 = vbcast.lane.b32.xlu0 %v847, 256
    %v850 = vpop.permute.xlu0 %849
    %s852 = sor.u32 256, 8
    %853 = vbcast.lane.b32.xlu0 %v847, %s852
    %v854 = vpop.permute.xlu0 %853
    %v855 = vlaneseq
    %v856 = vshrl.u32 %v855, 7
    %v857 = vsub.s32 7, %v856
    %v858 = vrot.slane %v122, %v857
    %860 = vbcast.lane.b32.xlu0 %v858, 256
    %v861 = vpop.permute.xlu0 %860
    %s863 = sor.u32 256, 8
    %864 = vbcast.lane.b32.xlu0 %v858, %s863
    %v865 = vpop.permute.xlu0 %864
    %v866 = vlaneseq
    %v867 = vshrl.u32 %v866, 7
    %v868 = vsub.s32 0, %v867
    %v869 = vrot.slane %v123, %v868
    %871 = vbcast.lane.b32.xlu0 %v869, 256
    %v872 = vpop.permute.xlu0 %871
    %s874 = sor.u32 256, 8
    %875 = vbcast.lane.b32.xlu0 %v869, %s874
    %v876 = vpop.permute.xlu0 %875
    %v877 = vlaneseq
    %v878 = vshrl.u32 %v877, 7
    %v879 = vsub.s32 1, %v878
    %v880 = vrot.slane %v123, %v879
    %882 = vbcast.lane.b32.xlu0 %v880, 256
    %v883 = vpop.permute.xlu0 %882
    %s885 = sor.u32 256, 8
    %886 = vbcast.lane.b32.xlu0 %v880, %s885
    %v887 = vpop.permute.xlu0 %886
    %v888 = vlaneseq
    %v889 = vshrl.u32 %v888, 7
    %v890 = vsub.s32 2, %v889
    %v891 = vrot.slane %v123, %v890
    %893 = vbcast.lane.b32.xlu0 %v891, 256
    %v894 = vpop.permute.xlu0 %893
    %s896 = sor.u32 256, 8
    %897 = vbcast.lane.b32.xlu0 %v891, %s896
    %v898 = vpop.permute.xlu0 %897
    %v899 = vlaneseq
    %v900 = vshrl.u32 %v899, 7
    %v901 = vsub.s32 3, %v900
    %v902 = vrot.slane %v123, %v901
    %904 = vbcast.lane.b32.xlu0 %v902, 256
    %v905 = vpop.permute.xlu0 %904
    %s907 = sor.u32 256, 8
    %908 = vbcast.lane.b32.xlu0 %v902, %s907
    %v909 = vpop.permute.xlu0 %908
    %v910 = vlaneseq
    %v911 = vshrl.u32 %v910, 7
    %v912 = vsub.s32 4, %v911
    %v913 = vrot.slane %v123, %v912
    %915 = vbcast.lane.b32.xlu0 %v913, 256
    %v916 = vpop.permute.xlu0 %915
    %s918 = sor.u32 256, 8
    %919 = vbcast.lane.b32.xlu0 %v913, %s918
    %v920 = vpop.permute.xlu0 %919
    %v921 = vlaneseq
    %v922 = vshrl.u32 %v921, 7
    %v923 = vsub.s32 5, %v922
    %v924 = vrot.slane %v123, %v923
    %926 = vbcast.lane.b32.xlu0 %v924, 256
    %v927 = vpop.permute.xlu0 %926
    %s929 = sor.u32 256, 8
    %930 = vbcast.lane.b32.xlu0 %v924, %s929
    %v931 = vpop.permute.xlu0 %930
    %v932 = vlaneseq
    %v933 = vshrl.u32 %v932, 7
    %v934 = vsub.s32 6, %v933
    %v935 = vrot.slane %v123, %v934
    %937 = vbcast.lane.b32.xlu0 %v935, 256
    %v938 = vpop.permute.xlu0 %937
    %s940 = sor.u32 256, 8
    %941 = vbcast.lane.b32.xlu0 %v935, %s940
    %v942 = vpop.permute.xlu0 %941
    %v943 = vlaneseq
    %v944 = vshrl.u32 %v943, 7
    %v945 = vsub.s32 7, %v944
    %v946 = vrot.slane %v123, %v945
    %948 = vbcast.lane.b32.xlu0 %v946, 256
    %v949 = vpop.permute.xlu0 %948
    %s951 = sor.u32 256, 8
    %952 = vbcast.lane.b32.xlu0 %v946, %s951
    %v953 = vpop.permute.xlu0 %952
    %v954 = vlaneseq
    %v955 = vshrl.u32 %v954, 7
    %v956 = vsub.s32 0, %v955
    %v957 = vrot.slane %v124, %v956
    %959 = vbcast.lane.b32.xlu0 %v957, 256
    %v960 = vpop.permute.xlu0 %959
    %s962 = sor.u32 256, 8
    %963 = vbcast.lane.b32.xlu0 %v957, %s962
    %v964 = vpop.permute.xlu0 %963
    %v965 = vlaneseq
    %v966 = vshrl.u32 %v965, 7
    %v967 = vsub.s32 1, %v966
    %v968 = vrot.slane %v124, %v967
    %970 = vbcast.lane.b32.xlu0 %v968, 256
    %v971 = vpop.permute.xlu0 %970
    %s973 = sor.u32 256, 8
    %974 = vbcast.lane.b32.xlu0 %v968, %s973
    %v975 = vpop.permute.xlu0 %974
    %v976 = vlaneseq
    %v977 = vshrl.u32 %v976, 7
    %v978 = vsub.s32 2, %v977
    %v979 = vrot.slane %v124, %v978
    %981 = vbcast.lane.b32.xlu0 %v979, 256
    %v982 = vpop.permute.xlu0 %981
    %s984 = sor.u32 256, 8
    %985 = vbcast.lane.b32.xlu0 %v979, %s984
    %v986 = vpop.permute.xlu0 %985
    %v987 = vlaneseq
    %v988 = vshrl.u32 %v987, 7
    %v989 = vsub.s32 3, %v988
    %v990 = vrot.slane %v124, %v989
    %992 = vbcast.lane.b32.xlu0 %v990, 256
    %v993 = vpop.permute.xlu0 %992
    %s995 = sor.u32 256, 8
    %996 = vbcast.lane.b32.xlu0 %v990, %s995
    %v997 = vpop.permute.xlu0 %996
    %v998 = vlaneseq
    %v999 = vshrl.u32 %v998, 7
    %v1000 = vsub.s32 4, %v999
    %v1001 = vrot.slane %v124, %v1000
    %1003 = vbcast.lane.b32.xlu0 %v1001, 256
    %v1004 = vpop.permute.xlu0 %1003
    %s1006 = sor.u32 256, 8
    %1007 = vbcast.lane.b32.xlu0 %v1001, %s1006
    %v1008 = vpop.permute.xlu0 %1007
    %v1009 = vlaneseq
    %v1010 = vshrl.u32 %v1009, 7
    %v1011 = vsub.s32 5, %v1010
    %v1012 = vrot.slane %v124, %v1011
    %1014 = vbcast.lane.b32.xlu0 %v1012, 256
    %v1015 = vpop.permute.xlu0 %1014
    %s1017 = sor.u32 256, 8
    %1018 = vbcast.lane.b32.xlu0 %v1012, %s1017
    %v1019 = vpop.permute.xlu0 %1018
    %v1020 = vlaneseq
    %v1021 = vshrl.u32 %v1020, 7
    %v1022 = vsub.s32 6, %v1021
    %v1023 = vrot.slane %v124, %v1022
    %1025 = vbcast.lane.b32.xlu0 %v1023, 256
    %v1026 = vpop.permute.xlu0 %1025
    %s1028 = sor.u32 256, 8
    %1029 = vbcast.lane.b32.xlu0 %v1023, %s1028
    %v1030 = vpop.permute.xlu0 %1029
    %v1031 = vlaneseq
    %v1032 = vshrl.u32 %v1031, 7
    %v1033 = vsub.s32 7, %v1032
    %v1034 = vrot.slane %v124, %v1033
    %1036 = vbcast.lane.b32.xlu0 %v1034, 256
    %v1037 = vpop.permute.xlu0 %1036
    %s1039 = sor.u32 256, 8
    %1040 = vbcast.lane.b32.xlu0 %v1034, %s1039
    %v1041 = vpop.permute.xlu0 %1040
    %v1042 = vlaneseq
    %v1043 = vshrl.u32 %v1042, 7
    %v1044 = vsub.s32 0, %v1043
    %v1045 = vrot.slane %v125, %v1044
    %1047 = vbcast.lane.b32.xlu0 %v1045, 256
    %v1048 = vpop.permute.xlu0 %1047
    %s1050 = sor.u32 256, 8
    %1051 = vbcast.lane.b32.xlu0 %v1045, %s1050
    %v1052 = vpop.permute.xlu0 %1051
    %v1053 = vlaneseq
    %v1054 = vshrl.u32 %v1053, 7
    %v1055 = vsub.s32 1, %v1054
    %v1056 = vrot.slane %v125, %v1055
    %1058 = vbcast.lane.b32.xlu0 %v1056, 256
    %v1059 = vpop.permute.xlu0 %1058
    %s1061 = sor.u32 256, 8
    %1062 = vbcast.lane.b32.xlu0 %v1056, %s1061
    %v1063 = vpop.permute.xlu0 %1062
    %v1064 = vlaneseq
    %v1065 = vshrl.u32 %v1064, 7
    %v1066 = vsub.s32 2, %v1065
    %v1067 = vrot.slane %v125, %v1066
    %1069 = vbcast.lane.b32.xlu0 %v1067, 256
    %v1070 = vpop.permute.xlu0 %1069
    %s1072 = sor.u32 256, 8
    %1073 = vbcast.lane.b32.xlu0 %v1067, %s1072
    %v1074 = vpop.permute.xlu0 %1073
    %v1075 = vlaneseq
    %v1076 = vshrl.u32 %v1075, 7
    %v1077 = vsub.s32 3, %v1076
    %v1078 = vrot.slane %v125, %v1077
    %1080 = vbcast.lane.b32.xlu0 %v1078, 256
    %v1081 = vpop.permute.xlu0 %1080
    %s1083 = sor.u32 256, 8
    %1084 = vbcast.lane.b32.xlu0 %v1078, %s1083
    %v1085 = vpop.permute.xlu0 %1084
    %v1086 = vlaneseq
    %v1087 = vshrl.u32 %v1086, 7
    %v1088 = vsub.s32 4, %v1087
    %v1089 = vrot.slane %v125, %v1088
    %1091 = vbcast.lane.b32.xlu0 %v1089, 256
    %v1092 = vpop.permute.xlu0 %1091
    %s1094 = sor.u32 256, 8
    %1095 = vbcast.lane.b32.xlu0 %v1089, %s1094
    %v1096 = vpop.permute.xlu0 %1095
    %v1097 = vlaneseq
    %v1098 = vshrl.u32 %v1097, 7
    %v1099 = vsub.s32 5, %v1098
    %v1100 = vrot.slane %v125, %v1099
    %1102 = vbcast.lane.b32.xlu0 %v1100, 256
    %v1103 = vpop.permute.xlu0 %1102
    %s1105 = sor.u32 256, 8
    %1106 = vbcast.lane.b32.xlu0 %v1100, %s1105
    %v1107 = vpop.permute.xlu0 %1106
    %v1108 = vlaneseq
    %v1109 = vshrl.u32 %v1108, 7
    %v1110 = vsub.s32 6, %v1109
    %v1111 = vrot.slane %v125, %v1110
    %1113 = vbcast.lane.b32.xlu0 %v1111, 256
    %v1114 = vpop.permute.xlu0 %1113
    %s1116 = sor.u32 256, 8
    %1117 = vbcast.lane.b32.xlu0 %v1111, %s1116
    %v1118 = vpop.permute.xlu0 %1117
    %v1119 = vlaneseq
    %v1120 = vshrl.u32 %v1119, 7
    %v1121 = vsub.s32 7, %v1120
    %v1122 = vrot.slane %v125, %v1121
    %1124 = vbcast.lane.b32.xlu0 %v1122, 256
    %v1125 = vpop.permute.xlu0 %1124
    %s1127 = sor.u32 256, 8
    %1128 = vbcast.lane.b32.xlu0 %v1122, %s1127
    %v1129 = vpop.permute.xlu0 %1128
    %v1130 = vlaneseq
    %v1131 = vshrl.u32 %v1130, 7
    %v1132 = vsub.s32 0, %v1131
    %v1133 = vrot.slane %v126, %v1132
    %1135 = vbcast.lane.b32.xlu0 %v1133, 256
    %v1136 = vpop.permute.xlu0 %1135
    %s1138 = sor.u32 256, 8
    %1139 = vbcast.lane.b32.xlu0 %v1133, %s1138
    %v1140 = vpop.permute.xlu0 %1139
    %v1141 = vlaneseq
    %v1142 = vshrl.u32 %v1141, 7
    %v1143 = vsub.s32 1, %v1142
    %v1144 = vrot.slane %v126, %v1143
    %1146 = vbcast.lane.b32.xlu0 %v1144, 256
    %v1147 = vpop.permute.xlu0 %1146
    %s1149 = sor.u32 256, 8
    %1150 = vbcast.lane.b32.xlu0 %v1144, %s1149
    %v1151 = vpop.permute.xlu0 %1150
    %v1152 = vlaneseq
    %v1153 = vshrl.u32 %v1152, 7
    %v1154 = vsub.s32 2, %v1153
    %v1155 = vrot.slane %v126, %v1154
    %1157 = vbcast.lane.b32.xlu0 %v1155, 256
    %v1158 = vpop.permute.xlu0 %1157
    %s1160 = sor.u32 256, 8
    %1161 = vbcast.lane.b32.xlu0 %v1155, %s1160
    %v1162 = vpop.permute.xlu0 %1161
    %v1163 = vlaneseq
    %v1164 = vshrl.u32 %v1163, 7
    %v1165 = vsub.s32 3, %v1164
    %v1166 = vrot.slane %v126, %v1165
    %1168 = vbcast.lane.b32.xlu0 %v1166, 256
    %v1169 = vpop.permute.xlu0 %1168
    %s1171 = sor.u32 256, 8
    %1172 = vbcast.lane.b32.xlu0 %v1166, %s1171
    %v1173 = vpop.permute.xlu0 %1172
    %v1174 = vlaneseq
    %v1175 = vshrl.u32 %v1174, 7
    %v1176 = vsub.s32 4, %v1175
    %v1177 = vrot.slane %v126, %v1176
    %1179 = vbcast.lane.b32.xlu0 %v1177, 256
    %v1180 = vpop.permute.xlu0 %1179
    %s1182 = sor.u32 256, 8
    %1183 = vbcast.lane.b32.xlu0 %v1177, %s1182
    %v1184 = vpop.permute.xlu0 %1183
    %v1185 = vlaneseq
    %v1186 = vshrl.u32 %v1185, 7
    %v1187 = vsub.s32 5, %v1186
    %v1188 = vrot.slane %v126, %v1187
    %1190 = vbcast.lane.b32.xlu0 %v1188, 256
    %v1191 = vpop.permute.xlu0 %1190
    %s1193 = sor.u32 256, 8
    %1194 = vbcast.lane.b32.xlu0 %v1188, %s1193
    %v1195 = vpop.permute.xlu0 %1194
    %v1196 = vlaneseq
    %v1197 = vshrl.u32 %v1196, 7
    %v1198 = vsub.s32 6, %v1197
    %v1199 = vrot.slane %v126, %v1198
    %1201 = vbcast.lane.b32.xlu0 %v1199, 256
    %v1202 = vpop.permute.xlu0 %1201
    %s1204 = sor.u32 256, 8
    %1205 = vbcast.lane.b32.xlu0 %v1199, %s1204
    %v1206 = vpop.permute.xlu0 %1205
    %v1207 = vlaneseq
    %v1208 = vshrl.u32 %v1207, 7
    %v1209 = vsub.s32 7, %v1208
    %v1210 = vrot.slane %v126, %v1209
    %1212 = vbcast.lane.b32.xlu0 %v1210, 256
    %v1213 = vpop.permute.xlu0 %1212
    %s1215 = sor.u32 256, 8
    %1216 = vbcast.lane.b32.xlu0 %v1210, %s1215
    %v1217 = vpop.permute.xlu0 %1216
    %v1218 = vlaneseq
    %v1219 = vshrl.u32 %v1218, 7
    %v1220 = vsub.s32 0, %v1219
    %v1221 = vrot.slane %v127, %v1220
    %1223 = vbcast.lane.b32.xlu0 %v1221, 256
    %v1224 = vpop.permute.xlu0 %1223
    %s1226 = sor.u32 256, 8
    %1227 = vbcast.lane.b32.xlu0 %v1221, %s1226
    %v1228 = vpop.permute.xlu0 %1227
    %v1229 = vlaneseq
    %v1230 = vshrl.u32 %v1229, 7
    %v1231 = vsub.s32 1, %v1230
    %v1232 = vrot.slane %v127, %v1231
    %1234 = vbcast.lane.b32.xlu0 %v1232, 256
    %v1235 = vpop.permute.xlu0 %1234
    %s1237 = sor.u32 256, 8
    %1238 = vbcast.lane.b32.xlu0 %v1232, %s1237
    %v1239 = vpop.permute.xlu0 %1238
    %v1240 = vlaneseq
    %v1241 = vshrl.u32 %v1240, 7
    %v1242 = vsub.s32 2, %v1241
    %v1243 = vrot.slane %v127, %v1242
    %1245 = vbcast.lane.b32.xlu0 %v1243, 256
    %v1246 = vpop.permute.xlu0 %1245
    %s1248 = sor.u32 256, 8
    %1249 = vbcast.lane.b32.xlu0 %v1243, %s1248
    %v1250 = vpop.permute.xlu0 %1249
    %v1251 = vlaneseq
    %v1252 = vshrl.u32 %v1251, 7
    %v1253 = vsub.s32 3, %v1252
    %v1254 = vrot.slane %v127, %v1253
    %1256 = vbcast.lane.b32.xlu0 %v1254, 256
    %v1257 = vpop.permute.xlu0 %1256
    %s1259 = sor.u32 256, 8
    %1260 = vbcast.lane.b32.xlu0 %v1254, %s1259
    %v1261 = vpop.permute.xlu0 %1260
    %v1262 = vlaneseq
    %v1263 = vshrl.u32 %v1262, 7
    %v1264 = vsub.s32 4, %v1263
    %v1265 = vrot.slane %v127, %v1264
    %1267 = vbcast.lane.b32.xlu0 %v1265, 256
    %v1268 = vpop.permute.xlu0 %1267
    %s1270 = sor.u32 256, 8
    %1271 = vbcast.lane.b32.xlu0 %v1265, %s1270
    %v1272 = vpop.permute.xlu0 %1271
    %v1273 = vlaneseq
    %v1274 = vshrl.u32 %v1273, 7
    %v1275 = vsub.s32 5, %v1274
    %v1276 = vrot.slane %v127, %v1275
    %1278 = vbcast.lane.b32.xlu0 %v1276, 256
    %v1279 = vpop.permute.xlu0 %1278
    %s1281 = sor.u32 256, 8
    %1282 = vbcast.lane.b32.xlu0 %v1276, %s1281
    %v1283 = vpop.permute.xlu0 %1282
    %v1284 = vlaneseq
    %v1285 = vshrl.u32 %v1284, 7
    %v1286 = vsub.s32 6, %v1285
    %v1287 = vrot.slane %v127, %v1286
    %1289 = vbcast.lane.b32.xlu0 %v1287, 256
    %v1290 = vpop.permute.xlu0 %1289
    %s1292 = sor.u32 256, 8
    %1293 = vbcast.lane.b32.xlu0 %v1287, %s1292
    %v1294 = vpop.permute.xlu0 %1293
    %v1295 = vlaneseq
    %v1296 = vshrl.u32 %v1295, 7
    %v1297 = vsub.s32 7, %v1296
    %v1298 = vrot.slane %v127, %v1297
    %1300 = vbcast.lane.b32.xlu0 %v1298, 256
    %v1301 = vpop.permute.xlu0 %1300
    %s1303 = sor.u32 256, 8
    %1304 = vbcast.lane.b32.xlu0 %v1298, %s1303
    %v1305 = vpop.permute.xlu0 %1304
    %v1306 = vlaneseq
    %v1307 = vshrl.u32 %v1306, 7
    %v1308 = vsub.s32 0, %v1307
    %v1309 = vrot.slane %v128, %v1308
    %1311 = vbcast.lane.b32.xlu0 %v1309, 256
    %v1312 = vpop.permute.xlu0 %1311
    %s1314 = sor.u32 256, 8
    %1315 = vbcast.lane.b32.xlu0 %v1309, %s1314
    %v1316 = vpop.permute.xlu0 %1315
    %v1317 = vlaneseq
    %v1318 = vshrl.u32 %v1317, 7
    %v1319 = vsub.s32 1, %v1318
    %v1320 = vrot.slane %v128, %v1319
    %1322 = vbcast.lane.b32.xlu0 %v1320, 256
    %v1323 = vpop.permute.xlu0 %1322
    %s1325 = sor.u32 256, 8
    %1326 = vbcast.lane.b32.xlu0 %v1320, %s1325
    %v1327 = vpop.permute.xlu0 %1326
    %v1328 = vlaneseq
    %v1329 = vshrl.u32 %v1328, 7
    %v1330 = vsub.s32 2, %v1329
    %v1331 = vrot.slane %v128, %v1330
    %1333 = vbcast.lane.b32.xlu0 %v1331, 256
    %v1334 = vpop.permute.xlu0 %1333
    %s1336 = sor.u32 256, 8
    %1337 = vbcast.lane.b32.xlu0 %v1331, %s1336
    %v1338 = vpop.permute.xlu0 %1337
    %v1339 = vlaneseq
    %v1340 = vshrl.u32 %v1339, 7
    %v1341 = vsub.s32 3, %v1340
    %v1342 = vrot.slane %v128, %v1341
    %1344 = vbcast.lane.b32.xlu0 %v1342, 256
    %v1345 = vpop.permute.xlu0 %1344
    %s1347 = sor.u32 256, 8
    %1348 = vbcast.lane.b32.xlu0 %v1342, %s1347
    %v1349 = vpop.permute.xlu0 %1348
    %v1350 = vlaneseq
    %v1351 = vshrl.u32 %v1350, 7
    %v1352 = vsub.s32 4, %v1351
    %v1353 = vrot.slane %v128, %v1352
    %1355 = vbcast.lane.b32.xlu0 %v1353, 256
    %v1356 = vpop.permute.xlu0 %1355
    %s1358 = sor.u32 256, 8
    %1359 = vbcast.lane.b32.xlu0 %v1353, %s1358
    %v1360 = vpop.permute.xlu0 %1359
    %v1361 = vlaneseq
    %v1362 = vshrl.u32 %v1361, 7
    %v1363 = vsub.s32 5, %v1362
    %v1364 = vrot.slane %v128, %v1363
    %1366 = vbcast.lane.b32.xlu0 %v1364, 256
    %v1367 = vpop.permute.xlu0 %1366
    %s1369 = sor.u32 256, 8
    %1370 = vbcast.lane.b32.xlu0 %v1364, %s1369
    %v1371 = vpop.permute.xlu0 %1370
    %v1372 = vlaneseq
    %v1373 = vshrl.u32 %v1372, 7
    %v1374 = vsub.s32 6, %v1373
    %v1375 = vrot.slane %v128, %v1374
    %1377 = vbcast.lane.b32.xlu0 %v1375, 256
    %v1378 = vpop.permute.xlu0 %1377
    %s1380 = sor.u32 256, 8
    %1381 = vbcast.lane.b32.xlu0 %v1375, %s1380
    %v1382 = vpop.permute.xlu0 %1381
    %v1383 = vlaneseq
    %v1384 = vshrl.u32 %v1383, 7
    %v1385 = vsub.s32 7, %v1384
    %v1386 = vrot.slane %v128, %v1385
    %1388 = vbcast.lane.b32.xlu0 %v1386, 256
    %v1389 = vpop.permute.xlu0 %1388
    %s1391 = sor.u32 256, 8
    %1392 = vbcast.lane.b32.xlu0 %v1386, %s1391
    %v1393 = vpop.permute.xlu0 %1392
    %v1394 = vlaneseq
    %v1395 = vshrl.u32 %v1394, 7
    %v1396 = vsub.s32 0, %v1395
    %v1397 = vrot.slane %v129, %v1396
    %1399 = vbcast.lane.b32.xlu0 %v1397, 256
    %v1400 = vpop.permute.xlu0 %1399
    %s1402 = sor.u32 256, 8
    %1403 = vbcast.lane.b32.xlu0 %v1397, %s1402
    %v1404 = vpop.permute.xlu0 %1403
    %v1405 = vlaneseq
    %v1406 = vshrl.u32 %v1405, 7
    %v1407 = vsub.s32 1, %v1406
    %v1408 = vrot.slane %v129, %v1407
    %1410 = vbcast.lane.b32.xlu0 %v1408, 256
    %v1411 = vpop.permute.xlu0 %1410
    %s1413 = sor.u32 256, 8
    %1414 = vbcast.lane.b32.xlu0 %v1408, %s1413
    %v1415 = vpop.permute.xlu0 %1414
    %v1416 = vlaneseq
    %v1417 = vshrl.u32 %v1416, 7
    %v1418 = vsub.s32 2, %v1417
    %v1419 = vrot.slane %v129, %v1418
    %1421 = vbcast.lane.b32.xlu0 %v1419, 256
    %v1422 = vpop.permute.xlu0 %1421
    %s1424 = sor.u32 256, 8
    %1425 = vbcast.lane.b32.xlu0 %v1419, %s1424
    %v1426 = vpop.permute.xlu0 %1425
    %v1427 = vlaneseq
    %v1428 = vshrl.u32 %v1427, 7
    %v1429 = vsub.s32 3, %v1428
    %v1430 = vrot.slane %v129, %v1429
    %1432 = vbcast.lane.b32.xlu0 %v1430, 256
    %v1433 = vpop.permute.xlu0 %1432
    %s1435 = sor.u32 256, 8
    %1436 = vbcast.lane.b32.xlu0 %v1430, %s1435
    %v1437 = vpop.permute.xlu0 %1436
    %v1438 = vlaneseq
    %v1439 = vshrl.u32 %v1438, 7
    %v1440 = vsub.s32 4, %v1439
    %v1441 = vrot.slane %v129, %v1440
    %1443 = vbcast.lane.b32.xlu0 %v1441, 256
    %v1444 = vpop.permute.xlu0 %1443
    %s1446 = sor.u32 256, 8
    %1447 = vbcast.lane.b32.xlu0 %v1441, %s1446
    %v1448 = vpop.permute.xlu0 %1447
    %v1449 = vlaneseq
    %v1450 = vshrl.u32 %v1449, 7
    %v1451 = vsub.s32 5, %v1450
    %v1452 = vrot.slane %v129, %v1451
    %1454 = vbcast.lane.b32.xlu0 %v1452, 256
    %v1455 = vpop.permute.xlu0 %1454
    %s1457 = sor.u32 256, 8
    %1458 = vbcast.lane.b32.xlu0 %v1452, %s1457
    %v1459 = vpop.permute.xlu0 %1458
    %v1460 = vlaneseq
    %v1461 = vshrl.u32 %v1460, 7
    %v1462 = vsub.s32 6, %v1461
    %v1463 = vrot.slane %v129, %v1462
    %1465 = vbcast.lane.b32.xlu0 %v1463, 256
    %v1466 = vpop.permute.xlu0 %1465
    %s1468 = sor.u32 256, 8
    %1469 = vbcast.lane.b32.xlu0 %v1463, %s1468
    %v1470 = vpop.permute.xlu0 %1469
    %v1471 = vlaneseq
    %v1472 = vshrl.u32 %v1471, 7
    %v1473 = vsub.s32 7, %v1472
    %v1474 = vrot.slane %v129, %v1473
    %1476 = vbcast.lane.b32.xlu0 %v1474, 256
    %v1477 = vpop.permute.xlu0 %1476
    %s1479 = sor.u32 256, 8
    %1480 = vbcast.lane.b32.xlu0 %v1474, %s1479
    %v1481 = vpop.permute.xlu0 %1480
    %v1482 = vlaneseq
    %v1483 = vshrl.u32 %v1482, 7
    %v1484 = vsub.s32 0, %v1483
    %v1485 = vrot.slane %v130, %v1484
    %1487 = vbcast.lane.b32.xlu0 %v1485, 256
    %v1488 = vpop.permute.xlu0 %1487
    %s1490 = sor.u32 256, 8
    %1491 = vbcast.lane.b32.xlu0 %v1485, %s1490
    %v1492 = vpop.permute.xlu0 %1491
    %v1493 = vlaneseq
    %v1494 = vshrl.u32 %v1493, 7
    %v1495 = vsub.s32 1, %v1494
    %v1496 = vrot.slane %v130, %v1495
    %1498 = vbcast.lane.b32.xlu0 %v1496, 256
    %v1499 = vpop.permute.xlu0 %1498
    %s1501 = sor.u32 256, 8
    %1502 = vbcast.lane.b32.xlu0 %v1496, %s1501
    %v1503 = vpop.permute.xlu0 %1502
    %v1504 = vlaneseq
    %v1505 = vshrl.u32 %v1504, 7
    %v1506 = vsub.s32 2, %v1505
    %v1507 = vrot.slane %v130, %v1506
    %1509 = vbcast.lane.b32.xlu0 %v1507, 256
    %v1510 = vpop.permute.xlu0 %1509
    %s1512 = sor.u32 256, 8
    %1513 = vbcast.lane.b32.xlu0 %v1507, %s1512
    %v1514 = vpop.permute.xlu0 %1513
    %v1515 = vlaneseq
    %v1516 = vshrl.u32 %v1515, 7
    %v1517 = vsub.s32 3, %v1516
    %v1518 = vrot.slane %v130, %v1517
    %1520 = vbcast.lane.b32.xlu0 %v1518, 256
    %v1521 = vpop.permute.xlu0 %1520
    %s1523 = sor.u32 256, 8
    %1524 = vbcast.lane.b32.xlu0 %v1518, %s1523
    %v1525 = vpop.permute.xlu0 %1524
    %v1526 = vlaneseq
    %v1527 = vshrl.u32 %v1526, 7
    %v1528 = vsub.s32 4, %v1527
    %v1529 = vrot.slane %v130, %v1528
    %1531 = vbcast.lane.b32.xlu0 %v1529, 256
    %v1532 = vpop.permute.xlu0 %1531
    %s1534 = sor.u32 256, 8
    %1535 = vbcast.lane.b32.xlu0 %v1529, %s1534
    %v1536 = vpop.permute.xlu0 %1535
    %v1537 = vlaneseq
    %v1538 = vshrl.u32 %v1537, 7
    %v1539 = vsub.s32 5, %v1538
    %v1540 = vrot.slane %v130, %v1539
    %1542 = vbcast.lane.b32.xlu0 %v1540, 256
    %v1543 = vpop.permute.xlu0 %1542
    %s1545 = sor.u32 256, 8
    %1546 = vbcast.lane.b32.xlu0 %v1540, %s1545
    %v1547 = vpop.permute.xlu0 %1546
    %v1548 = vlaneseq
    %v1549 = vshrl.u32 %v1548, 7
    %v1550 = vsub.s32 6, %v1549
    %v1551 = vrot.slane %v130, %v1550
    %1553 = vbcast.lane.b32.xlu0 %v1551, 256
    %v1554 = vpop.permute.xlu0 %1553
    %s1556 = sor.u32 256, 8
    %1557 = vbcast.lane.b32.xlu0 %v1551, %s1556
    %v1558 = vpop.permute.xlu0 %1557
    %v1559 = vlaneseq
    %v1560 = vshrl.u32 %v1559, 7
    %v1561 = vsub.s32 7, %v1560
    %v1562 = vrot.slane %v130, %v1561
    %1564 = vbcast.lane.b32.xlu0 %v1562, 256
    %v1565 = vpop.permute.xlu0 %1564
    %s1567 = sor.u32 256, 8
    %1568 = vbcast.lane.b32.xlu0 %v1562, %s1567
    %v1569 = vpop.permute.xlu0 %1568
    %v1570 = vlaneseq
    %v1571 = vshrl.u32 %v1570, 7
    %v1572 = vsub.s32 0, %v1571
    %v1573 = vrot.slane %v131, %v1572
    %1575 = vbcast.lane.b32.xlu0 %v1573, 256
    %v1576 = vpop.permute.xlu0 %1575
    %s1578 = sor.u32 256, 8
    %1579 = vbcast.lane.b32.xlu0 %v1573, %s1578
    %v1580 = vpop.permute.xlu0 %1579
    %v1581 = vlaneseq
    %v1582 = vshrl.u32 %v1581, 7
    %v1583 = vsub.s32 1, %v1582
    %v1584 = vrot.slane %v131, %v1583
    %1586 = vbcast.lane.b32.xlu0 %v1584, 256
    %v1587 = vpop.permute.xlu0 %1586
    %s1589 = sor.u32 256, 8
    %1590 = vbcast.lane.b32.xlu0 %v1584, %s1589
    %v1591 = vpop.permute.xlu0 %1590
    %v1592 = vlaneseq
    %v1593 = vshrl.u32 %v1592, 7
    %v1594 = vsub.s32 2, %v1593
    %v1595 = vrot.slane %v131, %v1594
    %1597 = vbcast.lane.b32.xlu0 %v1595, 256
    %v1598 = vpop.permute.xlu0 %1597
    %s1600 = sor.u32 256, 8
    %1601 = vbcast.lane.b32.xlu0 %v1595, %s1600
    %v1602 = vpop.permute.xlu0 %1601
    %v1603 = vlaneseq
    %v1604 = vshrl.u32 %v1603, 7
    %v1605 = vsub.s32 3, %v1604
    %v1606 = vrot.slane %v131, %v1605
    %1608 = vbcast.lane.b32.xlu0 %v1606, 256
    %v1609 = vpop.permute.xlu0 %1608
    %s1611 = sor.u32 256, 8
    %1612 = vbcast.lane.b32.xlu0 %v1606, %s1611
    %v1613 = vpop.permute.xlu0 %1612
    %v1614 = vlaneseq
    %v1615 = vshrl.u32 %v1614, 7
    %v1616 = vsub.s32 4, %v1615
    %v1617 = vrot.slane %v131, %v1616
    %1619 = vbcast.lane.b32.xlu0 %v1617, 256
    %v1620 = vpop.permute.xlu0 %1619
    %s1622 = sor.u32 256, 8
    %1623 = vbcast.lane.b32.xlu0 %v1617, %s1622
    %v1624 = vpop.permute.xlu0 %1623
    %v1625 = vlaneseq
    %v1626 = vshrl.u32 %v1625, 7
    %v1627 = vsub.s32 5, %v1626
    %v1628 = vrot.slane %v131, %v1627
    %1630 = vbcast.lane.b32.xlu0 %v1628, 256
    %v1631 = vpop.permute.xlu0 %1630
    %s1633 = sor.u32 256, 8
    %1634 = vbcast.lane.b32.xlu0 %v1628, %s1633
    %v1635 = vpop.permute.xlu0 %1634
    %v1636 = vlaneseq
    %v1637 = vshrl.u32 %v1636, 7
    %v1638 = vsub.s32 6, %v1637
    %v1639 = vrot.slane %v131, %v1638
    %1641 = vbcast.lane.b32.xlu0 %v1639, 256
    %v1642 = vpop.permute.xlu0 %1641
    %s1644 = sor.u32 256, 8
    %1645 = vbcast.lane.b32.xlu0 %v1639, %s1644
    %v1646 = vpop.permute.xlu0 %1645
    %v1647 = vlaneseq
    %v1648 = vshrl.u32 %v1647, 7
    %v1649 = vsub.s32 7, %v1648
    %v1650 = vrot.slane %v131, %v1649
    %1652 = vbcast.lane.b32.xlu0 %v1650, 256
    %v1653 = vpop.permute.xlu0 %1652
    %s1655 = sor.u32 256, 8
    %1656 = vbcast.lane.b32.xlu0 %v1650, %s1655
    %v1657 = vpop.permute.xlu0 %1656
    %v1658 = vlaneseq
    %v1659 = vshrl.u32 %v1658, 7
    %v1660 = vsub.s32 0, %v1659
    %v1661 = vrot.slane %v132, %v1660
    %1663 = vbcast.lane.b32.xlu0 %v1661, 256
    %v1664 = vpop.permute.xlu0 %1663
    %s1666 = sor.u32 256, 8
    %1667 = vbcast.lane.b32.xlu0 %v1661, %s1666
    %v1668 = vpop.permute.xlu0 %1667
    %v1669 = vlaneseq
    %v1670 = vshrl.u32 %v1669, 7
    %v1671 = vsub.s32 1, %v1670
    %v1672 = vrot.slane %v132, %v1671
    %1674 = vbcast.lane.b32.xlu0 %v1672, 256
    %v1675 = vpop.permute.xlu0 %1674
    %s1677 = sor.u32 256, 8
    %1678 = vbcast.lane.b32.xlu0 %v1672, %s1677
    %v1679 = vpop.permute.xlu0 %1678
    %v1680 = vlaneseq
    %v1681 = vshrl.u32 %v1680, 7
    %v1682 = vsub.s32 2, %v1681
    %v1683 = vrot.slane %v132, %v1682
    %1685 = vbcast.lane.b32.xlu0 %v1683, 256
    %v1686 = vpop.permute.xlu0 %1685
    %s1688 = sor.u32 256, 8
    %1689 = vbcast.lane.b32.xlu0 %v1683, %s1688
    %v1690 = vpop.permute.xlu0 %1689
    %v1691 = vlaneseq
    %v1692 = vshrl.u32 %v1691, 7
    %v1693 = vsub.s32 3, %v1692
    %v1694 = vrot.slane %v132, %v1693
    %1696 = vbcast.lane.b32.xlu0 %v1694, 256
    %v1697 = vpop.permute.xlu0 %1696
    %s1699 = sor.u32 256, 8
    %1700 = vbcast.lane.b32.xlu0 %v1694, %s1699
    %v1701 = vpop.permute.xlu0 %1700
    %v1702 = vlaneseq
    %v1703 = vshrl.u32 %v1702, 7
    %v1704 = vsub.s32 4, %v1703
    %v1705 = vrot.slane %v132, %v1704
    %1707 = vbcast.lane.b32.xlu0 %v1705, 256
    %v1708 = vpop.permute.xlu0 %1707
    %s1710 = sor.u32 256, 8
    %1711 = vbcast.lane.b32.xlu0 %v1705, %s1710
    %v1712 = vpop.permute.xlu0 %1711
    %v1713 = vlaneseq
    %v1714 = vshrl.u32 %v1713, 7
    %v1715 = vsub.s32 5, %v1714
    %v1716 = vrot.slane %v132, %v1715
    %1718 = vbcast.lane.b32.xlu0 %v1716, 256
    %v1719 = vpop.permute.xlu0 %1718
    %s1721 = sor.u32 256, 8
    %1722 = vbcast.lane.b32.xlu0 %v1716, %s1721
    %v1723 = vpop.permute.xlu0 %1722
    %v1724 = vlaneseq
    %v1725 = vshrl.u32 %v1724, 7
    %v1726 = vsub.s32 6, %v1725
    %v1727 = vrot.slane %v132, %v1726
    %1729 = vbcast.lane.b32.xlu0 %v1727, 256
    %v1730 = vpop.permute.xlu0 %1729
    %s1732 = sor.u32 256, 8
    %1733 = vbcast.lane.b32.xlu0 %v1727, %s1732
    %v1734 = vpop.permute.xlu0 %1733
    %v1735 = vlaneseq
    %v1736 = vshrl.u32 %v1735, 7
    %v1737 = vsub.s32 7, %v1736
    %v1738 = vrot.slane %v132, %v1737
    %1740 = vbcast.lane.b32.xlu0 %v1738, 256
    %v1741 = vpop.permute.xlu0 %1740
    %s1743 = sor.u32 256, 8
    %1744 = vbcast.lane.b32.xlu0 %v1738, %s1743
    %v1745 = vpop.permute.xlu0 %1744
    %v1746 = vmul.f32 %v344, %v101
    %v1747 = vmul.f32 %v348, %v102
    %v1748 = vmul.f32 %v355, %v101
    %v1749 = vmul.f32 %v359, %v102
    %v1750 = vmul.f32 %v366, %v101
    %v1751 = vmul.f32 %v370, %v102
    %v1752 = vmul.f32 %v377, %v101
    %v1753 = vmul.f32 %v381, %v102
    %v1754 = vmul.f32 %v388, %v101
    %v1755 = vmul.f32 %v392, %v102
    %v1756 = vmul.f32 %v399, %v101
    %v1757 = vmul.f32 %v403, %v102
    %v1758 = vmul.f32 %v410, %v101
    %v1759 = vmul.f32 %v414, %v102
    %v1760 = vmul.f32 %v421, %v101
    %v1761 = vmul.f32 %v425, %v102
    %v1762 = vmul.f32 %v432, %v101
    %v1763 = vmul.f32 %v436, %v102
    %v1764 = vmul.f32 %v443, %v101
    %v1765 = vmul.f32 %v447, %v102
    %v1766 = vmul.f32 %v454, %v101
    %v1767 = vmul.f32 %v458, %v102
    %v1768 = vmul.f32 %v465, %v101
    %v1769 = vmul.f32 %v469, %v102
    %v1770 = vmul.f32 %v476, %v101
    %v1771 = vmul.f32 %v480, %v102
    %v1772 = vmul.f32 %v487, %v101
    %v1773 = vmul.f32 %v491, %v102
    %v1774 = vmul.f32 %v498, %v101
    %v1775 = vmul.f32 %v502, %v102
    %v1776 = vmul.f32 %v509, %v101
    %v1777 = vmul.f32 %v513, %v102
    %v1778 = vmul.f32 %v520, %v103
    %v1779 = vmul.f32 %v524, %v104
    %v1780 = vmul.f32 %v531, %v103
    %v1781 = vmul.f32 %v535, %v104
    %v1782 = vmul.f32 %v542, %v103
    %v1783 = vmul.f32 %v546, %v104
    %v1784 = vmul.f32 %v553, %v103
    %v1785 = vmul.f32 %v557, %v104
    %v1786 = vmul.f32 %v564, %v103
    %v1787 = vmul.f32 %v568, %v104
    %v1788 = vmul.f32 %v575, %v103
    %v1789 = vmul.f32 %v579, %v104
    %v1790 = vmul.f32 %v586, %v103
    %v1791 = vmul.f32 %v590, %v104
    %v1792 = vmul.f32 %v597, %v103
    %v1793 = vmul.f32 %v601, %v104
    %v1794 = vmul.f32 %v608, %v103
    %v1795 = vmul.f32 %v612, %v104
    %v1796 = vmul.f32 %v619, %v103
    %v1797 = vmul.f32 %v623, %v104
    %v1798 = vmul.f32 %v630, %v103
    %v1799 = vmul.f32 %v634, %v104
    %v1800 = vmul.f32 %v641, %v103
    %v1801 = vmul.f32 %v645, %v104
    %v1802 = vmul.f32 %v652, %v103
    %v1803 = vmul.f32 %v656, %v104
    %v1804 = vmul.f32 %v663, %v103
    %v1805 = vmul.f32 %v667, %v104
    %v1806 = vmul.f32 %v674, %v103
    %v1807 = vmul.f32 %v678, %v104
    %v1808 = vmul.f32 %v685, %v103
    %v1809 = vmul.f32 %v689, %v104
    %v1810 = vmul.f32 %v696, %v105
    %v1811 = vmul.f32 %v700, %v106
    %v1812 = vmul.f32 %v707, %v105
    %v1813 = vmul.f32 %v711, %v106
    %v1814 = vmul.f32 %v718, %v105
    %v1815 = vmul.f32 %v722, %v106
    %v1816 = vmul.f32 %v729, %v105
    %v1817 = vmul.f32 %v733, %v106
    %v1818 = vmul.f32 %v740, %v105
    %v1819 = vmul.f32 %v744, %v106
    %v1820 = vmul.f32 %v751, %v105
    %v1821 = vmul.f32 %v755, %v106
    %v1822 = vmul.f32 %v762, %v105
    %v1823 = vmul.f32 %v766, %v106
    %v1824 = vmul.f32 %v773, %v105
    %v1825 = vmul.f32 %v777, %v106
    %v1826 = vmul.f32 %v784, %v105
    %v1827 = vmul.f32 %v788, %v106
    %v1828 = vmul.f32 %v795, %v105
    %v1829 = vmul.f32 %v799, %v106
    %v1830 = vmul.f32 %v806, %v105
    %v1831 = vmul.f32 %v810, %v106
    %v1832 = vmul.f32 %v817, %v105
    %v1833 = vmul.f32 %v821, %v106
    %v1834 = vmul.f32 %v828, %v105
    %v1835 = vmul.f32 %v832, %v106
    %v1836 = vmul.f32 %v839, %v105
    %v1837 = vmul.f32 %v843, %v106
    %v1838 = vmul.f32 %v850, %v105
    %v1839 = vmul.f32 %v854, %v106
    %v1840 = vmul.f32 %v861, %v105
    %v1841 = vmul.f32 %v865, %v106
    %v1842 = vmul.f32 %v872, %v107
    %v1843 = vmul.f32 %v876, %v108
    %v1844 = vmul.f32 %v883, %v107
    %v1845 = vmul.f32 %v887, %v108
    %v1846 = vmul.f32 %v894, %v107
    %v1847 = vmul.f32 %v898, %v108
    %v1848 = vmul.f32 %v905, %v107
    %v1849 = vmul.f32 %v909, %v108
    %v1850 = vmul.f32 %v916, %v107
    %v1851 = vmul.f32 %v920, %v108
    %v1852 = vmul.f32 %v927, %v107
    %v1853 = vmul.f32 %v931, %v108
    %v1854 = vmul.f32 %v938, %v107
    %v1855 = vmul.f32 %v942, %v108
    %v1856 = vmul.f32 %v949, %v107
    %v1857 = vmul.f32 %v953, %v108
    %v1858 = vmul.f32 %v960, %v107
    %v1859 = vmul.f32 %v964, %v108
    %v1860 = vmul.f32 %v971, %v107
    %v1861 = vmul.f32 %v975, %v108
    %v1862 = vmul.f32 %v982, %v107
    %v1863 = vmul.f32 %v986, %v108
    %v1864 = vmul.f32 %v993, %v107
    %v1865 = vmul.f32 %v997, %v108
    %v1866 = vmul.f32 %v1004, %v107
    %v1867 = vmul.f32 %v1008, %v108
    %v1868 = vmul.f32 %v1015, %v107
    %v1869 = vmul.f32 %v1019, %v108
    %v1870 = vmul.f32 %v1026, %v107
    %v1871 = vmul.f32 %v1030, %v108
    %v1872 = vmul.f32 %v1037, %v107
    %v1873 = vmul.f32 %v1041, %v108
    %v1874 = vmul.f32 %v1048, %v109
    %v1875 = vmul.f32 %v1052, %v110
    %v1876 = vmul.f32 %v1059, %v109
    %v1877 = vmul.f32 %v1063, %v110
    %v1878 = vmul.f32 %v1070, %v109
    %v1879 = vmul.f32 %v1074, %v110
    %v1880 = vmul.f32 %v1081, %v109
    %v1881 = vmul.f32 %v1085, %v110
    %v1882 = vmul.f32 %v1092, %v109
    %v1883 = vmul.f32 %v1096, %v110
    %v1884 = vmul.f32 %v1103, %v109
    %v1885 = vmul.f32 %v1107, %v110
    %v1886 = vmul.f32 %v1114, %v109
    %v1887 = vmul.f32 %v1118, %v110
    %v1888 = vmul.f32 %v1125, %v109
    %v1889 = vmul.f32 %v1129, %v110
    %v1890 = vmul.f32 %v1136, %v109
    %v1891 = vmul.f32 %v1140, %v110
    %v1892 = vmul.f32 %v1147, %v109
    %v1893 = vmul.f32 %v1151, %v110
    %v1894 = vmul.f32 %v1158, %v109
    %v1895 = vmul.f32 %v1162, %v110
    %v1896 = vmul.f32 %v1169, %v109
    %v1897 = vmul.f32 %v1173, %v110
    %v1898 = vmul.f32 %v1180, %v109
    %v1899 = vmul.f32 %v1184, %v110
    %v1900 = vmul.f32 %v1191, %v109
    %v1901 = vmul.f32 %v1195, %v110
    %v1902 = vmul.f32 %v1202, %v109
    %v1903 = vmul.f32 %v1206, %v110
    %v1904 = vmul.f32 %v1213, %v109
    %v1905 = vmul.f32 %v1217, %v110
    %v1906 = vmul.f32 %v1224, %v111
    %v1907 = vmul.f32 %v1228, %v112
    %v1908 = vmul.f32 %v1235, %v111
    %v1909 = vmul.f32 %v1239, %v112
    %v1910 = vmul.f32 %v1246, %v111
    %v1911 = vmul.f32 %v1250, %v112
    %v1912 = vmul.f32 %v1257, %v111
    %v1913 = vmul.f32 %v1261, %v112
    %v1914 = vmul.f32 %v1268, %v111
    %v1915 = vmul.f32 %v1272, %v112
    %v1916 = vmul.f32 %v1279, %v111
    %v1917 = vmul.f32 %v1283, %v112
    %v1918 = vmul.f32 %v1290, %v111
    %v1919 = vmul.f32 %v1294, %v112
    %v1920 = vmul.f32 %v1301, %v111
    %v1921 = vmul.f32 %v1305, %v112
    %v1922 = vmul.f32 %v1312, %v111
    %v1923 = vmul.f32 %v1316, %v112
    %v1924 = vmul.f32 %v1323, %v111
    %v1925 = vmul.f32 %v1327, %v112
    %v1926 = vmul.f32 %v1334, %v111
    %v1927 = vmul.f32 %v1338, %v112
    %v1928 = vmul.f32 %v1345, %v111
    %v1929 = vmul.f32 %v1349, %v112
    %v1930 = vmul.f32 %v1356, %v111
    %v1931 = vmul.f32 %v1360, %v112
    %v1932 = vmul.f32 %v1367, %v111
    %v1933 = vmul.f32 %v1371, %v112
    %v1934 = vmul.f32 %v1378, %v111
    %v1935 = vmul.f32 %v1382, %v112
    %v1936 = vmul.f32 %v1389, %v111
    %v1937 = vmul.f32 %v1393, %v112
    %v1938 = vmul.f32 %v1400, %v113
    %v1939 = vmul.f32 %v1404, %v114
    %v1940 = vmul.f32 %v1411, %v113
    %v1941 = vmul.f32 %v1415, %v114
    %v1942 = vmul.f32 %v1422, %v113
    %v1943 = vmul.f32 %v1426, %v114
    %v1944 = vmul.f32 %v1433, %v113
    %v1945 = vmul.f32 %v1437, %v114
    %v1946 = vmul.f32 %v1444, %v113
    %v1947 = vmul.f32 %v1448, %v114
    %v1948 = vmul.f32 %v1455, %v113
    %v1949 = vmul.f32 %v1459, %v114
    %v1950 = vmul.f32 %v1466, %v113
    %v1951 = vmul.f32 %v1470, %v114
    %v1952 = vmul.f32 %v1477, %v113
    %v1953 = vmul.f32 %v1481, %v114
    %v1954 = vmul.f32 %v1488, %v113
    %v1955 = vmul.f32 %v1492, %v114
    %v1956 = vmul.f32 %v1499, %v113
    %v1957 = vmul.f32 %v1503, %v114
    %v1958 = vmul.f32 %v1510, %v113
    %v1959 = vmul.f32 %v1514, %v114
    %v1960 = vmul.f32 %v1521, %v113
    %v1961 = vmul.f32 %v1525, %v114
    %v1962 = vmul.f32 %v1532, %v113
    %v1963 = vmul.f32 %v1536, %v114
    %v1964 = vmul.f32 %v1543, %v113
    %v1965 = vmul.f32 %v1547, %v114
    %v1966 = vmul.f32 %v1554, %v113
    %v1967 = vmul.f32 %v1558, %v114
    %v1968 = vmul.f32 %v1565, %v113
    %v1969 = vmul.f32 %v1569, %v114
    %v1970 = vmul.f32 %v1576, %v115
    %v1971 = vmul.f32 %v1580, %v116
    %v1972 = vmul.f32 %v1587, %v115
    %v1973 = vmul.f32 %v1591, %v116
    %v1974 = vmul.f32 %v1598, %v115
    %v1975 = vmul.f32 %v1602, %v116
    %v1976 = vmul.f32 %v1609, %v115
    %v1977 = vmul.f32 %v1613, %v116
    %v1978 = vmul.f32 %v1620, %v115
    %v1979 = vmul.f32 %v1624, %v116
    %v1980 = vmul.f32 %v1631, %v115
    %v1981 = vmul.f32 %v1635, %v116
    %v1982 = vmul.f32 %v1642, %v115
    %v1983 = vmul.f32 %v1646, %v116
    %v1984 = vmul.f32 %v1653, %v115
    %v1985 = vmul.f32 %v1657, %v116
    %v1986 = vmul.f32 %v1664, %v115
    %v1987 = vmul.f32 %v1668, %v116
    %v1988 = vmul.f32 %v1675, %v115
    %v1989 = vmul.f32 %v1679, %v116
    %v1990 = vmul.f32 %v1686, %v115
    %v1991 = vmul.f32 %v1690, %v116
    %v1992 = vmul.f32 %v1697, %v115
    %v1993 = vmul.f32 %v1701, %v116
    %v1994 = vmul.f32 %v1708, %v115
    %v1995 = vmul.f32 %v1712, %v116
    %v1996 = vmul.f32 %v1719, %v115
    %v1997 = vmul.f32 %v1723, %v116
    %v1998 = vmul.f32 %v1730, %v115
    %v1999 = vmul.f32 %v1734, %v116
    %v2000 = vmul.f32 %v1741, %v115
    %v2001 = vmul.f32 %v1745, %v116
    %v2002 = vadd.f32 %v1746, %v1747
    %v2003 = vrot.slane %v2002, 4
    %v2004 = vadd.f32 %v2002, %v2003
    %v2005 = vrot.slane %v2004, 2
    %v2006 = vadd.f32 %v2004, %v2005
    %v2007 = vrot.slane %v2006, 1
    %v2008 = vadd.f32 %v2006, %v2007
    %v2009 = vadd.f32 %v1748, %v1749
    %v2010 = vrot.slane %v2009, 4
    %v2011 = vadd.f32 %v2009, %v2010
    %v2012 = vrot.slane %v2011, 2
    %v2013 = vadd.f32 %v2011, %v2012
    %v2014 = vrot.slane %v2013, 1
    %v2015 = vadd.f32 %v2013, %v2014
    %v2016 = vadd.f32 %v1750, %v1751
    %v2017 = vrot.slane %v2016, 4
    %v2018 = vadd.f32 %v2016, %v2017
    %v2019 = vrot.slane %v2018, 2
    %v2020 = vadd.f32 %v2018, %v2019
    %v2021 = vrot.slane %v2020, 1
    %v2022 = vadd.f32 %v2020, %v2021
    %v2023 = vadd.f32 %v1752, %v1753
    %v2024 = vrot.slane %v2023, 4
    %v2025 = vadd.f32 %v2023, %v2024
    %v2026 = vrot.slane %v2025, 2
    %v2027 = vadd.f32 %v2025, %v2026
    %v2028 = vrot.slane %v2027, 1
    %v2029 = vadd.f32 %v2027, %v2028
    %v2030 = vadd.f32 %v1754, %v1755
    %v2031 = vrot.slane %v2030, 4
    %v2032 = vadd.f32 %v2030, %v2031
    %v2033 = vrot.slane %v2032, 2
    %v2034 = vadd.f32 %v2032, %v2033
    %v2035 = vrot.slane %v2034, 1
    %v2036 = vadd.f32 %v2034, %v2035
    %v2037 = vadd.f32 %v1756, %v1757
    %v2038 = vrot.slane %v2037, 4
    %v2039 = vadd.f32 %v2037, %v2038
    %v2040 = vrot.slane %v2039, 2
    %v2041 = vadd.f32 %v2039, %v2040
    %v2042 = vrot.slane %v2041, 1
    %v2043 = vadd.f32 %v2041, %v2042
    %v2044 = vadd.f32 %v1758, %v1759
    %v2045 = vrot.slane %v2044, 4
    %v2046 = vadd.f32 %v2044, %v2045
    %v2047 = vrot.slane %v2046, 2
    %v2048 = vadd.f32 %v2046, %v2047
    %v2049 = vrot.slane %v2048, 1
    %v2050 = vadd.f32 %v2048, %v2049
    %v2051 = vadd.f32 %v1760, %v1761
    %v2052 = vrot.slane %v2051, 4
    %v2053 = vadd.f32 %v2051, %v2052
    %v2054 = vrot.slane %v2053, 2
    %v2055 = vadd.f32 %v2053, %v2054
    %v2056 = vrot.slane %v2055, 1
    %v2057 = vadd.f32 %v2055, %v2056
    %v2058 = vadd.f32 %v1762, %v1763
    %v2059 = vrot.slane %v2058, 4
    %v2060 = vadd.f32 %v2058, %v2059
    %v2061 = vrot.slane %v2060, 2
    %v2062 = vadd.f32 %v2060, %v2061
    %v2063 = vrot.slane %v2062, 1
    %v2064 = vadd.f32 %v2062, %v2063
    %v2065 = vadd.f32 %v1764, %v1765
    %v2066 = vrot.slane %v2065, 4
    %v2067 = vadd.f32 %v2065, %v2066
    %v2068 = vrot.slane %v2067, 2
    %v2069 = vadd.f32 %v2067, %v2068
    %v2070 = vrot.slane %v2069, 1
    %v2071 = vadd.f32 %v2069, %v2070
    %v2072 = vadd.f32 %v1766, %v1767
    %v2073 = vrot.slane %v2072, 4
    %v2074 = vadd.f32 %v2072, %v2073
    %v2075 = vrot.slane %v2074, 2
    %v2076 = vadd.f32 %v2074, %v2075
    %v2077 = vrot.slane %v2076, 1
    %v2078 = vadd.f32 %v2076, %v2077
    %v2079 = vadd.f32 %v1768, %v1769
    %v2080 = vrot.slane %v2079, 4
    %v2081 = vadd.f32 %v2079, %v2080
    %v2082 = vrot.slane %v2081, 2
    %v2083 = vadd.f32 %v2081, %v2082
    %v2084 = vrot.slane %v2083, 1
    %v2085 = vadd.f32 %v2083, %v2084
    %v2086 = vadd.f32 %v1770, %v1771
    %v2087 = vrot.slane %v2086, 4
    %v2088 = vadd.f32 %v2086, %v2087
    %v2089 = vrot.slane %v2088, 2
    %v2090 = vadd.f32 %v2088, %v2089
    %v2091 = vrot.slane %v2090, 1
    %v2092 = vadd.f32 %v2090, %v2091
    %v2093 = vadd.f32 %v1772, %v1773
    %v2094 = vrot.slane %v2093, 4
    %v2095 = vadd.f32 %v2093, %v2094
    %v2096 = vrot.slane %v2095, 2
    %v2097 = vadd.f32 %v2095, %v2096
    %v2098 = vrot.slane %v2097, 1
    %v2099 = vadd.f32 %v2097, %v2098
    %v2100 = vadd.f32 %v1774, %v1775
    %v2101 = vrot.slane %v2100, 4
    %v2102 = vadd.f32 %v2100, %v2101
    %v2103 = vrot.slane %v2102, 2
    %v2104 = vadd.f32 %v2102, %v2103
    %v2105 = vrot.slane %v2104, 1
    %v2106 = vadd.f32 %v2104, %v2105
    %v2107 = vadd.f32 %v1776, %v1777
    %v2108 = vrot.slane %v2107, 4
    %v2109 = vadd.f32 %v2107, %v2108
    %v2110 = vrot.slane %v2109, 2
    %v2111 = vadd.f32 %v2109, %v2110
    %v2112 = vrot.slane %v2111, 1
    %v2113 = vadd.f32 %v2111, %v2112
    %v2114 = vadd.f32 %v1778, %v1779
    %v2115 = vrot.slane %v2114, 4
    %v2116 = vadd.f32 %v2114, %v2115
    %v2117 = vrot.slane %v2116, 2
    %v2118 = vadd.f32 %v2116, %v2117
    %v2119 = vrot.slane %v2118, 1
    %v2120 = vadd.f32 %v2118, %v2119
    %v2121 = vadd.f32 %v1780, %v1781
    %v2122 = vrot.slane %v2121, 4
    %v2123 = vadd.f32 %v2121, %v2122
    %v2124 = vrot.slane %v2123, 2
    %v2125 = vadd.f32 %v2123, %v2124
    %v2126 = vrot.slane %v2125, 1
    %v2127 = vadd.f32 %v2125, %v2126
    %v2128 = vadd.f32 %v1782, %v1783
    %v2129 = vrot.slane %v2128, 4
    %v2130 = vadd.f32 %v2128, %v2129
    %v2131 = vrot.slane %v2130, 2
    %v2132 = vadd.f32 %v2130, %v2131
    %v2133 = vrot.slane %v2132, 1
    %v2134 = vadd.f32 %v2132, %v2133
    %v2135 = vadd.f32 %v1784, %v1785
    %v2136 = vrot.slane %v2135, 4
    %v2137 = vadd.f32 %v2135, %v2136
    %v2138 = vrot.slane %v2137, 2
    %v2139 = vadd.f32 %v2137, %v2138
    %v2140 = vrot.slane %v2139, 1
    %v2141 = vadd.f32 %v2139, %v2140
    %v2142 = vadd.f32 %v1786, %v1787
    %v2143 = vrot.slane %v2142, 4
    %v2144 = vadd.f32 %v2142, %v2143
    %v2145 = vrot.slane %v2144, 2
    %v2146 = vadd.f32 %v2144, %v2145
    %v2147 = vrot.slane %v2146, 1
    %v2148 = vadd.f32 %v2146, %v2147
    %v2149 = vadd.f32 %v1788, %v1789
    %v2150 = vrot.slane %v2149, 4
    %v2151 = vadd.f32 %v2149, %v2150
    %v2152 = vrot.slane %v2151, 2
    %v2153 = vadd.f32 %v2151, %v2152
    %v2154 = vrot.slane %v2153, 1
    %v2155 = vadd.f32 %v2153, %v2154
    %v2156 = vadd.f32 %v1790, %v1791
    %v2157 = vrot.slane %v2156, 4
    %v2158 = vadd.f32 %v2156, %v2157
    %v2159 = vrot.slane %v2158, 2
    %v2160 = vadd.f32 %v2158, %v2159
    %v2161 = vrot.slane %v2160, 1
    %v2162 = vadd.f32 %v2160, %v2161
    %v2163 = vadd.f32 %v1792, %v1793
    %v2164 = vrot.slane %v2163, 4
    %v2165 = vadd.f32 %v2163, %v2164
    %v2166 = vrot.slane %v2165, 2
    %v2167 = vadd.f32 %v2165, %v2166
    %v2168 = vrot.slane %v2167, 1
    %v2169 = vadd.f32 %v2167, %v2168
    %v2170 = vadd.f32 %v1794, %v1795
    %v2171 = vrot.slane %v2170, 4
    %v2172 = vadd.f32 %v2170, %v2171
    %v2173 = vrot.slane %v2172, 2
    %v2174 = vadd.f32 %v2172, %v2173
    %v2175 = vrot.slane %v2174, 1
    %v2176 = vadd.f32 %v2174, %v2175
    %v2177 = vadd.f32 %v1796, %v1797
    %v2178 = vrot.slane %v2177, 4
    %v2179 = vadd.f32 %v2177, %v2178
    %v2180 = vrot.slane %v2179, 2
    %v2181 = vadd.f32 %v2179, %v2180
    %v2182 = vrot.slane %v2181, 1
    %v2183 = vadd.f32 %v2181, %v2182
    %v2184 = vadd.f32 %v1798, %v1799
    %v2185 = vrot.slane %v2184, 4
    %v2186 = vadd.f32 %v2184, %v2185
    %v2187 = vrot.slane %v2186, 2
    %v2188 = vadd.f32 %v2186, %v2187
    %v2189 = vrot.slane %v2188, 1
    %v2190 = vadd.f32 %v2188, %v2189
    %v2191 = vadd.f32 %v1800, %v1801
    %v2192 = vrot.slane %v2191, 4
    %v2193 = vadd.f32 %v2191, %v2192
    %v2194 = vrot.slane %v2193, 2
    %v2195 = vadd.f32 %v2193, %v2194
    %v2196 = vrot.slane %v2195, 1
    %v2197 = vadd.f32 %v2195, %v2196
    %v2198 = vadd.f32 %v1802, %v1803
    %v2199 = vrot.slane %v2198, 4
    %v2200 = vadd.f32 %v2198, %v2199
    %v2201 = vrot.slane %v2200, 2
    %v2202 = vadd.f32 %v2200, %v2201
    %v2203 = vrot.slane %v2202, 1
    %v2204 = vadd.f32 %v2202, %v2203
    %v2205 = vadd.f32 %v1804, %v1805
    %v2206 = vrot.slane %v2205, 4
    %v2207 = vadd.f32 %v2205, %v2206
    %v2208 = vrot.slane %v2207, 2
    %v2209 = vadd.f32 %v2207, %v2208
    %v2210 = vrot.slane %v2209, 1
    %v2211 = vadd.f32 %v2209, %v2210
    %v2212 = vadd.f32 %v1806, %v1807
    %v2213 = vrot.slane %v2212, 4
    %v2214 = vadd.f32 %v2212, %v2213
    %v2215 = vrot.slane %v2214, 2
    %v2216 = vadd.f32 %v2214, %v2215
    %v2217 = vrot.slane %v2216, 1
    %v2218 = vadd.f32 %v2216, %v2217
    %v2219 = vadd.f32 %v1808, %v1809
    %v2220 = vrot.slane %v2219, 4
    %v2221 = vadd.f32 %v2219, %v2220
    %v2222 = vrot.slane %v2221, 2
    %v2223 = vadd.f32 %v2221, %v2222
    %v2224 = vrot.slane %v2223, 1
    %v2225 = vadd.f32 %v2223, %v2224
    %v2226 = vadd.f32 %v1810, %v1811
    %v2227 = vrot.slane %v2226, 4
    %v2228 = vadd.f32 %v2226, %v2227
    %v2229 = vrot.slane %v2228, 2
    %v2230 = vadd.f32 %v2228, %v2229
    %v2231 = vrot.slane %v2230, 1
    %v2232 = vadd.f32 %v2230, %v2231
    %v2233 = vadd.f32 %v1812, %v1813
    %v2234 = vrot.slane %v2233, 4
    %v2235 = vadd.f32 %v2233, %v2234
    %v2236 = vrot.slane %v2235, 2
    %v2237 = vadd.f32 %v2235, %v2236
    %v2238 = vrot.slane %v2237, 1
    %v2239 = vadd.f32 %v2237, %v2238
    %v2240 = vadd.f32 %v1814, %v1815
    %v2241 = vrot.slane %v2240, 4
    %v2242 = vadd.f32 %v2240, %v2241
    %v2243 = vrot.slane %v2242, 2
    %v2244 = vadd.f32 %v2242, %v2243
    %v2245 = vrot.slane %v2244, 1
    %v2246 = vadd.f32 %v2244, %v2245
    %v2247 = vadd.f32 %v1816, %v1817
    %v2248 = vrot.slane %v2247, 4
    %v2249 = vadd.f32 %v2247, %v2248
    %v2250 = vrot.slane %v2249, 2
    %v2251 = vadd.f32 %v2249, %v2250
    %v2252 = vrot.slane %v2251, 1
    %v2253 = vadd.f32 %v2251, %v2252
    %v2254 = vadd.f32 %v1818, %v1819
    %v2255 = vrot.slane %v2254, 4
    %v2256 = vadd.f32 %v2254, %v2255
    %v2257 = vrot.slane %v2256, 2
    %v2258 = vadd.f32 %v2256, %v2257
    %v2259 = vrot.slane %v2258, 1
    %v2260 = vadd.f32 %v2258, %v2259
    %v2261 = vadd.f32 %v1820, %v1821
    %v2262 = vrot.slane %v2261, 4
    %v2263 = vadd.f32 %v2261, %v2262
    %v2264 = vrot.slane %v2263, 2
    %v2265 = vadd.f32 %v2263, %v2264
    %v2266 = vrot.slane %v2265, 1
    %v2267 = vadd.f32 %v2265, %v2266
    %v2268 = vadd.f32 %v1822, %v1823
    %v2269 = vrot.slane %v2268, 4
    %v2270 = vadd.f32 %v2268, %v2269
    %v2271 = vrot.slane %v2270, 2
    %v2272 = vadd.f32 %v2270, %v2271
    %v2273 = vrot.slane %v2272, 1
    %v2274 = vadd.f32 %v2272, %v2273
    %v2275 = vadd.f32 %v1824, %v1825
    %v2276 = vrot.slane %v2275, 4
    %v2277 = vadd.f32 %v2275, %v2276
    %v2278 = vrot.slane %v2277, 2
    %v2279 = vadd.f32 %v2277, %v2278
    %v2280 = vrot.slane %v2279, 1
    %v2281 = vadd.f32 %v2279, %v2280
    %v2282 = vadd.f32 %v1826, %v1827
    %v2283 = vrot.slane %v2282, 4
    %v2284 = vadd.f32 %v2282, %v2283
    %v2285 = vrot.slane %v2284, 2
    %v2286 = vadd.f32 %v2284, %v2285
    %v2287 = vrot.slane %v2286, 1
    %v2288 = vadd.f32 %v2286, %v2287
    %v2289 = vadd.f32 %v1828, %v1829
    %v2290 = vrot.slane %v2289, 4
    %v2291 = vadd.f32 %v2289, %v2290
    %v2292 = vrot.slane %v2291, 2
    %v2293 = vadd.f32 %v2291, %v2292
    %v2294 = vrot.slane %v2293, 1
    %v2295 = vadd.f32 %v2293, %v2294
    %v2296 = vadd.f32 %v1830, %v1831
    %v2297 = vrot.slane %v2296, 4
    %v2298 = vadd.f32 %v2296, %v2297
    %v2299 = vrot.slane %v2298, 2
    %v2300 = vadd.f32 %v2298, %v2299
    %v2301 = vrot.slane %v2300, 1
    %v2302 = vadd.f32 %v2300, %v2301
    %v2303 = vadd.f32 %v1832, %v1833
    %v2304 = vrot.slane %v2303, 4
    %v2305 = vadd.f32 %v2303, %v2304
    %v2306 = vrot.slane %v2305, 2
    %v2307 = vadd.f32 %v2305, %v2306
    %v2308 = vrot.slane %v2307, 1
    %v2309 = vadd.f32 %v2307, %v2308
    %v2310 = vadd.f32 %v1834, %v1835
    %v2311 = vrot.slane %v2310, 4
    %v2312 = vadd.f32 %v2310, %v2311
    %v2313 = vrot.slane %v2312, 2
    %v2314 = vadd.f32 %v2312, %v2313
    %v2315 = vrot.slane %v2314, 1
    %v2316 = vadd.f32 %v2314, %v2315
    %v2317 = vadd.f32 %v1836, %v1837
    %v2318 = vrot.slane %v2317, 4
    %v2319 = vadd.f32 %v2317, %v2318
    %v2320 = vrot.slane %v2319, 2
    %v2321 = vadd.f32 %v2319, %v2320
    %v2322 = vrot.slane %v2321, 1
    %v2323 = vadd.f32 %v2321, %v2322
    %v2324 = vadd.f32 %v1838, %v1839
    %v2325 = vrot.slane %v2324, 4
    %v2326 = vadd.f32 %v2324, %v2325
    %v2327 = vrot.slane %v2326, 2
    %v2328 = vadd.f32 %v2326, %v2327
    %v2329 = vrot.slane %v2328, 1
    %v2330 = vadd.f32 %v2328, %v2329
    %v2331 = vadd.f32 %v1840, %v1841
    %v2332 = vrot.slane %v2331, 4
    %v2333 = vadd.f32 %v2331, %v2332
    %v2334 = vrot.slane %v2333, 2
    %v2335 = vadd.f32 %v2333, %v2334
    %v2336 = vrot.slane %v2335, 1
    %v2337 = vadd.f32 %v2335, %v2336
    %v2338 = vadd.f32 %v1842, %v1843
    %v2339 = vrot.slane %v2338, 4
    %v2340 = vadd.f32 %v2338, %v2339
    %v2341 = vrot.slane %v2340, 2
    %v2342 = vadd.f32 %v2340, %v2341
    %v2343 = vrot.slane %v2342, 1
    %v2344 = vadd.f32 %v2342, %v2343
    %v2345 = vadd.f32 %v1844, %v1845
    %v2346 = vrot.slane %v2345, 4
    %v2347 = vadd.f32 %v2345, %v2346
    %v2348 = vrot.slane %v2347, 2
    %v2349 = vadd.f32 %v2347, %v2348
    %v2350 = vrot.slane %v2349, 1
    %v2351 = vadd.f32 %v2349, %v2350
    %v2352 = vadd.f32 %v1846, %v1847
    %v2353 = vrot.slane %v2352, 4
    %v2354 = vadd.f32 %v2352, %v2353
    %v2355 = vrot.slane %v2354, 2
    %v2356 = vadd.f32 %v2354, %v2355
    %v2357 = vrot.slane %v2356, 1
    %v2358 = vadd.f32 %v2356, %v2357
    %v2359 = vadd.f32 %v1848, %v1849
    %v2360 = vrot.slane %v2359, 4
    %v2361 = vadd.f32 %v2359, %v2360
    %v2362 = vrot.slane %v2361, 2
    %v2363 = vadd.f32 %v2361, %v2362
    %v2364 = vrot.slane %v2363, 1
    %v2365 = vadd.f32 %v2363, %v2364
    %v2366 = vadd.f32 %v1850, %v1851
    %v2367 = vrot.slane %v2366, 4
    %v2368 = vadd.f32 %v2366, %v2367
    %v2369 = vrot.slane %v2368, 2
    %v2370 = vadd.f32 %v2368, %v2369
    %v2371 = vrot.slane %v2370, 1
    %v2372 = vadd.f32 %v2370, %v2371
    %v2373 = vadd.f32 %v1852, %v1853
    %v2374 = vrot.slane %v2373, 4
    %v2375 = vadd.f32 %v2373, %v2374
    %v2376 = vrot.slane %v2375, 2
    %v2377 = vadd.f32 %v2375, %v2376
    %v2378 = vrot.slane %v2377, 1
    %v2379 = vadd.f32 %v2377, %v2378
    %v2380 = vadd.f32 %v1854, %v1855
    %v2381 = vrot.slane %v2380, 4
    %v2382 = vadd.f32 %v2380, %v2381
    %v2383 = vrot.slane %v2382, 2
    %v2384 = vadd.f32 %v2382, %v2383
    %v2385 = vrot.slane %v2384, 1
    %v2386 = vadd.f32 %v2384, %v2385
    %v2387 = vadd.f32 %v1856, %v1857
    %v2388 = vrot.slane %v2387, 4
    %v2389 = vadd.f32 %v2387, %v2388
    %v2390 = vrot.slane %v2389, 2
    %v2391 = vadd.f32 %v2389, %v2390
    %v2392 = vrot.slane %v2391, 1
    %v2393 = vadd.f32 %v2391, %v2392
    %v2394 = vadd.f32 %v1858, %v1859
    %v2395 = vrot.slane %v2394, 4
    %v2396 = vadd.f32 %v2394, %v2395
    %v2397 = vrot.slane %v2396, 2
    %v2398 = vadd.f32 %v2396, %v2397
    %v2399 = vrot.slane %v2398, 1
    %v2400 = vadd.f32 %v2398, %v2399
    %v2401 = vadd.f32 %v1860, %v1861
    %v2402 = vrot.slane %v2401, 4
    %v2403 = vadd.f32 %v2401, %v2402
    %v2404 = vrot.slane %v2403, 2
    %v2405 = vadd.f32 %v2403, %v2404
    %v2406 = vrot.slane %v2405, 1
    %v2407 = vadd.f32 %v2405, %v2406
    %v2408 = vadd.f32 %v1862, %v1863
    %v2409 = vrot.slane %v2408, 4
    %v2410 = vadd.f32 %v2408, %v2409
    %v2411 = vrot.slane %v2410, 2
    %v2412 = vadd.f32 %v2410, %v2411
    %v2413 = vrot.slane %v2412, 1
    %v2414 = vadd.f32 %v2412, %v2413
    %v2415 = vadd.f32 %v1864, %v1865
    %v2416 = vrot.slane %v2415, 4
    %v2417 = vadd.f32 %v2415, %v2416
    %v2418 = vrot.slane %v2417, 2
    %v2419 = vadd.f32 %v2417, %v2418
    %v2420 = vrot.slane %v2419, 1
    %v2421 = vadd.f32 %v2419, %v2420
    %v2422 = vadd.f32 %v1866, %v1867
    %v2423 = vrot.slane %v2422, 4
    %v2424 = vadd.f32 %v2422, %v2423
    %v2425 = vrot.slane %v2424, 2
    %v2426 = vadd.f32 %v2424, %v2425
    %v2427 = vrot.slane %v2426, 1
    %v2428 = vadd.f32 %v2426, %v2427
    %v2429 = vadd.f32 %v1868, %v1869
    %v2430 = vrot.slane %v2429, 4
    %v2431 = vadd.f32 %v2429, %v2430
    %v2432 = vrot.slane %v2431, 2
    %v2433 = vadd.f32 %v2431, %v2432
    %v2434 = vrot.slane %v2433, 1
    %v2435 = vadd.f32 %v2433, %v2434
    %v2436 = vadd.f32 %v1870, %v1871
    %v2437 = vrot.slane %v2436, 4
    %v2438 = vadd.f32 %v2436, %v2437
    %v2439 = vrot.slane %v2438, 2
    %v2440 = vadd.f32 %v2438, %v2439
    %v2441 = vrot.slane %v2440, 1
    %v2442 = vadd.f32 %v2440, %v2441
    %v2443 = vadd.f32 %v1872, %v1873
    %v2444 = vrot.slane %v2443, 4
    %v2445 = vadd.f32 %v2443, %v2444
    %v2446 = vrot.slane %v2445, 2
    %v2447 = vadd.f32 %v2445, %v2446
    %v2448 = vrot.slane %v2447, 1
    %v2449 = vadd.f32 %v2447, %v2448
    %v2450 = vadd.f32 %v1874, %v1875
    %v2451 = vrot.slane %v2450, 4
    %v2452 = vadd.f32 %v2450, %v2451
    %v2453 = vrot.slane %v2452, 2
    %v2454 = vadd.f32 %v2452, %v2453
    %v2455 = vrot.slane %v2454, 1
    %v2456 = vadd.f32 %v2454, %v2455
    %v2457 = vadd.f32 %v1876, %v1877
    %v2458 = vrot.slane %v2457, 4
    %v2459 = vadd.f32 %v2457, %v2458
    %v2460 = vrot.slane %v2459, 2
    %v2461 = vadd.f32 %v2459, %v2460
    %v2462 = vrot.slane %v2461, 1
    %v2463 = vadd.f32 %v2461, %v2462
    %v2464 = vadd.f32 %v1878, %v1879
    %v2465 = vrot.slane %v2464, 4
    %v2466 = vadd.f32 %v2464, %v2465
    %v2467 = vrot.slane %v2466, 2
    %v2468 = vadd.f32 %v2466, %v2467
    %v2469 = vrot.slane %v2468, 1
    %v2470 = vadd.f32 %v2468, %v2469
    %v2471 = vadd.f32 %v1880, %v1881
    %v2472 = vrot.slane %v2471, 4
    %v2473 = vadd.f32 %v2471, %v2472
    %v2474 = vrot.slane %v2473, 2
    %v2475 = vadd.f32 %v2473, %v2474
    %v2476 = vrot.slane %v2475, 1
    %v2477 = vadd.f32 %v2475, %v2476
    %v2478 = vadd.f32 %v1882, %v1883
    %v2479 = vrot.slane %v2478, 4
    %v2480 = vadd.f32 %v2478, %v2479
    %v2481 = vrot.slane %v2480, 2
    %v2482 = vadd.f32 %v2480, %v2481
    %v2483 = vrot.slane %v2482, 1
    %v2484 = vadd.f32 %v2482, %v2483
    %v2485 = vadd.f32 %v1884, %v1885
    %v2486 = vrot.slane %v2485, 4
    %v2487 = vadd.f32 %v2485, %v2486
    %v2488 = vrot.slane %v2487, 2
    %v2489 = vadd.f32 %v2487, %v2488
    %v2490 = vrot.slane %v2489, 1
    %v2491 = vadd.f32 %v2489, %v2490
    %v2492 = vadd.f32 %v1886, %v1887
    %v2493 = vrot.slane %v2492, 4
    %v2494 = vadd.f32 %v2492, %v2493
    %v2495 = vrot.slane %v2494, 2
    %v2496 = vadd.f32 %v2494, %v2495
    %v2497 = vrot.slane %v2496, 1
    %v2498 = vadd.f32 %v2496, %v2497
    %v2499 = vadd.f32 %v1888, %v1889
    %v2500 = vrot.slane %v2499, 4
    %v2501 = vadd.f32 %v2499, %v2500
    %v2502 = vrot.slane %v2501, 2
    %v2503 = vadd.f32 %v2501, %v2502
    %v2504 = vrot.slane %v2503, 1
    %v2505 = vadd.f32 %v2503, %v2504
    %v2506 = vadd.f32 %v1890, %v1891
    %v2507 = vrot.slane %v2506, 4
    %v2508 = vadd.f32 %v2506, %v2507
    %v2509 = vrot.slane %v2508, 2
    %v2510 = vadd.f32 %v2508, %v2509
    %v2511 = vrot.slane %v2510, 1
    %v2512 = vadd.f32 %v2510, %v2511
    %v2513 = vadd.f32 %v1892, %v1893
    %v2514 = vrot.slane %v2513, 4
    %v2515 = vadd.f32 %v2513, %v2514
    %v2516 = vrot.slane %v2515, 2
    %v2517 = vadd.f32 %v2515, %v2516
    %v2518 = vrot.slane %v2517, 1
    %v2519 = vadd.f32 %v2517, %v2518
    %v2520 = vadd.f32 %v1894, %v1895
    %v2521 = vrot.slane %v2520, 4
    %v2522 = vadd.f32 %v2520, %v2521
    %v2523 = vrot.slane %v2522, 2
    %v2524 = vadd.f32 %v2522, %v2523
    %v2525 = vrot.slane %v2524, 1
    %v2526 = vadd.f32 %v2524, %v2525
    %v2527 = vadd.f32 %v1896, %v1897
    %v2528 = vrot.slane %v2527, 4
    %v2529 = vadd.f32 %v2527, %v2528
    %v2530 = vrot.slane %v2529, 2
    %v2531 = vadd.f32 %v2529, %v2530
    %v2532 = vrot.slane %v2531, 1
    %v2533 = vadd.f32 %v2531, %v2532
    %v2534 = vadd.f32 %v1898, %v1899
    %v2535 = vrot.slane %v2534, 4
    %v2536 = vadd.f32 %v2534, %v2535
    %v2537 = vrot.slane %v2536, 2
    %v2538 = vadd.f32 %v2536, %v2537
    %v2539 = vrot.slane %v2538, 1
    %v2540 = vadd.f32 %v2538, %v2539
    %v2541 = vadd.f32 %v1900, %v1901
    %v2542 = vrot.slane %v2541, 4
    %v2543 = vadd.f32 %v2541, %v2542
    %v2544 = vrot.slane %v2543, 2
    %v2545 = vadd.f32 %v2543, %v2544
    %v2546 = vrot.slane %v2545, 1
    %v2547 = vadd.f32 %v2545, %v2546
    %v2548 = vadd.f32 %v1902, %v1903
    %v2549 = vrot.slane %v2548, 4
    %v2550 = vadd.f32 %v2548, %v2549
    %v2551 = vrot.slane %v2550, 2
    %v2552 = vadd.f32 %v2550, %v2551
    %v2553 = vrot.slane %v2552, 1
    %v2554 = vadd.f32 %v2552, %v2553
    %v2555 = vadd.f32 %v1904, %v1905
    %v2556 = vrot.slane %v2555, 4
    %v2557 = vadd.f32 %v2555, %v2556
    %v2558 = vrot.slane %v2557, 2
    %v2559 = vadd.f32 %v2557, %v2558
    %v2560 = vrot.slane %v2559, 1
    %v2561 = vadd.f32 %v2559, %v2560
    %v2562 = vadd.f32 %v1906, %v1907
    %v2563 = vrot.slane %v2562, 4
    %v2564 = vadd.f32 %v2562, %v2563
    %v2565 = vrot.slane %v2564, 2
    %v2566 = vadd.f32 %v2564, %v2565
    %v2567 = vrot.slane %v2566, 1
    %v2568 = vadd.f32 %v2566, %v2567
    %v2569 = vadd.f32 %v1908, %v1909
    %v2570 = vrot.slane %v2569, 4
    %v2571 = vadd.f32 %v2569, %v2570
    %v2572 = vrot.slane %v2571, 2
    %v2573 = vadd.f32 %v2571, %v2572
    %v2574 = vrot.slane %v2573, 1
    %v2575 = vadd.f32 %v2573, %v2574
    %v2576 = vadd.f32 %v1910, %v1911
    %v2577 = vrot.slane %v2576, 4
    %v2578 = vadd.f32 %v2576, %v2577
    %v2579 = vrot.slane %v2578, 2
    %v2580 = vadd.f32 %v2578, %v2579
    %v2581 = vrot.slane %v2580, 1
    %v2582 = vadd.f32 %v2580, %v2581
    %v2583 = vadd.f32 %v1912, %v1913
    %v2584 = vrot.slane %v2583, 4
    %v2585 = vadd.f32 %v2583, %v2584
    %v2586 = vrot.slane %v2585, 2
    %v2587 = vadd.f32 %v2585, %v2586
    %v2588 = vrot.slane %v2587, 1
    %v2589 = vadd.f32 %v2587, %v2588
    %v2590 = vadd.f32 %v1914, %v1915
    %v2591 = vrot.slane %v2590, 4
    %v2592 = vadd.f32 %v2590, %v2591
    %v2593 = vrot.slane %v2592, 2
    %v2594 = vadd.f32 %v2592, %v2593
    %v2595 = vrot.slane %v2594, 1
    %v2596 = vadd.f32 %v2594, %v2595
    %v2597 = vadd.f32 %v1916, %v1917
    %v2598 = vrot.slane %v2597, 4
    %v2599 = vadd.f32 %v2597, %v2598
    %v2600 = vrot.slane %v2599, 2
    %v2601 = vadd.f32 %v2599, %v2600
    %v2602 = vrot.slane %v2601, 1
    %v2603 = vadd.f32 %v2601, %v2602
    %v2604 = vadd.f32 %v1918, %v1919
    %v2605 = vrot.slane %v2604, 4
    %v2606 = vadd.f32 %v2604, %v2605
    %v2607 = vrot.slane %v2606, 2
    %v2608 = vadd.f32 %v2606, %v2607
    %v2609 = vrot.slane %v2608, 1
    %v2610 = vadd.f32 %v2608, %v2609
    %v2611 = vadd.f32 %v1920, %v1921
    %v2612 = vrot.slane %v2611, 4
    %v2613 = vadd.f32 %v2611, %v2612
    %v2614 = vrot.slane %v2613, 2
    %v2615 = vadd.f32 %v2613, %v2614
    %v2616 = vrot.slane %v2615, 1
    %v2617 = vadd.f32 %v2615, %v2616
    %v2618 = vadd.f32 %v1922, %v1923
    %v2619 = vrot.slane %v2618, 4
    %v2620 = vadd.f32 %v2618, %v2619
    %v2621 = vrot.slane %v2620, 2
    %v2622 = vadd.f32 %v2620, %v2621
    %v2623 = vrot.slane %v2622, 1
    %v2624 = vadd.f32 %v2622, %v2623
    %v2625 = vadd.f32 %v1924, %v1925
    %v2626 = vrot.slane %v2625, 4
    %v2627 = vadd.f32 %v2625, %v2626
    %v2628 = vrot.slane %v2627, 2
    %v2629 = vadd.f32 %v2627, %v2628
    %v2630 = vrot.slane %v2629, 1
    %v2631 = vadd.f32 %v2629, %v2630
    %v2632 = vadd.f32 %v1926, %v1927
    %v2633 = vrot.slane %v2632, 4
    %v2634 = vadd.f32 %v2632, %v2633
    %v2635 = vrot.slane %v2634, 2
    %v2636 = vadd.f32 %v2634, %v2635
    %v2637 = vrot.slane %v2636, 1
    %v2638 = vadd.f32 %v2636, %v2637
    %v2639 = vadd.f32 %v1928, %v1929
    %v2640 = vrot.slane %v2639, 4
    %v2641 = vadd.f32 %v2639, %v2640
    %v2642 = vrot.slane %v2641, 2
    %v2643 = vadd.f32 %v2641, %v2642
    %v2644 = vrot.slane %v2643, 1
    %v2645 = vadd.f32 %v2643, %v2644
    %v2646 = vadd.f32 %v1930, %v1931
    %v2647 = vrot.slane %v2646, 4
    %v2648 = vadd.f32 %v2646, %v2647
    %v2649 = vrot.slane %v2648, 2
    %v2650 = vadd.f32 %v2648, %v2649
    %v2651 = vrot.slane %v2650, 1
    %v2652 = vadd.f32 %v2650, %v2651
    %v2653 = vadd.f32 %v1932, %v1933
    %v2654 = vrot.slane %v2653, 4
    %v2655 = vadd.f32 %v2653, %v2654
    %v2656 = vrot.slane %v2655, 2
    %v2657 = vadd.f32 %v2655, %v2656
    %v2658 = vrot.slane %v2657, 1
    %v2659 = vadd.f32 %v2657, %v2658
    %v2660 = vadd.f32 %v1934, %v1935
    %v2661 = vrot.slane %v2660, 4
    %v2662 = vadd.f32 %v2660, %v2661
    %v2663 = vrot.slane %v2662, 2
    %v2664 = vadd.f32 %v2662, %v2663
    %v2665 = vrot.slane %v2664, 1
    %v2666 = vadd.f32 %v2664, %v2665
    %v2667 = vadd.f32 %v1936, %v1937
    %v2668 = vrot.slane %v2667, 4
    %v2669 = vadd.f32 %v2667, %v2668
    %v2670 = vrot.slane %v2669, 2
    %v2671 = vadd.f32 %v2669, %v2670
    %v2672 = vrot.slane %v2671, 1
    %v2673 = vadd.f32 %v2671, %v2672
    %v2674 = vadd.f32 %v1938, %v1939
    %v2675 = vrot.slane %v2674, 4
    %v2676 = vadd.f32 %v2674, %v2675
    %v2677 = vrot.slane %v2676, 2
    %v2678 = vadd.f32 %v2676, %v2677
    %v2679 = vrot.slane %v2678, 1
    %v2680 = vadd.f32 %v2678, %v2679
    %v2681 = vadd.f32 %v1940, %v1941
    %v2682 = vrot.slane %v2681, 4
    %v2683 = vadd.f32 %v2681, %v2682
    %v2684 = vrot.slane %v2683, 2
    %v2685 = vadd.f32 %v2683, %v2684
    %v2686 = vrot.slane %v2685, 1
    %v2687 = vadd.f32 %v2685, %v2686
    %v2688 = vadd.f32 %v1942, %v1943
    %v2689 = vrot.slane %v2688, 4
    %v2690 = vadd.f32 %v2688, %v2689
    %v2691 = vrot.slane %v2690, 2
    %v2692 = vadd.f32 %v2690, %v2691
    %v2693 = vrot.slane %v2692, 1
    %v2694 = vadd.f32 %v2692, %v2693
    %v2695 = vadd.f32 %v1944, %v1945
    %v2696 = vrot.slane %v2695, 4
    %v2697 = vadd.f32 %v2695, %v2696
    %v2698 = vrot.slane %v2697, 2
    %v2699 = vadd.f32 %v2697, %v2698
    %v2700 = vrot.slane %v2699, 1
    %v2701 = vadd.f32 %v2699, %v2700
    %v2702 = vadd.f32 %v1946, %v1947
    %v2703 = vrot.slane %v2702, 4
    %v2704 = vadd.f32 %v2702, %v2703
    %v2705 = vrot.slane %v2704, 2
    %v2706 = vadd.f32 %v2704, %v2705
    %v2707 = vrot.slane %v2706, 1
    %v2708 = vadd.f32 %v2706, %v2707
    %v2709 = vadd.f32 %v1948, %v1949
    %v2710 = vrot.slane %v2709, 4
    %v2711 = vadd.f32 %v2709, %v2710
    %v2712 = vrot.slane %v2711, 2
    %v2713 = vadd.f32 %v2711, %v2712
    %v2714 = vrot.slane %v2713, 1
    %v2715 = vadd.f32 %v2713, %v2714
    %v2716 = vadd.f32 %v1950, %v1951
    %v2717 = vrot.slane %v2716, 4
    %v2718 = vadd.f32 %v2716, %v2717
    %v2719 = vrot.slane %v2718, 2
    %v2720 = vadd.f32 %v2718, %v2719
    %v2721 = vrot.slane %v2720, 1
    %v2722 = vadd.f32 %v2720, %v2721
    %v2723 = vadd.f32 %v1952, %v1953
    %v2724 = vrot.slane %v2723, 4
    %v2725 = vadd.f32 %v2723, %v2724
    %v2726 = vrot.slane %v2725, 2
    %v2727 = vadd.f32 %v2725, %v2726
    %v2728 = vrot.slane %v2727, 1
    %v2729 = vadd.f32 %v2727, %v2728
    %v2730 = vadd.f32 %v1954, %v1955
    %v2731 = vrot.slane %v2730, 4
    %v2732 = vadd.f32 %v2730, %v2731
    %v2733 = vrot.slane %v2732, 2
    %v2734 = vadd.f32 %v2732, %v2733
    %v2735 = vrot.slane %v2734, 1
    %v2736 = vadd.f32 %v2734, %v2735
    %v2737 = vadd.f32 %v1956, %v1957
    %v2738 = vrot.slane %v2737, 4
    %v2739 = vadd.f32 %v2737, %v2738
    %v2740 = vrot.slane %v2739, 2
    %v2741 = vadd.f32 %v2739, %v2740
    %v2742 = vrot.slane %v2741, 1
    %v2743 = vadd.f32 %v2741, %v2742
    %v2744 = vadd.f32 %v1958, %v1959
    %v2745 = vrot.slane %v2744, 4
    %v2746 = vadd.f32 %v2744, %v2745
    %v2747 = vrot.slane %v2746, 2
    %v2748 = vadd.f32 %v2746, %v2747
    %v2749 = vrot.slane %v2748, 1
    %v2750 = vadd.f32 %v2748, %v2749
    %v2751 = vadd.f32 %v1960, %v1961
    %v2752 = vrot.slane %v2751, 4
    %v2753 = vadd.f32 %v2751, %v2752
    %v2754 = vrot.slane %v2753, 2
    %v2755 = vadd.f32 %v2753, %v2754
    %v2756 = vrot.slane %v2755, 1
    %v2757 = vadd.f32 %v2755, %v2756
    %v2758 = vadd.f32 %v1962, %v1963
    %v2759 = vrot.slane %v2758, 4
    %v2760 = vadd.f32 %v2758, %v2759
    %v2761 = vrot.slane %v2760, 2
    %v2762 = vadd.f32 %v2760, %v2761
    %v2763 = vrot.slane %v2762, 1
    %v2764 = vadd.f32 %v2762, %v2763
    %v2765 = vadd.f32 %v1964, %v1965
    %v2766 = vrot.slane %v2765, 4
    %v2767 = vadd.f32 %v2765, %v2766
    %v2768 = vrot.slane %v2767, 2
    %v2769 = vadd.f32 %v2767, %v2768
    %v2770 = vrot.slane %v2769, 1
    %v2771 = vadd.f32 %v2769, %v2770
    %v2772 = vadd.f32 %v1966, %v1967
    %v2773 = vrot.slane %v2772, 4
    %v2774 = vadd.f32 %v2772, %v2773
    %v2775 = vrot.slane %v2774, 2
    %v2776 = vadd.f32 %v2774, %v2775
    %v2777 = vrot.slane %v2776, 1
    %v2778 = vadd.f32 %v2776, %v2777
    %v2779 = vadd.f32 %v1968, %v1969
    %v2780 = vrot.slane %v2779, 4
    %v2781 = vadd.f32 %v2779, %v2780
    %v2782 = vrot.slane %v2781, 2
    %v2783 = vadd.f32 %v2781, %v2782
    %v2784 = vrot.slane %v2783, 1
    %v2785 = vadd.f32 %v2783, %v2784
    %v2786 = vadd.f32 %v1970, %v1971
    %v2787 = vrot.slane %v2786, 4
    %v2788 = vadd.f32 %v2786, %v2787
    %v2789 = vrot.slane %v2788, 2
    %v2790 = vadd.f32 %v2788, %v2789
    %v2791 = vrot.slane %v2790, 1
    %v2792 = vadd.f32 %v2790, %v2791
    %v2793 = vadd.f32 %v1972, %v1973
    %v2794 = vrot.slane %v2793, 4
    %v2795 = vadd.f32 %v2793, %v2794
    %v2796 = vrot.slane %v2795, 2
    %v2797 = vadd.f32 %v2795, %v2796
    %v2798 = vrot.slane %v2797, 1
    %v2799 = vadd.f32 %v2797, %v2798
    %v2800 = vadd.f32 %v1974, %v1975
    %v2801 = vrot.slane %v2800, 4
    %v2802 = vadd.f32 %v2800, %v2801
    %v2803 = vrot.slane %v2802, 2
    %v2804 = vadd.f32 %v2802, %v2803
    %v2805 = vrot.slane %v2804, 1
    %v2806 = vadd.f32 %v2804, %v2805
    %v2807 = vadd.f32 %v1976, %v1977
    %v2808 = vrot.slane %v2807, 4
    %v2809 = vadd.f32 %v2807, %v2808
    %v2810 = vrot.slane %v2809, 2
    %v2811 = vadd.f32 %v2809, %v2810
    %v2812 = vrot.slane %v2811, 1
    %v2813 = vadd.f32 %v2811, %v2812
    %v2814 = vadd.f32 %v1978, %v1979
    %v2815 = vrot.slane %v2814, 4
    %v2816 = vadd.f32 %v2814, %v2815
    %v2817 = vrot.slane %v2816, 2
    %v2818 = vadd.f32 %v2816, %v2817
    %v2819 = vrot.slane %v2818, 1
    %v2820 = vadd.f32 %v2818, %v2819
    %v2821 = vadd.f32 %v1980, %v1981
    %v2822 = vrot.slane %v2821, 4
    %v2823 = vadd.f32 %v2821, %v2822
    %v2824 = vrot.slane %v2823, 2
    %v2825 = vadd.f32 %v2823, %v2824
    %v2826 = vrot.slane %v2825, 1
    %v2827 = vadd.f32 %v2825, %v2826
    %v2828 = vadd.f32 %v1982, %v1983
    %v2829 = vrot.slane %v2828, 4
    %v2830 = vadd.f32 %v2828, %v2829
    %v2831 = vrot.slane %v2830, 2
    %v2832 = vadd.f32 %v2830, %v2831
    %v2833 = vrot.slane %v2832, 1
    %v2834 = vadd.f32 %v2832, %v2833
    %v2835 = vadd.f32 %v1984, %v1985
    %v2836 = vrot.slane %v2835, 4
    %v2837 = vadd.f32 %v2835, %v2836
    %v2838 = vrot.slane %v2837, 2
    %v2839 = vadd.f32 %v2837, %v2838
    %v2840 = vrot.slane %v2839, 1
    %v2841 = vadd.f32 %v2839, %v2840
    %v2842 = vadd.f32 %v1986, %v1987
    %v2843 = vrot.slane %v2842, 4
    %v2844 = vadd.f32 %v2842, %v2843
    %v2845 = vrot.slane %v2844, 2
    %v2846 = vadd.f32 %v2844, %v2845
    %v2847 = vrot.slane %v2846, 1
    %v2848 = vadd.f32 %v2846, %v2847
    %v2849 = vadd.f32 %v1988, %v1989
    %v2850 = vrot.slane %v2849, 4
    %v2851 = vadd.f32 %v2849, %v2850
    %v2852 = vrot.slane %v2851, 2
    %v2853 = vadd.f32 %v2851, %v2852
    %v2854 = vrot.slane %v2853, 1
    %v2855 = vadd.f32 %v2853, %v2854
    %v2856 = vadd.f32 %v1990, %v1991
    %v2857 = vrot.slane %v2856, 4
    %v2858 = vadd.f32 %v2856, %v2857
    %v2859 = vrot.slane %v2858, 2
    %v2860 = vadd.f32 %v2858, %v2859
    %v2861 = vrot.slane %v2860, 1
    %v2862 = vadd.f32 %v2860, %v2861
    %v2863 = vadd.f32 %v1992, %v1993
    %v2864 = vrot.slane %v2863, 4
    %v2865 = vadd.f32 %v2863, %v2864
    %v2866 = vrot.slane %v2865, 2
    %v2867 = vadd.f32 %v2865, %v2866
    %v2868 = vrot.slane %v2867, 1
    %v2869 = vadd.f32 %v2867, %v2868
    %v2870 = vadd.f32 %v1994, %v1995
    %v2871 = vrot.slane %v2870, 4
    %v2872 = vadd.f32 %v2870, %v2871
    %v2873 = vrot.slane %v2872, 2
    %v2874 = vadd.f32 %v2872, %v2873
    %v2875 = vrot.slane %v2874, 1
    %v2876 = vadd.f32 %v2874, %v2875
    %v2877 = vadd.f32 %v1996, %v1997
    %v2878 = vrot.slane %v2877, 4
    %v2879 = vadd.f32 %v2877, %v2878
    %v2880 = vrot.slane %v2879, 2
    %v2881 = vadd.f32 %v2879, %v2880
    %v2882 = vrot.slane %v2881, 1
    %v2883 = vadd.f32 %v2881, %v2882
    %v2884 = vadd.f32 %v1998, %v1999
    %v2885 = vrot.slane %v2884, 4
    %v2886 = vadd.f32 %v2884, %v2885
    %v2887 = vrot.slane %v2886, 2
    %v2888 = vadd.f32 %v2886, %v2887
    %v2889 = vrot.slane %v2888, 1
    %v2890 = vadd.f32 %v2888, %v2889
    %v2891 = vadd.f32 %v2000, %v2001
    %v2892 = vrot.slane %v2891, 4
    %v2893 = vadd.f32 %v2891, %v2892
    %v2894 = vrot.slane %v2893, 2
    %v2895 = vadd.f32 %v2893, %v2894
    %v2896 = vrot.slane %v2895, 1
    %v2897 = vadd.f32 %v2895, %v2896
    %vm2898 = vcmask 130048
    %v2899 = vsel %vm2898, %v117, 0.0
    %2900 = vadd.xlane.f32.xlu0 %v2899
    %v2901 = vpop.xlane.xlu0 %2900
    %v2902 = vsel %vm2898, %v118, 0.0
    %2903 = vadd.xlane.f32.xlu0 %v2902
    %v2904 = vpop.xlane.xlu0 %2903
    %v2905 = vsel %vm2898, %v119, 0.0
    %2906 = vadd.xlane.f32.xlu0 %v2905
    %v2907 = vpop.xlane.xlu0 %2906
    %v2908 = vsel %vm2898, %v120, 0.0
    %2909 = vadd.xlane.f32.xlu0 %v2908
    %v2910 = vpop.xlane.xlu0 %2909
    %v2911 = vsel %vm2898, %v121, 0.0
    %2912 = vadd.xlane.f32.xlu0 %v2911
    %v2913 = vpop.xlane.xlu0 %2912
    %v2914 = vsel %vm2898, %v122, 0.0
    %2915 = vadd.xlane.f32.xlu0 %v2914
    %v2916 = vpop.xlane.xlu0 %2915
    %v2917 = vsel %vm2898, %v123, 0.0
    %2918 = vadd.xlane.f32.xlu0 %v2917
    %v2919 = vpop.xlane.xlu0 %2918
    %v2920 = vsel %vm2898, %v124, 0.0
    %2921 = vadd.xlane.f32.xlu0 %v2920
    %v2922 = vpop.xlane.xlu0 %2921
    %v2923 = vsel %vm2898, %v125, 0.0
    %2924 = vadd.xlane.f32.xlu0 %v2923
    %v2925 = vpop.xlane.xlu0 %2924
    %v2926 = vsel %vm2898, %v126, 0.0
    %2927 = vadd.xlane.f32.xlu0 %v2926
    %v2928 = vpop.xlane.xlu0 %2927
    %v2929 = vsel %vm2898, %v127, 0.0
    %2930 = vadd.xlane.f32.xlu0 %v2929
    %v2931 = vpop.xlane.xlu0 %2930
    %v2932 = vsel %vm2898, %v128, 0.0
    %2933 = vadd.xlane.f32.xlu0 %v2932
    %v2934 = vpop.xlane.xlu0 %2933
    %v2935 = vsel %vm2898, %v129, 0.0
    %2936 = vadd.xlane.f32.xlu0 %v2935
    %v2937 = vpop.xlane.xlu0 %2936
    %v2938 = vsel %vm2898, %v130, 0.0
    %2939 = vadd.xlane.f32.xlu0 %v2938
    %v2940 = vpop.xlane.xlu0 %2939
    %v2941 = vsel %vm2898, %v131, 0.0
    %2942 = vadd.xlane.f32.xlu0 %v2941
    %v2943 = vpop.xlane.xlu0 %2942
    %v2944 = vsel %vm2898, %v132, 0.0
    %2945 = vadd.xlane.f32.xlu0 %v2944
    %v2946 = vpop.xlane.xlu0 %2945
    %v2947 = vld [vmem:[#allocation8] sm:$0xff]
    %v2948 = vld [vmem:[#allocation8 + $0x8] sm:$0xff]
    %v2949 = vld [vmem:[#allocation8 + $0x10] sm:$0xff]
    %v2950 = vld [vmem:[#allocation8 + $0x18] sm:$0xff]
    %v2951 = vld [vmem:[#allocation8 + $0x20] sm:$0xff]
    %v2952 = vld [vmem:[#allocation8 + $0x28] sm:$0xff]
    %v2953 = vld [vmem:[#allocation8 + $0x30] sm:$0xff]
    %v2954 = vld [vmem:[#allocation8 + $0x38] sm:$0xff]
    %v2955 = vld [vmem:[#allocation8 + $0x40] sm:$0xff]
    %v2956 = vld [vmem:[#allocation8 + $0x48] sm:$0xff]
    %v2957 = vld [vmem:[#allocation8 + $0x50] sm:$0xff]
    %v2958 = vld [vmem:[#allocation8 + $0x58] sm:$0xff]
    %v2959 = vld [vmem:[#allocation8 + $0x60] sm:$0xff]
    %v2960 = vld [vmem:[#allocation8 + $0x68] sm:$0xff]
    %v2961 = vld [vmem:[#allocation8 + $0x70] sm:$0xff]
    %v2962 = vld [vmem:[#allocation8 + $0x78] sm:$0xff]
    %v2963 = vld [vmem:[#allocation8 + $0x80] sm:$0xff]
    %v2964 = vld [vmem:[#allocation8 + $0x88] sm:$0xff]
    %v2965 = vld [vmem:[#allocation8 + $0x90] sm:$0xff]
    %v2966 = vld [vmem:[#allocation8 + $0x98] sm:$0xff]
    %v2967 = vld [vmem:[#allocation8 + $0xa0] sm:$0xff]
    %v2968 = vld [vmem:[#allocation8 + $0xa8] sm:$0xff]
    %v2969 = vld [vmem:[#allocation8 + $0xb0] sm:$0xff]
    %v2970 = vld [vmem:[#allocation8 + $0xb8] sm:$0xff]
    %v2971 = vld [vmem:[#allocation8 + $0xc0] sm:$0xff]
    %v2972 = vld [vmem:[#allocation8 + $0xc8] sm:$0xff]
    %v2973 = vld [vmem:[#allocation8 + $0xd0] sm:$0xff]
    %v2974 = vld [vmem:[#allocation8 + $0xd8] sm:$0xff]
    %v2975 = vld [vmem:[#allocation8 + $0xe0] sm:$0xff]
    %v2976 = vld [vmem:[#allocation8 + $0xe8] sm:$0xff]
    %v2977 = vld [vmem:[#allocation8 + $0xf0] sm:$0xff]
    %v2978 = vld [vmem:[#allocation8 + $0xf8] sm:$0xff]
    %v2979 = vld [vmem:[#allocation8 + $0x100] sm:$0xff]
    %v2980 = vld [vmem:[#allocation8 + $0x108] sm:$0xff]
    %v2981 = vld [vmem:[#allocation8 + $0x110] sm:$0xff]
    %v2982 = vld [vmem:[#allocation8 + $0x118] sm:$0xff]
    %v2983 = vld [vmem:[#allocation8 + $0x120] sm:$0xff]
    %v2984 = vld [vmem:[#allocation8 + $0x128] sm:$0xff]
    %v2985 = vld [vmem:[#allocation8 + $0x130] sm:$0xff]
    %v2986 = vld [vmem:[#allocation8 + $0x138] sm:$0xff]
    %v2987 = vld [vmem:[#allocation8 + $0x140] sm:$0xff]
    %v2988 = vld [vmem:[#allocation8 + $0x148] sm:$0xff]
    %v2989 = vld [vmem:[#allocation8 + $0x150] sm:$0xff]
    %v2990 = vld [vmem:[#allocation8 + $0x158] sm:$0xff]
    %v2991 = vld [vmem:[#allocation8 + $0x160] sm:$0xff]
    %v2992 = vld [vmem:[#allocation8 + $0x168] sm:$0xff]
    %v2993 = vld [vmem:[#allocation8 + $0x170] sm:$0xff]
    %v2994 = vld [vmem:[#allocation8 + $0x178] sm:$0xff]
    %v2995 = vld [vmem:[%s5] sm:$0x7]
    %v2997 = vlaneseq
    %v2998 = vshrl.u32 %v2997, 7
    %v2999 = vsub.s32 0, %v2998
    %v3000 = vrot.slane %v2995, %v2999
    %v3001 = vlaneseq
    %v3002 = vshrl.u32 %v3001, 7
    %v3003 = vsub.s32 1, %v3002
    %v3004 = vrot.slane %v2995, %v3003
    %v3005 = vlaneseq
    %v3006 = vshrl.u32 %v3005, 7
    %v3007 = vsub.s32 2, %v3006
    %v3008 = vrot.slane %v2995, %v3007
    %v3012 = vmul.f32 %v2901, %v3000
    %v3013 = vmul.f32 %v2901, %v3004
    %v3014 = vmul.f32 %v2901, %v3008
    %v3015 = vmul.f32 %v2904, %v3000
    %v3016 = vmul.f32 %v2904, %v3004
    %v3017 = vmul.f32 %v2904, %v3008
    %v3018 = vmul.f32 %v2907, %v3000
    %v3019 = vmul.f32 %v2907, %v3004
    %v3020 = vmul.f32 %v2907, %v3008
    %v3021 = vmul.f32 %v2910, %v3000
    %v3022 = vmul.f32 %v2910, %v3004
    %v3023 = vmul.f32 %v2910, %v3008
    %v3024 = vmul.f32 %v2913, %v3000
    %v3025 = vmul.f32 %v2913, %v3004
    %v3026 = vmul.f32 %v2913, %v3008
    %v3027 = vmul.f32 %v2916, %v3000
    %v3028 = vmul.f32 %v2916, %v3004
    %v3029 = vmul.f32 %v2916, %v3008
    %v3030 = vmul.f32 %v2919, %v3000
    %v3031 = vmul.f32 %v2919, %v3004
    %v3032 = vmul.f32 %v2919, %v3008
    %v3033 = vmul.f32 %v2922, %v3000
    %v3034 = vmul.f32 %v2922, %v3004
    %v3035 = vmul.f32 %v2922, %v3008
    %v3036 = vmul.f32 %v2925, %v3000
    %v3037 = vmul.f32 %v2925, %v3004
    %v3038 = vmul.f32 %v2925, %v3008
    %v3039 = vmul.f32 %v2928, %v3000
    %v3040 = vmul.f32 %v2928, %v3004
    %v3041 = vmul.f32 %v2928, %v3008
    %v3042 = vmul.f32 %v2931, %v3000
    %v3043 = vmul.f32 %v2931, %v3004
    %v3044 = vmul.f32 %v2931, %v3008
    %v3045 = vmul.f32 %v2934, %v3000
    %v3046 = vmul.f32 %v2934, %v3004
    %v3047 = vmul.f32 %v2934, %v3008
    %v3048 = vmul.f32 %v2937, %v3000
    %v3049 = vmul.f32 %v2937, %v3004
    %v3050 = vmul.f32 %v2937, %v3008
    %v3051 = vmul.f32 %v2940, %v3000
    %v3052 = vmul.f32 %v2940, %v3004
    %v3053 = vmul.f32 %v2940, %v3008
    %v3054 = vmul.f32 %v2943, %v3000
    %v3055 = vmul.f32 %v2943, %v3004
    %v3056 = vmul.f32 %v2943, %v3008
    %v3057 = vmul.f32 %v2946, %v3000
    %v3058 = vmul.f32 %v2946, %v3004
    %v3059 = vmul.f32 %v2946, %v3008
    %vm3188 = vcmask 1041409
    %v3189 = vsel %vm3188, %v2015, %v2008
    %vm3190 = vcmask 1042434
    %v3191 = vsel %vm3190, %v2022, %v3189
    %vm3192 = vcmask 1043459
    %v3193 = vsel %vm3192, %v2029, %v3191
    %vm3194 = vcmask 1044484
    %v3195 = vsel %vm3194, %v2036, %v3193
    %vm3196 = vcmask 1045509
    %v3197 = vsel %vm3196, %v2043, %v3195
    %vm3198 = vcmask 1046534
    %v3199 = vsel %vm3198, %v2050, %v3197
    %vm3200 = vcmask 1047559
    %v3201 = vsel %vm3200, %v2057, %v3199
    %v3202 = vsel %vm3188, %v2071, %v2064
    %v3203 = vsel %vm3190, %v2078, %v3202
    %v3204 = vsel %vm3192, %v2085, %v3203
    %v3205 = vsel %vm3194, %v2092, %v3204
    %v3206 = vsel %vm3196, %v2099, %v3205
    %v3207 = vsel %vm3198, %v2106, %v3206
    %v3208 = vsel %vm3200, %v2113, %v3207
    %v3209 = vsel %vm3188, %v2127, %v2120
    %v3210 = vsel %vm3190, %v2134, %v3209
    %v3211 = vsel %vm3192, %v2141, %v3210
    %v3212 = vsel %vm3194, %v2148, %v3211
    %v3213 = vsel %vm3196, %v2155, %v3212
    %v3214 = vsel %vm3198, %v2162, %v3213
    %v3215 = vsel %vm3200, %v2169, %v3214
    %v3216 = vsel %vm3188, %v2183, %v2176
    %v3217 = vsel %vm3190, %v2190, %v3216
    %v3218 = vsel %vm3192, %v2197, %v3217
    %v3219 = vsel %vm3194, %v2204, %v3218
    %v3220 = vsel %vm3196, %v2211, %v3219
    %v3221 = vsel %vm3198, %v2218, %v3220
    %v3222 = vsel %vm3200, %v2225, %v3221
    %v3223 = vsel %vm3188, %v2239, %v2232
    %v3224 = vsel %vm3190, %v2246, %v3223
    %v3225 = vsel %vm3192, %v2253, %v3224
    %v3226 = vsel %vm3194, %v2260, %v3225
    %v3227 = vsel %vm3196, %v2267, %v3226
    %v3228 = vsel %vm3198, %v2274, %v3227
    %v3229 = vsel %vm3200, %v2281, %v3228
    %v3230 = vsel %vm3188, %v2295, %v2288
    %v3231 = vsel %vm3190, %v2302, %v3230
    %v3232 = vsel %vm3192, %v2309, %v3231
    %v3233 = vsel %vm3194, %v2316, %v3232
    %v3234 = vsel %vm3196, %v2323, %v3233
    %v3235 = vsel %vm3198, %v2330, %v3234
    %v3236 = vsel %vm3200, %v2337, %v3235
    %v3237 = vsel %vm3188, %v2351, %v2344
    %v3238 = vsel %vm3190, %v2358, %v3237
    %v3239 = vsel %vm3192, %v2365, %v3238
    %v3240 = vsel %vm3194, %v2372, %v3239
    %v3241 = vsel %vm3196, %v2379, %v3240
    %v3242 = vsel %vm3198, %v2386, %v3241
    %v3243 = vsel %vm3200, %v2393, %v3242
    %v3244 = vsel %vm3188, %v2407, %v2400
    %v3245 = vsel %vm3190, %v2414, %v3244
    %v3246 = vsel %vm3192, %v2421, %v3245
    %v3247 = vsel %vm3194, %v2428, %v3246
    %v3248 = vsel %vm3196, %v2435, %v3247
    %v3249 = vsel %vm3198, %v2442, %v3248
    %v3250 = vsel %vm3200, %v2449, %v3249
    %v3251 = vsel %vm3188, %v2463, %v2456
    %v3252 = vsel %vm3190, %v2470, %v3251
    %v3253 = vsel %vm3192, %v2477, %v3252
    %v3254 = vsel %vm3194, %v2484, %v3253
    %v3255 = vsel %vm3196, %v2491, %v3254
    %v3256 = vsel %vm3198, %v2498, %v3255
    %v3257 = vsel %vm3200, %v2505, %v3256
    %v3258 = vsel %vm3188, %v2519, %v2512
    %v3259 = vsel %vm3190, %v2526, %v3258
    %v3260 = vsel %vm3192, %v2533, %v3259
    %v3261 = vsel %vm3194, %v2540, %v3260
    %v3262 = vsel %vm3196, %v2547, %v3261
    %v3263 = vsel %vm3198, %v2554, %v3262
    %v3264 = vsel %vm3200, %v2561, %v3263
    %v3265 = vsel %vm3188, %v2575, %v2568
    %v3266 = vsel %vm3190, %v2582, %v3265
    %v3267 = vsel %vm3192, %v2589, %v3266
    %v3268 = vsel %vm3194, %v2596, %v3267
    %v3269 = vsel %vm3196, %v2603, %v3268
    %v3270 = vsel %vm3198, %v2610, %v3269
    %v3271 = vsel %vm3200, %v2617, %v3270
    %v3272 = vsel %vm3188, %v2631, %v2624
    %v3273 = vsel %vm3190, %v2638, %v3272
    %v3274 = vsel %vm3192, %v2645, %v3273
    %v3275 = vsel %vm3194, %v2652, %v3274
    %v3276 = vsel %vm3196, %v2659, %v3275
    %v3277 = vsel %vm3198, %v2666, %v3276
    %v3278 = vsel %vm3200, %v2673, %v3277
    %v3279 = vsel %vm3188, %v2687, %v2680
    %v3280 = vsel %vm3190, %v2694, %v3279
    %v3281 = vsel %vm3192, %v2701, %v3280
    %v3282 = vsel %vm3194, %v2708, %v3281
    %v3283 = vsel %vm3196, %v2715, %v3282
    %v3284 = vsel %vm3198, %v2722, %v3283
    %v3285 = vsel %vm3200, %v2729, %v3284
    %v3286 = vsel %vm3188, %v2743, %v2736
    %v3287 = vsel %vm3190, %v2750, %v3286
    %v3288 = vsel %vm3192, %v2757, %v3287
    %v3289 = vsel %vm3194, %v2764, %v3288
    %v3290 = vsel %vm3196, %v2771, %v3289
    %v3291 = vsel %vm3198, %v2778, %v3290
    %v3292 = vsel %vm3200, %v2785, %v3291
    %v3293 = vsel %vm3188, %v2799, %v2792
    %v3294 = vsel %vm3190, %v2806, %v3293
    %v3295 = vsel %vm3192, %v2813, %v3294
    %v3296 = vsel %vm3194, %v2820, %v3295
    %v3297 = vsel %vm3196, %v2827, %v3296
    %v3298 = vsel %vm3198, %v2834, %v3297
    %v3299 = vsel %vm3200, %v2841, %v3298
    %v3300 = vsel %vm3188, %v2855, %v2848
    %v3301 = vsel %vm3190, %v2862, %v3300
    %v3302 = vsel %vm3192, %v2869, %v3301
    %v3303 = vsel %vm3194, %v2876, %v3302
    %v3304 = vsel %vm3196, %v2883, %v3303
    %v3305 = vsel %vm3198, %v2890, %v3304
    %v3306 = vsel %vm3200, %v2897, %v3305
    %3323 = vmatprep.subr.mxu0 %v2948
    %3324 = vmatpush1.msra.mxu0 %v2947
    %3325 = vmatprep.subr.mxu0 %v2951
    %3326 = vmatpush1.msra.mxu0 %v2950
    %3327 = vmatprep.subr.mxu0 %v2954
    %3328 = vmatpush1.msra.mxu0 %v2953
    %3329 = vmatprep.subr.mxu0 %v2957
    %3330 = vmatpush1.msra.mxu0 %v2956
    %3331 = vmatprep.subr.mxu0 %v2960
    %3332 = vmatpush1.msra.mxu0 %v2959
    %3333 = vmatprep.subr.mxu0 %v2963
    %3334 = vmatpush1.msra.mxu0 %v2962
    %3335 = vmatprep.subr.mxu0 %v2966
    %3336 = vmatpush1.msra.mxu0 %v2965
    %3337 = vmatprep.subr.mxu0 %v2969
    %3338 = vmatpush1.msra.mxu0 %v2968
    %3339 = vmatprep.subr.mxu0 %v2972
    %3340 = vmatpush1.msra.mxu0 %v2971
    %3341 = vmatprep.subr.mxu0 %v2975
    %3342 = vmatpush1.msra.mxu0 %v2974
    %3343 = vmatprep.subr.mxu0 %v2978
    %3344 = vmatpush1.msra.mxu0 %v2977
    %3345 = vmatprep.subr.mxu0 %v2981
    %3346 = vmatpush1.msra.mxu0 %v2980
    %3347 = vmatprep.subr.mxu0 %v2984
    %3348 = vmatpush1.msra.mxu0 %v2983
    %3349 = vmatprep.subr.mxu0 %v2987
    %3350 = vmatpush1.msra.mxu0 %v2986
    %3351 = vmatprep.subr.mxu0 %v2990
    %3352 = vmatpush1.msra.mxu0 %v2989
    %3353 = vmatprep.subr.mxu0 %v2993
    %3354 = vmatpush1.msra.mxu0 %v2992
    %3355 = vmatprep.subr.mxu0 0.0
    %3356 = vmatpush1.msra.mxu0 0.0
    %3357 = vmatprep.subr.mxu0 0.0
    %3358 = vmatpush1.msra.mxu0 0.0
    %3359 = vmatprep.subr.mxu0 0.0
    %3360 = vmatpush1.msra.mxu0 0.0
    %3361 = vmatprep.subr.mxu0 0.0
    %3362 = vmatpush1.msra.mxu0 0.0
    %3363 = vmatprep.subr.mxu0 0.0
    %3364 = vmatpush1.msra.mxu0 0.0
    %3365 = vmatprep.subr.mxu0 0.0
    %3366 = vmatpush1.msra.mxu0 0.0
    %3367 = vmatprep.subr.mxu0 0.0
    %3368 = vmatpush1.msra.mxu0 0.0
    %3369 = vmatprep.subr.mxu0 0.0
    %3370 = vmatpush1.msra.mxu0 0.0
    %3371 = vmatprep.subr.mxu0 0.0
    %3372 = vmatpush1.msra.mxu0 0.0
    %3373 = vmatprep.subr.mxu0 0.0
    %3374 = vmatpush1.msra.mxu0 0.0
    %3375 = vmatprep.subr.mxu0 0.0
    %3376 = vmatpush1.msra.mxu0 0.0
    %3377 = vmatprep.subr.mxu0 0.0
    %3378 = vmatpush1.msra.mxu0 0.0
    %3379 = vmatprep.subr.mxu0 0.0
    %3380 = vmatpush1.msra.mxu0 0.0
    %3381 = vmatprep.subr.mxu0 0.0
    %3382 = vmatpush1.msra.mxu0 0.0
    %3383 = vmatprep.subr.mxu0 0.0
    %3384 = vmatpush1.msra.mxu0 0.0
    %3385 = vmatprep.subr.mxu0 0.0
    %3386 = vmatpush1.msra.mxu0 0.0
    %3387 = vmatprep.mubr.f32.mxu0 0.0
    %3388 = vmatmul.mubr.f32.gmra.mrb[0].mxu0 %v3201
    %v3389 = vpop.f32.mrb[0].mxu0
    %v3390 = vadd.f32 %v3012, %v3389
    %v3391 = vpop.f32.mrb[0].mxu0
    %v3392 = vadd.f32 %v3013, %v3391
    %3393 = vmatprep.mubr.f32.mxu0 0.0
    %3394 = vmatmul.mubr.f32.gmra.mrb[0].mxu0 %v3208
    %v3395 = vpop.f32.mrb[0].mxu0
    %v3396 = vadd.f32 %v3015, %v3395
    %v3397 = vpop.f32.mrb[0].mxu0
    %v3398 = vadd.f32 %v3016, %v3397
    %3399 = vmatprep.mubr.f32.mxu0 0.0
    %3400 = vmatmul.mubr.f32.gmra.mrb[0].mxu0 %v3215
    %v3401 = vpop.f32.mrb[0].mxu0
    %v3402 = vadd.f32 %v3018, %v3401
    %v3403 = vpop.f32.mrb[0].mxu0
    %v3404 = vadd.f32 %v3019, %v3403
    %3405 = vmatprep.mubr.f32.mxu0 0.0
    %3406 = vmatmul.mubr.f32.gmra.mrb[0].mxu0 %v3222
    %v3407 = vpop.f32.mrb[0].mxu0
    %v3408 = vadd.f32 %v3021, %v3407
    %v3409 = vpop.f32.mrb[0].mxu0
    %v3410 = vadd.f32 %v3022, %v3409
    %3411 = vmatprep.mubr.f32.mxu0 0.0
    %3412 = vmatmul.mubr.f32.gmra.mrb[0].mxu0 %v3229
    %v3413 = vpop.f32.mrb[0].mxu0
    %v3414 = vadd.f32 %v3024, %v3413
    %v3415 = vpop.f32.mrb[0].mxu0
    %v3416 = vadd.f32 %v3025, %v3415
    %3417 = vmatprep.mubr.f32.mxu0 0.0
    %3418 = vmatmul.mubr.f32.gmra.mrb[0].mxu0 %v3236
    %v3419 = vpop.f32.mrb[0].mxu0
    %v3420 = vadd.f32 %v3027, %v3419
    %v3421 = vpop.f32.mrb[0].mxu0
    %v3422 = vadd.f32 %v3028, %v3421
    %3423 = vmatprep.mubr.f32.mxu0 0.0
    %3424 = vmatmul.mubr.f32.gmra.mrb[0].mxu0 %v3243
    %v3425 = vpop.f32.mrb[0].mxu0
    %v3426 = vadd.f32 %v3030, %v3425
    %v3427 = vpop.f32.mrb[0].mxu0
    %v3428 = vadd.f32 %v3031, %v3427
    %3429 = vmatprep.mubr.f32.mxu0 0.0
    %3430 = vmatmul.mubr.f32.gmra.mrb[0].mxu0 %v3250
    %v3431 = vpop.f32.mrb[0].mxu0
    %v3432 = vadd.f32 %v3033, %v3431
    %v3433 = vpop.f32.mrb[0].mxu0
    %v3434 = vadd.f32 %v3034, %v3433
    %3435 = vmatprep.mubr.f32.mxu0 0.0
    %3436 = vmatmul.mubr.f32.gmra.mrb[0].mxu0 %v3257
    %v3437 = vpop.f32.mrb[0].mxu0
    %v3438 = vadd.f32 %v3036, %v3437
    %v3439 = vpop.f32.mrb[0].mxu0
    %v3440 = vadd.f32 %v3037, %v3439
    %3441 = vmatprep.mubr.f32.mxu0 0.0
    %3442 = vmatmul.mubr.f32.gmra.mrb[0].mxu0 %v3264
    %v3443 = vpop.f32.mrb[0].mxu0
    %v3444 = vadd.f32 %v3039, %v3443
    %v3445 = vpop.f32.mrb[0].mxu0
    %v3446 = vadd.f32 %v3040, %v3445
    %3447 = vmatprep.mubr.f32.mxu0 0.0
    %3448 = vmatmul.mubr.f32.gmra.mrb[0].mxu0 %v3271
    %v3449 = vpop.f32.mrb[0].mxu0
    %v3450 = vadd.f32 %v3042, %v3449
    %v3451 = vpop.f32.mrb[0].mxu0
    %v3452 = vadd.f32 %v3043, %v3451
    %3453 = vmatprep.mubr.f32.mxu0 0.0
    %3454 = vmatmul.mubr.f32.gmra.mrb[0].mxu0 %v3278
    %v3455 = vpop.f32.mrb[0].mxu0
    %v3456 = vadd.f32 %v3045, %v3455
    %v3457 = vpop.f32.mrb[0].mxu0
    %v3458 = vadd.f32 %v3046, %v3457
    %3459 = vmatprep.mubr.f32.mxu0 0.0
    %3460 = vmatmul.mubr.f32.gmra.mrb[0].mxu0 %v3285
    %v3461 = vpop.f32.mrb[0].mxu0
    %v3462 = vadd.f32 %v3048, %v3461
    %v3463 = vpop.f32.mrb[0].mxu0
    %v3464 = vadd.f32 %v3049, %v3463
    %3465 = vmatprep.mubr.f32.mxu0 0.0
    %3466 = vmatmul.mubr.f32.gmra.mrb[0].mxu0 %v3292
    %v3467 = vpop.f32.mrb[0].mxu0
    %v3468 = vadd.f32 %v3051, %v3467
    %v3469 = vpop.f32.mrb[0].mxu0
    %v3470 = vadd.f32 %v3052, %v3469
    %3471 = vmatprep.mubr.f32.mxu0 0.0
    %3472 = vmatmul.mubr.f32.gmra.mrb[0].mxu0 %v3299
    %v3473 = vpop.f32.mrb[0].mxu0
    %v3474 = vadd.f32 %v3054, %v3473
    %v3475 = vpop.f32.mrb[0].mxu0
    %v3476 = vadd.f32 %v3055, %v3475
    %3477 = vmatprep.mubr.f32.mxu0 0.0
    %3478 = vmatmul.mubr.f32.gmra.mrb[0].mxu0 %v3306
    %v3479 = vpop.f32.mrb[0].mxu0
    %v3480 = vadd.f32 %v3057, %v3479
    %v3481 = vpop.f32.mrb[0].mxu0
    %v3482 = vadd.f32 %v3058, %v3481
    %3483 = vdwg.mxu0
    %3484 = vmatprep.subr.mxu0 0.0
    %3485 = vmatpush1.msra.mxu0 %v2949
    %3486 = vmatprep.subr.mxu0 0.0
    %3487 = vmatpush1.msra.mxu0 %v2952
    %3488 = vmatprep.subr.mxu0 0.0
    %3489 = vmatpush1.msra.mxu0 %v2955
    %3490 = vmatprep.subr.mxu0 0.0
    %3491 = vmatpush1.msra.mxu0 %v2958
    %3492 = vmatprep.subr.mxu0 0.0
    %3493 = vmatpush1.msra.mxu0 %v2961
    %3494 = vmatprep.subr.mxu0 0.0
    %3495 = vmatpush1.msra.mxu0 %v2964
    %3496 = vmatprep.subr.mxu0 0.0
    %3497 = vmatpush1.msra.mxu0 %v2967
    %3498 = vmatprep.subr.mxu0 0.0
    %3499 = vmatpush1.msra.mxu0 %v2970
    %3500 = vmatprep.subr.mxu0 0.0
    %3501 = vmatpush1.msra.mxu0 %v2973
    %3502 = vmatprep.subr.mxu0 0.0
    %3503 = vmatpush1.msra.mxu0 %v2976
    %3504 = vmatprep.subr.mxu0 0.0
    %3505 = vmatpush1.msra.mxu0 %v2979
    %3506 = vmatprep.subr.mxu0 0.0
    %3507 = vmatpush1.msra.mxu0 %v2982
    %3508 = vmatprep.subr.mxu0 0.0
    %3509 = vmatpush1.msra.mxu0 %v2985
    %3510 = vmatprep.subr.mxu0 0.0
    %3511 = vmatpush1.msra.mxu0 %v2988
    %3512 = vmatprep.subr.mxu0 0.0
    %3513 = vmatpush1.msra.mxu0 %v2991
    %3514 = vmatprep.subr.mxu0 0.0
    %3515 = vmatpush1.msra.mxu0 %v2994
    %3516 = vmatprep.subr.mxu0 0.0
    %3517 = vmatpush1.msra.mxu0 0.0
    %3518 = vmatprep.subr.mxu0 0.0
    %3519 = vmatpush1.msra.mxu0 0.0
    %3520 = vmatprep.subr.mxu0 0.0
    %3521 = vmatpush1.msra.mxu0 0.0
    %3522 = vmatprep.subr.mxu0 0.0
    %3523 = vmatpush1.msra.mxu0 0.0
    %3524 = vmatprep.subr.mxu0 0.0
    %3525 = vmatpush1.msra.mxu0 0.0
    %3526 = vmatprep.subr.mxu0 0.0
    %3527 = vmatpush1.msra.mxu0 0.0
    %3528 = vmatprep.subr.mxu0 0.0
    %3529 = vmatpush1.msra.mxu0 0.0
    %3530 = vmatprep.subr.mxu0 0.0
    %3531 = vmatpush1.msra.mxu0 0.0
    %3532 = vmatprep.subr.mxu0 0.0
    %3533 = vmatpush1.msra.mxu0 0.0
    %3534 = vmatprep.subr.mxu0 0.0
    %3535 = vmatpush1.msra.mxu0 0.0
    %3536 = vmatprep.subr.mxu0 0.0
    %3537 = vmatpush1.msra.mxu0 0.0
    %3538 = vmatprep.subr.mxu0 0.0
    %3539 = vmatpush1.msra.mxu0 0.0
    %3540 = vmatprep.subr.mxu0 0.0
    %3541 = vmatpush1.msra.mxu0 0.0
    %3542 = vmatprep.subr.mxu0 0.0
    %3543 = vmatpush1.msra.mxu0 0.0
    %3544 = vmatprep.subr.mxu0 0.0
    %3545 = vmatpush1.msra.mxu0 0.0
    %3546 = vmatprep.subr.mxu0 0.0
    %3547 = vmatpush1.msra.mxu0 0.0
    %3548 = vmatprep.mubr.f32.mxu0 0.0
    %3549 = vmatmul.mubr.f32.gmra.mrb[0].mxu0 %v3201
    %v3550 = vpop.f32.mrb[0].mxu0
    %v3551 = vadd.f32 %v3014, %v3550
    %v3552 = vpop.f32.mrb[0].mxu0
    %3553 = vmatprep.mubr.f32.mxu0 0.0
    %3554 = vmatmul.mubr.f32.gmra.mrb[0].mxu0 %v3208
    %v3555 = vpop.f32.mrb[0].mxu0
    %v3556 = vadd.f32 %v3017, %v3555
    %v3557 = vpop.f32.mrb[0].mxu0
    %3558 = vmatprep.mubr.f32.mxu0 0.0
    %3559 = vmatmul.mubr.f32.gmra.mrb[0].mxu0 %v3215
    %v3560 = vpop.f32.mrb[0].mxu0
    %v3561 = vadd.f32 %v3020, %v3560
    %v3562 = vpop.f32.mrb[0].mxu0
    %3563 = vmatprep.mubr.f32.mxu0 0.0
    %3564 = vmatmul.mubr.f32.gmra.mrb[0].mxu0 %v3222
    %v3565 = vpop.f32.mrb[0].mxu0
    %v3566 = vadd.f32 %v3023, %v3565
    %v3567 = vpop.f32.mrb[0].mxu0
    %3568 = vmatprep.mubr.f32.mxu0 0.0
    %3569 = vmatmul.mubr.f32.gmra.mrb[0].mxu0 %v3229
    %v3570 = vpop.f32.mrb[0].mxu0
    %v3571 = vadd.f32 %v3026, %v3570
    %v3572 = vpop.f32.mrb[0].mxu0
    %3573 = vmatprep.mubr.f32.mxu0 0.0
    %3574 = vmatmul.mubr.f32.gmra.mrb[0].mxu0 %v3236
    %v3575 = vpop.f32.mrb[0].mxu0
    %v3576 = vadd.f32 %v3029, %v3575
    %v3577 = vpop.f32.mrb[0].mxu0
    %3578 = vmatprep.mubr.f32.mxu0 0.0
    %3579 = vmatmul.mubr.f32.gmra.mrb[0].mxu0 %v3243
    %v3580 = vpop.f32.mrb[0].mxu0
    %v3581 = vadd.f32 %v3032, %v3580
    %v3582 = vpop.f32.mrb[0].mxu0
    %3583 = vmatprep.mubr.f32.mxu0 0.0
    %3584 = vmatmul.mubr.f32.gmra.mrb[0].mxu0 %v3250
    %v3585 = vpop.f32.mrb[0].mxu0
    %v3586 = vadd.f32 %v3035, %v3585
    %v3587 = vpop.f32.mrb[0].mxu0
    %3588 = vmatprep.mubr.f32.mxu0 0.0
    %3589 = vmatmul.mubr.f32.gmra.mrb[0].mxu0 %v3257
    %v3590 = vpop.f32.mrb[0].mxu0
    %v3591 = vadd.f32 %v3038, %v3590
    %v3592 = vpop.f32.mrb[0].mxu0
    %3593 = vmatprep.mubr.f32.mxu0 0.0
    %3594 = vmatmul.mubr.f32.gmra.mrb[0].mxu0 %v3264
    %v3595 = vpop.f32.mrb[0].mxu0
    %v3596 = vadd.f32 %v3041, %v3595
    %v3597 = vpop.f32.mrb[0].mxu0
    %3598 = vmatprep.mubr.f32.mxu0 0.0
    %3599 = vmatmul.mubr.f32.gmra.mrb[0].mxu0 %v3271
    %v3600 = vpop.f32.mrb[0].mxu0
    %v3601 = vadd.f32 %v3044, %v3600
    %v3602 = vpop.f32.mrb[0].mxu0
    %3603 = vmatprep.mubr.f32.mxu0 0.0
    %3604 = vmatmul.mubr.f32.gmra.mrb[0].mxu0 %v3278
    %v3605 = vpop.f32.mrb[0].mxu0
    %v3606 = vadd.f32 %v3047, %v3605
    %v3607 = vpop.f32.mrb[0].mxu0
    %3608 = vmatprep.mubr.f32.mxu0 0.0
    %3609 = vmatmul.mubr.f32.gmra.mrb[0].mxu0 %v3285
    %v3610 = vpop.f32.mrb[0].mxu0
    %v3611 = vadd.f32 %v3050, %v3610
    %v3612 = vpop.f32.mrb[0].mxu0
    %3613 = vmatprep.mubr.f32.mxu0 0.0
    %3614 = vmatmul.mubr.f32.gmra.mrb[0].mxu0 %v3292
    %v3615 = vpop.f32.mrb[0].mxu0
    %v3616 = vadd.f32 %v3053, %v3615
    %v3617 = vpop.f32.mrb[0].mxu0
    %3618 = vmatprep.mubr.f32.mxu0 0.0
    %3619 = vmatmul.mubr.f32.gmra.mrb[0].mxu0 %v3299
    %v3620 = vpop.f32.mrb[0].mxu0
    %v3621 = vadd.f32 %v3056, %v3620
    %v3622 = vpop.f32.mrb[0].mxu0
    %3623 = vmatprep.mubr.f32.mxu0 0.0
    %3624 = vmatmul.mubr.f32.gmra.mrb[0].mxu0 %v3306
    %v3625 = vpop.f32.mrb[0].mxu0
    %v3626 = vadd.f32 %v3059, %v3625
    %v3627 = vpop.f32.mrb[0].mxu0
    %3628 = vdwg.mxu0
    %v3629 = vld [vmem:[%s6] sm:$0x7]
    %v3631 = vlaneseq
    %v3632 = vshrl.u32 %v3631, 7
    %v3633 = vsub.s32 0, %v3632
    %v3634 = vrot.slane %v3629, %v3633
    %v3635 = vlaneseq
    %v3636 = vshrl.u32 %v3635, 7
    %v3637 = vsub.s32 1, %v3636
    %v3638 = vrot.slane %v3629, %v3637
    %v3639 = vlaneseq
    %v3640 = vshrl.u32 %v3639, 7
    %v3641 = vsub.s32 2, %v3640
    %v3642 = vrot.slane %v3629, %v3641
    %v3646 = vadd.f32 %v3390, %v3634
    %v3647 = vadd.f32 %v3392, %v3638
    %v3648 = vadd.f32 %v3551, %v3642
    %v3649 = vadd.f32 %v3396, %v3634
    %v3650 = vadd.f32 %v3398, %v3638
    %v3651 = vadd.f32 %v3556, %v3642
    %v3652 = vadd.f32 %v3402, %v3634
    %v3653 = vadd.f32 %v3404, %v3638
    %v3654 = vadd.f32 %v3561, %v3642
    %v3655 = vadd.f32 %v3408, %v3634
    %v3656 = vadd.f32 %v3410, %v3638
    %v3657 = vadd.f32 %v3566, %v3642
    %v3658 = vadd.f32 %v3414, %v3634
    %v3659 = vadd.f32 %v3416, %v3638
    %v3660 = vadd.f32 %v3571, %v3642
    %v3661 = vadd.f32 %v3420, %v3634
    %v3662 = vadd.f32 %v3422, %v3638
    %v3663 = vadd.f32 %v3576, %v3642
    %v3664 = vadd.f32 %v3426, %v3634
    %v3665 = vadd.f32 %v3428, %v3638
    %v3666 = vadd.f32 %v3581, %v3642
    %v3667 = vadd.f32 %v3432, %v3634
    %v3668 = vadd.f32 %v3434, %v3638
    %v3669 = vadd.f32 %v3586, %v3642
    %v3670 = vadd.f32 %v3438, %v3634
    %v3671 = vadd.f32 %v3440, %v3638
    %v3672 = vadd.f32 %v3591, %v3642
    %v3673 = vadd.f32 %v3444, %v3634
    %v3674 = vadd.f32 %v3446, %v3638
    %v3675 = vadd.f32 %v3596, %v3642
    %v3676 = vadd.f32 %v3450, %v3634
    %v3677 = vadd.f32 %v3452, %v3638
    %v3678 = vadd.f32 %v3601, %v3642
    %v3679 = vadd.f32 %v3456, %v3634
    %v3680 = vadd.f32 %v3458, %v3638
    %v3681 = vadd.f32 %v3606, %v3642
    %v3682 = vadd.f32 %v3462, %v3634
    %v3683 = vadd.f32 %v3464, %v3638
    %v3684 = vadd.f32 %v3611, %v3642
    %v3685 = vadd.f32 %v3468, %v3634
    %v3686 = vadd.f32 %v3470, %v3638
    %v3687 = vadd.f32 %v3616, %v3642
    %v3688 = vadd.f32 %v3474, %v3634
    %v3689 = vadd.f32 %v3476, %v3638
    %v3690 = vadd.f32 %v3621, %v3642
    %v3691 = vadd.f32 %v3480, %v3634
    %v3692 = vadd.f32 %v3482, %v3638
    %v3693 = vadd.f32 %v3626, %v3642
    %v3694 = vadd.f32 %v3646, %v244
    %v3695 = vadd.f32 %v3649, %v250
    %v3696 = vadd.f32 %v3652, %v256
    %v3697 = vadd.f32 %v3655, %v262
    %v3698 = vadd.f32 %v3658, %v268
    %v3699 = vadd.f32 %v3661, %v274
    %v3700 = vadd.f32 %v3664, %v280
    %v3701 = vadd.f32 %v3667, %v286
    %v3702 = vadd.f32 %v3670, %v292
    %v3703 = vadd.f32 %v3673, %v298
    %v3704 = vadd.f32 %v3676, %v304
    %v3705 = vadd.f32 %v3679, %v310
    %v3706 = vadd.f32 %v3682, %v316
    %v3707 = vadd.f32 %v3685, %v322
    %v3708 = vadd.f32 %v3688, %v328
    %v3709 = vadd.f32 %v3691, %v334
    %v3710 = vmul.f32 %v3694, 0.5
    %v3711 = vmul.f32 %v3695, 0.5
    %v3712 = vmul.f32 %v3696, 0.5
    %v3713 = vmul.f32 %v3697, 0.5
    %v3714 = vmul.f32 %v3698, 0.5
    %v3715 = vmul.f32 %v3699, 0.5
    %v3716 = vmul.f32 %v3700, 0.5
    %v3717 = vmul.f32 %v3701, 0.5
    %v3718 = vmul.f32 %v3702, 0.5
    %v3719 = vmul.f32 %v3703, 0.5
    %v3720 = vmul.f32 %v3704, 0.5
    %v3721 = vmul.f32 %v3705, 0.5
    %v3722 = vmul.f32 %v3706, 0.5
    %v3723 = vmul.f32 %v3707, 0.5
    %v3724 = vmul.f32 %v3708, 0.5
    %v3725 = vmul.f32 %v3709, 0.5
    %v3726 = vtanh.pop %v3710
    %v3727 = vtanh.pop %v3711
    %v3728 = vtanh.pop %v3712
    %v3729 = vtanh.pop %v3713
    %v3730 = vtanh.pop %v3714
    %v3731 = vtanh.pop %v3715
    %v3732 = vtanh.pop %v3716
    %v3733 = vtanh.pop %v3717
    %v3734 = vtanh.pop %v3718
    %v3735 = vtanh.pop %v3719
    %v3736 = vtanh.pop %v3720
    %v3737 = vtanh.pop %v3721
    %v3738 = vtanh.pop %v3722
    %v3739 = vtanh.pop %v3723
    %v3740 = vtanh.pop %v3724
    %v3741 = vtanh.pop %v3725
    %v3742 = vadd.f32 %v3726, 1.0
    %v3743 = vadd.f32 %v3727, 1.0
    %v3744 = vadd.f32 %v3728, 1.0
    %v3745 = vadd.f32 %v3729, 1.0
    %v3746 = vadd.f32 %v3730, 1.0
    %v3747 = vadd.f32 %v3731, 1.0
    %v3748 = vadd.f32 %v3732, 1.0
    %v3749 = vadd.f32 %v3733, 1.0
    %v3750 = vadd.f32 %v3734, 1.0
    %v3751 = vadd.f32 %v3735, 1.0
    %v3752 = vadd.f32 %v3736, 1.0
    %v3753 = vadd.f32 %v3737, 1.0
    %v3754 = vadd.f32 %v3738, 1.0
    %v3755 = vadd.f32 %v3739, 1.0
    %v3756 = vadd.f32 %v3740, 1.0
    %v3757 = vadd.f32 %v3741, 1.0
    %v3758 = vmul.f32 %v3742, 0.5
    %v3759 = vmul.f32 %v3743, 0.5
    %v3760 = vmul.f32 %v3744, 0.5
    %v3761 = vmul.f32 %v3745, 0.5
    %v3762 = vmul.f32 %v3746, 0.5
    %v3763 = vmul.f32 %v3747, 0.5
    %v3764 = vmul.f32 %v3748, 0.5
    %v3765 = vmul.f32 %v3749, 0.5
    %v3766 = vmul.f32 %v3750, 0.5
    %v3767 = vmul.f32 %v3751, 0.5
    %v3768 = vmul.f32 %v3752, 0.5
    %v3769 = vmul.f32 %v3753, 0.5
    %v3770 = vmul.f32 %v3754, 0.5
    %v3771 = vmul.f32 %v3755, 0.5
    %v3772 = vmul.f32 %v3756, 0.5
    %v3773 = vmul.f32 %v3757, 0.5
    %v3774 = vadd.f32 %v3647, %v246
    %v3775 = vadd.f32 %v3650, %v252
    %v3776 = vadd.f32 %v3653, %v258
    %v3777 = vadd.f32 %v3656, %v264
    %v3778 = vadd.f32 %v3659, %v270
    %v3779 = vadd.f32 %v3662, %v276
    %v3780 = vadd.f32 %v3665, %v282
    %v3781 = vadd.f32 %v3668, %v288
    %v3782 = vadd.f32 %v3671, %v294
    %v3783 = vadd.f32 %v3674, %v300
    %v3784 = vadd.f32 %v3677, %v306
    %v3785 = vadd.f32 %v3680, %v312
    %v3786 = vadd.f32 %v3683, %v318
    %v3787 = vadd.f32 %v3686, %v324
    %v3788 = vadd.f32 %v3689, %v330
    %v3789 = vadd.f32 %v3692, %v336
    %v3790 = vmul.f32 %v3774, 0.5
    %v3791 = vmul.f32 %v3775, 0.5
    %v3792 = vmul.f32 %v3776, 0.5
    %v3793 = vmul.f32 %v3777, 0.5
    %v3794 = vmul.f32 %v3778, 0.5
    %v3795 = vmul.f32 %v3779, 0.5
    %v3796 = vmul.f32 %v3780, 0.5
    %v3797 = vmul.f32 %v3781, 0.5
    %v3798 = vmul.f32 %v3782, 0.5
    %v3799 = vmul.f32 %v3783, 0.5
    %v3800 = vmul.f32 %v3784, 0.5
    %v3801 = vmul.f32 %v3785, 0.5
    %v3802 = vmul.f32 %v3786, 0.5
    %v3803 = vmul.f32 %v3787, 0.5
    %v3804 = vmul.f32 %v3788, 0.5
    %v3805 = vmul.f32 %v3789, 0.5
    %v3806 = vtanh.pop %v3790
    %v3807 = vtanh.pop %v3791
    %v3808 = vtanh.pop %v3792
    %v3809 = vtanh.pop %v3793
    %v3810 = vtanh.pop %v3794
    %v3811 = vtanh.pop %v3795
    %v3812 = vtanh.pop %v3796
    %v3813 = vtanh.pop %v3797
    %v3814 = vtanh.pop %v3798
    %v3815 = vtanh.pop %v3799
    %v3816 = vtanh.pop %v3800
    %v3817 = vtanh.pop %v3801
    %v3818 = vtanh.pop %v3802
    %v3819 = vtanh.pop %v3803
    %v3820 = vtanh.pop %v3804
    %v3821 = vtanh.pop %v3805
    %v3822 = vadd.f32 %v3806, 1.0
    %v3823 = vadd.f32 %v3807, 1.0
    %v3824 = vadd.f32 %v3808, 1.0
    %v3825 = vadd.f32 %v3809, 1.0
    %v3826 = vadd.f32 %v3810, 1.0
    %v3827 = vadd.f32 %v3811, 1.0
    %v3828 = vadd.f32 %v3812, 1.0
    %v3829 = vadd.f32 %v3813, 1.0
    %v3830 = vadd.f32 %v3814, 1.0
    %v3831 = vadd.f32 %v3815, 1.0
    %v3832 = vadd.f32 %v3816, 1.0
    %v3833 = vadd.f32 %v3817, 1.0
    %v3834 = vadd.f32 %v3818, 1.0
    %v3835 = vadd.f32 %v3819, 1.0
    %v3836 = vadd.f32 %v3820, 1.0
    %v3837 = vadd.f32 %v3821, 1.0
    %v3838 = vmul.f32 %v3822, 0.5
    %v3839 = vmul.f32 %v3823, 0.5
    %v3840 = vmul.f32 %v3824, 0.5
    %v3841 = vmul.f32 %v3825, 0.5
    %v3842 = vmul.f32 %v3826, 0.5
    %v3843 = vmul.f32 %v3827, 0.5
    %v3844 = vmul.f32 %v3828, 0.5
    %v3845 = vmul.f32 %v3829, 0.5
    %v3846 = vmul.f32 %v3830, 0.5
    %v3847 = vmul.f32 %v3831, 0.5
    %v3848 = vmul.f32 %v3832, 0.5
    %v3849 = vmul.f32 %v3833, 0.5
    %v3850 = vmul.f32 %v3834, 0.5
    %v3851 = vmul.f32 %v3835, 0.5
    %v3852 = vmul.f32 %v3836, 0.5
    %v3853 = vmul.f32 %v3837, 0.5
    %v3854 = vmul.f32 %v3838, %v101
    %v3855 = vmul.f32 %v3839, %v102
    %v3856 = vmul.f32 %v3840, %v103
    %v3857 = vmul.f32 %v3841, %v104
    %v3858 = vmul.f32 %v3842, %v105
    %v3859 = vmul.f32 %v3843, %v106
    %v3860 = vmul.f32 %v3844, %v107
    %v3861 = vmul.f32 %v3845, %v108
    %v3862 = vmul.f32 %v3846, %v109
    %v3863 = vmul.f32 %v3847, %v110
    %v3864 = vmul.f32 %v3848, %v111
    %v3865 = vmul.f32 %v3849, %v112
    %v3866 = vmul.f32 %v3850, %v113
    %v3867 = vmul.f32 %v3851, %v114
    %v3868 = vmul.f32 %v3852, %v115
    %v3869 = vmul.f32 %v3853, %v116
    %v3870 = vld [vmem:[#allocation10] sm:$0xff]
    %v3871 = vld [vmem:[#allocation10 + $0x8] sm:$0xff]
    %v3872 = vld [vmem:[#allocation10 + $0x10] sm:$0xff]
    %v3873 = vld [vmem:[#allocation10 + $0x18] sm:$0xff]
    %v3874 = vld [vmem:[#allocation10 + $0x20] sm:$0xff]
    %v3875 = vld [vmem:[#allocation10 + $0x28] sm:$0xff]
    %v3876 = vld [vmem:[#allocation10 + $0x30] sm:$0xff]
    %v3877 = vld [vmem:[#allocation10 + $0x38] sm:$0xff]
    %v3878 = vld [vmem:[#allocation10 + $0x40] sm:$0xff]
    %v3879 = vld [vmem:[#allocation10 + $0x48] sm:$0xff]
    %v3880 = vld [vmem:[#allocation10 + $0x50] sm:$0xff]
    %v3881 = vld [vmem:[#allocation10 + $0x58] sm:$0xff]
    %v3882 = vld [vmem:[#allocation10 + $0x60] sm:$0xff]
    %v3883 = vld [vmem:[#allocation10 + $0x68] sm:$0xff]
    %v3884 = vld [vmem:[#allocation10 + $0x70] sm:$0xff]
    %v3885 = vld [vmem:[#allocation10 + $0x78] sm:$0xff]
    %3886 = vmatprep.subr.mxu0 0.0
    %3887 = vmatpush1.msra.mxu0 %v3870
    %3888 = vmatprep.subr.mxu0 0.0
    %3889 = vmatpush1.msra.mxu0 %v3871
    %3890 = vmatprep.subr.mxu0 0.0
    %3891 = vmatpush1.msra.mxu0 %v3872
    %3892 = vmatprep.subr.mxu0 0.0
    %3893 = vmatpush1.msra.mxu0 %v3873
    %3894 = vmatprep.subr.mxu0 0.0
    %3895 = vmatpush1.msra.mxu0 %v3874
    %3896 = vmatprep.subr.mxu0 0.0
    %3897 = vmatpush1.msra.mxu0 %v3875
    %3898 = vmatprep.subr.mxu0 0.0
    %3899 = vmatpush1.msra.mxu0 %v3876
    %3900 = vmatprep.subr.mxu0 0.0
    %3901 = vmatpush1.msra.mxu0 %v3877
    %3902 = vmatprep.subr.mxu0 0.0
    %3903 = vmatpush1.msra.mxu0 %v3878
    %3904 = vmatprep.subr.mxu0 0.0
    %3905 = vmatpush1.msra.mxu0 %v3879
    %3906 = vmatprep.subr.mxu0 0.0
    %3907 = vmatpush1.msra.mxu0 %v3880
    %3908 = vmatprep.subr.mxu0 0.0
    %3909 = vmatpush1.msra.mxu0 %v3881
    %3910 = vmatprep.subr.mxu0 0.0
    %3911 = vmatpush1.msra.mxu0 %v3882
    %3912 = vmatprep.subr.mxu0 0.0
    %3913 = vmatpush1.msra.mxu0 %v3883
    %3914 = vmatprep.subr.mxu0 0.0
    %3915 = vmatpush1.msra.mxu0 %v3884
    %3916 = vmatprep.subr.mxu0 0.0
    %3917 = vmatpush1.msra.mxu0 %v3885
    %3918 = vmatprep.subr.mxu0 0.0
    %3919 = vmatpush1.msra.mxu0 0.0
    %3920 = vmatprep.subr.mxu0 0.0
    %3921 = vmatpush1.msra.mxu0 0.0
    %3922 = vmatprep.subr.mxu0 0.0
    %3923 = vmatpush1.msra.mxu0 0.0
    %3924 = vmatprep.subr.mxu0 0.0
    %3925 = vmatpush1.msra.mxu0 0.0
    %3926 = vmatprep.subr.mxu0 0.0
    %3927 = vmatpush1.msra.mxu0 0.0
    %3928 = vmatprep.subr.mxu0 0.0
    %3929 = vmatpush1.msra.mxu0 0.0
    %3930 = vmatprep.subr.mxu0 0.0
    %3931 = vmatpush1.msra.mxu0 0.0
    %3932 = vmatprep.subr.mxu0 0.0
    %3933 = vmatpush1.msra.mxu0 0.0
    %3934 = vmatprep.subr.mxu0 0.0
    %3935 = vmatpush1.msra.mxu0 0.0
    %3936 = vmatprep.subr.mxu0 0.0
    %3937 = vmatpush1.msra.mxu0 0.0
    %3938 = vmatprep.subr.mxu0 0.0
    %3939 = vmatpush1.msra.mxu0 0.0
    %3940 = vmatprep.subr.mxu0 0.0
    %3941 = vmatpush1.msra.mxu0 0.0
    %3942 = vmatprep.subr.mxu0 0.0
    %3943 = vmatpush1.msra.mxu0 0.0
    %3944 = vmatprep.subr.mxu0 0.0
    %3945 = vmatpush1.msra.mxu0 0.0
    %3946 = vmatprep.subr.mxu0 0.0
    %3947 = vmatpush1.msra.mxu0 0.0
    %3948 = vmatprep.subr.mxu0 0.0
    %3949 = vmatpush1.msra.mxu0 0.0
    %3950 = vmatprep.mubr.f32.mxu0 0.0
    %3951 = vmatmul.mubr.f32.gmra.mrb[0].mxu0 %v3854
    %v3952 = vpop.f32.mrb[0].mxu0
    %v3953 = vadd.f32 0.0, %v3952
    %v3954 = vpop.f32.mrb[0].mxu0
    %3955 = vmatprep.mubr.f32.mxu0 0.0
    %3956 = vmatmul.mubr.f32.gmra.mrb[0].mxu0 %v3855
    %v3957 = vpop.f32.mrb[0].mxu0
    %v3958 = vadd.f32 0.0, %v3957
    %v3959 = vpop.f32.mrb[0].mxu0
    %3960 = vmatprep.mubr.f32.mxu0 0.0
    %3961 = vmatmul.mubr.f32.gmra.mrb[0].mxu0 %v3856
    %v3962 = vpop.f32.mrb[0].mxu0
    %v3963 = vadd.f32 0.0, %v3962
    %v3964 = vpop.f32.mrb[0].mxu0
    %3965 = vmatprep.mubr.f32.mxu0 0.0
    %3966 = vmatmul.mubr.f32.gmra.mrb[0].mxu0 %v3857
    %v3967 = vpop.f32.mrb[0].mxu0
    %v3968 = vadd.f32 0.0, %v3967
    %v3969 = vpop.f32.mrb[0].mxu0
    %3970 = vmatprep.mubr.f32.mxu0 0.0
    %3971 = vmatmul.mubr.f32.gmra.mrb[0].mxu0 %v3858
    %v3972 = vpop.f32.mrb[0].mxu0
    %v3973 = vadd.f32 0.0, %v3972
    %v3974 = vpop.f32.mrb[0].mxu0
    %3975 = vmatprep.mubr.f32.mxu0 0.0
    %3976 = vmatmul.mubr.f32.gmra.mrb[0].mxu0 %v3859
    %v3977 = vpop.f32.mrb[0].mxu0
    %v3978 = vadd.f32 0.0, %v3977
    %v3979 = vpop.f32.mrb[0].mxu0
    %3980 = vmatprep.mubr.f32.mxu0 0.0
    %3981 = vmatmul.mubr.f32.gmra.mrb[0].mxu0 %v3860
    %v3982 = vpop.f32.mrb[0].mxu0
    %v3983 = vadd.f32 0.0, %v3982
    %v3984 = vpop.f32.mrb[0].mxu0
    %3985 = vmatprep.mubr.f32.mxu0 0.0
    %3986 = vmatmul.mubr.f32.gmra.mrb[0].mxu0 %v3861
    %v3987 = vpop.f32.mrb[0].mxu0
    %v3988 = vadd.f32 0.0, %v3987
    %v3989 = vpop.f32.mrb[0].mxu0
    %3990 = vmatprep.mubr.f32.mxu0 0.0
    %3991 = vmatmul.mubr.f32.gmra.mrb[0].mxu0 %v3862
    %v3992 = vpop.f32.mrb[0].mxu0
    %v3993 = vadd.f32 0.0, %v3992
    %v3994 = vpop.f32.mrb[0].mxu0
    %3995 = vmatprep.mubr.f32.mxu0 0.0
    %3996 = vmatmul.mubr.f32.gmra.mrb[0].mxu0 %v3863
    %v3997 = vpop.f32.mrb[0].mxu0
    %v3998 = vadd.f32 0.0, %v3997
    %v3999 = vpop.f32.mrb[0].mxu0
    %4000 = vmatprep.mubr.f32.mxu0 0.0
    %4001 = vmatmul.mubr.f32.gmra.mrb[0].mxu0 %v3864
    %v4002 = vpop.f32.mrb[0].mxu0
    %v4003 = vadd.f32 0.0, %v4002
    %v4004 = vpop.f32.mrb[0].mxu0
    %4005 = vmatprep.mubr.f32.mxu0 0.0
    %4006 = vmatmul.mubr.f32.gmra.mrb[0].mxu0 %v3865
    %v4007 = vpop.f32.mrb[0].mxu0
    %v4008 = vadd.f32 0.0, %v4007
    %v4009 = vpop.f32.mrb[0].mxu0
    %4010 = vmatprep.mubr.f32.mxu0 0.0
    %4011 = vmatmul.mubr.f32.gmra.mrb[0].mxu0 %v3866
    %v4012 = vpop.f32.mrb[0].mxu0
    %v4013 = vadd.f32 0.0, %v4012
    %v4014 = vpop.f32.mrb[0].mxu0
    %4015 = vmatprep.mubr.f32.mxu0 0.0
    %4016 = vmatmul.mubr.f32.gmra.mrb[0].mxu0 %v3867
    %v4017 = vpop.f32.mrb[0].mxu0
    %v4018 = vadd.f32 0.0, %v4017
    %v4019 = vpop.f32.mrb[0].mxu0
    %4020 = vmatprep.mubr.f32.mxu0 0.0
    %4021 = vmatmul.mubr.f32.gmra.mrb[0].mxu0 %v3868
    %v4022 = vpop.f32.mrb[0].mxu0
    %v4023 = vadd.f32 0.0, %v4022
    %v4024 = vpop.f32.mrb[0].mxu0
    %4025 = vmatprep.mubr.f32.mxu0 0.0
    %4026 = vmatmul.mubr.f32.gmra.mrb[0].mxu0 %v3869
    %v4027 = vpop.f32.mrb[0].mxu0
    %v4028 = vadd.f32 0.0, %v4027
    %v4029 = vpop.f32.mrb[0].mxu0
    %4030 = vdwg.mxu0
    %v4031 = vadd.f32 %v3648, %v3953
    %v4032 = vadd.f32 %v3651, %v3958
    %v4033 = vadd.f32 %v3654, %v3963
    %v4034 = vadd.f32 %v3657, %v3968
    %v4035 = vadd.f32 %v3660, %v3973
    %v4036 = vadd.f32 %v3663, %v3978
    %v4037 = vadd.f32 %v3666, %v3983
    %v4038 = vadd.f32 %v3669, %v3988
    %v4039 = vadd.f32 %v3672, %v3993
    %v4040 = vadd.f32 %v3675, %v3998
    %v4041 = vadd.f32 %v3678, %v4003
    %v4042 = vadd.f32 %v3681, %v4008
    %v4043 = vadd.f32 %v3684, %v4013
    %v4044 = vadd.f32 %v3687, %v4018
    %v4045 = vadd.f32 %v3690, %v4023
    %v4046 = vadd.f32 %v3693, %v4028
    %v4047 = vld [vmem:[%s8] sm:$0x1]
    %v4049 = vlaneseq
    %v4050 = vshrl.u32 %v4049, 7
    %v4051 = vsub.s32 0, %v4050
    %v4052 = vrot.slane %v4047, %v4051
    %v4054 = vadd.f32 %v4031, %v4052
    %v4055 = vadd.f32 %v4032, %v4052
    %v4056 = vadd.f32 %v4033, %v4052
    %v4057 = vadd.f32 %v4034, %v4052
    %v4058 = vadd.f32 %v4035, %v4052
    %v4059 = vadd.f32 %v4036, %v4052
    %v4060 = vadd.f32 %v4037, %v4052
    %v4061 = vadd.f32 %v4038, %v4052
    %v4062 = vadd.f32 %v4039, %v4052
    %v4063 = vadd.f32 %v4040, %v4052
    %v4064 = vadd.f32 %v4041, %v4052
    %v4065 = vadd.f32 %v4042, %v4052
    %v4066 = vadd.f32 %v4043, %v4052
    %v4067 = vadd.f32 %v4044, %v4052
    %v4068 = vadd.f32 %v4045, %v4052
    %v4069 = vadd.f32 %v4046, %v4052
    %v4070 = vtanh.pop %v4054
    %v4071 = vtanh.pop %v4055
    %v4072 = vtanh.pop %v4056
    %v4073 = vtanh.pop %v4057
    %v4074 = vtanh.pop %v4058
    %v4075 = vtanh.pop %v4059
    %v4076 = vtanh.pop %v4060
    %v4077 = vtanh.pop %v4061
    %v4078 = vtanh.pop %v4062
    %v4079 = vtanh.pop %v4063
    %v4080 = vtanh.pop %v4064
    %v4081 = vtanh.pop %v4065
    %v4082 = vtanh.pop %v4066
    %v4083 = vtanh.pop %v4067
    %v4084 = vtanh.pop %v4068
    %v4085 = vtanh.pop %v4069
    %v4086 = vsub.f32 1.0, %v3758
    %v4087 = vsub.f32 1.0, %v3759
    %v4088 = vsub.f32 1.0, %v3760
    %v4089 = vsub.f32 1.0, %v3761
    %v4090 = vsub.f32 1.0, %v3762
    %v4091 = vsub.f32 1.0, %v3763
    %v4092 = vsub.f32 1.0, %v3764
    %v4093 = vsub.f32 1.0, %v3765
    %v4094 = vsub.f32 1.0, %v3766
    %v4095 = vsub.f32 1.0, %v3767
    %v4096 = vsub.f32 1.0, %v3768
    %v4097 = vsub.f32 1.0, %v3769
    %v4098 = vsub.f32 1.0, %v3770
    %v4099 = vsub.f32 1.0, %v3771
    %v4100 = vsub.f32 1.0, %v3772
    %v4101 = vsub.f32 1.0, %v3773
    %v4102 = vmul.f32 %v4086, %v101
    %v4103 = vmul.f32 %v4087, %v102
    %v4104 = vmul.f32 %v4088, %v103
    %v4105 = vmul.f32 %v4089, %v104
    %v4106 = vmul.f32 %v4090, %v105
    %v4107 = vmul.f32 %v4091, %v106
    %v4108 = vmul.f32 %v4092, %v107
    %v4109 = vmul.f32 %v4093, %v108
    %v4110 = vmul.f32 %v4094, %v109
    %v4111 = vmul.f32 %v4095, %v110
    %v4112 = vmul.f32 %v4096, %v111
    %v4113 = vmul.f32 %v4097, %v112
    %v4114 = vmul.f32 %v4098, %v113
    %v4115 = vmul.f32 %v4099, %v114
    %v4116 = vmul.f32 %v4100, %v115
    %v4117 = vmul.f32 %v4101, %v116
    %v4118 = vmul.f32 %v3758, %v4070
    %v4119 = vmul.f32 %v3759, %v4071
    %v4120 = vmul.f32 %v3760, %v4072
    %v4121 = vmul.f32 %v3761, %v4073
    %v4122 = vmul.f32 %v3762, %v4074
    %v4123 = vmul.f32 %v3763, %v4075
    %v4124 = vmul.f32 %v3764, %v4076
    %v4125 = vmul.f32 %v3765, %v4077
    %v4126 = vmul.f32 %v3766, %v4078
    %v4127 = vmul.f32 %v3767, %v4079
    %v4128 = vmul.f32 %v3768, %v4080
    %v4129 = vmul.f32 %v3769, %v4081
    %v4130 = vmul.f32 %v3770, %v4082
    %v4131 = vmul.f32 %v3771, %v4083
    %v4132 = vmul.f32 %v3772, %v4084
    %v4133 = vmul.f32 %v3773, %v4085
    %v4134 = vadd.f32 %v4102, %v4118
    %v4135 = vadd.f32 %v4103, %v4119
    %v4136 = vadd.f32 %v4104, %v4120
    %v4137 = vadd.f32 %v4105, %v4121
    %v4138 = vadd.f32 %v4106, %v4122
    %v4139 = vadd.f32 %v4107, %v4123
    %v4140 = vadd.f32 %v4108, %v4124
    %v4141 = vadd.f32 %v4109, %v4125
    %v4142 = vadd.f32 %v4110, %v4126
    %v4143 = vadd.f32 %v4111, %v4127
    %v4144 = vadd.f32 %v4112, %v4128
    %v4145 = vadd.f32 %v4113, %v4129
    %v4146 = vadd.f32 %v4114, %v4130
    %v4147 = vadd.f32 %v4115, %v4131
    %v4148 = vadd.f32 %v4116, %v4132
    %v4149 = vadd.f32 %v4117, %v4133
    %4150 = vst [vmem:[#allocation11] sm:$0xff] %v4134
    %4151 = vst [vmem:[#allocation11 + $0x8] sm:$0xff] %v4135
    %4152 = vst [vmem:[#allocation11 + $0x10] sm:$0xff] %v4136
    %4153 = vst [vmem:[#allocation11 + $0x18] sm:$0xff] %v4137
    %4154 = vst [vmem:[#allocation11 + $0x20] sm:$0xff] %v4138
    %4155 = vst [vmem:[#allocation11 + $0x28] sm:$0xff] %v4139
    %4156 = vst [vmem:[#allocation11 + $0x30] sm:$0xff] %v4140
    %4157 = vst [vmem:[#allocation11 + $0x38] sm:$0xff] %v4141
    %4158 = vst [vmem:[#allocation11 + $0x40] sm:$0xff] %v4142
    %4159 = vst [vmem:[#allocation11 + $0x48] sm:$0xff] %v4143
    %4160 = vst [vmem:[#allocation11 + $0x50] sm:$0xff] %v4144
    %4161 = vst [vmem:[#allocation11 + $0x58] sm:$0xff] %v4145
    %4162 = vst [vmem:[#allocation11 + $0x60] sm:$0xff] %v4146
    %4163 = vst [vmem:[#allocation11 + $0x68] sm:$0xff] %v4147
    %4164 = vst [vmem:[#allocation11 + $0x70] sm:$0xff] %v4148
    %4165 = vst [vmem:[#allocation11 + $0x78] sm:$0xff] %v4149
    // Predicated region
    $region58: #{tpu_custom_call.1} parent=1 // pred_check
      _
    $region59: #{tpu_custom_call.1} parent=1 // pred_check_branch
      %4167 = sbr.rel (0) target = $region61
    $region60: #{tpu_custom_call.1} parent=1 // pred_region
      %s4169 = ssub.s32 2048, 2048
      %4170 = vsyncadd [#allocation4], %s4169
      %s4171 = sshll.u32 [#allocation11], 4
      %s4172 = int_to_ptr.vmem [resolvable:$true] %s4171
      %4177 = dma.vmem_to_hbm [thread:$0]  %s4172, 2048, %s9, [#allocation4], 128, 128, 8
    $region61: #{tpu_custom_call.1} parent=1 // pred_fallthru
      _
    // Predicated region
    $region62: #{tpu_custom_call.1} parent=1 // pred_check
      _
    $region63: #{tpu_custom_call.1} parent=1 // pred_check_branch
      %4179 = sbr.rel (0) target = $region65
    $region64: #{tpu_custom_call.1} parent=1 // pred_region
      %4180 = dma.done [#allocation4], 2048
    $region65: #{tpu_custom_call.1} parent=1 // pred_fallthru
      _
    %4181 = vsyncpa [#allocation3], 1
    %4182 = vsyncpa [#allocation6], 1
    %4183 = vsyncpa [#allocation9], 1
    %4184 = vsyncpa [#allocation4], 1

// kernel: tpu_custom_call.1
$region0: #{tpu_custom_call.1}
  #allocation0 [shape = 'u32[]', space=smem, size = 0x4, offset = 0x4, fixed_abs, tag = 'smem constant byte address 0x4 - core index']
  #allocation1 [shape = 'u32[144,128]{1,0:T(1,128)}', space=vmem, size = 0x12000, scoped, tag = 'internal scratch']
  %s0 = inlined_call_operand.hbm [shape: f32[8,16,128], index: 0, kind: input, shape index: {}]
  %s1 = inlined_call_operand.hbm [shape: f32[8,16,16], index: 1, kind: input, shape index: {}]
  %s2 = inlined_call_operand.hbm [shape: f32[128,256], index: 2, kind: input, shape index: {}]
  %s3 = inlined_call_operand.vmem [shape: f32[1,256], index: 3, kind: input, shape index: {}]
  %s4 = inlined_call_operand.hbm [shape: f32[128,384], index: 4, kind: input, shape index: {}]
  %s5 = inlined_call_operand.vmem [shape: f32[1,384], index: 5, kind: input, shape index: {}]
  %s6 = inlined_call_operand.vmem [shape: f32[1,384], index: 6, kind: input, shape index: {}]
  %s7 = inlined_call_operand.hbm [shape: f32[128,128], index: 7, kind: input, shape index: {}]
  %s8 = inlined_call_operand.vmem [shape: f32[1,128], index: 8, kind: input, shape index: {}]
  %s9 = inlined_call_operand.hbm [shape: f32[8,16,128], index: 9, kind: output, shape index: {}]
  %s10 = sld [smem:[#allocation0]]
  $region66: #{tpu_custom_call.1} parent=0
    _
  %s12 = ssub.s32 1, %s10
  %s13 = scalar_select 0, %s12, %s10
  $region1: #{tpu_custom_call.1} parent=0
    #allocation2 [shape = 'u8[65536]{0}', space=vmem, size = 0x10000, scoped, tag = 'input window, operand 0, single buffered']
    #allocation3 [shape = 's32[1]{0}', space=sflag, size = 0x4, scoped, tag = 'scoped memory for tpu_custom_call.1']
    #allocation4 [shape = 's32[1]{0}', space=sflag, size = 0x4, scoped, tag = 'scoped memory for tpu_custom_call.1']
    #allocation5 [shape = 'u8[65536]{0}', space=vmem, size = 0x10000, scoped, tag = 'input window, operand 1, single buffered']
    #allocation6 [shape = 's32[1]{0}', space=sflag, size = 0x4, scoped, tag = 'scoped memory for tpu_custom_call.1']
    #allocation7 [shape = 'u8[131072]{0}', space=vmem, size = 0x20000, scoped, tag = 'input window, operand 2, single buffered']
    #allocation8 [shape = 'u8[196608]{0}', space=vmem, size = 0x30000, scoped, tag = 'input window, operand 4, single buffered']
    #allocation9 [shape = 's32[1]{0}', space=sflag, size = 0x4, scoped, tag = 'scoped memory for tpu_custom_call.1']
    #allocation10 [shape = 'u8[65536]{0}', space=vmem, size = 0x10000, scoped, tag = 'input window, operand 7, single buffered']
    #allocation11 [shape = 'u8[65536]{0}', space=vmem, size = 0x10000, scoped, tag = 'output window, operand 0, single buffered']
    %14 = vsyncpa [#allocation3], 0
    %15 = vsyncpa [#allocation6], 0
    %16 = vsyncpa [#allocation9], 0
    %17 = vsyncpa [#allocation4], 0
    // Predicated region
    $region2: #{tpu_custom_call.1} parent=1 // pred_check
      _
    $region3: #{tpu_custom_call.1} parent=1 // pred_check_branch
      %19 = sbr.rel (0) target = $region5
    $region4: #{tpu_custom_call.1} parent=1 // pred_region
      %s21 = ssub.s32 2048, 2048
      %22 = vsyncadd [#allocation3], %s21
      %s23 = sshll.u32 [#allocation2], 4
      %s24 = int_to_ptr.vmem [resolvable:$true] %s23
      %29 = dma.hbm_to_vmem [thread:$0]  %s0, 2048, %s24, [#allocation3], 128, 128, 8
    $region5: #{tpu_custom_call.1} parent=1 // pred_fallthru
      _
    // Predicated region
    $region6: #{tpu_custom_call.1} parent=1 // pred_check
      _
    $region7: #{tpu_custom_call.1} parent=1 // pred_check_branch
      %31 = sbr.rel (0) target = $region9
    $region8: #{tpu_custom_call.1} parent=1 // pred_region
      %s33 = ssub.s32 2048, 2048
      %34 = vsyncadd [#allocation6], %s33
      %s35 = sshll.u32 [#allocation5], 4
      %s36 = int_to_ptr.vmem [resolvable:$true] %s35
      %41 = dma.hbm_to_vmem [thread:$0]  %s1, 2048, %s36, [#allocation6], 128, 128, 8
    $region9: #{tpu_custom_call.1} parent=1 // pred_fallthru
      _
    // Predicated region
    $region10: #{tpu_custom_call.1} parent=1 // pred_check
      _
    $region11: #{tpu_custom_call.1} parent=1 // pred_check_branch
      %43 = sbr.rel (0) target = $region13
    $region12: #{tpu_custom_call.1} parent=1 // pred_region
      %s45 = ssub.s32 4096, 4096
      %46 = vsyncadd [#allocation6], %s45
      %s47 = sshll.u32 [#allocation7], 4
      %s48 = int_to_ptr.vmem [resolvable:$true] %s47
      %53 = dma.hbm_to_vmem [thread:$0]  %s2, 4096, %s48, [#allocation6], 256, 256, 16
    $region13: #{tpu_custom_call.1} parent=1 // pred_fallthru
      _
    // Predicated region
    $region14: #{tpu_custom_call.1} parent=1 // pred_check
      _
    $region15: #{tpu_custom_call.1} parent=1 // pred_check_branch
      %55 = sbr.rel (0) target = $region17
    $region16: #{tpu_custom_call.1} parent=1 // pred_region
      _
    $region17: #{tpu_custom_call.1} parent=1 // pred_fallthru
      _
    // Predicated region
    $region18: #{tpu_custom_call.1} parent=1 // pred_check
      _
    $region19: #{tpu_custom_call.1} parent=1 // pred_check_branch
      %57 = sbr.rel (0) target = $region21
    $region20: #{tpu_custom_call.1} parent=1 // pred_region
      %s59 = ssub.s32 6144, 6144
      %60 = vsyncadd [#allocation9], %s59
      %s61 = sshll.u32 [#allocation8], 4
      %s62 = int_to_ptr.vmem [resolvable:$true] %s61
      %67 = dma.hbm_to_vmem [thread:$0]  %s4, 6144, %s62, [#allocation9], 384, 384, 24
    $region21: #{tpu_custom_call.1} parent=1 // pred_fallthru
      _
    // Predicated region
    $region22: #{tpu_custom_call.1} parent=1 // pred_check
      _
    $region23: #{tpu_custom_call.1} parent=1 // pred_check_branch
      %69 = sbr.rel (0) target = $region25
    $region24: #{tpu_custom_call.1} parent=1 // pred_region
      _
    $region25: #{tpu_custom_call.1} parent=1 // pred_fallthru
      _
    // Predicated region
    $region26: #{tpu_custom_call.1} parent=1 // pred_check
      _
    $region27: #{tpu_custom_call.1} parent=1 // pred_check_branch
      %71 = sbr.rel (0) target = $region29
    $region28: #{tpu_custom_call.1} parent=1 // pred_region
      _
    $region29: #{tpu_custom_call.1} parent=1 // pred_fallthru
      _
    // Predicated region
    $region30: #{tpu_custom_call.1} parent=1 // pred_check
      _
    $region31: #{tpu_custom_call.1} parent=1 // pred_check_branch
      %73 = sbr.rel (0) target = $region33
    $region32: #{tpu_custom_call.1} parent=1 // pred_region
      %s75 = ssub.s32 2048, 2048
      %76 = vsyncadd [#allocation9], %s75
      %s77 = sshll.u32 [#allocation10], 4
      %s78 = int_to_ptr.vmem [resolvable:$true] %s77
      %83 = dma.hbm_to_vmem [thread:$0]  %s7, 2048, %s78, [#allocation9], 128, 128, 8
    $region33: #{tpu_custom_call.1} parent=1 // pred_fallthru
      _
    // Predicated region
    $region34: #{tpu_custom_call.1} parent=1 // pred_check
      _
    $region35: #{tpu_custom_call.1} parent=1 // pred_check_branch
      %85 = sbr.rel (0) target = $region37
    $region36: #{tpu_custom_call.1} parent=1 // pred_region
      _
    $region37: #{tpu_custom_call.1} parent=1 // pred_fallthru
      _
    // Predicated region
    $region38: #{tpu_custom_call.1} parent=1 // pred_check
      _
    $region39: #{tpu_custom_call.1} parent=1 // pred_check_branch
      %87 = sbr.rel (0) target = $region41
    $region40: #{tpu_custom_call.1} parent=1 // pred_region
      %88 = dma.done [#allocation3], 2048
    $region41: #{tpu_custom_call.1} parent=1 // pred_fallthru
      _
    // Predicated region
    $region42: #{tpu_custom_call.1} parent=1 // pred_check
      _
    $region43: #{tpu_custom_call.1} parent=1 // pred_check_branch
      %90 = sbr.rel (0) target = $region45
    $region44: #{tpu_custom_call.1} parent=1 // pred_region
      %91 = dma.done [#allocation6], 2048
    $region45: #{tpu_custom_call.1} parent=1 // pred_fallthru
      _
    // Predicated region
    $region46: #{tpu_custom_call.1} parent=1 // pred_check
      _
    $region47: #{tpu_custom_call.1} parent=1 // pred_check_branch
      %93 = sbr.rel (0) target = $region49
    $region48: #{tpu_custom_call.1} parent=1 // pred_region
      %94 = dma.done [#allocation6], 4096
    $region49: #{tpu_custom_call.1} parent=1 // pred_fallthru
      _
    // Predicated region
    $region50: #{tpu_custom_call.1} parent=1 // pred_check
      _
    $region51: #{tpu_custom_call.1} parent=1 // pred_check_branch
      %96 = sbr.rel (0) target = $region53
    $region52: #{tpu_custom_call.1} parent=1 // pred_region
      %97 = dma.done [#allocation9], 6144
    $region53: #{tpu_custom_call.1} parent=1 // pred_fallthru
      _
    // Predicated region
    $region54: #{tpu_custom_call.1} parent=1 // pred_check
      _
    $region55: #{tpu_custom_call.1} parent=1 // pred_check_branch
      %99 = sbr.rel (0) target = $region57
    $region56: #{tpu_custom_call.1} parent=1 // pred_region
      %100 = dma.done [#allocation9], 2048
    $region57: #{tpu_custom_call.1} parent=1 // pred_fallthru
      _
    %v101 = vld [vmem:[#allocation2] sm:$0xff]
    %v102 = vld [vmem:[#allocation2 + $0x8] sm:$0xff]
    %v103 = vld [vmem:[#allocation2 + $0x10] sm:$0xff]
    %v104 = vld [vmem:[#allocation2 + $0x18] sm:$0xff]
    %v105 = vld [vmem:[#allocation2 + $0x20] sm:$0xff]
    %v106 = vld [vmem:[#allocation2 + $0x28] sm:$0xff]
    %v107 = vld [vmem:[#allocation2 + $0x30] sm:$0xff]
    %v108 = vld [vmem:[#allocation2 + $0x38] sm:$0xff]
    %v109 = vld [vmem:[#allocation2 + $0x40] sm:$0xff]
    %v110 = vld [vmem:[#allocation2 + $0x48] sm:$0xff]
    %v111 = vld [vmem:[#allocation2 + $0x50] sm:$0xff]
    %v112 = vld [vmem:[#allocation2 + $0x58] sm:$0xff]
    %v113 = vld [vmem:[#allocation2 + $0x60] sm:$0xff]
    %v114 = vld [vmem:[#allocation2 + $0x68] sm:$0xff]
    %v115 = vld [vmem:[#allocation2 + $0x70] sm:$0xff]
    %v116 = vld [vmem:[#allocation2 + $0x78] sm:$0xff]
    %v117 = vld [vmem:[#allocation5] sm:$0xff]
    %v118 = vld [vmem:[#allocation5 + $0x8] sm:$0xff]
    %v119 = vld [vmem:[#allocation5 + $0x10] sm:$0xff]
    %v120 = vld [vmem:[#allocation5 + $0x18] sm:$0xff]
    %v121 = vld [vmem:[#allocation5 + $0x20] sm:$0xff]
    %v122 = vld [vmem:[#allocation5 + $0x28] sm:$0xff]
    %v123 = vld [vmem:[#allocation5 + $0x30] sm:$0xff]
    %v124 = vld [vmem:[#allocation5 + $0x38] sm:$0xff]
    %v125 = vld [vmem:[#allocation5 + $0x40] sm:$0xff]
    %v126 = vld [vmem:[#allocation5 + $0x48] sm:$0xff]
    %v127 = vld [vmem:[#allocation5 + $0x50] sm:$0xff]
    %v128 = vld [vmem:[#allocation5 + $0x58] sm:$0xff]
    %v129 = vld [vmem:[#allocation5 + $0x60] sm:$0xff]
    %v130 = vld [vmem:[#allocation5 + $0x68] sm:$0xff]
    %v131 = vld [vmem:[#allocation5 + $0x70] sm:$0xff]
    %v132 = vld [vmem:[#allocation5 + $0x78] sm:$0xff]
    %v133 = vld [vmem:[#allocation7] sm:$0xff]
    %v134 = vld [vmem:[#allocation7 + $0x8] sm:$0xff]
    %v135 = vld [vmem:[#allocation7 + $0x10] sm:$0xff]
    %v136 = vld [vmem:[#allocation7 + $0x18] sm:$0xff]
    %v137 = vld [vmem:[#allocation7 + $0x20] sm:$0xff]
    %v138 = vld [vmem:[#allocation7 + $0x28] sm:$0xff]
    %v139 = vld [vmem:[#allocation7 + $0x30] sm:$0xff]
    %v140 = vld [vmem:[#allocation7 + $0x38] sm:$0xff]
    %v141 = vld [vmem:[#allocation7 + $0x40] sm:$0xff]
    %v142 = vld [vmem:[#allocation7 + $0x48] sm:$0xff]
    %v143 = vld [vmem:[#allocation7 + $0x50] sm:$0xff]
    %v144 = vld [vmem:[#allocation7 + $0x58] sm:$0xff]
    %v145 = vld [vmem:[#allocation7 + $0x60] sm:$0xff]
    %v146 = vld [vmem:[#allocation7 + $0x68] sm:$0xff]
    %v147 = vld [vmem:[#allocation7 + $0x70] sm:$0xff]
    %v148 = vld [vmem:[#allocation7 + $0x78] sm:$0xff]
    %v149 = vld [vmem:[#allocation7 + $0x80] sm:$0xff]
    %v150 = vld [vmem:[#allocation7 + $0x88] sm:$0xff]
    %v151 = vld [vmem:[#allocation7 + $0x90] sm:$0xff]
    %v152 = vld [vmem:[#allocation7 + $0x98] sm:$0xff]
    %v153 = vld [vmem:[#allocation7 + $0xa0] sm:$0xff]
    %v154 = vld [vmem:[#allocation7 + $0xa8] sm:$0xff]
    %v155 = vld [vmem:[#allocation7 + $0xb0] sm:$0xff]
    %v156 = vld [vmem:[#allocation7 + $0xb8] sm:$0xff]
    %v157 = vld [vmem:[#allocation7 + $0xc0] sm:$0xff]
    %v158 = vld [vmem:[#allocation7 + $0xc8] sm:$0xff]
    %v159 = vld [vmem:[#allocation7 + $0xd0] sm:$0xff]
    %v160 = vld [vmem:[#allocation7 + $0xd8] sm:$0xff]
    %v161 = vld [vmem:[#allocation7 + $0xe0] sm:$0xff]
    %v162 = vld [vmem:[#allocation7 + $0xe8] sm:$0xff]
    %v163 = vld [vmem:[#allocation7 + $0xf0] sm:$0xff]
    %v164 = vld [vmem:[#allocation7 + $0xf8] sm:$0xff]
    %v165 = vld [vmem:[%s3] sm:$0x3]
    %v167 = vlaneseq
    %v168 = vshrl.u32 %v167, 7
    %v169 = vsub.s32 0, %v168
    %v170 = vrot.slane %v165, %v169
    %v171 = vlaneseq
    %v172 = vshrl.u32 %v171, 7
    %v173 = vsub.s32 1, %v172
    %v174 = vrot.slane %v165, %v173
    %177 = vmatprep.subr.mxu0 %v134
    %178 = vmatpush1.msra.mxu0 %v133
    %179 = vmatprep.subr.mxu0 %v136
    %180 = vmatpush1.msra.mxu0 %v135
    %181 = vmatprep.subr.mxu0 %v138
    %182 = vmatpush1.msra.mxu0 %v137
    %183 = vmatprep.subr.mxu0 %v140
    %184 = vmatpush1.msra.mxu0 %v139
    %185 = vmatprep.subr.mxu0 %v142
    %186 = vmatpush1.msra.mxu0 %v141
    %187 = vmatprep.subr.mxu0 %v144
    %188 = vmatpush1.msra.mxu0 %v143
    %189 = vmatprep.subr.mxu0 %v146
    %190 = vmatpush1.msra.mxu0 %v145
    %191 = vmatprep.subr.mxu0 %v148
    %192 = vmatpush1.msra.mxu0 %v147
    %193 = vmatprep.subr.mxu0 %v150
    %194 = vmatpush1.msra.mxu0 %v149
    %195 = vmatprep.subr.mxu0 %v152
    %196 = vmatpush1.msra.mxu0 %v151
    %197 = vmatprep.subr.mxu0 %v154
    %198 = vmatpush1.msra.mxu0 %v153
    %199 = vmatprep.subr.mxu0 %v156
    %200 = vmatpush1.msra.mxu0 %v155
    %201 = vmatprep.subr.mxu0 %v158
    %202 = vmatpush1.msra.mxu0 %v157
    %203 = vmatprep.subr.mxu0 %v160
    %204 = vmatpush1.msra.mxu0 %v159
    %205 = vmatprep.subr.mxu0 %v162
    %206 = vmatpush1.msra.mxu0 %v161
    %207 = vmatprep.subr.mxu0 %v164
    %208 = vmatpush1.msra.mxu0 %v163
    %209 = vmatprep.subr.mxu0 0.0
    %210 = vmatpush1.msra.mxu0 0.0
    %211 = vmatprep.subr.mxu0 0.0
    %212 = vmatpush1.msra.mxu0 0.0
    %213 = vmatprep.subr.mxu0 0.0
    %214 = vmatpush1.msra.mxu0 0.0
    %215 = vmatprep.subr.mxu0 0.0
    %216 = vmatpush1.msra.mxu0 0.0
    %217 = vmatprep.subr.mxu0 0.0
    %218 = vmatpush1.msra.mxu0 0.0
    %219 = vmatprep.subr.mxu0 0.0
    %220 = vmatpush1.msra.mxu0 0.0
    %221 = vmatprep.subr.mxu0 0.0
    %222 = vmatpush1.msra.mxu0 0.0
    %223 = vmatprep.subr.mxu0 0.0
    %224 = vmatpush1.msra.mxu0 0.0
    %225 = vmatprep.subr.mxu0 0.0
    %226 = vmatpush1.msra.mxu0 0.0
    %227 = vmatprep.subr.mxu0 0.0
    %228 = vmatpush1.msra.mxu0 0.0
    %229 = vmatprep.subr.mxu0 0.0
    %230 = vmatpush1.msra.mxu0 0.0
    %231 = vmatprep.subr.mxu0 0.0
    %232 = vmatpush1.msra.mxu0 0.0
    %233 = vmatprep.subr.mxu0 0.0
    %234 = vmatpush1.msra.mxu0 0.0
    %235 = vmatprep.subr.mxu0 0.0
    %236 = vmatpush1.msra.mxu0 0.0
    %237 = vmatprep.subr.mxu0 0.0
    %238 = vmatpush1.msra.mxu0 0.0
    %239 = vmatprep.subr.mxu0 0.0
    %240 = vmatpush1.msra.mxu0 0.0
    %241 = vmatprep.mubr.f32.mxu0 0.0
    %242 = vmatmul.mubr.f32.gmra.mrb[0].mxu0 %v101
    %v243 = vpop.f32.mrb[0].mxu0
    %v244 = vadd.f32 %v170, %v243
    %v245 = vpop.f32.mrb[0].mxu0
    %v246 = vadd.f32 %v174, %v245
    %247 = vmatprep.mubr.f32.mxu0 0.0
    %248 = vmatmul.mubr.f32.gmra.mrb[0].mxu0 %v102
    %v249 = vpop.f32.mrb[0].mxu0
    %v250 = vadd.f32 %v170, %v249
    %v251 = vpop.f32.mrb[0].mxu0
    %v252 = vadd.f32 %v174, %v251
    %253 = vmatprep.mubr.f32.mxu0 0.0
    %254 = vmatmul.mubr.f32.gmra.mrb[0].mxu0 %v103
    %v255 = vpop.f32.mrb[0].mxu0
    %v256 = vadd.f32 %v170, %v255
    %v257 = vpop.f32.mrb[0].mxu0
    %v258 = vadd.f32 %v174, %v257
    %259 = vmatprep.mubr.f32.mxu0 0.0
    %260 = vmatmul.mubr.f32.gmra.mrb[0].mxu0 %v104
    %v261 = vpop.f32.mrb[0].mxu0
    %v262 = vadd.f32 %v170, %v261
    %v263 = vpop.f32.mrb[0].mxu0
    %v264 = vadd.f32 %v174, %v263
    %265 = vmatprep.mubr.f32.mxu0 0.0
    %266 = vmatmul.mubr.f32.gmra.mrb[0].mxu0 %v105
    %v267 = vpop.f32.mrb[0].mxu0
    %v268 = vadd.f32 %v170, %v267
    %v269 = vpop.f32.mrb[0].mxu0
    %v270 = vadd.f32 %v174, %v269
    %271 = vmatprep.mubr.f32.mxu0 0.0
    %272 = vmatmul.mubr.f32.gmra.mrb[0].mxu0 %v106
    %v273 = vpop.f32.mrb[0].mxu0
    %v274 = vadd.f32 %v170, %v273
    %v275 = vpop.f32.mrb[0].mxu0
    %v276 = vadd.f32 %v174, %v275
    %277 = vmatprep.mubr.f32.mxu0 0.0
    %278 = vmatmul.mubr.f32.gmra.mrb[0].mxu0 %v107
    %v279 = vpop.f32.mrb[0].mxu0
    %v280 = vadd.f32 %v170, %v279
    %v281 = vpop.f32.mrb[0].mxu0
    %v282 = vadd.f32 %v174, %v281
    %283 = vmatprep.mubr.f32.mxu0 0.0
    %284 = vmatmul.mubr.f32.gmra.mrb[0].mxu0 %v108
    %v285 = vpop.f32.mrb[0].mxu0
    %v286 = vadd.f32 %v170, %v285
    %v287 = vpop.f32.mrb[0].mxu0
    %v288 = vadd.f32 %v174, %v287
    %289 = vmatprep.mubr.f32.mxu0 0.0
    %290 = vmatmul.mubr.f32.gmra.mrb[0].mxu0 %v109
    %v291 = vpop.f32.mrb[0].mxu0
    %v292 = vadd.f32 %v170, %v291
    %v293 = vpop.f32.mrb[0].mxu0
    %v294 = vadd.f32 %v174, %v293
    %295 = vmatprep.mubr.f32.mxu0 0.0
    %296 = vmatmul.mubr.f32.gmra.mrb[0].mxu0 %v110
    %v297 = vpop.f32.mrb[0].mxu0
    %v298 = vadd.f32 %v170, %v297
    %v299 = vpop.f32.mrb[0].mxu0
    %v300 = vadd.f32 %v174, %v299
    %301 = vmatprep.mubr.f32.mxu0 0.0
    %302 = vmatmul.mubr.f32.gmra.mrb[0].mxu0 %v111
    %v303 = vpop.f32.mrb[0].mxu0
    %v304 = vadd.f32 %v170, %v303
    %v305 = vpop.f32.mrb[0].mxu0
    %v306 = vadd.f32 %v174, %v305
    %307 = vmatprep.mubr.f32.mxu0 0.0
    %308 = vmatmul.mubr.f32.gmra.mrb[0].mxu0 %v112
    %v309 = vpop.f32.mrb[0].mxu0
    %v310 = vadd.f32 %v170, %v309
    %v311 = vpop.f32.mrb[0].mxu0
    %v312 = vadd.f32 %v174, %v311
    %313 = vmatprep.mubr.f32.mxu0 0.0
    %314 = vmatmul.mubr.f32.gmra.mrb[0].mxu0 %v113
    %v315 = vpop.f32.mrb[0].mxu0
    %v316 = vadd.f32 %v170, %v315
    %v317 = vpop.f32.mrb[0].mxu0
    %v318 = vadd.f32 %v174, %v317
    %319 = vmatprep.mubr.f32.mxu0 0.0
    %320 = vmatmul.mubr.f32.gmra.mrb[0].mxu0 %v114
    %v321 = vpop.f32.mrb[0].mxu0
    %v322 = vadd.f32 %v170, %v321
    %v323 = vpop.f32.mrb[0].mxu0
    %v324 = vadd.f32 %v174, %v323
    %325 = vmatprep.mubr.f32.mxu0 0.0
    %326 = vmatmul.mubr.f32.gmra.mrb[0].mxu0 %v115
    %v327 = vpop.f32.mrb[0].mxu0
    %v328 = vadd.f32 %v170, %v327
    %v329 = vpop.f32.mrb[0].mxu0
    %v330 = vadd.f32 %v174, %v329
    %331 = vmatprep.mubr.f32.mxu0 0.0
    %332 = vmatmul.mubr.f32.gmra.mrb[0].mxu0 %v116
    %v333 = vpop.f32.mrb[0].mxu0
    %v334 = vadd.f32 %v170, %v333
    %v335 = vpop.f32.mrb[0].mxu0
    %v336 = vadd.f32 %v174, %v335
    %337 = vdwg.mxu0
    %vm338 = vcmask 130048
    %v340 = vsel %vm338, %v117, 0
    %v343 = vsel %vm338, %v118, 0
    %345 = vmatprep.subr.mxu0 0.0
    %346 = vmatpush1.msra.mxu0 %v101
    %347 = vmatprep.subr.mxu0 0.0
    %348 = vmatpush1.msra.mxu0 %v102
    %349 = vmatprep.subr.mxu0 0.0
    %350 = vmatpush1.msra.mxu0 0.0
    %351 = vmatprep.subr.mxu0 0.0
    %352 = vmatpush1.msra.mxu0 0.0
    %353 = vmatprep.subr.mxu0 0.0
    %354 = vmatpush1.msra.mxu0 0.0
    %355 = vmatprep.subr.mxu0 0.0
    %356 = vmatpush1.msra.mxu0 0.0
    %357 = vmatprep.subr.mxu0 0.0
    %358 = vmatpush1.msra.mxu0 0.0
    %359 = vmatprep.subr.mxu0 0.0
    %360 = vmatpush1.msra.mxu0 0.0
    %361 = vmatprep.subr.mxu0 0.0
    %362 = vmatpush1.msra.mxu0 0.0
    %363 = vmatprep.subr.mxu0 0.0
    %364 = vmatpush1.msra.mxu0 0.0
    %365 = vmatprep.subr.mxu0 0.0
    %366 = vmatpush1.msra.mxu0 0.0
    %367 = vmatprep.subr.mxu0 0.0
    %368 = vmatpush1.msra.mxu0 0.0
    %369 = vmatprep.subr.mxu0 0.0
    %370 = vmatpush1.msra.mxu0 0.0
    %371 = vmatprep.subr.mxu0 0.0
    %372 = vmatpush1.msra.mxu0 0.0
    %373 = vmatprep.subr.mxu0 0.0
    %374 = vmatpush1.msra.mxu0 0.0
    %375 = vmatprep.subr.mxu0 0.0
    %376 = vmatpush1.msra.mxu0 0.0
    %377 = vmatprep.subr.mxu0 0.0
    %378 = vmatpush1.msra.mxu0 0.0
    %379 = vmatprep.subr.mxu0 0.0
    %380 = vmatpush1.msra.mxu0 0.0
    %381 = vmatprep.subr.mxu0 0.0
    %382 = vmatpush1.msra.mxu0 0.0
    %383 = vmatprep.subr.mxu0 0.0
    %384 = vmatpush1.msra.mxu0 0.0
    %385 = vmatprep.subr.mxu0 0.0
    %386 = vmatpush1.msra.mxu0 0.0
    %387 = vmatprep.subr.mxu0 0.0
    %388 = vmatpush1.msra.mxu0 0.0
    %389 = vmatprep.subr.mxu0 0.0
    %390 = vmatpush1.msra.mxu0 0.0
    %391 = vmatprep.subr.mxu0 0.0
    %392 = vmatpush1.msra.mxu0 0.0
    %393 = vmatprep.subr.mxu0 0.0
    %394 = vmatpush1.msra.mxu0 0.0
    %395 = vmatprep.subr.mxu0 0.0
    %396 = vmatpush1.msra.mxu0 0.0
    %397 = vmatprep.subr.mxu0 0.0
    %398 = vmatpush1.msra.mxu0 0.0
    %399 = vmatprep.subr.mxu0 0.0
    %400 = vmatpush1.msra.mxu0 0.0
    %401 = vmatprep.subr.mxu0 0.0
    %402 = vmatpush1.msra.mxu0 0.0
    %403 = vmatprep.subr.mxu0 0.0
    %404 = vmatpush1.msra.mxu0 0.0
    %405 = vmatprep.subr.mxu0 0.0
    %406 = vmatpush1.msra.mxu0 0.0
    %407 = vmatprep.subr.mxu0 0.0
    %408 = vmatpush1.msra.mxu0 0.0
    %409 = vmatprep.mubr.f32.mxu0 0.0
    %410 = vmatmul.mubr.f32.gmra.mrb[0].mxu0 %v340
    %v411 = vpop.f32.mrb[0].mxu0
    %v412 = vadd.f32 0.0, %v411
    %v413 = vpop.f32.mrb[0].mxu0
    %414 = vmatprep.mubr.f32.mxu0 0.0
    %415 = vmatmul.mubr.f32.gmra.mrb[0].mxu0 %v343
    %v416 = vpop.f32.mrb[0].mxu0
    %v417 = vadd.f32 0.0, %v416
    %v418 = vpop.f32.mrb[0].mxu0
    %419 = vdwg.mxu0
    %v421 = vsel %vm338, %v119, 0
    %v424 = vsel %vm338, %v120, 0
    %426 = vmatprep.subr.mxu0 0.0
    %427 = vmatpush1.msra.mxu0 %v103
    %428 = vmatprep.subr.mxu0 0.0
    %429 = vmatpush1.msra.mxu0 %v104
    %430 = vmatprep.subr.mxu0 0.0
    %431 = vmatpush1.msra.mxu0 0.0
    %432 = vmatprep.subr.mxu0 0.0
    %433 = vmatpush1.msra.mxu0 0.0
    %434 = vmatprep.subr.mxu0 0.0
    %435 = vmatpush1.msra.mxu0 0.0
    %436 = vmatprep.subr.mxu0 0.0
    %437 = vmatpush1.msra.mxu0 0.0
    %438 = vmatprep.subr.mxu0 0.0
    %439 = vmatpush1.msra.mxu0 0.0
    %440 = vmatprep.subr.mxu0 0.0
    %441 = vmatpush1.msra.mxu0 0.0
    %442 = vmatprep.subr.mxu0 0.0
    %443 = vmatpush1.msra.mxu0 0.0
    %444 = vmatprep.subr.mxu0 0.0
    %445 = vmatpush1.msra.mxu0 0.0
    %446 = vmatprep.subr.mxu0 0.0
    %447 = vmatpush1.msra.mxu0 0.0
    %448 = vmatprep.subr.mxu0 0.0
    %449 = vmatpush1.msra.mxu0 0.0
    %450 = vmatprep.subr.mxu0 0.0
    %451 = vmatpush1.msra.mxu0 0.0
    %452 = vmatprep.subr.mxu0 0.0
    %453 = vmatpush1.msra.mxu0 0.0
    %454 = vmatprep.subr.mxu0 0.0
    %455 = vmatpush1.msra.mxu0 0.0
    %456 = vmatprep.subr.mxu0 0.0
    %457 = vmatpush1.msra.mxu0 0.0
    %458 = vmatprep.subr.mxu0 0.0
    %459 = vmatpush1.msra.mxu0 0.0
    %460 = vmatprep.subr.mxu0 0.0
    %461 = vmatpush1.msra.mxu0 0.0
    %462 = vmatprep.subr.mxu0 0.0
    %463 = vmatpush1.msra.mxu0 0.0
    %464 = vmatprep.subr.mxu0 0.0
    %465 = vmatpush1.msra.mxu0 0.0
    %466 = vmatprep.subr.mxu0 0.0
    %467 = vmatpush1.msra.mxu0 0.0
    %468 = vmatprep.subr.mxu0 0.0
    %469 = vmatpush1.msra.mxu0 0.0
    %470 = vmatprep.subr.mxu0 0.0
    %471 = vmatpush1.msra.mxu0 0.0
    %472 = vmatprep.subr.mxu0 0.0
    %473 = vmatpush1.msra.mxu0 0.0
    %474 = vmatprep.subr.mxu0 0.0
    %475 = vmatpush1.msra.mxu0 0.0
    %476 = vmatprep.subr.mxu0 0.0
    %477 = vmatpush1.msra.mxu0 0.0
    %478 = vmatprep.subr.mxu0 0.0
    %479 = vmatpush1.msra.mxu0 0.0
    %480 = vmatprep.subr.mxu0 0.0
    %481 = vmatpush1.msra.mxu0 0.0
    %482 = vmatprep.subr.mxu0 0.0
    %483 = vmatpush1.msra.mxu0 0.0
    %484 = vmatprep.subr.mxu0 0.0
    %485 = vmatpush1.msra.mxu0 0.0
    %486 = vmatprep.subr.mxu0 0.0
    %487 = vmatpush1.msra.mxu0 0.0
    %488 = vmatprep.subr.mxu0 0.0
    %489 = vmatpush1.msra.mxu0 0.0
    %490 = vmatprep.mubr.f32.mxu0 0.0
    %491 = vmatmul.mubr.f32.gmra.mrb[0].mxu0 %v421
    %v492 = vpop.f32.mrb[0].mxu0
    %v493 = vadd.f32 0.0, %v492
    %v494 = vpop.f32.mrb[0].mxu0
    %495 = vmatprep.mubr.f32.mxu0 0.0
    %496 = vmatmul.mubr.f32.gmra.mrb[0].mxu0 %v424
    %v497 = vpop.f32.mrb[0].mxu0
    %v498 = vadd.f32 0.0, %v497
    %v499 = vpop.f32.mrb[0].mxu0
    %500 = vdwg.mxu0
    %v502 = vsel %vm338, %v121, 0
    %v505 = vsel %vm338, %v122, 0
    %507 = vmatprep.subr.mxu0 0.0
    %508 = vmatpush1.msra.mxu0 %v105
    %509 = vmatprep.subr.mxu0 0.0
    %510 = vmatpush1.msra.mxu0 %v106
    %511 = vmatprep.subr.mxu0 0.0
    %512 = vmatpush1.msra.mxu0 0.0
    %513 = vmatprep.subr.mxu0 0.0
    %514 = vmatpush1.msra.mxu0 0.0
    %515 = vmatprep.subr.mxu0 0.0
    %516 = vmatpush1.msra.mxu0 0.0
    %517 = vmatprep.subr.mxu0 0.0
    %518 = vmatpush1.msra.mxu0 0.0
    %519 = vmatprep.subr.mxu0 0.0
    %520 = vmatpush1.msra.mxu0 0.0
    %521 = vmatprep.subr.mxu0 0.0
    %522 = vmatpush1.msra.mxu0 0.0
    %523 = vmatprep.subr.mxu0 0.0
    %524 = vmatpush1.msra.mxu0 0.0
    %525 = vmatprep.subr.mxu0 0.0
    %526 = vmatpush1.msra.mxu0 0.0
    %527 = vmatprep.subr.mxu0 0.0
    %528 = vmatpush1.msra.mxu0 0.0
    %529 = vmatprep.subr.mxu0 0.0
    %530 = vmatpush1.msra.mxu0 0.0
    %531 = vmatprep.subr.mxu0 0.0
    %532 = vmatpush1.msra.mxu0 0.0
    %533 = vmatprep.subr.mxu0 0.0
    %534 = vmatpush1.msra.mxu0 0.0
    %535 = vmatprep.subr.mxu0 0.0
    %536 = vmatpush1.msra.mxu0 0.0
    %537 = vmatprep.subr.mxu0 0.0
    %538 = vmatpush1.msra.mxu0 0.0
    %539 = vmatprep.subr.mxu0 0.0
    %540 = vmatpush1.msra.mxu0 0.0
    %541 = vmatprep.subr.mxu0 0.0
    %542 = vmatpush1.msra.mxu0 0.0
    %543 = vmatprep.subr.mxu0 0.0
    %544 = vmatpush1.msra.mxu0 0.0
    %545 = vmatprep.subr.mxu0 0.0
    %546 = vmatpush1.msra.mxu0 0.0
    %547 = vmatprep.subr.mxu0 0.0
    %548 = vmatpush1.msra.mxu0 0.0
    %549 = vmatprep.subr.mxu0 0.0
    %550 = vmatpush1.msra.mxu0 0.0
    %551 = vmatprep.subr.mxu0 0.0
    %552 = vmatpush1.msra.mxu0 0.0
    %553 = vmatprep.subr.mxu0 0.0
    %554 = vmatpush1.msra.mxu0 0.0
    %555 = vmatprep.subr.mxu0 0.0
    %556 = vmatpush1.msra.mxu0 0.0
    %557 = vmatprep.subr.mxu0 0.0
    %558 = vmatpush1.msra.mxu0 0.0
    %559 = vmatprep.subr.mxu0 0.0
    %560 = vmatpush1.msra.mxu0 0.0
    %561 = vmatprep.subr.mxu0 0.0
    %562 = vmatpush1.msra.mxu0 0.0
    %563 = vmatprep.subr.mxu0 0.0
    %564 = vmatpush1.msra.mxu0 0.0
    %565 = vmatprep.subr.mxu0 0.0
    %566 = vmatpush1.msra.mxu0 0.0
    %567 = vmatprep.subr.mxu0 0.0
    %568 = vmatpush1.msra.mxu0 0.0
    %569 = vmatprep.subr.mxu0 0.0
    %570 = vmatpush1.msra.mxu0 0.0
    %571 = vmatprep.mubr.f32.mxu0 0.0
    %572 = vmatmul.mubr.f32.gmra.mrb[0].mxu0 %v502
    %v573 = vpop.f32.mrb[0].mxu0
    %v574 = vadd.f32 0.0, %v573
    %v575 = vpop.f32.mrb[0].mxu0
    %576 = vmatprep.mubr.f32.mxu0 0.0
    %577 = vmatmul.mubr.f32.gmra.mrb[0].mxu0 %v505
    %v578 = vpop.f32.mrb[0].mxu0
    %v579 = vadd.f32 0.0, %v578
    %v580 = vpop.f32.mrb[0].mxu0
    %581 = vdwg.mxu0
    %v583 = vsel %vm338, %v123, 0
    %v586 = vsel %vm338, %v124, 0
    %588 = vmatprep.subr.mxu0 0.0
    %589 = vmatpush1.msra.mxu0 %v107
    %590 = vmatprep.subr.mxu0 0.0
    %591 = vmatpush1.msra.mxu0 %v108
    %592 = vmatprep.subr.mxu0 0.0
    %593 = vmatpush1.msra.mxu0 0.0
    %594 = vmatprep.subr.mxu0 0.0
    %595 = vmatpush1.msra.mxu0 0.0
    %596 = vmatprep.subr.mxu0 0.0
    %597 = vmatpush1.msra.mxu0 0.0
    %598 = vmatprep.subr.mxu0 0.0
    %599 = vmatpush1.msra.mxu0 0.0
    %600 = vmatprep.subr.mxu0 0.0
    %601 = vmatpush1.msra.mxu0 0.0
    %602 = vmatprep.subr.mxu0 0.0
    %603 = vmatpush1.msra.mxu0 0.0
    %604 = vmatprep.subr.mxu0 0.0
    %605 = vmatpush1.msra.mxu0 0.0
    %606 = vmatprep.subr.mxu0 0.0
    %607 = vmatpush1.msra.mxu0 0.0
    %608 = vmatprep.subr.mxu0 0.0
    %609 = vmatpush1.msra.mxu0 0.0
    %610 = vmatprep.subr.mxu0 0.0
    %611 = vmatpush1.msra.mxu0 0.0
    %612 = vmatprep.subr.mxu0 0.0
    %613 = vmatpush1.msra.mxu0 0.0
    %614 = vmatprep.subr.mxu0 0.0
    %615 = vmatpush1.msra.mxu0 0.0
    %616 = vmatprep.subr.mxu0 0.0
    %617 = vmatpush1.msra.mxu0 0.0
    %618 = vmatprep.subr.mxu0 0.0
    %619 = vmatpush1.msra.mxu0 0.0
    %620 = vmatprep.subr.mxu0 0.0
    %621 = vmatpush1.msra.mxu0 0.0
    %622 = vmatprep.subr.mxu0 0.0
    %623 = vmatpush1.msra.mxu0 0.0
    %624 = vmatprep.subr.mxu0 0.0
    %625 = vmatpush1.msra.mxu0 0.0
    %626 = vmatprep.subr.mxu0 0.0
    %627 = vmatpush1.msra.mxu0 0.0
    %628 = vmatprep.subr.mxu0 0.0
    %629 = vmatpush1.msra.mxu0 0.0
    %630 = vmatprep.subr.mxu0 0.0
    %631 = vmatpush1.msra.mxu0 0.0
    %632 = vmatprep.subr.mxu0 0.0
    %633 = vmatpush1.msra.mxu0 0.0
    %634 = vmatprep.subr.mxu0 0.0
    %635 = vmatpush1.msra.mxu0 0.0
    %636 = vmatprep.subr.mxu0 0.0
    %637 = vmatpush1.msra.mxu0 0.0
    %638 = vmatprep.subr.mxu0 0.0
    %639 = vmatpush1.msra.mxu0 0.0
    %640 = vmatprep.subr.mxu0 0.0
    %641 = vmatpush1.msra.mxu0 0.0
    %642 = vmatprep.subr.mxu0 0.0
    %643 = vmatpush1.msra.mxu0 0.0
    %644 = vmatprep.subr.mxu0 0.0
    %645 = vmatpush1.msra.mxu0 0.0
    %646 = vmatprep.subr.mxu0 0.0
    %647 = vmatpush1.msra.mxu0 0.0
    %648 = vmatprep.subr.mxu0 0.0
    %649 = vmatpush1.msra.mxu0 0.0
    %650 = vmatprep.subr.mxu0 0.0
    %651 = vmatpush1.msra.mxu0 0.0
    %652 = vmatprep.mubr.f32.mxu0 0.0
    %653 = vmatmul.mubr.f32.gmra.mrb[0].mxu0 %v583
    %v654 = vpop.f32.mrb[0].mxu0
    %v655 = vadd.f32 0.0, %v654
    %v656 = vpop.f32.mrb[0].mxu0
    %657 = vmatprep.mubr.f32.mxu0 0.0
    %658 = vmatmul.mubr.f32.gmra.mrb[0].mxu0 %v586
    %v659 = vpop.f32.mrb[0].mxu0
    %v660 = vadd.f32 0.0, %v659
    %v661 = vpop.f32.mrb[0].mxu0
    %662 = vdwg.mxu0
    %v664 = vsel %vm338, %v125, 0
    %v667 = vsel %vm338, %v126, 0
    %669 = vmatprep.subr.mxu0 0.0
    %670 = vmatpush1.msra.mxu0 %v109
    %671 = vmatprep.subr.mxu0 0.0
    %672 = vmatpush1.msra.mxu0 %v110
    %673 = vmatprep.subr.mxu0 0.0
    %674 = vmatpush1.msra.mxu0 0.0
    %675 = vmatprep.subr.mxu0 0.0
    %676 = vmatpush1.msra.mxu0 0.0
    %677 = vmatprep.subr.mxu0 0.0
    %678 = vmatpush1.msra.mxu0 0.0
    %679 = vmatprep.subr.mxu0 0.0
    %680 = vmatpush1.msra.mxu0 0.0
    %681 = vmatprep.subr.mxu0 0.0
    %682 = vmatpush1.msra.mxu0 0.0
    %683 = vmatprep.subr.mxu0 0.0
    %684 = vmatpush1.msra.mxu0 0.0
    %685 = vmatprep.subr.mxu0 0.0
    %686 = vmatpush1.msra.mxu0 0.0
    %687 = vmatprep.subr.mxu0 0.0
    %688 = vmatpush1.msra.mxu0 0.0
    %689 = vmatprep.subr.mxu0 0.0
    %690 = vmatpush1.msra.mxu0 0.0
    %691 = vmatprep.subr.mxu0 0.0
    %692 = vmatpush1.msra.mxu0 0.0
    %693 = vmatprep.subr.mxu0 0.0
    %694 = vmatpush1.msra.mxu0 0.0
    %695 = vmatprep.subr.mxu0 0.0
    %696 = vmatpush1.msra.mxu0 0.0
    %697 = vmatprep.subr.mxu0 0.0
    %698 = vmatpush1.msra.mxu0 0.0
    %699 = vmatprep.subr.mxu0 0.0
    %700 = vmatpush1.msra.mxu0 0.0
    %701 = vmatprep.subr.mxu0 0.0
    %702 = vmatpush1.msra.mxu0 0.0
    %703 = vmatprep.subr.mxu0 0.0
    %704 = vmatpush1.msra.mxu0 0.0
    %705 = vmatprep.subr.mxu0 0.0
    %706 = vmatpush1.msra.mxu0 0.0
    %707 = vmatprep.subr.mxu0 0.0
    %708 = vmatpush1.msra.mxu0 0.0
    %709 = vmatprep.subr.mxu0 0.0
    %710 = vmatpush1.msra.mxu0 0.0
    %711 = vmatprep.subr.mxu0 0.0
    %712 = vmatpush1.msra.mxu0 0.0
    %713 = vmatprep.subr.mxu0 0.0
    %714 = vmatpush1.msra.mxu0 0.0
    %715 = vmatprep.subr.mxu0 0.0
    %716 = vmatpush1.msra.mxu0 0.0
    %717 = vmatprep.subr.mxu0 0.0
    %718 = vmatpush1.msra.mxu0 0.0
    %719 = vmatprep.subr.mxu0 0.0
    %720 = vmatpush1.msra.mxu0 0.0
    %721 = vmatprep.subr.mxu0 0.0
    %722 = vmatpush1.msra.mxu0 0.0
    %723 = vmatprep.subr.mxu0 0.0
    %724 = vmatpush1.msra.mxu0 0.0
    %725 = vmatprep.subr.mxu0 0.0
    %726 = vmatpush1.msra.mxu0 0.0
    %727 = vmatprep.subr.mxu0 0.0
    %728 = vmatpush1.msra.mxu0 0.0
    %729 = vmatprep.subr.mxu0 0.0
    %730 = vmatpush1.msra.mxu0 0.0
    %731 = vmatprep.subr.mxu0 0.0
    %732 = vmatpush1.msra.mxu0 0.0
    %733 = vmatprep.mubr.f32.mxu0 0.0
    %734 = vmatmul.mubr.f32.gmra.mrb[0].mxu0 %v664
    %v735 = vpop.f32.mrb[0].mxu0
    %v736 = vadd.f32 0.0, %v735
    %v737 = vpop.f32.mrb[0].mxu0
    %738 = vmatprep.mubr.f32.mxu0 0.0
    %739 = vmatmul.mubr.f32.gmra.mrb[0].mxu0 %v667
    %v740 = vpop.f32.mrb[0].mxu0
    %v741 = vadd.f32 0.0, %v740
    %v742 = vpop.f32.mrb[0].mxu0
    %743 = vdwg.mxu0
    %v745 = vsel %vm338, %v127, 0
    %v748 = vsel %vm338, %v128, 0
    %750 = vmatprep.subr.mxu0 0.0
    %751 = vmatpush1.msra.mxu0 %v111
    %752 = vmatprep.subr.mxu0 0.0
    %753 = vmatpush1.msra.mxu0 %v112
    %754 = vmatprep.subr.mxu0 0.0
    %755 = vmatpush1.msra.mxu0 0.0
    %756 = vmatprep.subr.mxu0 0.0
    %757 = vmatpush1.msra.mxu0 0.0
    %758 = vmatprep.subr.mxu0 0.0
    %759 = vmatpush1.msra.mxu0 0.0
    %760 = vmatprep.subr.mxu0 0.0
    %761 = vmatpush1.msra.mxu0 0.0
    %762 = vmatprep.subr.mxu0 0.0
    %763 = vmatpush1.msra.mxu0 0.0
    %764 = vmatprep.subr.mxu0 0.0
    %765 = vmatpush1.msra.mxu0 0.0
    %766 = vmatprep.subr.mxu0 0.0
    %767 = vmatpush1.msra.mxu0 0.0
    %768 = vmatprep.subr.mxu0 0.0
    %769 = vmatpush1.msra.mxu0 0.0
    %770 = vmatprep.subr.mxu0 0.0
    %771 = vmatpush1.msra.mxu0 0.0
    %772 = vmatprep.subr.mxu0 0.0
    %773 = vmatpush1.msra.mxu0 0.0
    %774 = vmatprep.subr.mxu0 0.0
    %775 = vmatpush1.msra.mxu0 0.0
    %776 = vmatprep.subr.mxu0 0.0
    %777 = vmatpush1.msra.mxu0 0.0
    %778 = vmatprep.subr.mxu0 0.0
    %779 = vmatpush1.msra.mxu0 0.0
    %780 = vmatprep.subr.mxu0 0.0
    %781 = vmatpush1.msra.mxu0 0.0
    %782 = vmatprep.subr.mxu0 0.0
    %783 = vmatpush1.msra.mxu0 0.0
    %784 = vmatprep.subr.mxu0 0.0
    %785 = vmatpush1.msra.mxu0 0.0
    %786 = vmatprep.subr.mxu0 0.0
    %787 = vmatpush1.msra.mxu0 0.0
    %788 = vmatprep.subr.mxu0 0.0
    %789 = vmatpush1.msra.mxu0 0.0
    %790 = vmatprep.subr.mxu0 0.0
    %791 = vmatpush1.msra.mxu0 0.0
    %792 = vmatprep.subr.mxu0 0.0
    %793 = vmatpush1.msra.mxu0 0.0
    %794 = vmatprep.subr.mxu0 0.0
    %795 = vmatpush1.msra.mxu0 0.0
    %796 = vmatprep.subr.mxu0 0.0
    %797 = vmatpush1.msra.mxu0 0.0
    %798 = vmatprep.subr.mxu0 0.0
    %799 = vmatpush1.msra.mxu0 0.0
    %800 = vmatprep.subr.mxu0 0.0
    %801 = vmatpush1.msra.mxu0 0.0
    %802 = vmatprep.subr.mxu0 0.0
    %803 = vmatpush1.msra.mxu0 0.0
    %804 = vmatprep.subr.mxu0 0.0
    %805 = vmatpush1.msra.mxu0 0.0
    %806 = vmatprep.subr.mxu0 0.0
    %807 = vmatpush1.msra.mxu0 0.0
    %808 = vmatprep.subr.mxu0 0.0
    %809 = vmatpush1.msra.mxu0 0.0
    %810 = vmatprep.subr.mxu0 0.0
    %811 = vmatpush1.msra.mxu0 0.0
    %812 = vmatprep.subr.mxu0 0.0
    %813 = vmatpush1.msra.mxu0 0.0
    %814 = vmatprep.mubr.f32.mxu0 0.0
    %815 = vmatmul.mubr.f32.gmra.mrb[0].mxu0 %v745
    %v816 = vpop.f32.mrb[0].mxu0
    %v817 = vadd.f32 0.0, %v816
    %v818 = vpop.f32.mrb[0].mxu0
    %819 = vmatprep.mubr.f32.mxu0 0.0
    %820 = vmatmul.mubr.f32.gmra.mrb[0].mxu0 %v748
    %v821 = vpop.f32.mrb[0].mxu0
    %v822 = vadd.f32 0.0, %v821
    %v823 = vpop.f32.mrb[0].mxu0
    %824 = vdwg.mxu0
    %v826 = vsel %vm338, %v129, 0
    %v829 = vsel %vm338, %v130, 0
    %831 = vmatprep.subr.mxu0 0.0
    %832 = vmatpush1.msra.mxu0 %v113
    %833 = vmatprep.subr.mxu0 0.0
    %834 = vmatpush1.msra.mxu0 %v114
    %835 = vmatprep.subr.mxu0 0.0
    %836 = vmatpush1.msra.mxu0 0.0
    %837 = vmatprep.subr.mxu0 0.0
    %838 = vmatpush1.msra.mxu0 0.0
    %839 = vmatprep.subr.mxu0 0.0
    %840 = vmatpush1.msra.mxu0 0.0
    %841 = vmatprep.subr.mxu0 0.0
    %842 = vmatpush1.msra.mxu0 0.0
    %843 = vmatprep.subr.mxu0 0.0
    %844 = vmatpush1.msra.mxu0 0.0
    %845 = vmatprep.subr.mxu0 0.0
    %846 = vmatpush1.msra.mxu0 0.0
    %847 = vmatprep.subr.mxu0 0.0
    %848 = vmatpush1.msra.mxu0 0.0
    %849 = vmatprep.subr.mxu0 0.0
    %850 = vmatpush1.msra.mxu0 0.0
    %851 = vmatprep.subr.mxu0 0.0
    %852 = vmatpush1.msra.mxu0 0.0
    %853 = vmatprep.subr.mxu0 0.0
    %854 = vmatpush1.msra.mxu0 0.0
    %855 = vmatprep.subr.mxu0 0.0
    %856 = vmatpush1.msra.mxu0 0.0
    %857 = vmatprep.subr.mxu0 0.0
    %858 = vmatpush1.msra.mxu0 0.0
    %859 = vmatprep.subr.mxu0 0.0
    %860 = vmatpush1.msra.mxu0 0.0
    %861 = vmatprep.subr.mxu0 0.0
    %862 = vmatpush1.msra.mxu0 0.0
    %863 = vmatprep.subr.mxu0 0.0
    %864 = vmatpush1.msra.mxu0 0.0
    %865 = vmatprep.subr.mxu0 0.0
    %866 = vmatpush1.msra.mxu0 0.0
    %867 = vmatprep.subr.mxu0 0.0
    %868 = vmatpush1.msra.mxu0 0.0
    %869 = vmatprep.subr.mxu0 0.0
    %870 = vmatpush1.msra.mxu0 0.0
    %871 = vmatprep.subr.mxu0 0.0
    %872 = vmatpush1.msra.mxu0 0.0
    %873 = vmatprep.subr.mxu0 0.0
    %874 = vmatpush1.msra.mxu0 0.0
    %875 = vmatprep.subr.mxu0 0.0
    %876 = vmatpush1.msra.mxu0 0.0
    %877 = vmatprep.subr.mxu0 0.0
    %878 = vmatpush1.msra.mxu0 0.0
    %879 = vmatprep.subr.mxu0 0.0
    %880 = vmatpush1.msra.mxu0 0.0
    %881 = vmatprep.subr.mxu0 0.0
    %882 = vmatpush1.msra.mxu0 0.0
    %883 = vmatprep.subr.mxu0 0.0
    %884 = vmatpush1.msra.mxu0 0.0
    %885 = vmatprep.subr.mxu0 0.0
    %886 = vmatpush1.msra.mxu0 0.0
    %887 = vmatprep.subr.mxu0 0.0
    %888 = vmatpush1.msra.mxu0 0.0
    %889 = vmatprep.subr.mxu0 0.0
    %890 = vmatpush1.msra.mxu0 0.0
    %891 = vmatprep.subr.mxu0 0.0
    %892 = vmatpush1.msra.mxu0 0.0
    %893 = vmatprep.subr.mxu0 0.0
    %894 = vmatpush1.msra.mxu0 0.0
    %895 = vmatprep.mubr.f32.mxu0 0.0
    %896 = vmatmul.mubr.f32.gmra.mrb[0].mxu0 %v826
    %v897 = vpop.f32.mrb[0].mxu0
    %v898 = vadd.f32 0.0, %v897
    %v899 = vpop.f32.mrb[0].mxu0
    %900 = vmatprep.mubr.f32.mxu0 0.0
    %901 = vmatmul.mubr.f32.gmra.mrb[0].mxu0 %v829
    %v902 = vpop.f32.mrb[0].mxu0
    %v903 = vadd.f32 0.0, %v902
    %v904 = vpop.f32.mrb[0].mxu0
    %905 = vdwg.mxu0
    %v907 = vsel %vm338, %v131, 0
    %v910 = vsel %vm338, %v132, 0
    %912 = vmatprep.subr.mxu0 0.0
    %913 = vmatpush1.msra.mxu0 %v115
    %914 = vmatprep.subr.mxu0 0.0
    %915 = vmatpush1.msra.mxu0 %v116
    %916 = vmatprep.subr.mxu0 0.0
    %917 = vmatpush1.msra.mxu0 0.0
    %918 = vmatprep.subr.mxu0 0.0
    %919 = vmatpush1.msra.mxu0 0.0
    %920 = vmatprep.subr.mxu0 0.0
    %921 = vmatpush1.msra.mxu0 0.0
    %922 = vmatprep.subr.mxu0 0.0
    %923 = vmatpush1.msra.mxu0 0.0
    %924 = vmatprep.subr.mxu0 0.0
    %925 = vmatpush1.msra.mxu0 0.0
    %926 = vmatprep.subr.mxu0 0.0
    %927 = vmatpush1.msra.mxu0 0.0
    %928 = vmatprep.subr.mxu0 0.0
    %929 = vmatpush1.msra.mxu0 0.0
    %930 = vmatprep.subr.mxu0 0.0
    %931 = vmatpush1.msra.mxu0 0.0
    %932 = vmatprep.subr.mxu0 0.0
    %933 = vmatpush1.msra.mxu0 0.0
    %934 = vmatprep.subr.mxu0 0.0
    %935 = vmatpush1.msra.mxu0 0.0
    %936 = vmatprep.subr.mxu0 0.0
    %937 = vmatpush1.msra.mxu0 0.0
    %938 = vmatprep.subr.mxu0 0.0
    %939 = vmatpush1.msra.mxu0 0.0
    %940 = vmatprep.subr.mxu0 0.0
    %941 = vmatpush1.msra.mxu0 0.0
    %942 = vmatprep.subr.mxu0 0.0
    %943 = vmatpush1.msra.mxu0 0.0
    %944 = vmatprep.subr.mxu0 0.0
    %945 = vmatpush1.msra.mxu0 0.0
    %946 = vmatprep.subr.mxu0 0.0
    %947 = vmatpush1.msra.mxu0 0.0
    %948 = vmatprep.subr.mxu0 0.0
    %949 = vmatpush1.msra.mxu0 0.0
    %950 = vmatprep.subr.mxu0 0.0
    %951 = vmatpush1.msra.mxu0 0.0
    %952 = vmatprep.subr.mxu0 0.0
    %953 = vmatpush1.msra.mxu0 0.0
    %954 = vmatprep.subr.mxu0 0.0
    %955 = vmatpush1.msra.mxu0 0.0
    %956 = vmatprep.subr.mxu0 0.0
    %957 = vmatpush1.msra.mxu0 0.0
    %958 = vmatprep.subr.mxu0 0.0
    %959 = vmatpush1.msra.mxu0 0.0
    %960 = vmatprep.subr.mxu0 0.0
    %961 = vmatpush1.msra.mxu0 0.0
    %962 = vmatprep.subr.mxu0 0.0
    %963 = vmatpush1.msra.mxu0 0.0
    %964 = vmatprep.subr.mxu0 0.0
    %965 = vmatpush1.msra.mxu0 0.0
    %966 = vmatprep.subr.mxu0 0.0
    %967 = vmatpush1.msra.mxu0 0.0
    %968 = vmatprep.subr.mxu0 0.0
    %969 = vmatpush1.msra.mxu0 0.0
    %970 = vmatprep.subr.mxu0 0.0
    %971 = vmatpush1.msra.mxu0 0.0
    %972 = vmatprep.subr.mxu0 0.0
    %973 = vmatpush1.msra.mxu0 0.0
    %974 = vmatprep.subr.mxu0 0.0
    %975 = vmatpush1.msra.mxu0 0.0
    %976 = vmatprep.mubr.f32.mxu0 0.0
    %977 = vmatmul.mubr.f32.gmra.mrb[0].mxu0 %v907
    %v978 = vpop.f32.mrb[0].mxu0
    %v979 = vadd.f32 0.0, %v978
    %v980 = vpop.f32.mrb[0].mxu0
    %981 = vmatprep.mubr.f32.mxu0 0.0
    %982 = vmatmul.mubr.f32.gmra.mrb[0].mxu0 %v910
    %v983 = vpop.f32.mrb[0].mxu0
    %v984 = vadd.f32 0.0, %v983
    %v985 = vpop.f32.mrb[0].mxu0
    %986 = vdwg.mxu0
    %v987 = vsel %vm338, %v117, 0.0
    %988 = vadd.xlane.f32.xlu0 %v987
    %v989 = vpop.xlane.xlu0 %988
    %v990 = vsel %vm338, %v118, 0.0
    %991 = vadd.xlane.f32.xlu0 %v990
    %v992 = vpop.xlane.xlu0 %991
    %v993 = vsel %vm338, %v119, 0.0
    %994 = vadd.xlane.f32.xlu0 %v993
    %v995 = vpop.xlane.xlu0 %994
    %v996 = vsel %vm338, %v120, 0.0
    %997 = vadd.xlane.f32.xlu0 %v996
    %v998 = vpop.xlane.xlu0 %997
    %v999 = vsel %vm338, %v121, 0.0
    %1000 = vadd.xlane.f32.xlu0 %v999
    %v1001 = vpop.xlane.xlu0 %1000
    %v1002 = vsel %vm338, %v122, 0.0
    %1003 = vadd.xlane.f32.xlu0 %v1002
    %v1004 = vpop.xlane.xlu0 %1003
    %v1005 = vsel %vm338, %v123, 0.0
    %1006 = vadd.xlane.f32.xlu0 %v1005
    %v1007 = vpop.xlane.xlu0 %1006
    %v1008 = vsel %vm338, %v124, 0.0
    %1009 = vadd.xlane.f32.xlu0 %v1008
    %v1010 = vpop.xlane.xlu0 %1009
    %v1011 = vsel %vm338, %v125, 0.0
    %1012 = vadd.xlane.f32.xlu0 %v1011
    %v1013 = vpop.xlane.xlu0 %1012
    %v1014 = vsel %vm338, %v126, 0.0
    %1015 = vadd.xlane.f32.xlu0 %v1014
    %v1016 = vpop.xlane.xlu0 %1015
    %v1017 = vsel %vm338, %v127, 0.0
    %1018 = vadd.xlane.f32.xlu0 %v1017
    %v1019 = vpop.xlane.xlu0 %1018
    %v1020 = vsel %vm338, %v128, 0.0
    %1021 = vadd.xlane.f32.xlu0 %v1020
    %v1022 = vpop.xlane.xlu0 %1021
    %v1023 = vsel %vm338, %v129, 0.0
    %1024 = vadd.xlane.f32.xlu0 %v1023
    %v1025 = vpop.xlane.xlu0 %1024
    %v1026 = vsel %vm338, %v130, 0.0
    %1027 = vadd.xlane.f32.xlu0 %v1026
    %v1028 = vpop.xlane.xlu0 %1027
    %v1029 = vsel %vm338, %v131, 0.0
    %1030 = vadd.xlane.f32.xlu0 %v1029
    %v1031 = vpop.xlane.xlu0 %1030
    %v1032 = vsel %vm338, %v132, 0.0
    %1033 = vadd.xlane.f32.xlu0 %v1032
    %v1034 = vpop.xlane.xlu0 %1033
    %v1035 = vld [vmem:[#allocation8] sm:$0xff]
    %v1036 = vld [vmem:[#allocation8 + $0x8] sm:$0xff]
    %v1037 = vld [vmem:[#allocation8 + $0x10] sm:$0xff]
    %v1038 = vld [vmem:[#allocation8 + $0x18] sm:$0xff]
    %v1039 = vld [vmem:[#allocation8 + $0x20] sm:$0xff]
    %v1040 = vld [vmem:[#allocation8 + $0x28] sm:$0xff]
    %v1041 = vld [vmem:[#allocation8 + $0x30] sm:$0xff]
    %v1042 = vld [vmem:[#allocation8 + $0x38] sm:$0xff]
    %v1043 = vld [vmem:[#allocation8 + $0x40] sm:$0xff]
    %v1044 = vld [vmem:[#allocation8 + $0x48] sm:$0xff]
    %v1045 = vld [vmem:[#allocation8 + $0x50] sm:$0xff]
    %v1046 = vld [vmem:[#allocation8 + $0x58] sm:$0xff]
    %v1047 = vld [vmem:[#allocation8 + $0x60] sm:$0xff]
    %v1048 = vld [vmem:[#allocation8 + $0x68] sm:$0xff]
    %v1049 = vld [vmem:[#allocation8 + $0x70] sm:$0xff]
    %v1050 = vld [vmem:[#allocation8 + $0x78] sm:$0xff]
    %v1051 = vld [vmem:[#allocation8 + $0x80] sm:$0xff]
    %v1052 = vld [vmem:[#allocation8 + $0x88] sm:$0xff]
    %v1053 = vld [vmem:[#allocation8 + $0x90] sm:$0xff]
    %v1054 = vld [vmem:[#allocation8 + $0x98] sm:$0xff]
    %v1055 = vld [vmem:[#allocation8 + $0xa0] sm:$0xff]
    %v1056 = vld [vmem:[#allocation8 + $0xa8] sm:$0xff]
    %v1057 = vld [vmem:[#allocation8 + $0xb0] sm:$0xff]
    %v1058 = vld [vmem:[#allocation8 + $0xb8] sm:$0xff]
    %v1059 = vld [vmem:[#allocation8 + $0xc0] sm:$0xff]
    %v1060 = vld [vmem:[#allocation8 + $0xc8] sm:$0xff]
    %v1061 = vld [vmem:[#allocation8 + $0xd0] sm:$0xff]
    %v1062 = vld [vmem:[#allocation8 + $0xd8] sm:$0xff]
    %v1063 = vld [vmem:[#allocation8 + $0xe0] sm:$0xff]
    %v1064 = vld [vmem:[#allocation8 + $0xe8] sm:$0xff]
    %v1065 = vld [vmem:[#allocation8 + $0xf0] sm:$0xff]
    %v1066 = vld [vmem:[#allocation8 + $0xf8] sm:$0xff]
    %v1067 = vld [vmem:[#allocation8 + $0x100] sm:$0xff]
    %v1068 = vld [vmem:[#allocation8 + $0x108] sm:$0xff]
    %v1069 = vld [vmem:[#allocation8 + $0x110] sm:$0xff]
    %v1070 = vld [vmem:[#allocation8 + $0x118] sm:$0xff]
    %v1071 = vld [vmem:[#allocation8 + $0x120] sm:$0xff]
    %v1072 = vld [vmem:[#allocation8 + $0x128] sm:$0xff]
    %v1073 = vld [vmem:[#allocation8 + $0x130] sm:$0xff]
    %v1074 = vld [vmem:[#allocation8 + $0x138] sm:$0xff]
    %v1075 = vld [vmem:[#allocation8 + $0x140] sm:$0xff]
    %v1076 = vld [vmem:[#allocation8 + $0x148] sm:$0xff]
    %v1077 = vld [vmem:[#allocation8 + $0x150] sm:$0xff]
    %v1078 = vld [vmem:[#allocation8 + $0x158] sm:$0xff]
    %v1079 = vld [vmem:[#allocation8 + $0x160] sm:$0xff]
    %v1080 = vld [vmem:[#allocation8 + $0x168] sm:$0xff]
    %v1081 = vld [vmem:[#allocation8 + $0x170] sm:$0xff]
    %v1082 = vld [vmem:[#allocation8 + $0x178] sm:$0xff]
    %v1083 = vld [vmem:[%s5] sm:$0x7]
    %v1085 = vlaneseq
    %v1086 = vshrl.u32 %v1085, 7
    %v1087 = vsub.s32 0, %v1086
    %v1088 = vrot.slane %v1083, %v1087
    %v1089 = vlaneseq
    %v1090 = vshrl.u32 %v1089, 7
    %v1091 = vsub.s32 1, %v1090
    %v1092 = vrot.slane %v1083, %v1091
    %v1093 = vlaneseq
    %v1094 = vshrl.u32 %v1093, 7
    %v1095 = vsub.s32 2, %v1094
    %v1096 = vrot.slane %v1083, %v1095
    %v1100 = vmul.f32 %v989, %v1088
    %v1101 = vmul.f32 %v989, %v1092
    %v1102 = vmul.f32 %v989, %v1096
    %v1103 = vmul.f32 %v992, %v1088
    %v1104 = vmul.f32 %v992, %v1092
    %v1105 = vmul.f32 %v992, %v1096
    %v1106 = vmul.f32 %v995, %v1088
    %v1107 = vmul.f32 %v995, %v1092
    %v1108 = vmul.f32 %v995, %v1096
    %v1109 = vmul.f32 %v998, %v1088
    %v1110 = vmul.f32 %v998, %v1092
    %v1111 = vmul.f32 %v998, %v1096
    %v1112 = vmul.f32 %v1001, %v1088
    %v1113 = vmul.f32 %v1001, %v1092
    %v1114 = vmul.f32 %v1001, %v1096
    %v1115 = vmul.f32 %v1004, %v1088
    %v1116 = vmul.f32 %v1004, %v1092
    %v1117 = vmul.f32 %v1004, %v1096
    %v1118 = vmul.f32 %v1007, %v1088
    %v1119 = vmul.f32 %v1007, %v1092
    %v1120 = vmul.f32 %v1007, %v1096
    %v1121 = vmul.f32 %v1010, %v1088
    %v1122 = vmul.f32 %v1010, %v1092
    %v1123 = vmul.f32 %v1010, %v1096
    %v1124 = vmul.f32 %v1013, %v1088
    %v1125 = vmul.f32 %v1013, %v1092
    %v1126 = vmul.f32 %v1013, %v1096
    %v1127 = vmul.f32 %v1016, %v1088
    %v1128 = vmul.f32 %v1016, %v1092
    %v1129 = vmul.f32 %v1016, %v1096
    %v1130 = vmul.f32 %v1019, %v1088
    %v1131 = vmul.f32 %v1019, %v1092
    %v1132 = vmul.f32 %v1019, %v1096
    %v1133 = vmul.f32 %v1022, %v1088
    %v1134 = vmul.f32 %v1022, %v1092
    %v1135 = vmul.f32 %v1022, %v1096
    %v1136 = vmul.f32 %v1025, %v1088
    %v1137 = vmul.f32 %v1025, %v1092
    %v1138 = vmul.f32 %v1025, %v1096
    %v1139 = vmul.f32 %v1028, %v1088
    %v1140 = vmul.f32 %v1028, %v1092
    %v1141 = vmul.f32 %v1028, %v1096
    %v1142 = vmul.f32 %v1031, %v1088
    %v1143 = vmul.f32 %v1031, %v1092
    %v1144 = vmul.f32 %v1031, %v1096
    %v1145 = vmul.f32 %v1034, %v1088
    %v1146 = vmul.f32 %v1034, %v1092
    %v1147 = vmul.f32 %v1034, %v1096
    %1148 = vmatprep.subr.mxu0 %v1036
    %1149 = vmatpush1.msra.mxu0 %v1035
    %1150 = vmatprep.subr.mxu0 %v1039
    %1151 = vmatpush1.msra.mxu0 %v1038
    %1152 = vmatprep.subr.mxu0 %v1042
    %1153 = vmatpush1.msra.mxu0 %v1041
    %1154 = vmatprep.subr.mxu0 %v1045
    %1155 = vmatpush1.msra.mxu0 %v1044
    %1156 = vmatprep.subr.mxu0 %v1048
    %1157 = vmatpush1.msra.mxu0 %v1047
    %1158 = vmatprep.subr.mxu0 %v1051
    %1159 = vmatpush1.msra.mxu0 %v1050
    %1160 = vmatprep.subr.mxu0 %v1054
    %1161 = vmatpush1.msra.mxu0 %v1053
    %1162 = vmatprep.subr.mxu0 %v1057
    %1163 = vmatpush1.msra.mxu0 %v1056
    %1164 = vmatprep.subr.mxu0 %v1060
    %1165 = vmatpush1.msra.mxu0 %v1059
    %1166 = vmatprep.subr.mxu0 %v1063
    %1167 = vmatpush1.msra.mxu0 %v1062
    %1168 = vmatprep.subr.mxu0 %v1066
    %1169 = vmatpush1.msra.mxu0 %v1065
    %1170 = vmatprep.subr.mxu0 %v1069
    %1171 = vmatpush1.msra.mxu0 %v1068
    %1172 = vmatprep.subr.mxu0 %v1072
    %1173 = vmatpush1.msra.mxu0 %v1071
    %1174 = vmatprep.subr.mxu0 %v1075
    %1175 = vmatpush1.msra.mxu0 %v1074
    %1176 = vmatprep.subr.mxu0 %v1078
    %1177 = vmatpush1.msra.mxu0 %v1077
    %1178 = vmatprep.subr.mxu0 %v1081
    %1179 = vmatpush1.msra.mxu0 %v1080
    %1180 = vmatprep.subr.mxu0 0.0
    %1181 = vmatpush1.msra.mxu0 0.0
    %1182 = vmatprep.subr.mxu0 0.0
    %1183 = vmatpush1.msra.mxu0 0.0
    %1184 = vmatprep.subr.mxu0 0.0
    %1185 = vmatpush1.msra.mxu0 0.0
    %1186 = vmatprep.subr.mxu0 0.0
    %1187 = vmatpush1.msra.mxu0 0.0
    %1188 = vmatprep.subr.mxu0 0.0
    %1189 = vmatpush1.msra.mxu0 0.0
    %1190 = vmatprep.subr.mxu0 0.0
    %1191 = vmatpush1.msra.mxu0 0.0
    %1192 = vmatprep.subr.mxu0 0.0
    %1193 = vmatpush1.msra.mxu0 0.0
    %1194 = vmatprep.subr.mxu0 0.0
    %1195 = vmatpush1.msra.mxu0 0.0
    %1196 = vmatprep.subr.mxu0 0.0
    %1197 = vmatpush1.msra.mxu0 0.0
    %1198 = vmatprep.subr.mxu0 0.0
    %1199 = vmatpush1.msra.mxu0 0.0
    %1200 = vmatprep.subr.mxu0 0.0
    %1201 = vmatpush1.msra.mxu0 0.0
    %1202 = vmatprep.subr.mxu0 0.0
    %1203 = vmatpush1.msra.mxu0 0.0
    %1204 = vmatprep.subr.mxu0 0.0
    %1205 = vmatpush1.msra.mxu0 0.0
    %1206 = vmatprep.subr.mxu0 0.0
    %1207 = vmatpush1.msra.mxu0 0.0
    %1208 = vmatprep.subr.mxu0 0.0
    %1209 = vmatpush1.msra.mxu0 0.0
    %1210 = vmatprep.subr.mxu0 0.0
    %1211 = vmatpush1.msra.mxu0 0.0
    %1212 = vmatprep.mubr.f32.mxu0 0.0
    %1213 = vmatmul.mubr.f32.gmra.mrb[0].mxu0 %v412
    %v1214 = vpop.f32.mrb[0].mxu0
    %v1215 = vadd.f32 %v1100, %v1214
    %v1216 = vpop.f32.mrb[0].mxu0
    %v1217 = vadd.f32 %v1101, %v1216
    %1218 = vmatprep.mubr.f32.mxu0 0.0
    %1219 = vmatmul.mubr.f32.gmra.mrb[0].mxu0 %v417
    %v1220 = vpop.f32.mrb[0].mxu0
    %v1221 = vadd.f32 %v1103, %v1220
    %v1222 = vpop.f32.mrb[0].mxu0
    %v1223 = vadd.f32 %v1104, %v1222
    %1224 = vmatprep.mubr.f32.mxu0 0.0
    %1225 = vmatmul.mubr.f32.gmra.mrb[0].mxu0 %v493
    %v1226 = vpop.f32.mrb[0].mxu0
    %v1227 = vadd.f32 %v1106, %v1226
    %v1228 = vpop.f32.mrb[0].mxu0
    %v1229 = vadd.f32 %v1107, %v1228
    %1230 = vmatprep.mubr.f32.mxu0 0.0
    %1231 = vmatmul.mubr.f32.gmra.mrb[0].mxu0 %v498
    %v1232 = vpop.f32.mrb[0].mxu0
    %v1233 = vadd.f32 %v1109, %v1232
    %v1234 = vpop.f32.mrb[0].mxu0
    %v1235 = vadd.f32 %v1110, %v1234
    %1236 = vmatprep.mubr.f32.mxu0 0.0
    %1237 = vmatmul.mubr.f32.gmra.mrb[0].mxu0 %v574
    %v1238 = vpop.f32.mrb[0].mxu0
    %v1239 = vadd.f32 %v1112, %v1238
    %v1240 = vpop.f32.mrb[0].mxu0
    %v1241 = vadd.f32 %v1113, %v1240
    %1242 = vmatprep.mubr.f32.mxu0 0.0
    %1243 = vmatmul.mubr.f32.gmra.mrb[0].mxu0 %v579
    %v1244 = vpop.f32.mrb[0].mxu0
    %v1245 = vadd.f32 %v1115, %v1244
    %v1246 = vpop.f32.mrb[0].mxu0
    %v1247 = vadd.f32 %v1116, %v1246
    %1248 = vmatprep.mubr.f32.mxu0 0.0
    %1249 = vmatmul.mubr.f32.gmra.mrb[0].mxu0 %v655
    %v1250 = vpop.f32.mrb[0].mxu0
    %v1251 = vadd.f32 %v1118, %v1250
    %v1252 = vpop.f32.mrb[0].mxu0
    %v1253 = vadd.f32 %v1119, %v1252
    %1254 = vmatprep.mubr.f32.mxu0 0.0
    %1255 = vmatmul.mubr.f32.gmra.mrb[0].mxu0 %v660
    %v1256 = vpop.f32.mrb[0].mxu0
    %v1257 = vadd.f32 %v1121, %v1256
    %v1258 = vpop.f32.mrb[0].mxu0
    %v1259 = vadd.f32 %v1122, %v1258
    %1260 = vmatprep.mubr.f32.mxu0 0.0
    %1261 = vmatmul.mubr.f32.gmra.mrb[0].mxu0 %v736
    %v1262 = vpop.f32.mrb[0].mxu0
    %v1263 = vadd.f32 %v1124, %v1262
    %v1264 = vpop.f32.mrb[0].mxu0
    %v1265 = vadd.f32 %v1125, %v1264
    %1266 = vmatprep.mubr.f32.mxu0 0.0
    %1267 = vmatmul.mubr.f32.gmra.mrb[0].mxu0 %v741
    %v1268 = vpop.f32.mrb[0].mxu0
    %v1269 = vadd.f32 %v1127, %v1268
    %v1270 = vpop.f32.mrb[0].mxu0
    %v1271 = vadd.f32 %v1128, %v1270
    %1272 = vmatprep.mubr.f32.mxu0 0.0
    %1273 = vmatmul.mubr.f32.gmra.mrb[0].mxu0 %v817
    %v1274 = vpop.f32.mrb[0].mxu0
    %v1275 = vadd.f32 %v1130, %v1274
    %v1276 = vpop.f32.mrb[0].mxu0
    %v1277 = vadd.f32 %v1131, %v1276
    %1278 = vmatprep.mubr.f32.mxu0 0.0
    %1279 = vmatmul.mubr.f32.gmra.mrb[0].mxu0 %v822
    %v1280 = vpop.f32.mrb[0].mxu0
    %v1281 = vadd.f32 %v1133, %v1280
    %v1282 = vpop.f32.mrb[0].mxu0
    %v1283 = vadd.f32 %v1134, %v1282
    %1284 = vmatprep.mubr.f32.mxu0 0.0
    %1285 = vmatmul.mubr.f32.gmra.mrb[0].mxu0 %v898
    %v1286 = vpop.f32.mrb[0].mxu0
    %v1287 = vadd.f32 %v1136, %v1286
    %v1288 = vpop.f32.mrb[0].mxu0
    %v1289 = vadd.f32 %v1137, %v1288
    %1290 = vmatprep.mubr.f32.mxu0 0.0
    %1291 = vmatmul.mubr.f32.gmra.mrb[0].mxu0 %v903
    %v1292 = vpop.f32.mrb[0].mxu0
    %v1293 = vadd.f32 %v1139, %v1292
    %v1294 = vpop.f32.mrb[0].mxu0
    %v1295 = vadd.f32 %v1140, %v1294
    %1296 = vmatprep.mubr.f32.mxu0 0.0
    %1297 = vmatmul.mubr.f32.gmra.mrb[0].mxu0 %v979
    %v1298 = vpop.f32.mrb[0].mxu0
    %v1299 = vadd.f32 %v1142, %v1298
    %v1300 = vpop.f32.mrb[0].mxu0
    %v1301 = vadd.f32 %v1143, %v1300
    %1302 = vmatprep.mubr.f32.mxu0 0.0
    %1303 = vmatmul.mubr.f32.gmra.mrb[0].mxu0 %v984
    %v1304 = vpop.f32.mrb[0].mxu0
    %v1305 = vadd.f32 %v1145, %v1304
    %v1306 = vpop.f32.mrb[0].mxu0
    %v1307 = vadd.f32 %v1146, %v1306
    %1308 = vdwg.mxu0
    %1309 = vmatprep.subr.mxu0 0.0
    %1310 = vmatpush1.msra.mxu0 %v1037
    %1311 = vmatprep.subr.mxu0 0.0
    %1312 = vmatpush1.msra.mxu0 %v1040
    %1313 = vmatprep.subr.mxu0 0.0
    %1314 = vmatpush1.msra.mxu0 %v1043
    %1315 = vmatprep.subr.mxu0 0.0
    %1316 = vmatpush1.msra.mxu0 %v1046
    %1317 = vmatprep.subr.mxu0 0.0
    %1318 = vmatpush1.msra.mxu0 %v1049
    %1319 = vmatprep.subr.mxu0 0.0
    %1320 = vmatpush1.msra.mxu0 %v1052
    %1321 = vmatprep.subr.mxu0 0.0
    %1322 = vmatpush1.msra.mxu0 %v1055
    %1323 = vmatprep.subr.mxu0 0.0
    %1324 = vmatpush1.msra.mxu0 %v1058
    %1325 = vmatprep.subr.mxu0 0.0
    %1326 = vmatpush1.msra.mxu0 %v1061
    %1327 = vmatprep.subr.mxu0 0.0
    %1328 = vmatpush1.msra.mxu0 %v1064
    %1329 = vmatprep.subr.mxu0 0.0
    %1330 = vmatpush1.msra.mxu0 %v1067
    %1331 = vmatprep.subr.mxu0 0.0
    %1332 = vmatpush1.msra.mxu0 %v1070
    %1333 = vmatprep.subr.mxu0 0.0
    %1334 = vmatpush1.msra.mxu0 %v1073
    %1335 = vmatprep.subr.mxu0 0.0
    %1336 = vmatpush1.msra.mxu0 %v1076
    %1337 = vmatprep.subr.mxu0 0.0
    %1338 = vmatpush1.msra.mxu0 %v1079
    %1339 = vmatprep.subr.mxu0 0.0
    %1340 = vmatpush1.msra.mxu0 %v1082
    %1341 = vmatprep.subr.mxu0 0.0
    %1342 = vmatpush1.msra.mxu0 0.0
    %1343 = vmatprep.subr.mxu0 0.0
    %1344 = vmatpush1.msra.mxu0 0.0
    %1345 = vmatprep.subr.mxu0 0.0
    %1346 = vmatpush1.msra.mxu0 0.0
    %1347 = vmatprep.subr.mxu0 0.0
    %1348 = vmatpush1.msra.mxu0 0.0
    %1349 = vmatprep.subr.mxu0 0.0
    %1350 = vmatpush1.msra.mxu0 0.0
    %1351 = vmatprep.subr.mxu0 0.0
    %1352 = vmatpush1.msra.mxu0 0.0
    %1353 = vmatprep.subr.mxu0 0.0
    %1354 = vmatpush1.msra.mxu0 0.0
    %1355 = vmatprep.subr.mxu0 0.0
    %1356 = vmatpush1.msra.mxu0 0.0
    %1357 = vmatprep.subr.mxu0 0.0
    %1358 = vmatpush1.msra.mxu0 0.0
    %1359 = vmatprep.subr.mxu0 0.0
    %1360 = vmatpush1.msra.mxu0 0.0
    %1361 = vmatprep.subr.mxu0 0.0
    %1362 = vmatpush1.msra.mxu0 0.0
    %1363 = vmatprep.subr.mxu0 0.0
    %1364 = vmatpush1.msra.mxu0 0.0
    %1365 = vmatprep.subr.mxu0 0.0
    %1366 = vmatpush1.msra.mxu0 0.0
    %1367 = vmatprep.subr.mxu0 0.0
    %1368 = vmatpush1.msra.mxu0 0.0
    %1369 = vmatprep.subr.mxu0 0.0
    %1370 = vmatpush1.msra.mxu0 0.0
    %1371 = vmatprep.subr.mxu0 0.0
    %1372 = vmatpush1.msra.mxu0 0.0
    %1373 = vmatprep.mubr.f32.mxu0 0.0
    %1374 = vmatmul.mubr.f32.gmra.mrb[0].mxu0 %v412
    %v1375 = vpop.f32.mrb[0].mxu0
    %v1376 = vadd.f32 %v1102, %v1375
    %v1377 = vpop.f32.mrb[0].mxu0
    %1378 = vmatprep.mubr.f32.mxu0 0.0
    %1379 = vmatmul.mubr.f32.gmra.mrb[0].mxu0 %v417
    %v1380 = vpop.f32.mrb[0].mxu0
    %v1381 = vadd.f32 %v1105, %v1380
    %v1382 = vpop.f32.mrb[0].mxu0
    %1383 = vmatprep.mubr.f32.mxu0 0.0
    %1384 = vmatmul.mubr.f32.gmra.mrb[0].mxu0 %v493
    %v1385 = vpop.f32.mrb[0].mxu0
    %v1386 = vadd.f32 %v1108, %v1385
    %v1387 = vpop.f32.mrb[0].mxu0
    %1388 = vmatprep.mubr.f32.mxu0 0.0
    %1389 = vmatmul.mubr.f32.gmra.mrb[0].mxu0 %v498
    %v1390 = vpop.f32.mrb[0].mxu0
    %v1391 = vadd.f32 %v1111, %v1390
    %v1392 = vpop.f32.mrb[0].mxu0
    %1393 = vmatprep.mubr.f32.mxu0 0.0
    %1394 = vmatmul.mubr.f32.gmra.mrb[0].mxu0 %v574
    %v1395 = vpop.f32.mrb[0].mxu0
    %v1396 = vadd.f32 %v1114, %v1395
    %v1397 = vpop.f32.mrb[0].mxu0
    %1398 = vmatprep.mubr.f32.mxu0 0.0
    %1399 = vmatmul.mubr.f32.gmra.mrb[0].mxu0 %v579
    %v1400 = vpop.f32.mrb[0].mxu0
    %v1401 = vadd.f32 %v1117, %v1400
    %v1402 = vpop.f32.mrb[0].mxu0
    %1403 = vmatprep.mubr.f32.mxu0 0.0
    %1404 = vmatmul.mubr.f32.gmra.mrb[0].mxu0 %v655
    %v1405 = vpop.f32.mrb[0].mxu0
    %v1406 = vadd.f32 %v1120, %v1405
    %v1407 = vpop.f32.mrb[0].mxu0
    %1408 = vmatprep.mubr.f32.mxu0 0.0
    %1409 = vmatmul.mubr.f32.gmra.mrb[0].mxu0 %v660
    %v1410 = vpop.f32.mrb[0].mxu0
    %v1411 = vadd.f32 %v1123, %v1410
    %v1412 = vpop.f32.mrb[0].mxu0
    %1413 = vmatprep.mubr.f32.mxu0 0.0
    %1414 = vmatmul.mubr.f32.gmra.mrb[0].mxu0 %v736
    %v1415 = vpop.f32.mrb[0].mxu0
    %v1416 = vadd.f32 %v1126, %v1415
    %v1417 = vpop.f32.mrb[0].mxu0
    %1418 = vmatprep.mubr.f32.mxu0 0.0
    %1419 = vmatmul.mubr.f32.gmra.mrb[0].mxu0 %v741
    %v1420 = vpop.f32.mrb[0].mxu0
    %v1421 = vadd.f32 %v1129, %v1420
    %v1422 = vpop.f32.mrb[0].mxu0
    %1423 = vmatprep.mubr.f32.mxu0 0.0
    %1424 = vmatmul.mubr.f32.gmra.mrb[0].mxu0 %v817
    %v1425 = vpop.f32.mrb[0].mxu0
    %v1426 = vadd.f32 %v1132, %v1425
    %v1427 = vpop.f32.mrb[0].mxu0
    %1428 = vmatprep.mubr.f32.mxu0 0.0
    %1429 = vmatmul.mubr.f32.gmra.mrb[0].mxu0 %v822
    %v1430 = vpop.f32.mrb[0].mxu0
    %v1431 = vadd.f32 %v1135, %v1430
    %v1432 = vpop.f32.mrb[0].mxu0
    %1433 = vmatprep.mubr.f32.mxu0 0.0
    %1434 = vmatmul.mubr.f32.gmra.mrb[0].mxu0 %v898
    %v1435 = vpop.f32.mrb[0].mxu0
    %v1436 = vadd.f32 %v1138, %v1435
    %v1437 = vpop.f32.mrb[0].mxu0
    %1438 = vmatprep.mubr.f32.mxu0 0.0
    %1439 = vmatmul.mubr.f32.gmra.mrb[0].mxu0 %v903
    %v1440 = vpop.f32.mrb[0].mxu0
    %v1441 = vadd.f32 %v1141, %v1440
    %v1442 = vpop.f32.mrb[0].mxu0
    %1443 = vmatprep.mubr.f32.mxu0 0.0
    %1444 = vmatmul.mubr.f32.gmra.mrb[0].mxu0 %v979
    %v1445 = vpop.f32.mrb[0].mxu0
    %v1446 = vadd.f32 %v1144, %v1445
    %v1447 = vpop.f32.mrb[0].mxu0
    %1448 = vmatprep.mubr.f32.mxu0 0.0
    %1449 = vmatmul.mubr.f32.gmra.mrb[0].mxu0 %v984
    %v1450 = vpop.f32.mrb[0].mxu0
    %v1451 = vadd.f32 %v1147, %v1450
    %v1452 = vpop.f32.mrb[0].mxu0
    %1453 = vdwg.mxu0
    %v1454 = vld [vmem:[%s6] sm:$0x7]
    %v1456 = vlaneseq
    %v1457 = vshrl.u32 %v1456, 7
    %v1458 = vsub.s32 0, %v1457
    %v1459 = vrot.slane %v1454, %v1458
    %v1460 = vlaneseq
    %v1461 = vshrl.u32 %v1460, 7
    %v1462 = vsub.s32 1, %v1461
    %v1463 = vrot.slane %v1454, %v1462
    %v1464 = vlaneseq
    %v1465 = vshrl.u32 %v1464, 7
    %v1466 = vsub.s32 2, %v1465
    %v1467 = vrot.slane %v1454, %v1466
    %v1471 = vadd.f32 %v1215, %v1459
    %v1472 = vadd.f32 %v1217, %v1463
    %v1473 = vadd.f32 %v1376, %v1467
    %v1474 = vadd.f32 %v1221, %v1459
    %v1475 = vadd.f32 %v1223, %v1463
    %v1476 = vadd.f32 %v1381, %v1467
    %v1477 = vadd.f32 %v1227, %v1459
    %v1478 = vadd.f32 %v1229, %v1463
    %v1479 = vadd.f32 %v1386, %v1467
    %v1480 = vadd.f32 %v1233, %v1459
    %v1481 = vadd.f32 %v1235, %v1463
    %v1482 = vadd.f32 %v1391, %v1467
    %v1483 = vadd.f32 %v1239, %v1459
    %v1484 = vadd.f32 %v1241, %v1463
    %v1485 = vadd.f32 %v1396, %v1467
    %v1486 = vadd.f32 %v1245, %v1459
    %v1487 = vadd.f32 %v1247, %v1463
    %v1488 = vadd.f32 %v1401, %v1467
    %v1489 = vadd.f32 %v1251, %v1459
    %v1490 = vadd.f32 %v1253, %v1463
    %v1491 = vadd.f32 %v1406, %v1467
    %v1492 = vadd.f32 %v1257, %v1459
    %v1493 = vadd.f32 %v1259, %v1463
    %v1494 = vadd.f32 %v1411, %v1467
    %v1495 = vadd.f32 %v1263, %v1459
    %v1496 = vadd.f32 %v1265, %v1463
    %v1497 = vadd.f32 %v1416, %v1467
    %v1498 = vadd.f32 %v1269, %v1459
    %v1499 = vadd.f32 %v1271, %v1463
    %v1500 = vadd.f32 %v1421, %v1467
    %v1501 = vadd.f32 %v1275, %v1459
    %v1502 = vadd.f32 %v1277, %v1463
    %v1503 = vadd.f32 %v1426, %v1467
    %v1504 = vadd.f32 %v1281, %v1459
    %v1505 = vadd.f32 %v1283, %v1463
    %v1506 = vadd.f32 %v1431, %v1467
    %v1507 = vadd.f32 %v1287, %v1459
    %v1508 = vadd.f32 %v1289, %v1463
    %v1509 = vadd.f32 %v1436, %v1467
    %v1510 = vadd.f32 %v1293, %v1459
    %v1511 = vadd.f32 %v1295, %v1463
    %v1512 = vadd.f32 %v1441, %v1467
    %v1513 = vadd.f32 %v1299, %v1459
    %v1514 = vadd.f32 %v1301, %v1463
    %v1515 = vadd.f32 %v1446, %v1467
    %v1516 = vadd.f32 %v1305, %v1459
    %v1517 = vadd.f32 %v1307, %v1463
    %v1518 = vadd.f32 %v1451, %v1467
    %v1519 = vadd.f32 %v1471, %v244
    %v1520 = vadd.f32 %v1474, %v250
    %v1521 = vadd.f32 %v1477, %v256
    %v1522 = vadd.f32 %v1480, %v262
    %v1523 = vadd.f32 %v1483, %v268
    %v1524 = vadd.f32 %v1486, %v274
    %v1525 = vadd.f32 %v1489, %v280
    %v1526 = vadd.f32 %v1492, %v286
    %v1527 = vadd.f32 %v1495, %v292
    %v1528 = vadd.f32 %v1498, %v298
    %v1529 = vadd.f32 %v1501, %v304
    %v1530 = vadd.f32 %v1504, %v310
    %v1531 = vadd.f32 %v1507, %v316
    %v1532 = vadd.f32 %v1510, %v322
    %v1533 = vadd.f32 %v1513, %v328
    %v1534 = vadd.f32 %v1516, %v334
    %v1535 = vmul.f32 %v1519, 0.5
    %v1536 = vmul.f32 %v1520, 0.5
    %v1537 = vmul.f32 %v1521, 0.5
    %v1538 = vmul.f32 %v1522, 0.5
    %v1539 = vmul.f32 %v1523, 0.5
    %v1540 = vmul.f32 %v1524, 0.5
    %v1541 = vmul.f32 %v1525, 0.5
    %v1542 = vmul.f32 %v1526, 0.5
    %v1543 = vmul.f32 %v1527, 0.5
    %v1544 = vmul.f32 %v1528, 0.5
    %v1545 = vmul.f32 %v1529, 0.5
    %v1546 = vmul.f32 %v1530, 0.5
    %v1547 = vmul.f32 %v1531, 0.5
    %v1548 = vmul.f32 %v1532, 0.5
    %v1549 = vmul.f32 %v1533, 0.5
    %v1550 = vmul.f32 %v1534, 0.5
    %v1551 = vtanh.pop %v1535
    %v1552 = vtanh.pop %v1536
    %v1553 = vtanh.pop %v1537
    %v1554 = vtanh.pop %v1538
    %v1555 = vtanh.pop %v1539
    %v1556 = vtanh.pop %v1540
    %v1557 = vtanh.pop %v1541
    %v1558 = vtanh.pop %v1542
    %v1559 = vtanh.pop %v1543
    %v1560 = vtanh.pop %v1544
    %v1561 = vtanh.pop %v1545
    %v1562 = vtanh.pop %v1546
    %v1563 = vtanh.pop %v1547
    %v1564 = vtanh.pop %v1548
    %v1565 = vtanh.pop %v1549
    %v1566 = vtanh.pop %v1550
    %v1567 = vadd.f32 %v1551, 1.0
    %v1568 = vadd.f32 %v1552, 1.0
    %v1569 = vadd.f32 %v1553, 1.0
    %v1570 = vadd.f32 %v1554, 1.0
    %v1571 = vadd.f32 %v1555, 1.0
    %v1572 = vadd.f32 %v1556, 1.0
    %v1573 = vadd.f32 %v1557, 1.0
    %v1574 = vadd.f32 %v1558, 1.0
    %v1575 = vadd.f32 %v1559, 1.0
    %v1576 = vadd.f32 %v1560, 1.0
    %v1577 = vadd.f32 %v1561, 1.0
    %v1578 = vadd.f32 %v1562, 1.0
    %v1579 = vadd.f32 %v1563, 1.0
    %v1580 = vadd.f32 %v1564, 1.0
    %v1581 = vadd.f32 %v1565, 1.0
    %v1582 = vadd.f32 %v1566, 1.0
    %v1583 = vmul.f32 %v1567, 0.5
    %v1584 = vmul.f32 %v1568, 0.5
    %v1585 = vmul.f32 %v1569, 0.5
    %v1586 = vmul.f32 %v1570, 0.5
    %v1587 = vmul.f32 %v1571, 0.5
    %v1588 = vmul.f32 %v1572, 0.5
    %v1589 = vmul.f32 %v1573, 0.5
    %v1590 = vmul.f32 %v1574, 0.5
    %v1591 = vmul.f32 %v1575, 0.5
    %v1592 = vmul.f32 %v1576, 0.5
    %v1593 = vmul.f32 %v1577, 0.5
    %v1594 = vmul.f32 %v1578, 0.5
    %v1595 = vmul.f32 %v1579, 0.5
    %v1596 = vmul.f32 %v1580, 0.5
    %v1597 = vmul.f32 %v1581, 0.5
    %v1598 = vmul.f32 %v1582, 0.5
    %v1599 = vadd.f32 %v1472, %v246
    %v1600 = vadd.f32 %v1475, %v252
    %v1601 = vadd.f32 %v1478, %v258
    %v1602 = vadd.f32 %v1481, %v264
    %v1603 = vadd.f32 %v1484, %v270
    %v1604 = vadd.f32 %v1487, %v276
    %v1605 = vadd.f32 %v1490, %v282
    %v1606 = vadd.f32 %v1493, %v288
    %v1607 = vadd.f32 %v1496, %v294
    %v1608 = vadd.f32 %v1499, %v300
    %v1609 = vadd.f32 %v1502, %v306
    %v1610 = vadd.f32 %v1505, %v312
    %v1611 = vadd.f32 %v1508, %v318
    %v1612 = vadd.f32 %v1511, %v324
    %v1613 = vadd.f32 %v1514, %v330
    %v1614 = vadd.f32 %v1517, %v336
    %v1615 = vmul.f32 %v1599, 0.5
    %v1616 = vmul.f32 %v1600, 0.5
    %v1617 = vmul.f32 %v1601, 0.5
    %v1618 = vmul.f32 %v1602, 0.5
    %v1619 = vmul.f32 %v1603, 0.5
    %v1620 = vmul.f32 %v1604, 0.5
    %v1621 = vmul.f32 %v1605, 0.5
    %v1622 = vmul.f32 %v1606, 0.5
    %v1623 = vmul.f32 %v1607, 0.5
    %v1624 = vmul.f32 %v1608, 0.5
    %v1625 = vmul.f32 %v1609, 0.5
    %v1626 = vmul.f32 %v1610, 0.5
    %v1627 = vmul.f32 %v1611, 0.5
    %v1628 = vmul.f32 %v1612, 0.5
    %v1629 = vmul.f32 %v1613, 0.5
    %v1630 = vmul.f32 %v1614, 0.5
    %v1631 = vtanh.pop %v1615
    %v1632 = vtanh.pop %v1616
    %v1633 = vtanh.pop %v1617
    %v1634 = vtanh.pop %v1618
    %v1635 = vtanh.pop %v1619
    %v1636 = vtanh.pop %v1620
    %v1637 = vtanh.pop %v1621
    %v1638 = vtanh.pop %v1622
    %v1639 = vtanh.pop %v1623
    %v1640 = vtanh.pop %v1624
    %v1641 = vtanh.pop %v1625
    %v1642 = vtanh.pop %v1626
    %v1643 = vtanh.pop %v1627
    %v1644 = vtanh.pop %v1628
    %v1645 = vtanh.pop %v1629
    %v1646 = vtanh.pop %v1630
    %v1647 = vadd.f32 %v1631, 1.0
    %v1648 = vadd.f32 %v1632, 1.0
    %v1649 = vadd.f32 %v1633, 1.0
    %v1650 = vadd.f32 %v1634, 1.0
    %v1651 = vadd.f32 %v1635, 1.0
    %v1652 = vadd.f32 %v1636, 1.0
    %v1653 = vadd.f32 %v1637, 1.0
    %v1654 = vadd.f32 %v1638, 1.0
    %v1655 = vadd.f32 %v1639, 1.0
    %v1656 = vadd.f32 %v1640, 1.0
    %v1657 = vadd.f32 %v1641, 1.0
    %v1658 = vadd.f32 %v1642, 1.0
    %v1659 = vadd.f32 %v1643, 1.0
    %v1660 = vadd.f32 %v1644, 1.0
    %v1661 = vadd.f32 %v1645, 1.0
    %v1662 = vadd.f32 %v1646, 1.0
    %v1663 = vmul.f32 %v1647, 0.5
    %v1664 = vmul.f32 %v1648, 0.5
    %v1665 = vmul.f32 %v1649, 0.5
    %v1666 = vmul.f32 %v1650, 0.5
    %v1667 = vmul.f32 %v1651, 0.5
    %v1668 = vmul.f32 %v1652, 0.5
    %v1669 = vmul.f32 %v1653, 0.5
    %v1670 = vmul.f32 %v1654, 0.5
    %v1671 = vmul.f32 %v1655, 0.5
    %v1672 = vmul.f32 %v1656, 0.5
    %v1673 = vmul.f32 %v1657, 0.5
    %v1674 = vmul.f32 %v1658, 0.5
    %v1675 = vmul.f32 %v1659, 0.5
    %v1676 = vmul.f32 %v1660, 0.5
    %v1677 = vmul.f32 %v1661, 0.5
    %v1678 = vmul.f32 %v1662, 0.5
    %v1679 = vmul.f32 %v1663, %v101
    %v1680 = vmul.f32 %v1664, %v102
    %v1681 = vmul.f32 %v1665, %v103
    %v1682 = vmul.f32 %v1666, %v104
    %v1683 = vmul.f32 %v1667, %v105
    %v1684 = vmul.f32 %v1668, %v106
    %v1685 = vmul.f32 %v1669, %v107
    %v1686 = vmul.f32 %v1670, %v108
    %v1687 = vmul.f32 %v1671, %v109
    %v1688 = vmul.f32 %v1672, %v110
    %v1689 = vmul.f32 %v1673, %v111
    %v1690 = vmul.f32 %v1674, %v112
    %v1691 = vmul.f32 %v1675, %v113
    %v1692 = vmul.f32 %v1676, %v114
    %v1693 = vmul.f32 %v1677, %v115
    %v1694 = vmul.f32 %v1678, %v116
    %v1695 = vld [vmem:[#allocation10] sm:$0xff]
    %v1696 = vld [vmem:[#allocation10 + $0x8] sm:$0xff]
    %v1697 = vld [vmem:[#allocation10 + $0x10] sm:$0xff]
    %v1698 = vld [vmem:[#allocation10 + $0x18] sm:$0xff]
    %v1699 = vld [vmem:[#allocation10 + $0x20] sm:$0xff]
    %v1700 = vld [vmem:[#allocation10 + $0x28] sm:$0xff]
    %v1701 = vld [vmem:[#allocation10 + $0x30] sm:$0xff]
    %v1702 = vld [vmem:[#allocation10 + $0x38] sm:$0xff]
    %v1703 = vld [vmem:[#allocation10 + $0x40] sm:$0xff]
    %v1704 = vld [vmem:[#allocation10 + $0x48] sm:$0xff]
    %v1705 = vld [vmem:[#allocation10 + $0x50] sm:$0xff]
    %v1706 = vld [vmem:[#allocation10 + $0x58] sm:$0xff]
    %v1707 = vld [vmem:[#allocation10 + $0x60] sm:$0xff]
    %v1708 = vld [vmem:[#allocation10 + $0x68] sm:$0xff]
    %v1709 = vld [vmem:[#allocation10 + $0x70] sm:$0xff]
    %v1710 = vld [vmem:[#allocation10 + $0x78] sm:$0xff]
    %1711 = vmatprep.subr.mxu0 0.0
    %1712 = vmatpush1.msra.mxu0 %v1695
    %1713 = vmatprep.subr.mxu0 0.0
    %1714 = vmatpush1.msra.mxu0 %v1696
    %1715 = vmatprep.subr.mxu0 0.0
    %1716 = vmatpush1.msra.mxu0 %v1697
    %1717 = vmatprep.subr.mxu0 0.0
    %1718 = vmatpush1.msra.mxu0 %v1698
    %1719 = vmatprep.subr.mxu0 0.0
    %1720 = vmatpush1.msra.mxu0 %v1699
    %1721 = vmatprep.subr.mxu0 0.0
    %1722 = vmatpush1.msra.mxu0 %v1700
    %1723 = vmatprep.subr.mxu0 0.0
    %1724 = vmatpush1.msra.mxu0 %v1701
    %1725 = vmatprep.subr.mxu0 0.0
    %1726 = vmatpush1.msra.mxu0 %v1702
    %1727 = vmatprep.subr.mxu0 0.0
    %1728 = vmatpush1.msra.mxu0 %v1703
    %1729 = vmatprep.subr.mxu0 0.0
    %1730 = vmatpush1.msra.mxu0 %v1704
    %1731 = vmatprep.subr.mxu0 0.0
    %1732 = vmatpush1.msra.mxu0 %v1705
    %1733 = vmatprep.subr.mxu0 0.0
    %1734 = vmatpush1.msra.mxu0 %v1706
    %1735 = vmatprep.subr.mxu0 0.0
    %1736 = vmatpush1.msra.mxu0 %v1707
    %1737 = vmatprep.subr.mxu0 0.0
    %1738 = vmatpush1.msra.mxu0 %v1708
    %1739 = vmatprep.subr.mxu0 0.0
    %1740 = vmatpush1.msra.mxu0 %v1709
    %1741 = vmatprep.subr.mxu0 0.0
    %1742 = vmatpush1.msra.mxu0 %v1710
    %1743 = vmatprep.subr.mxu0 0.0
    %1744 = vmatpush1.msra.mxu0 0.0
    %1745 = vmatprep.subr.mxu0 0.0
    %1746 = vmatpush1.msra.mxu0 0.0
    %1747 = vmatprep.subr.mxu0 0.0
    %1748 = vmatpush1.msra.mxu0 0.0
    %1749 = vmatprep.subr.mxu0 0.0
    %1750 = vmatpush1.msra.mxu0 0.0
    %1751 = vmatprep.subr.mxu0 0.0
    %1752 = vmatpush1.msra.mxu0 0.0
    %1753 = vmatprep.subr.mxu0 0.0
    %1754 = vmatpush1.msra.mxu0 0.0
    %1755 = vmatprep.subr.mxu0 0.0
    %1756 = vmatpush1.msra.mxu0 0.0
    %1757 = vmatprep.subr.mxu0 0.0
    %1758 = vmatpush1.msra.mxu0 0.0
    %1759 = vmatprep.subr.mxu0 0.0
    %1760 = vmatpush1.msra.mxu0 0.0
    %1761 = vmatprep.subr.mxu0 0.0
    %1762 = vmatpush1.msra.mxu0 0.0
    %1763 = vmatprep.subr.mxu0 0.0
    %1764 = vmatpush1.msra.mxu0 0.0
    %1765 = vmatprep.subr.mxu0 0.0
    %1766 = vmatpush1.msra.mxu0 0.0
    %1767 = vmatprep.subr.mxu0 0.0
    %1768 = vmatpush1.msra.mxu0 0.0
    %1769 = vmatprep.subr.mxu0 0.0
    %1770 = vmatpush1.msra.mxu0 0.0
    %1771 = vmatprep.subr.mxu0 0.0
    %1772 = vmatpush1.msra.mxu0 0.0
    %1773 = vmatprep.subr.mxu0 0.0
    %1774 = vmatpush1.msra.mxu0 0.0
    %1775 = vmatprep.mubr.f32.mxu0 0.0
    %1776 = vmatmul.mubr.f32.gmra.mrb[0].mxu0 %v1679
    %v1777 = vpop.f32.mrb[0].mxu0
    %v1778 = vadd.f32 0.0, %v1777
    %v1779 = vpop.f32.mrb[0].mxu0
    %1780 = vmatprep.mubr.f32.mxu0 0.0
    %1781 = vmatmul.mubr.f32.gmra.mrb[0].mxu0 %v1680
    %v1782 = vpop.f32.mrb[0].mxu0
    %v1783 = vadd.f32 0.0, %v1782
    %v1784 = vpop.f32.mrb[0].mxu0
    %1785 = vmatprep.mubr.f32.mxu0 0.0
    %1786 = vmatmul.mubr.f32.gmra.mrb[0].mxu0 %v1681
    %v1787 = vpop.f32.mrb[0].mxu0
    %v1788 = vadd.f32 0.0, %v1787
    %v1789 = vpop.f32.mrb[0].mxu0
    %1790 = vmatprep.mubr.f32.mxu0 0.0
    %1791 = vmatmul.mubr.f32.gmra.mrb[0].mxu0 %v1682
    %v1792 = vpop.f32.mrb[0].mxu0
    %v1793 = vadd.f32 0.0, %v1792
    %v1794 = vpop.f32.mrb[0].mxu0
    %1795 = vmatprep.mubr.f32.mxu0 0.0
    %1796 = vmatmul.mubr.f32.gmra.mrb[0].mxu0 %v1683
    %v1797 = vpop.f32.mrb[0].mxu0
    %v1798 = vadd.f32 0.0, %v1797
    %v1799 = vpop.f32.mrb[0].mxu0
    %1800 = vmatprep.mubr.f32.mxu0 0.0
    %1801 = vmatmul.mubr.f32.gmra.mrb[0].mxu0 %v1684
    %v1802 = vpop.f32.mrb[0].mxu0
    %v1803 = vadd.f32 0.0, %v1802
    %v1804 = vpop.f32.mrb[0].mxu0
    %1805 = vmatprep.mubr.f32.mxu0 0.0
    %1806 = vmatmul.mubr.f32.gmra.mrb[0].mxu0 %v1685
    %v1807 = vpop.f32.mrb[0].mxu0
    %v1808 = vadd.f32 0.0, %v1807
    %v1809 = vpop.f32.mrb[0].mxu0
    %1810 = vmatprep.mubr.f32.mxu0 0.0
    %1811 = vmatmul.mubr.f32.gmra.mrb[0].mxu0 %v1686
    %v1812 = vpop.f32.mrb[0].mxu0
    %v1813 = vadd.f32 0.0, %v1812
    %v1814 = vpop.f32.mrb[0].mxu0
    %1815 = vmatprep.mubr.f32.mxu0 0.0
    %1816 = vmatmul.mubr.f32.gmra.mrb[0].mxu0 %v1687
    %v1817 = vpop.f32.mrb[0].mxu0
    %v1818 = vadd.f32 0.0, %v1817
    %v1819 = vpop.f32.mrb[0].mxu0
    %1820 = vmatprep.mubr.f32.mxu0 0.0
    %1821 = vmatmul.mubr.f32.gmra.mrb[0].mxu0 %v1688
    %v1822 = vpop.f32.mrb[0].mxu0
    %v1823 = vadd.f32 0.0, %v1822
    %v1824 = vpop.f32.mrb[0].mxu0
    %1825 = vmatprep.mubr.f32.mxu0 0.0
    %1826 = vmatmul.mubr.f32.gmra.mrb[0].mxu0 %v1689
    %v1827 = vpop.f32.mrb[0].mxu0
    %v1828 = vadd.f32 0.0, %v1827
    %v1829 = vpop.f32.mrb[0].mxu0
    %1830 = vmatprep.mubr.f32.mxu0 0.0
    %1831 = vmatmul.mubr.f32.gmra.mrb[0].mxu0 %v1690
    %v1832 = vpop.f32.mrb[0].mxu0
    %v1833 = vadd.f32 0.0, %v1832
    %v1834 = vpop.f32.mrb[0].mxu0
    %1835 = vmatprep.mubr.f32.mxu0 0.0
    %1836 = vmatmul.mubr.f32.gmra.mrb[0].mxu0 %v1691
    %v1837 = vpop.f32.mrb[0].mxu0
    %v1838 = vadd.f32 0.0, %v1837
    %v1839 = vpop.f32.mrb[0].mxu0
    %1840 = vmatprep.mubr.f32.mxu0 0.0
    %1841 = vmatmul.mubr.f32.gmra.mrb[0].mxu0 %v1692
    %v1842 = vpop.f32.mrb[0].mxu0
    %v1843 = vadd.f32 0.0, %v1842
    %v1844 = vpop.f32.mrb[0].mxu0
    %1845 = vmatprep.mubr.f32.mxu0 0.0
    %1846 = vmatmul.mubr.f32.gmra.mrb[0].mxu0 %v1693
    %v1847 = vpop.f32.mrb[0].mxu0
    %v1848 = vadd.f32 0.0, %v1847
    %v1849 = vpop.f32.mrb[0].mxu0
    %1850 = vmatprep.mubr.f32.mxu0 0.0
    %1851 = vmatmul.mubr.f32.gmra.mrb[0].mxu0 %v1694
    %v1852 = vpop.f32.mrb[0].mxu0
    %v1853 = vadd.f32 0.0, %v1852
    %v1854 = vpop.f32.mrb[0].mxu0
    %1855 = vdwg.mxu0
    %v1856 = vadd.f32 %v1473, %v1778
    %v1857 = vadd.f32 %v1476, %v1783
    %v1858 = vadd.f32 %v1479, %v1788
    %v1859 = vadd.f32 %v1482, %v1793
    %v1860 = vadd.f32 %v1485, %v1798
    %v1861 = vadd.f32 %v1488, %v1803
    %v1862 = vadd.f32 %v1491, %v1808
    %v1863 = vadd.f32 %v1494, %v1813
    %v1864 = vadd.f32 %v1497, %v1818
    %v1865 = vadd.f32 %v1500, %v1823
    %v1866 = vadd.f32 %v1503, %v1828
    %v1867 = vadd.f32 %v1506, %v1833
    %v1868 = vadd.f32 %v1509, %v1838
    %v1869 = vadd.f32 %v1512, %v1843
    %v1870 = vadd.f32 %v1515, %v1848
    %v1871 = vadd.f32 %v1518, %v1853
    %v1872 = vld [vmem:[%s8] sm:$0x1]
    %v1874 = vlaneseq
    %v1875 = vshrl.u32 %v1874, 7
    %v1876 = vsub.s32 0, %v1875
    %v1877 = vrot.slane %v1872, %v1876
    %v1879 = vadd.f32 %v1856, %v1877
    %v1880 = vadd.f32 %v1857, %v1877
    %v1881 = vadd.f32 %v1858, %v1877
    %v1882 = vadd.f32 %v1859, %v1877
    %v1883 = vadd.f32 %v1860, %v1877
    %v1884 = vadd.f32 %v1861, %v1877
    %v1885 = vadd.f32 %v1862, %v1877
    %v1886 = vadd.f32 %v1863, %v1877
    %v1887 = vadd.f32 %v1864, %v1877
    %v1888 = vadd.f32 %v1865, %v1877
    %v1889 = vadd.f32 %v1866, %v1877
    %v1890 = vadd.f32 %v1867, %v1877
    %v1891 = vadd.f32 %v1868, %v1877
    %v1892 = vadd.f32 %v1869, %v1877
    %v1893 = vadd.f32 %v1870, %v1877
    %v1894 = vadd.f32 %v1871, %v1877
    %v1895 = vtanh.pop %v1879
    %v1896 = vtanh.pop %v1880
    %v1897 = vtanh.pop %v1881
    %v1898 = vtanh.pop %v1882
    %v1899 = vtanh.pop %v1883
    %v1900 = vtanh.pop %v1884
    %v1901 = vtanh.pop %v1885
    %v1902 = vtanh.pop %v1886
    %v1903 = vtanh.pop %v1887
    %v1904 = vtanh.pop %v1888
    %v1905 = vtanh.pop %v1889
    %v1906 = vtanh.pop %v1890
    %v1907 = vtanh.pop %v1891
    %v1908 = vtanh.pop %v1892
    %v1909 = vtanh.pop %v1893
    %v1910 = vtanh.pop %v1894
    %v1911 = vsub.f32 1.0, %v1583
    %v1912 = vsub.f32 1.0, %v1584
    %v1913 = vsub.f32 1.0, %v1585
    %v1914 = vsub.f32 1.0, %v1586
    %v1915 = vsub.f32 1.0, %v1587
    %v1916 = vsub.f32 1.0, %v1588
    %v1917 = vsub.f32 1.0, %v1589
    %v1918 = vsub.f32 1.0, %v1590
    %v1919 = vsub.f32 1.0, %v1591
    %v1920 = vsub.f32 1.0, %v1592
    %v1921 = vsub.f32 1.0, %v1593
    %v1922 = vsub.f32 1.0, %v1594
    %v1923 = vsub.f32 1.0, %v1595
    %v1924 = vsub.f32 1.0, %v1596
    %v1925 = vsub.f32 1.0, %v1597
    %v1926 = vsub.f32 1.0, %v1598
    %v1927 = vmul.f32 %v1911, %v101
    %v1928 = vmul.f32 %v1912, %v102
    %v1929 = vmul.f32 %v1913, %v103
    %v1930 = vmul.f32 %v1914, %v104
    %v1931 = vmul.f32 %v1915, %v105
    %v1932 = vmul.f32 %v1916, %v106
    %v1933 = vmul.f32 %v1917, %v107
    %v1934 = vmul.f32 %v1918, %v108
    %v1935 = vmul.f32 %v1919, %v109
    %v1936 = vmul.f32 %v1920, %v110
    %v1937 = vmul.f32 %v1921, %v111
    %v1938 = vmul.f32 %v1922, %v112
    %v1939 = vmul.f32 %v1923, %v113
    %v1940 = vmul.f32 %v1924, %v114
    %v1941 = vmul.f32 %v1925, %v115
    %v1942 = vmul.f32 %v1926, %v116
    %v1943 = vmul.f32 %v1583, %v1895
    %v1944 = vmul.f32 %v1584, %v1896
    %v1945 = vmul.f32 %v1585, %v1897
    %v1946 = vmul.f32 %v1586, %v1898
    %v1947 = vmul.f32 %v1587, %v1899
    %v1948 = vmul.f32 %v1588, %v1900
    %v1949 = vmul.f32 %v1589, %v1901
    %v1950 = vmul.f32 %v1590, %v1902
    %v1951 = vmul.f32 %v1591, %v1903
    %v1952 = vmul.f32 %v1592, %v1904
    %v1953 = vmul.f32 %v1593, %v1905
    %v1954 = vmul.f32 %v1594, %v1906
    %v1955 = vmul.f32 %v1595, %v1907
    %v1956 = vmul.f32 %v1596, %v1908
    %v1957 = vmul.f32 %v1597, %v1909
    %v1958 = vmul.f32 %v1598, %v1910
    %v1959 = vadd.f32 %v1927, %v1943
    %v1960 = vadd.f32 %v1928, %v1944
    %v1961 = vadd.f32 %v1929, %v1945
    %v1962 = vadd.f32 %v1930, %v1946
    %v1963 = vadd.f32 %v1931, %v1947
    %v1964 = vadd.f32 %v1932, %v1948
    %v1965 = vadd.f32 %v1933, %v1949
    %v1966 = vadd.f32 %v1934, %v1950
    %v1967 = vadd.f32 %v1935, %v1951
    %v1968 = vadd.f32 %v1936, %v1952
    %v1969 = vadd.f32 %v1937, %v1953
    %v1970 = vadd.f32 %v1938, %v1954
    %v1971 = vadd.f32 %v1939, %v1955
    %v1972 = vadd.f32 %v1940, %v1956
    %v1973 = vadd.f32 %v1941, %v1957
    %v1974 = vadd.f32 %v1942, %v1958
    %1975 = vst [vmem:[#allocation11] sm:$0xff] %v1959
    %1976 = vst [vmem:[#allocation11 + $0x8] sm:$0xff] %v1960
    %1977 = vst [vmem:[#allocation11 + $0x10] sm:$0xff] %v1961
    %1978 = vst [vmem:[#allocation11 + $0x18] sm:$0xff] %v1962
    %1979 = vst [vmem:[#allocation11 + $0x20] sm:$0xff] %v1963
    %1980 = vst [vmem:[#allocation11 + $0x28] sm:$0xff] %v1964
    %1981 = vst [vmem:[#allocation11 + $0x30] sm:$0xff] %v1965
    %1982 = vst [vmem:[#allocation11 + $0x38] sm:$0xff] %v1966
    %1983 = vst [vmem:[#allocation11 + $0x40] sm:$0xff] %v1967
    %1984 = vst [vmem:[#allocation11 + $0x48] sm:$0xff] %v1968
    %1985 = vst [vmem:[#allocation11 + $0x50] sm:$0xff] %v1969
    %1986 = vst [vmem:[#allocation11 + $0x58] sm:$0xff] %v1970
    %1987 = vst [vmem:[#allocation11 + $0x60] sm:$0xff] %v1971
    %1988 = vst [vmem:[#allocation11 + $0x68] sm:$0xff] %v1972
    %1989 = vst [vmem:[#allocation11 + $0x70] sm:$0xff] %v1973
    %1990 = vst [vmem:[#allocation11 + $0x78] sm:$0xff] %v1974
    // Predicated region
    $region58: #{tpu_custom_call.1} parent=1 // pred_check
      _
    $region59: #{tpu_custom_call.1} parent=1 // pred_check_branch
      %1992 = sbr.rel (0) target = $region61
    $region60: #{tpu_custom_call.1} parent=1 // pred_region
      %s1994 = ssub.s32 2048, 2048
      %1995 = vsyncadd [#allocation4], %s1994
      %s1996 = sshll.u32 [#allocation11], 4
      %s1997 = int_to_ptr.vmem [resolvable:$true] %s1996
      %2002 = dma.vmem_to_hbm [thread:$0]  %s1997, 2048, %s9, [#allocation4], 128, 128, 8
    $region61: #{tpu_custom_call.1} parent=1 // pred_fallthru
      _
    // Predicated region
    $region62: #{tpu_custom_call.1} parent=1 // pred_check
      _
    $region63: #{tpu_custom_call.1} parent=1 // pred_check_branch
      %2004 = sbr.rel (0) target = $region65
    $region64: #{tpu_custom_call.1} parent=1 // pred_region
      %2005 = dma.done [#allocation4], 2048
    $region65: #{tpu_custom_call.1} parent=1 // pred_fallthru
      _
    %2006 = vsyncpa [#allocation3], 1
    %2007 = vsyncpa [#allocation6], 1
    %2008 = vsyncpa [#allocation9], 1
    %2009 = vsyncpa [#allocation4], 1

</llo_original>
